<compile_context>
chip_gen: v6e
topology: v6e:2x2x1
jax: 0.10.0
libtpu: 0.0.40
codegen_flags: <defaults>
</compile_context>

<pallas_src>
import functools

import numpy as np
import jax
import jax.numpy as jnp
from jax import lax
from jax.experimental import pallas as pl
from jax.experimental.pallas import tpu as pltpu

_LN_EPS = 1e-5
_INV_SQRT2 = 0.7071067811865476


# ----------------------------------------------------------------------------
# Host-side layout helpers (mask construction + pure-JAX reference only)
# ----------------------------------------------------------------------------
def _window_partition(x, ws):
    B, H, W, C = x.shape
    x = x.reshape(B, H // ws, ws, W // ws, ws, C)
    return x.transpose(0, 1, 3, 2, 4, 5).reshape(-1, ws, ws, C)


def _window_reverse(windows, ws, H, W):
    B = windows.shape[0] // ((H // ws) * (W // ws))
    x = windows.reshape(B, H // ws, W // ws, ws, ws, -1)
    return x.transpose(0, 1, 3, 2, 4, 5).reshape(B, H, W, -1)


def _relative_position_index(ws):
    coords = np.stack(np.meshgrid(np.arange(ws), np.arange(ws), indexing="ij"))
    coords_flat = coords.reshape(2, -1)
    rel = coords_flat[:, :, None] - coords_flat[:, None, :]
    rel = rel.transpose(1, 2, 0).copy()
    rel[:, :, 0] += ws - 1
    rel[:, :, 1] += ws - 1
    rel[:, :, 0] *= 2 * ws - 1
    return rel.sum(-1)  # (N, N)


def _create_attn_mask(H, W, ws, shift):
    """Shift-window mask, identical to Swin's BasicLayer.create_mask."""
    Hp = int(np.ceil(H / ws)) * ws
    Wp = int(np.ceil(W / ws)) * ws
    img_mask = np.zeros((1, Hp, Wp, 1), np.float32)
    cnt = 0
    for h in (slice(0, -ws), slice(-ws, -shift), slice(-shift, None)):
        for w in (slice(0, -ws), slice(-ws, -shift), slice(-shift, None)):
            img_mask[:, h, w, :] = cnt
            cnt += 1
    mw = _window_partition(jnp.asarray(img_mask), ws).reshape(-1, ws * ws)
    am = mw[:, None, :] - mw[:, :, None]
    return jnp.where(am != 0, -100.0, 0.0).astype(jnp.float32)  # (nW, N, N)


def _pick_row_tile(m):
    # Prefer 128-row tiles: enough to feed the MXU and amortize the ~0.35us/step
    # overhead, while keeping >=2 grid steps per TensorCore on v7x at small M.
    for t in (128, 256, 64, 32, 16, 8):
        if m % t == 0:
            return t
    raise ValueError("token count (B*H*W) must be a multiple of 8")


# ----------------------------------------------------------------------------
# In-kernel helpers
# ----------------------------------------------------------------------------
def _roll_static(x, shift, axis):
    """jnp.roll with a static shift via slice + concat (guaranteed Mosaic lowering)."""
    n = x.shape[axis]
    s = shift % n
    if s == 0:
        return x
    return jnp.concatenate([lax.slice_in_dim(x, n - s, n, axis=axis),
                            lax.slice_in_dim(x, 0, n - s, axis=axis)], axis=axis)


# ----------------------------------------------------------------------------
# Kernel 1: fused norm1 + shift + window partition + window attention
#           + window reverse + un-shift + first residual.   Grid: one image / step.
# ----------------------------------------------------------------------------
def _fused_swin_attn_kernel(x_ref, g1_ref, b1_ref, wqkv_ref, bqkv_ref,
                            wproj_ref, bproj_ref, rbias_ref, mask_ref, o_ref,
                            *, num_heads, ws, shift, pad_b, pad_r, use_mask):
    _, H, W, C = x_ref.shape
    Hp, Wp = H + pad_b, W + pad_r
    nWh, nWw = Hp // ws, Wp // ws
    nW, N = nWh * nWw, ws * ws
    hd = C // num_heads
    scale = float(hd) ** -0.5

    x = x_ref[0].astype(jnp.float32)                                  # (H, W, C) shortcut

    # --- norm1 (fused prologue) ---
    mean = jnp.mean(x, axis=-1, keepdims=True)
    xc = x - mean
    var = jnp.mean(xc * xc, axis=-1, keepdims=True)
    xn = xc * lax.rsqrt(var + _LN_EPS) * g1_ref[0] + b1_ref[0]

    # --- zero-pad to window multiples (post-norm zeros, matches torch F.pad) ---
    if pad_r:
        xn = jnp.concatenate([xn, jnp.zeros((H, pad_r, C), jnp.float32)], axis=1)
    if pad_b:
        xn = jnp.concatenate([xn, jnp.zeros((pad_b, Wp, C), jnp.float32)], axis=0)

    # --- cyclic shift (static roll; stays in VMEM) ---
    if shift > 0:
        xn = _roll_static(_roll_static(xn, -shift, 0), -shift, 1)

    # --- window partition: tile-aligned static slices, no transposes ---
    xw = jnp.concatenate(
        [xn[hi * ws:(hi + 1) * ws, wi * ws:(wi + 1) * ws, :].reshape(N, C)
         for hi in range(nWh) for wi in range(nWw)], axis=0)          # (nW*N, C)

    # --- qkv projection: bf16 operands, f32 accumulation on the MXU ---
    qkv = jnp.dot(xw.astype(jnp.bfloat16), wqkv_ref[...],
                  preferred_element_type=jnp.float32) + bqkv_ref[0]   # (nW*N, 3C)

    def split_heads(t):          # (nW*N, nh*hd) -> (nh*nW, N, hd), heads on the batch dim
        return jnp.stack([t[:, h * hd:(h + 1) * hd] for h in range(num_heads)],
                         axis=0).reshape(num_heads * nW, N, hd)

    q = split_heads((qkv[:, 0 * C:1 * C] * scale).astype(jnp.bfloat16))
    k = split_heads(qkv[:, 1 * C:2 * C].astype(jnp.bfloat16))
    v = split_heads(qkv[:, 2 * C:3 * C].astype(jnp.bfloat16))

    # --- all (head x window) score matmuls as ONE batched contraction ---
    s = jnp.einsum("bqd,bkd->bqk", q, k, preferred_element_type=jnp.float32)
    s = s.reshape(num_heads, nW, N, N)
    s = s + rbias_ref[...][:, None, :, :]                 # relative-position bias
    if use_mask:
        s = s + mask_ref[...][None, :, :, :]              # SW-MSA shift mask

    # --- numerically-stable softmax (exp / reciprocal on the EUP slot) ---
    s = s - jnp.max(s, axis=-1, keepdims=True)
    p = jnp.exp(s)
    p = p * pl.reciprocal(jnp.sum(p, axis=-1, keepdims=True), approx=True)
    p = p.reshape(num_heads * nW, N, N).astype(jnp.bfloat16)

    # --- context: ONE batched contraction, then merge heads back onto lanes ---
    ctx = jnp.einsum("bqk,bkd->bqd", p, v, preferred_element_type=jnp.float32)
    ctx = ctx.astype(jnp.bfloat16).reshape(num_heads, nW * N, hd)
    ctx = jnp.concatenate([ctx[h] for h in range(num_heads)], axis=-1)  # (nW*N, C)

    # --- output projection ---
    attn = jnp.dot(ctx, wproj_ref[...], preferred_element_type=jnp.float32) + bproj_ref[0]

    # --- window reverse (tile-aligned concats, no transposes) ---
    attn = attn.reshape(nW, ws, ws, C)
    rows = [jnp.concatenate([attn[hi * nWw + wi] for wi in range(nWw)], axis=1)
            for hi in range(nWh)]
    y = jnp.concatenate(rows, axis=0)                                  # (Hp, Wp, C)

    # --- reverse shift, crop padding, first residual ---
    if shift > 0:
        y = _roll_static(_roll_static(y, shift, 0), shift, 1)
    if pad_b or pad_r:
        y = y[:H, :W, :]
    o_ref[0] = (x + y).astype(o_ref.dtype)


def _fused_attn_block_pallas(x4, g1, b1, wqkv, bqkv, wproj, bproj, rel_bias, mask,
                             *, num_heads, ws, shift, pad_b, pad_r, use_mask):
    B, H, W, C = x4.shape
    Hp, Wp = H + pad_b, W + pad_r
    nW = (Hp // ws) * (Wp // ws)
    N = ws * ws
    hd = C // num_heads

    kern = functools.partial(_fused_swin_attn_kernel, num_heads=num_heads, ws=ws,
                             shift=shift, pad_b=pad_b, pad_r=pad_r, use_mask=use_mask)
    T = B * Hp * Wp
    flops = (2 * T * C * 3 * C                       # qkv projection
             + 4 * B * nW * num_heads * N * N * hd   # scores + context
             + 2 * T * C * C)                        # output projection
    bytes_accessed = (4 * 2 * B * H * W * C + 2 * (C * 3 * C + C * C)
                      + 4 * (num_heads + nW) * N * N + 4 * (3 * C + C + 4 * C))

    return pl.pallas_call(
        kern,
        out_shape=jax.ShapeDtypeStruct((B, H, W, C), x4.dtype),
        grid_spec=pltpu.PrefetchScalarGridSpec(
            num_scalar_prefetch=0,
            grid=(B,),
            in_specs=[
                pl.BlockSpec((1, H, W, C), lambda b: (b, 0, 0, 0)),       # image b
                pl.BlockSpec((1, C), lambda b: (0, 0)),                   # norm1 gamma
                pl.BlockSpec((1, C), lambda b: (0, 0)),                   # norm1 beta
                pl.BlockSpec((C, 3 * C), lambda b: (0, 0)),               # qkv weight (bf16)
                pl.BlockSpec((1, 3 * C), lambda b: (0, 0)),               # qkv bias
                pl.BlockSpec((C, C), lambda b: (0, 0)),                   # proj weight (bf16)
                pl.BlockSpec((1, C), lambda b: (0, 0)),                   # proj bias
                pl.BlockSpec((num_heads, N, N), lambda b: (0, 0, 0)),     # rel-pos bias
                pl.BlockSpec((nW, N, N), lambda b: (0, 0, 0)),            # shift mask
            ],
            out_specs=pl.BlockSpec((1, H, W, C), lambda b: (b, 0, 0, 0)),
        ),
        compiler_params=pltpu.CompilerParams(dimension_semantics=("parallel",)),
        cost_estimate=pl.CostEstimate(flops=flops,
                                      transcendentals=B * nW * num_heads * N * N,
                                      bytes_accessed=bytes_accessed),
    )(x4, g1.reshape(1, C), b1.reshape(1, C), wqkv, bqkv.reshape(1, 3 * C),
      wproj, bproj.reshape(1, C), rel_bias, mask)


# ----------------------------------------------------------------------------
# Kernel 2: fused norm2 + MLP (fc1 -> exact GELU -> fc2) + residual, row-tiled
# ----------------------------------------------------------------------------
def _res_ln_mlp_kernel(y_ref, g_ref, b_ref, w1_ref, b1_ref, w2_ref, b2_ref, o_ref):
    y = y_ref[...].astype(jnp.float32)
    mean = jnp.mean(y, axis=-1, keepdims=True)
    yc = y - mean
    var = jnp.mean(yc * yc, axis=-1, keepdims=True)
    z = yc * lax.rsqrt(var + _LN_EPS) * g_ref[0] + b_ref[0]                   # norm2
    h = jnp.dot(z.astype(jnp.bfloat16), w1_ref[...],
                preferred_element_type=jnp.float32) + b1_ref[0]
    h = 0.5 * h * (1.0 + lax.erf(h * _INV_SQRT2))        # exact GELU (torch default)
    m = jnp.dot(h.astype(jnp.bfloat16), w2_ref[...],
                preferred_element_type=jnp.float32) + b2_ref[0]
    o_ref[...] = (y + m).astype(o_ref.dtype)                                  # residual


def res_ln_mlp_pallas(y2, g2, b2, w1, b1m, w2, b2m, *, tm):
    M, C = y2.shape
    Hd = w1.shape[1]
    assert M % tm == 0
    flops = 2 * M * (C * Hd + Hd * C)
    bytes_accessed = 4 * 2 * M * C + 2 * (C * Hd + Hd * C) + 4 * (Hd + 3 * C)

    return pl.pallas_call(
        _res_ln_mlp_kernel,
        out_shape=jax.ShapeDtypeStruct((M, C), y2.dtype),
        grid_spec=pltpu.PrefetchScalarGridSpec(
            num_scalar_prefetch=0,
            grid=(M // tm,),
            in_specs=[
                pl.BlockSpec((tm, C), lambda i: (i, 0)),   # y rows (attn output + shortcut)
                pl.BlockSpec((1, C), lambda i: (0, 0)),    # norm2 gamma
                pl.BlockSpec((1, C), lambda i: (0, 0)),    # norm2 beta
                pl.BlockSpec((C, Hd), lambda i: (0, 0)),   # fc1 weight (bf16)
                pl.BlockSpec((1, Hd), lambda i: (0, 0)),   # fc1 bias
                pl.BlockSpec((Hd, C), lambda i: (0, 0)),   # fc2 weight (bf16)
                pl.BlockSpec((1, C), lambda i: (0, 0)),    # fc2 bias
            ],
            out_specs=pl.BlockSpec((tm, C), lambda i: (i, 0)),
        ),
        compiler_params=pltpu.CompilerParams(dimension_semantics=("parallel",)),
        cost_estimate=pl.CostEstimate(flops=flops, transcendentals=M * Hd,
                                      bytes_accessed=bytes_accessed),
    )(y2, g2.reshape(1, C), b2.reshape(1, C),
      w1, b1m.reshape(1, Hd), w2, b2m.reshape(1, C))


# ----------------------------------------------------------------------------
# Full SwinTransformerBlock forward (2 Pallas calls, zero XLA layout glue)
# ----------------------------------------------------------------------------
@functools.partial(jax.jit,
                   static_argnames=("H", "W", "window_size", "shift_size", "num_heads"))
def swin_block_pallas(x, params, attn_mask, *, H, W, window_size, shift_size, num_heads):
    B, L, C = x.shape
    assert L == H * W, "input feature has wrong size"
    ws = window_size
    N = ws * ws
    pad_r = (ws - W % ws) % ws
    pad_b = (ws - H % ws) % ws
    Hp, Wp = H + pad_b, W + pad_r
    nW = (Hp // ws) * (Wp // ws)
    use_mask = shift_size > 0

    # bf16 matmul operands (f32 accumulation inside the kernels)
    wqkv = params["wqkv"].astype(jnp.bfloat16)
    wproj = params["wproj"].astype(jnp.bfloat16)
    w1 = params["w1"].astype(jnp.bfloat16)
    w2 = params["w2"].astype(jnp.bfloat16)

    if use_mask:
        mask = attn_mask.astype(jnp.float32)
    else:
        mask = jnp.zeros((nW, N, N), jnp.float32)   # unread by the kernel (use_mask=False)

    # Kernel 1: norm1 + shift + windows + attention + reverse + residual
    y4 = _fused_attn_block_pallas(
        x.reshape(B, H, W, C), params["g1"], params["b1"],
        wqkv, params["bqkv"], wproj, params["bproj"],
        params["rel_bias"].astype(jnp.float32), mask,
        num_heads=num_heads, ws=ws, shift=shift_size,
        pad_b=pad_b, pad_r=pad_r, use_mask=use_mask)

    # Kernel 2: norm2 + MLP + residual
    tm = _pick_row_tile(B * L)
    out = res_ln_mlp_pallas(y4.reshape(B * L, C), params["g2"], params["b2"],
                            w1, params["b1m"], w2, params["b2m"], tm=tm)
    return out.reshape(B, L, C)


# ----------------------------------------------------------------------------
# Pure-JAX f32 reference (follows the PyTorch forward line by line)
# ----------------------------------------------------------------------------
def _layernorm_ref(x, g, b):
    mean = jnp.mean(x, axis=-1, keepdims=True)
    var = jnp.mean((x - mean) ** 2, axis=-1, keepdims=True)
    return (x - mean) / jnp.sqrt(var + _LN_EPS) * g + b


def swin_block_reference(x, p, attn_mask, *, H, W, window_size, shift_size, num_heads):
    B, L, C = x.shape
    ws = window_size
    N = ws * ws
    hd = C // num_heads
    shortcut = x

    xn = _layernorm_ref(x, p["g1"], p["b1"]).reshape(B, H, W, C)
    pad_r = (ws - W % ws) % ws
    pad_b = (ws - H % ws) % ws
    xv = jnp.pad(xn, ((0, 0), (0, pad_b), (0, pad_r), (0, 0)))
    Hp, Wp = H + pad_b, W + pad_r
    if shift_size > 0:
        xv = jnp.roll(xv, (-shift_size, -shift_size), axis=(1, 2))
        mask = attn_mask
    else:
        mask = None

    xw = _window_partition(xv, ws).reshape(-1, N, C)
    qkv = xw @ p["wqkv"] + p["bqkv"]
    qkv = qkv.reshape(-1, N, 3, num_heads, hd).transpose(2, 0, 3, 1, 4)
    q, k, v = qkv[0] * (hd ** -0.5), qkv[1], qkv[2]
    attn = jnp.einsum("bhqd,bhkd->bhqk", q, k) + p["rel_bias"][None]
    if mask is not None:
        nW = mask.shape[0]
        attn = attn.reshape(-1, nW, num_heads, N, N) + mask[None, :, None]
        attn = attn.reshape(-1, num_heads, N, N)
    attn = jax.nn.softmax(attn, axis=-1)
    xo = jnp.einsum("bhqk,bhkd->bhqd", attn, v).transpose(0, 2, 1, 3).reshape(-1, N, C)
    xo = xo @ p["wproj"] + p["bproj"]

    xv = _window_reverse(xo.reshape(-1, ws, ws, C), ws, Hp, Wp)
    if shift_size > 0:
        xv = jnp.roll(xv, (shift_size, shift_size), axis=(1, 2))
    xv = xv[:, :H, :W, :].reshape(B, L, C)
    x1 = shortcut + xv

    z = _layernorm_ref(x1, p["g2"], p["b2"])
    h = z @ p["w1"] + p["b1m"]
    h = 0.5 * h * (1.0 + jax.lax.erf(h * _INV_SQRT2))
    return x1 + (h @ p["w2"] + p["b2m"])


# ----------------------------------------------------------------------------
if __name__ == "__main__":
    # SwinTransformerBlock(dim=128, num_heads=4, window_size=8, mlp_ratio=4.0), H=W=16, B=2
    B, H, W = 2, 16, 16
    C, num_heads, ws = 128, 4, 8
    Hd = int(C * 4.0)
    N = ws * ws

    key = jax.random.PRNGKey(0)
    ks = jax.random.split(key, 16)

    params = dict(
        g1=1.0 + 0.1 * jax.random.normal(ks[0], (C,), jnp.float32),
        b1=0.1 * jax.random.normal(ks[1], (C,), jnp.float32),
        # PyTorch Linear stores (out, in); kernels use the transposed (in, out) layout
        # so every matmul is a row-major MXU matmul.
        wqkv=0.05 * jax.random.normal(ks[2], (C, 3 * C), jnp.float32),
        bqkv=0.02 * jax.random.normal(ks[3], (3 * C,), jnp.float32),
        wproj=0.05 * jax.random.normal(ks[4], (C, C), jnp.float32),
        bproj=0.02 * jax.random.normal(ks[5], (C,), jnp.float32),
        g2=1.0 + 0.1 * jax.random.normal(ks[6], (C,), jnp.float32),
        b2=0.1 * jax.random.normal(ks[7], (C,), jnp.float32),
        w1=0.05 * jax.random.normal(ks[8], (C, Hd), jnp.float32),
        b1m=0.02 * jax.random.normal(ks[9], (Hd,), jnp.float32),
        w2=0.05 * jax.random.normal(ks[10], (Hd, C), jnp.float32),
        b2m=0.02 * jax.random.normal(ks[11], (C,), jnp.float32),
    )
    rel_table = 0.02 * jax.random.normal(ks[12], ((2 * ws - 1) ** 2, num_heads), jnp.float32)
    rel_idx = _relative_position_index(ws)
    params["rel_bias"] = rel_table[jnp.asarray(rel_idx.reshape(-1))] \
        .reshape(N, N, num_heads).transpose(2, 0, 1)  # (nh, N, N)

    x = jax.random.normal(ks[13], (B, H * W, C), dtype=jnp.float32)

    # bf16 matmul operands vs f32 reference -> tolerance relaxed to 3e-2
    TOL = dict(atol=3e-2, rtol=3e-2)

    # W-MSA (shift_size = 0, mask ignored / None)
    out0 = swin_block_pallas(x, params, None,
                             H=H, W=W, window_size=ws, shift_size=0, num_heads=num_heads)
    out0 = jax.block_until_ready(out0)
    ref0 = swin_block_reference(x, params, None,
                                H=H, W=W, window_size=ws, shift_size=0, num_heads=num_heads)
    assert out0.shape == (B, H * W, C)
    assert jnp.allclose(out0, ref0, **TOL), "W-MSA mismatch vs JAX reference"

    # SW-MSA (shift_size = window_size // 2, with attention mask)
    shift = ws // 2
    mask = _create_attn_mask(H, W, ws, shift)
    out1 = swin_block_pallas(x, params, mask,
                             H=H, W=W, window_size=ws, shift_size=shift, num_heads=num_heads)
    out1 = jax.block_until_ready(out1)
    ref1 = swin_block_reference(x, params, mask,
                                H=H, W=W, window_size=ws, shift_size=shift, num_heads=num_heads)
    assert jnp.allclose(out1, ref1, **TOL), "SW-MSA mismatch vs JAX reference"

    print("KERNEL_OK")
</pallas_src>

<mosaic_0001>
module attributes {stable_mosaic.version = 11 : i64} {
  func.func @_fused_swin_attn_kernel(%arg0: i32, %arg1: memref<1x16x16x128xf32, #tpu.memory_space<vmem>>, %arg2: memref<1x128xf32, #tpu.memory_space<vmem>>, %arg3: memref<1x128xf32, #tpu.memory_space<vmem>>, %arg4: memref<128x384xbf16, #tpu.memory_space<vmem>>, %arg5: memref<1x384xf32, #tpu.memory_space<vmem>>, %arg6: memref<128x128xbf16, #tpu.memory_space<vmem>>, %arg7: memref<1x128xf32, #tpu.memory_space<vmem>>, %arg8: memref<4x64x64xf32, #tpu.memory_space<vmem>>, %arg9: memref<4x64x64xf32, #tpu.memory_space<vmem>>, %arg10: memref<1x16x16x128xf32, #tpu.memory_space<vmem>>) attributes {dimension_semantics = [#tpu.dimension_semantics<parallel>], iteration_bounds = array<i64: 2>, scalar_prefetch = 0 : i64, scratch_operands = 0 : i64, tpu.core_type = #tpu.core_type<tc>, window_params = [{transform_indices = @transform_0, window_bounds = array<i64: 1, 16, 16, 128>}, {pipeline_mode = #tpu.pipeline_mode<synchronous>, transform_indices = @transform_1, window_bounds = array<i64: 1, 128>}, {pipeline_mode = #tpu.pipeline_mode<synchronous>, transform_indices = @transform_2, window_bounds = array<i64: 1, 128>}, {pipeline_mode = #tpu.pipeline_mode<synchronous>, transform_indices = @transform_3, window_bounds = array<i64: 128, 384>}, {pipeline_mode = #tpu.pipeline_mode<synchronous>, transform_indices = @transform_4, window_bounds = array<i64: 1, 384>}, {pipeline_mode = #tpu.pipeline_mode<synchronous>, transform_indices = @transform_5, window_bounds = array<i64: 128, 128>}, {pipeline_mode = #tpu.pipeline_mode<synchronous>, transform_indices = @transform_6, window_bounds = array<i64: 1, 128>}, {pipeline_mode = #tpu.pipeline_mode<synchronous>, transform_indices = @transform_7, window_bounds = array<i64: 4, 64, 64>}, {pipeline_mode = #tpu.pipeline_mode<synchronous>, transform_indices = @transform_8, window_bounds = array<i64: 4, 64, 64>}, {transform_indices = @transform_9, window_bounds = array<i64: 1, 16, 16, 128>}]} {
    %c0 = arith.constant 0 : index
    %c0_0 = arith.constant 0 : index
    %c0_1 = arith.constant 0 : index
    %c0_2 = arith.constant 0 : index
    %0 = vector.load %arg1[%c0, %c0_0, %c0_1, %c0_2] : memref<1x16x16x128xf32, #tpu.memory_space<vmem>>, vector<1x16x16x128xf32>
    %1 = vector.shape_cast %0 : vector<1x16x16x128xf32> to vector<16x16x128xf32>
    %cst = arith.constant dense<0.000000e+00> : vector<16x16xf32>
    %2 = vector.multi_reduction <add>, %1, %cst [2] : vector<16x16x128xf32> to vector<16x16xf32>
    %3 = vector.shape_cast %2 : vector<16x16xf32> to vector<16x16x1xf32>
    %cst_3 = arith.constant 1.280000e+02 : f32
    %4 = vector.broadcast %cst_3 : f32 to vector<16x16x1xf32>
    %5 = arith.divf %3, %4 : vector<16x16x1xf32>
    %6 = vector.broadcast %5 : vector<16x16x1xf32> to vector<16x16x128xf32>
    %7 = arith.subf %1, %6 : vector<16x16x128xf32>
    %8 = arith.mulf %7, %7 : vector<16x16x128xf32>
    %cst_4 = arith.constant dense<0.000000e+00> : vector<16x16xf32>
    %9 = vector.multi_reduction <add>, %8, %cst_4 [2] : vector<16x16x128xf32> to vector<16x16xf32>
    %10 = vector.shape_cast %9 : vector<16x16xf32> to vector<16x16x1xf32>
    %cst_5 = arith.constant 1.280000e+02 : f32
    %11 = vector.broadcast %cst_5 : f32 to vector<16x16x1xf32>
    %12 = arith.divf %10, %11 : vector<16x16x1xf32>
    %cst_6 = arith.constant 9.99999974E-6 : f32
    %13 = vector.broadcast %cst_6 : f32 to vector<16x16x1xf32>
    %14 = arith.addf %12, %13 : vector<16x16x1xf32>
    %15 = math.rsqrt %14 : vector<16x16x1xf32>
    %16 = vector.broadcast %15 : vector<16x16x1xf32> to vector<16x16x128xf32>
    %17 = arith.mulf %7, %16 : vector<16x16x128xf32>
    %c0_7 = arith.constant 0 : index
    %c0_8 = arith.constant 0 : index
    %18 = vector.load %arg2[%c0_7, %c0_8] : memref<1x128xf32, #tpu.memory_space<vmem>>, vector<1x128xf32>
    %19 = vector.shape_cast %18 : vector<1x128xf32> to vector<128xf32>
    %20 = vector.shape_cast %19 : vector<128xf32> to vector<1x1x128xf32>
    %21 = vector.broadcast %20 : vector<1x1x128xf32> to vector<16x16x128xf32>
    %22 = arith.mulf %17, %21 : vector<16x16x128xf32>
    %c0_9 = arith.constant 0 : index
    %c0_10 = arith.constant 0 : index
    %23 = vector.load %arg3[%c0_9, %c0_10] : memref<1x128xf32, #tpu.memory_space<vmem>>, vector<1x128xf32>
    %24 = vector.shape_cast %23 : vector<1x128xf32> to vector<128xf32>
    %25 = vector.shape_cast %24 : vector<128xf32> to vector<1x1x128xf32>
    %26 = vector.broadcast %25 : vector<1x1x128xf32> to vector<16x16x128xf32>
    %27 = arith.addf %22, %26 : vector<16x16x128xf32>
    %28 = vector.extract_strided_slice %27 {offsets = [0, 0, 0], sizes = [8, 8, 128], strides = [1, 1, 1]} : vector<16x16x128xf32> to vector<8x8x128xf32>
    %29 = vector.shape_cast %28 : vector<8x8x128xf32> to vector<64x128xf32>
    %30 = vector.extract_strided_slice %27 {offsets = [0, 8, 0], sizes = [8, 8, 128], strides = [1, 1, 1]} : vector<16x16x128xf32> to vector<8x8x128xf32>
    %31 = vector.shape_cast %30 : vector<8x8x128xf32> to vector<64x128xf32>
    %32 = vector.extract_strided_slice %27 {offsets = [8, 0, 0], sizes = [8, 8, 128], strides = [1, 1, 1]} : vector<16x16x128xf32> to vector<8x8x128xf32>
    %33 = vector.shape_cast %32 : vector<8x8x128xf32> to vector<64x128xf32>
    %34 = vector.extract_strided_slice %27 {offsets = [8, 8, 0], sizes = [8, 8, 128], strides = [1, 1, 1]} : vector<16x16x128xf32> to vector<8x8x128xf32>
    %35 = vector.shape_cast %34 : vector<8x8x128xf32> to vector<64x128xf32>
    %36 = tpu.concatenate %29, %31, %33, %35 in 0 : vector<64x128xf32>, vector<64x128xf32>, vector<64x128xf32>, vector<64x128xf32> -> vector<256x128xf32>
    %37 = arith.truncf %36 : vector<256x128xf32> to vector<256x128xbf16>
    %c0_11 = arith.constant 0 : index
    %c0_12 = arith.constant 0 : index
    %38 = vector.load %arg4[%c0_11, %c0_12] : memref<128x384xbf16, #tpu.memory_space<vmem>>, vector<128x384xbf16>
    %cst_13 = arith.constant dense<0.000000e+00> : vector<256x384xf32>
    %39 = tpu.matmul %37, %38, %cst_13 {dimension_numbers = #tpu.dot_dimension_numbers<[1], [0], [0], [1], [0, 0, 1, 1], [], []>} : vector<256x128xbf16>, vector<128x384xbf16>, vector<256x384xf32> -> vector<256x384xf32>
    %c0_14 = arith.constant 0 : index
    %c0_15 = arith.constant 0 : index
    %40 = vector.load %arg5[%c0_14, %c0_15] : memref<1x384xf32, #tpu.memory_space<vmem>>, vector<1x384xf32>
    %41 = vector.shape_cast %40 : vector<1x384xf32> to vector<384xf32>
    %42 = vector.shape_cast %41 : vector<384xf32> to vector<1x384xf32>
    %43 = vector.broadcast %42 : vector<1x384xf32> to vector<256x384xf32>
    %44 = arith.addf %39, %43 : vector<256x384xf32>
    %45 = vector.extract_strided_slice %44 {offsets = [0, 0], sizes = [256, 128], strides = [1, 1]} : vector<256x384xf32> to vector<256x128xf32>
    %cst_16 = arith.constant 0.176776692 : f32
    %46 = vector.broadcast %cst_16 : f32 to vector<256x128xf32>
    %47 = arith.mulf %45, %46 : vector<256x128xf32>
    %48 = arith.truncf %47 : vector<256x128xf32> to vector<256x128xbf16>
    %49 = vector.extract_strided_slice %48 {offsets = [0, 0], sizes = [256, 32], strides = [1, 1]} : vector<256x128xbf16> to vector<256x32xbf16>
    %50 = vector.extract_strided_slice %48 {offsets = [0, 32], sizes = [256, 32], strides = [1, 1]} : vector<256x128xbf16> to vector<256x32xbf16>
    %51 = vector.extract_strided_slice %48 {offsets = [0, 64], sizes = [256, 32], strides = [1, 1]} : vector<256x128xbf16> to vector<256x32xbf16>
    %52 = vector.extract_strided_slice %48 {offsets = [0, 96], sizes = [256, 32], strides = [1, 1]} : vector<256x128xbf16> to vector<256x32xbf16>
    %53 = vector.shape_cast %49 : vector<256x32xbf16> to vector<1x256x32xbf16>
    %54 = vector.shape_cast %50 : vector<256x32xbf16> to vector<1x256x32xbf16>
    %55 = vector.shape_cast %51 : vector<256x32xbf16> to vector<1x256x32xbf16>
    %56 = vector.shape_cast %52 : vector<256x32xbf16> to vector<1x256x32xbf16>
    %57 = tpu.concatenate %53, %54, %55, %56 in 0 : vector<1x256x32xbf16>, vector<1x256x32xbf16>, vector<1x256x32xbf16>, vector<1x256x32xbf16> -> vector<4x256x32xbf16>
    %58 = vector.shape_cast %57 : vector<4x256x32xbf16> to vector<16x64x32xbf16>
    %59 = vector.extract_strided_slice %44 {offsets = [0, 128], sizes = [256, 128], strides = [1, 1]} : vector<256x384xf32> to vector<256x128xf32>
    %60 = arith.truncf %59 : vector<256x128xf32> to vector<256x128xbf16>
    %61 = vector.extract_strided_slice %60 {offsets = [0, 0], sizes = [256, 32], strides = [1, 1]} : vector<256x128xbf16> to vector<256x32xbf16>
    %62 = vector.extract_strided_slice %60 {offsets = [0, 32], sizes = [256, 32], strides = [1, 1]} : vector<256x128xbf16> to vector<256x32xbf16>
    %63 = vector.extract_strided_slice %60 {offsets = [0, 64], sizes = [256, 32], strides = [1, 1]} : vector<256x128xbf16> to vector<256x32xbf16>
    %64 = vector.extract_strided_slice %60 {offsets = [0, 96], sizes = [256, 32], strides = [1, 1]} : vector<256x128xbf16> to vector<256x32xbf16>
    %65 = vector.shape_cast %61 : vector<256x32xbf16> to vector<1x256x32xbf16>
    %66 = vector.shape_cast %62 : vector<256x32xbf16> to vector<1x256x32xbf16>
    %67 = vector.shape_cast %63 : vector<256x32xbf16> to vector<1x256x32xbf16>
    %68 = vector.shape_cast %64 : vector<256x32xbf16> to vector<1x256x32xbf16>
    %69 = tpu.concatenate %65, %66, %67, %68 in 0 : vector<1x256x32xbf16>, vector<1x256x32xbf16>, vector<1x256x32xbf16>, vector<1x256x32xbf16> -> vector<4x256x32xbf16>
    %70 = vector.shape_cast %69 : vector<4x256x32xbf16> to vector<16x64x32xbf16>
    %71 = vector.extract_strided_slice %44 {offsets = [0, 256], sizes = [256, 128], strides = [1, 1]} : vector<256x384xf32> to vector<256x128xf32>
    %72 = arith.truncf %71 : vector<256x128xf32> to vector<256x128xbf16>
    %73 = vector.extract_strided_slice %72 {offsets = [0, 0], sizes = [256, 32], strides = [1, 1]} : vector<256x128xbf16> to vector<256x32xbf16>
    %74 = vector.extract_strided_slice %72 {offsets = [0, 32], sizes = [256, 32], strides = [1, 1]} : vector<256x128xbf16> to vector<256x32xbf16>
    %75 = vector.extract_strided_slice %72 {offsets = [0, 64], sizes = [256, 32], strides = [1, 1]} : vector<256x128xbf16> to vector<256x32xbf16>
    %76 = vector.extract_strided_slice %72 {offsets = [0, 96], sizes = [256, 32], strides = [1, 1]} : vector<256x128xbf16> to vector<256x32xbf16>
    %77 = vector.shape_cast %73 : vector<256x32xbf16> to vector<1x256x32xbf16>
    %78 = vector.shape_cast %74 : vector<256x32xbf16> to vector<1x256x32xbf16>
    %79 = vector.shape_cast %75 : vector<256x32xbf16> to vector<1x256x32xbf16>
    %80 = vector.shape_cast %76 : vector<256x32xbf16> to vector<1x256x32xbf16>
    %81 = tpu.concatenate %77, %78, %79, %80 in 0 : vector<1x256x32xbf16>, vector<1x256x32xbf16>, vector<1x256x32xbf16>, vector<1x256x32xbf16> -> vector<4x256x32xbf16>
    %82 = vector.shape_cast %81 : vector<4x256x32xbf16> to vector<16x64x32xbf16>
    "tpu.trace_start"() <{level = 10 : i32, message = "bqd,bkd->bqk"}> : () -> ()
    %cst_17 = arith.constant dense<0.000000e+00> : vector<16x64x64xf32>
    %83 = tpu.matmul %58, %70, %cst_17 {dimension_numbers = #tpu.dot_dimension_numbers<[2], [2], [1], [1], [0, 0, 0, 1, 1, 1], [0], [0]>} : vector<16x64x32xbf16>, vector<16x64x32xbf16>, vector<16x64x64xf32> -> vector<16x64x64xf32>
    "tpu.trace_stop"() : () -> ()
    %84 = vector.shape_cast %83 : vector<16x64x64xf32> to vector<4x4x64x64xf32>
    %c0_18 = arith.constant 0 : index
    %c0_19 = arith.constant 0 : index
    %c0_20 = arith.constant 0 : index
    %85 = vector.load %arg8[%c0_18, %c0_19, %c0_20] : memref<4x64x64xf32, #tpu.memory_space<vmem>>, vector<4x64x64xf32>
    %86 = vector.shape_cast %85 : vector<4x64x64xf32> to vector<4x1x64x64xf32>
    %87 = vector.broadcast %86 : vector<4x1x64x64xf32> to vector<4x4x64x64xf32>
    %88 = arith.addf %84, %87 : vector<4x4x64x64xf32>
    %cst_21 = arith.constant dense<0xFF800000> : vector<4x4x64xf32>
    %89 = vector.multi_reduction <maximumf>, %88, %cst_21 [3] : vector<4x4x64x64xf32> to vector<4x4x64xf32>
    %90 = vector.shape_cast %89 : vector<4x4x64xf32> to vector<4x4x64x1xf32>
    %91 = vector.broadcast %90 : vector<4x4x64x1xf32> to vector<4x4x64x64xf32>
    %92 = arith.subf %88, %91 : vector<4x4x64x64xf32>
    %93 = math.exp %92 : vector<4x4x64x64xf32>
    %cst_22 = arith.constant dense<0.000000e+00> : vector<4x4x64xf32>
    %94 = vector.multi_reduction <add>, %93, %cst_22 [3] : vector<4x4x64x64xf32> to vector<4x4x64xf32>
    %95 = vector.shape_cast %94 : vector<4x4x64xf32> to vector<4x4x64x1xf32>
    %96 = tpu.reciprocal %95 {approx = true} : vector<4x4x64x1xf32> -> vector<4x4x64x1xf32>
    %97 = vector.broadcast %96 : vector<4x4x64x1xf32> to vector<4x4x64x64xf32>
    %98 = arith.mulf %93, %97 : vector<4x4x64x64xf32>
    %99 = vector.shape_cast %98 : vector<4x4x64x64xf32> to vector<16x64x64xf32>
    %100 = arith.truncf %99 : vector<16x64x64xf32> to vector<16x64x64xbf16>
    "tpu.trace_start"() <{level = 10 : i32, message = "bqk,bkd->bqd"}> : () -> ()
    %cst_23 = arith.constant dense<0.000000e+00> : vector<16x64x32xf32>
    %101 = tpu.matmul %100, %82, %cst_23 {dimension_numbers = #tpu.dot_dimension_numbers<[2], [1], [1], [2], [0, 0, 0, 1, 1, 2], [0], [0]>} : vector<16x64x64xbf16>, vector<16x64x32xbf16>, vector<16x64x32xf32> -> vector<16x64x32xf32>
    "tpu.trace_stop"() : () -> ()
    %102 = arith.truncf %101 : vector<16x64x32xf32> to vector<16x64x32xbf16>
    %103 = vector.shape_cast %102 : vector<16x64x32xbf16> to vector<4x256x32xbf16>
    %104 = vector.extract_strided_slice %103 {offsets = [0, 0, 0], sizes = [1, 256, 32], strides = [1, 1, 1]} : vector<4x256x32xbf16> to vector<1x256x32xbf16>
    %105 = vector.shape_cast %104 : vector<1x256x32xbf16> to vector<256x32xbf16>
    %106 = vector.extract_strided_slice %103 {offsets = [1, 0, 0], sizes = [1, 256, 32], strides = [1, 1, 1]} : vector<4x256x32xbf16> to vector<1x256x32xbf16>
    %107 = vector.shape_cast %106 : vector<1x256x32xbf16> to vector<256x32xbf16>
    %108 = vector.extract_strided_slice %103 {offsets = [2, 0, 0], sizes = [1, 256, 32], strides = [1, 1, 1]} : vector<4x256x32xbf16> to vector<1x256x32xbf16>
    %109 = vector.shape_cast %108 : vector<1x256x32xbf16> to vector<256x32xbf16>
    %110 = vector.extract_strided_slice %103 {offsets = [3, 0, 0], sizes = [1, 256, 32], strides = [1, 1, 1]} : vector<4x256x32xbf16> to vector<1x256x32xbf16>
    %111 = vector.shape_cast %110 : vector<1x256x32xbf16> to vector<256x32xbf16>
    %112 = tpu.concatenate %105, %107, %109, %111 in 1 : vector<256x32xbf16>, vector<256x32xbf16>, vector<256x32xbf16>, vector<256x32xbf16> -> vector<256x128xbf16>
    %c0_24 = arith.constant 0 : index
    %c0_25 = arith.constant 0 : index
    %113 = vector.load %arg6[%c0_24, %c0_25] : memref<128x128xbf16, #tpu.memory_space<vmem>>, vector<128x128xbf16>
    %cst_26 = arith.constant dense<0.000000e+00> : vector<256x128xf32>
    %114 = tpu.matmul %112, %113, %cst_26 {dimension_numbers = #tpu.dot_dimension_numbers<[1], [0], [0], [1], [0, 0, 1, 1], [], []>} : vector<256x128xbf16>, vector<128x128xbf16>, vector<256x128xf32> -> vector<256x128xf32>
    %c0_27 = arith.constant 0 : index
    %c0_28 = arith.constant 0 : index
    %115 = vector.load %arg7[%c0_27, %c0_28] : memref<1x128xf32, #tpu.memory_space<vmem>>, vector<1x128xf32>
    %116 = vector.shape_cast %115 : vector<1x128xf32> to vector<128xf32>
    %117 = vector.shape_cast %116 : vector<128xf32> to vector<1x128xf32>
    %118 = vector.broadcast %117 : vector<1x128xf32> to vector<256x128xf32>
    %119 = arith.addf %114, %118 : vector<256x128xf32>
    %120 = vector.shape_cast %119 : vector<256x128xf32> to vector<4x8x8x128xf32>
    %121 = vector.extract_strided_slice %120 {offsets = [0, 0, 0, 0], sizes = [1, 8, 8, 128], strides = [1, 1, 1, 1]} : vector<4x8x8x128xf32> to vector<1x8x8x128xf32>
    %122 = vector.shape_cast %121 : vector<1x8x8x128xf32> to vector<8x8x128xf32>
    %123 = vector.extract_strided_slice %120 {offsets = [1, 0, 0, 0], sizes = [1, 8, 8, 128], strides = [1, 1, 1, 1]} : vector<4x8x8x128xf32> to vector<1x8x8x128xf32>
    %124 = vector.shape_cast %123 : vector<1x8x8x128xf32> to vector<8x8x128xf32>
    %125 = tpu.concatenate %122, %124 in 1 : vector<8x8x128xf32>, vector<8x8x128xf32> -> vector<8x16x128xf32>
    %126 = vector.extract_strided_slice %120 {offsets = [2, 0, 0, 0], sizes = [1, 8, 8, 128], strides = [1, 1, 1, 1]} : vector<4x8x8x128xf32> to vector<1x8x8x128xf32>
    %127 = vector.shape_cast %126 : vector<1x8x8x128xf32> to vector<8x8x128xf32>
    %128 = vector.extract_strided_slice %120 {offsets = [3, 0, 0, 0], sizes = [1, 8, 8, 128], strides = [1, 1, 1, 1]} : vector<4x8x8x128xf32> to vector<1x8x8x128xf32>
    %129 = vector.shape_cast %128 : vector<1x8x8x128xf32> to vector<8x8x128xf32>
    %130 = tpu.concatenate %127, %129 in 1 : vector<8x8x128xf32>, vector<8x8x128xf32> -> vector<8x16x128xf32>
    %131 = tpu.concatenate %125, %130 in 0 : vector<8x16x128xf32>, vector<8x16x128xf32> -> vector<16x16x128xf32>
    %132 = arith.addf %1, %131 : vector<16x16x128xf32>
    %c0_29 = arith.constant 0 : index
    %c0_30 = arith.constant 0 : index
    %c0_31 = arith.constant 0 : index
    %c0_32 = arith.constant 0 : index
    %133 = vector.load %arg10[%c0_29, %c0_30, %c0_31, %c0_32] : memref<1x16x16x128xf32, #tpu.memory_space<vmem>>, vector<1x16x16x128xf32>
    %134 = vector.shape_cast %133 : vector<1x16x16x128xf32> to vector<16x16x128xf32>
    %135 = vector.shape_cast %132 : vector<16x16x128xf32> to vector<1x16x16x128xf32>
    tpu.vector_store %arg10[%c0_29, %c0_30, %c0_31, %c0_32], %135 {strides = array<i32>} : memref<1x16x16x128xf32, #tpu.memory_space<vmem>>, vector<1x16x16x128xf32>,
    return
  }
  func.func @transform_0(%arg0: i32) -> (i32, i32, i32, i32) {
    %c0_i32 = arith.constant 0 : i32
    %c0_i32_0 = arith.constant 0 : i32
    %c0_i32_1 = arith.constant 0 : i32
    %c0_i32_2 = arith.constant 0 : i32
    return %arg0, %c0_i32, %c0_i32_0, %c0_i32_1 : i32, i32, i32, i32
  }
  func.func @transform_1(%arg0: i32) -> (i32, i32) {
    %c0_i32 = arith.constant 0 : i32
    %c0_i32_0 = arith.constant 0 : i32
    %c0_i32_1 = arith.constant 0 : i32
    return %c0_i32, %c0_i32_0 : i32, i32
  }
  func.func @transform_2(%arg0: i32) -> (i32, i32) {
    %c0_i32 = arith.constant 0 : i32
    %c0_i32_0 = arith.constant 0 : i32
    %c0_i32_1 = arith.constant 0 : i32
    return %c0_i32, %c0_i32_0 : i32, i32
  }
  func.func @transform_3(%arg0: i32) -> (i32, i32) {
    %c0_i32 = arith.constant 0 : i32
    %c0_i32_0 = arith.constant 0 : i32
    %c0_i32_1 = arith.constant 0 : i32
    return %c0_i32, %c0_i32_0 : i32, i32
  }
  func.func @transform_4(%arg0: i32) -> (i32, i32) {
    %c0_i32 = arith.constant 0 : i32
    %c0_i32_0 = arith.constant 0 : i32
    %c0_i32_1 = arith.constant 0 : i32
    return %c0_i32, %c0_i32_0 : i32, i32
  }
  func.func @transform_5(%arg0: i32) -> (i32, i32) {
    %c0_i32 = arith.constant 0 : i32
    %c0_i32_0 = arith.constant 0 : i32
    %c0_i32_1 = arith.constant 0 : i32
    return %c0_i32, %c0_i32_0 : i32, i32
  }
  func.func @transform_6(%arg0: i32) -> (i32, i32) {
    %c0_i32 = arith.constant 0 : i32
    %c0_i32_0 = arith.constant 0 : i32
    %c0_i32_1 = arith.constant 0 : i32
    return %c0_i32, %c0_i32_0 : i32, i32
  }
  func.func @transform_7(%arg0: i32) -> (i32, i32, i32) {
    %c0_i32 = arith.constant 0 : i32
    %c0_i32_0 = arith.constant 0 : i32
    %c0_i32_1 = arith.constant 0 : i32
    %c0_i32_2 = arith.constant 0 : i32
    return %c0_i32, %c0_i32_0, %c0_i32_1 : i32, i32, i32
  }
  func.func @transform_8(%arg0: i32) -> (i32, i32, i32) {
    %c0_i32 = arith.constant 0 : i32
    %c0_i32_0 = arith.constant 0 : i32
    %c0_i32_1 = arith.constant 0 : i32
    %c0_i32_2 = arith.constant 0 : i32
    return %c0_i32, %c0_i32_0, %c0_i32_1 : i32, i32, i32
  }
  func.func @transform_9(%arg0: i32) -> (i32, i32, i32, i32) {
    %c0_i32 = arith.constant 0 : i32
    %c0_i32_0 = arith.constant 0 : i32
    %c0_i32_1 = arith.constant 0 : i32
    %c0_i32_2 = arith.constant 0 : i32
    return %arg0, %c0_i32, %c0_i32_0, %c0_i32_1 : i32, i32, i32, i32
  }
}

module attributes {stable_mosaic.version = 11 : i64} {
  func.func @_res_ln_mlp_kernel(%arg0: i32, %arg1: memref<128x128xf32, #tpu.memory_space<vmem>>, %arg2: memref<1x128xf32, #tpu.memory_space<vmem>>, %arg3: memref<1x128xf32, #tpu.memory_space<vmem>>, %arg4: memref<128x512xbf16, #tpu.memory_space<vmem>>, %arg5: memref<1x512xf32, #tpu.memory_space<vmem>>, %arg6: memref<512x128xbf16, #tpu.memory_space<vmem>>, %arg7: memref<1x128xf32, #tpu.memory_space<vmem>>, %arg8: memref<128x128xf32, #tpu.memory_space<vmem>>) attributes {dimension_semantics = [#tpu.dimension_semantics<parallel>], iteration_bounds = array<i64: 4>, scalar_prefetch = 0 : i64, scratch_operands = 0 : i64, tpu.core_type = #tpu.core_type<tc>, window_params = [{transform_indices = @transform_0, window_bounds = array<i64: 128, 128>}, {pipeline_mode = #tpu.pipeline_mode<synchronous>, transform_indices = @transform_1, window_bounds = array<i64: 1, 128>}, {pipeline_mode = #tpu.pipeline_mode<synchronous>, transform_indices = @transform_2, window_bounds = array<i64: 1, 128>}, {pipeline_mode = #tpu.pipeline_mode<synchronous>, transform_indices = @transform_3, window_bounds = array<i64: 128, 512>}, {pipeline_mode = #tpu.pipeline_mode<synchronous>, transform_indices = @transform_4, window_bounds = array<i64: 1, 512>}, {pipeline_mode = #tpu.pipeline_mode<synchronous>, transform_indices = @transform_5, window_bounds = array<i64: 512, 128>}, {pipeline_mode = #tpu.pipeline_mode<synchronous>, transform_indices = @transform_6, window_bounds = array<i64: 1, 128>}, {transform_indices = @transform_7, window_bounds = array<i64: 128, 128>}]} {
    %c0 = arith.constant 0 : index
    %c0_0 = arith.constant 0 : index
    %0 = vector.load %arg1[%c0, %c0_0] : memref<128x128xf32, #tpu.memory_space<vmem>>, vector<128x128xf32>
    %cst = arith.constant dense<0.000000e+00> : vector<128xf32>
    %1 = vector.multi_reduction <add>, %0, %cst [1] : vector<128x128xf32> to vector<128xf32>
    %2 = vector.shape_cast %1 : vector<128xf32> to vector<128x1xf32>
    %cst_1 = arith.constant 1.280000e+02 : f32
    %3 = vector.broadcast %cst_1 : f32 to vector<128x1xf32>
    %4 = arith.divf %2, %3 : vector<128x1xf32>
    %5 = vector.broadcast %4 : vector<128x1xf32> to vector<128x128xf32>
    %6 = arith.subf %0, %5 : vector<128x128xf32>
    %7 = arith.mulf %6, %6 : vector<128x128xf32>
    %cst_2 = arith.constant dense<0.000000e+00> : vector<128xf32>
    %8 = vector.multi_reduction <add>, %7, %cst_2 [1] : vector<128x128xf32> to vector<128xf32>
    %9 = vector.shape_cast %8 : vector<128xf32> to vector<128x1xf32>
    %cst_3 = arith.constant 1.280000e+02 : f32
    %10 = vector.broadcast %cst_3 : f32 to vector<128x1xf32>
    %11 = arith.divf %9, %10 : vector<128x1xf32>
    %cst_4 = arith.constant 9.99999974E-6 : f32
    %12 = vector.broadcast %cst_4 : f32 to vector<128x1xf32>
    %13 = arith.addf %11, %12 : vector<128x1xf32>
    %14 = math.rsqrt %13 : vector<128x1xf32>
    %15 = vector.broadcast %14 : vector<128x1xf32> to vector<128x128xf32>
    %16 = arith.mulf %6, %15 : vector<128x128xf32>
    %c0_5 = arith.constant 0 : index
    %c0_6 = arith.constant 0 : index
    %17 = vector.load %arg2[%c0_5, %c0_6] : memref<1x128xf32, #tpu.memory_space<vmem>>, vector<1x128xf32>
    %18 = vector.shape_cast %17 : vector<1x128xf32> to vector<128xf32>
    %19 = vector.shape_cast %18 : vector<128xf32> to vector<1x128xf32>
    %20 = vector.broadcast %19 : vector<1x128xf32> to vector<128x128xf32>
    %21 = arith.mulf %16, %20 : vector<128x128xf32>
    %c0_7 = arith.constant 0 : index
    %c0_8 = arith.constant 0 : index
    %22 = vector.load %arg3[%c0_7, %c0_8] : memref<1x128xf32, #tpu.memory_space<vmem>>, vector<1x128xf32>
    %23 = vector.shape_cast %22 : vector<1x128xf32> to vector<128xf32>
    %24 = vector.shape_cast %23 : vector<128xf32> to vector<1x128xf32>
    %25 = vector.broadcast %24 : vector<1x128xf32> to vector<128x128xf32>
    %26 = arith.addf %21, %25 : vector<128x128xf32>
    %27 = arith.truncf %26 : vector<128x128xf32> to vector<128x128xbf16>
    %c0_9 = arith.constant 0 : index
    %c0_10 = arith.constant 0 : index
    %28 = vector.load %arg4[%c0_9, %c0_10] : memref<128x512xbf16, #tpu.memory_space<vmem>>, vector<128x512xbf16>
    %cst_11 = arith.constant dense<0.000000e+00> : vector<128x512xf32>
    %29 = tpu.matmul %27, %28, %cst_11 {dimension_numbers = #tpu.dot_dimension_numbers<[1], [0], [0], [1], [0, 0, 1, 1], [], []>} : vector<128x128xbf16>, vector<128x512xbf16>, vector<128x512xf32> -> vector<128x512xf32>
    %c0_12 = arith.constant 0 : index
    %c0_13 = arith.constant 0 : index
    %30 = vector.load %arg5[%c0_12, %c0_13] : memref<1x512xf32, #tpu.memory_space<vmem>>, vector<1x512xf32>
    %31 = vector.shape_cast %30 : vector<1x512xf32> to vector<512xf32>
    %32 = vector.shape_cast %31 : vector<512xf32> to vector<1x512xf32>
    %33 = vector.broadcast %32 : vector<1x512xf32> to vector<128x512xf32>
    %34 = arith.addf %29, %33 : vector<128x512xf32>
    %cst_14 = arith.constant 5.000000e-01 : f32
    %35 = vector.broadcast %cst_14 : f32 to vector<128x512xf32>
    %36 = arith.mulf %35, %34 : vector<128x512xf32>
    %cst_15 = arith.constant 0.707106769 : f32
    %37 = vector.broadcast %cst_15 : f32 to vector<128x512xf32>
    %38 = arith.mulf %34, %37 : vector<128x512xf32>
    %39 = math.erf %38 : vector<128x512xf32>
    %cst_16 = arith.constant 1.000000e+00 : f32
    %40 = vector.broadcast %cst_16 : f32 to vector<128x512xf32>
    %41 = arith.addf %40, %39 : vector<128x512xf32>
    %42 = arith.mulf %36, %41 : vector<128x512xf32>
    %43 = arith.truncf %42 : vector<128x512xf32> to vector<128x512xbf16>
    %c0_17 = arith.constant 0 : index
    %c0_18 = arith.constant 0 : index
    %44 = vector.load %arg6[%c0_17, %c0_18] : memref<512x128xbf16, #tpu.memory_space<vmem>>, vector<512x128xbf16>
    %cst_19 = arith.constant dense<0.000000e+00> : vector<128x128xf32>
    %45 = tpu.matmul %43, %44, %cst_19 {dimension_numbers = #tpu.dot_dimension_numbers<[1], [0], [0], [1], [0, 0, 1, 1], [], []>} : vector<128x512xbf16>, vector<512x128xbf16>, vector<128x128xf32> -> vector<128x128xf32>
    %c0_20 = arith.constant 0 : index
    %c0_21 = arith.constant 0 : index
    %46 = vector.load %arg7[%c0_20, %c0_21] : memref<1x128xf32, #tpu.memory_space<vmem>>, vector<1x128xf32>
    %47 = vector.shape_cast %46 : vector<1x128xf32> to vector<128xf32>
    %48 = vector.shape_cast %47 : vector<128xf32> to vector<1x128xf32>
    %49 = vector.broadcast %48 : vector<1x128xf32> to vector<128x128xf32>
    %50 = arith.addf %45, %49 : vector<128x128xf32>
    %51 = arith.addf %0, %50 : vector<128x128xf32>
    %c0_22 = arith.constant 0 : index
    %c0_23 = arith.constant 0 : index
    %52 = vector.load %arg8[%c0_22, %c0_23] : memref<128x128xf32, #tpu.memory_space<vmem>>, vector<128x128xf32>
    tpu.vector_store %arg8[%c0_22, %c0_23], %51 {strides = array<i32>} : memref<128x128xf32, #tpu.memory_space<vmem>>, vector<128x128xf32>,
    return
  }
  func.func @transform_0(%arg0: i32) -> (i32, i32) {
    %c0_i32 = arith.constant 0 : i32
    %c0_i32_0 = arith.constant 0 : i32
    return %arg0, %c0_i32 : i32, i32
  }
  func.func @transform_1(%arg0: i32) -> (i32, i32) {
    %c0_i32 = arith.constant 0 : i32
    %c0_i32_0 = arith.constant 0 : i32
    %c0_i32_1 = arith.constant 0 : i32
    return %c0_i32, %c0_i32_0 : i32, i32
  }
  func.func @transform_2(%arg0: i32) -> (i32, i32) {
    %c0_i32 = arith.constant 0 : i32
    %c0_i32_0 = arith.constant 0 : i32
    %c0_i32_1 = arith.constant 0 : i32
    return %c0_i32, %c0_i32_0 : i32, i32
  }
  func.func @transform_3(%arg0: i32) -> (i32, i32) {
    %c0_i32 = arith.constant 0 : i32
    %c0_i32_0 = arith.constant 0 : i32
    %c0_i32_1 = arith.constant 0 : i32
    return %c0_i32, %c0_i32_0 : i32, i32
  }
  func.func @transform_4(%arg0: i32) -> (i32, i32) {
    %c0_i32 = arith.constant 0 : i32
    %c0_i32_0 = arith.constant 0 : i32
    %c0_i32_1 = arith.constant 0 : i32
    return %c0_i32, %c0_i32_0 : i32, i32
  }
  func.func @transform_5(%arg0: i32) -> (i32, i32) {
    %c0_i32 = arith.constant 0 : i32
    %c0_i32_0 = arith.constant 0 : i32
    %c0_i32_1 = arith.constant 0 : i32
    return %c0_i32, %c0_i32_0 : i32, i32
  }
  func.func @transform_6(%arg0: i32) -> (i32, i32) {
    %c0_i32 = arith.constant 0 : i32
    %c0_i32_0 = arith.constant 0 : i32
    %c0_i32_1 = arith.constant 0 : i32
    return %c0_i32, %c0_i32_0 : i32, i32
  }
  func.func @transform_7(%arg0: i32) -> (i32, i32) {
    %c0_i32 = arith.constant 0 : i32
    %c0_i32_0 = arith.constant 0 : i32
    return %arg0, %c0_i32 : i32, i32
  }
}

</mosaic_0001>

<llo_original>
// kernel: swin_block_pallas.3
$region0: #{swin_block_pallas.3}
  #allocation0 [shape = 'u32[]', space=smem, size = 0x4, offset = 0x4, fixed_abs, tag = 'smem constant byte address 0x4 - core index']
  #allocation1 [shape = 'u32[144,128]{1,0:T(1,128)}', space=vmem, size = 0x12000, scoped, tag = 'internal scratch']
  %s0 = inlined_call_operand.vmem [shape: f32[512,128], index: 0, kind: input, shape index: {}]
  %s1 = inlined_call_operand.vmem [shape: f32[1,128], index: 1, kind: input, shape index: {}]
  %s2 = inlined_call_operand.vmem [shape: f32[1,128], index: 2, kind: input, shape index: {}]
  %s3 = inlined_call_operand.vmem [shape: bf16[128,512], index: 3, kind: input, shape index: {}]
  %s4 = inlined_call_operand.vmem [shape: f32[1,512], index: 4, kind: input, shape index: {}]
  %s5 = inlined_call_operand.vmem [shape: bf16[512,128], index: 5, kind: input, shape index: {}]
  %s6 = inlined_call_operand.vmem [shape: f32[1,128], index: 6, kind: input, shape index: {}]
  %s7 = inlined_call_operand.hbm [shape: f32[512,128], index: 7, kind: output, shape index: {}]
  %s8 = sld [smem:[#allocation0]]
  $region61: #{swin_block_pallas.3} parent=0
    _
  %s10 = ssub.s32 1, %s8
  %s11 = scalar_select 0, %s10, %s8
  $region1: #{swin_block_pallas.3} parent=0
    #allocation2 [shape = 'u8[131072]{0}', space=vmem, size = 0x20000, scoped, tag = 'output window, operand 0']
    #allocation3 [shape = 's32[2]{0}', space=sflag, size = 0x8, scoped, tag = 'scoped memory for swin_block_pallas.3']
    %12 = vsyncpa [#allocation3], 0
    %s13 = scalar_lea.sflag [#allocation3], 1
    %14 = vsyncpa %s13, 0
    loop: start=0, step=1, limit=6
    $region2: #{swin_block_pallas.3} parent=1 // loop_pre_header
      _
    $region3: #{swin_block_pallas.3} parent=1 // loop_header
      %s16 = sphi 0, %s20
      %p17 = scmp.ge.s32.totalorder %s16, 6
      %s26 = sphi 0, %s28
      %s29 = sphi 0, %s26
      %s30 = sphi 0, %s29
      %s46 = sphi 0, %s30
      %s50 = sphi 0, %s50
      %s52 = sphi 0, %s50
      %s53 = sphi 0, %s52
      %s67 = sphi 0, %s53
      %s71 = sphi 0, %s71
      %s73 = sphi 0, %s71
      %s74 = sphi 0, %s73
      %s88 = sphi 0, %s74
      %s92 = sphi 0, %s92
      %s94 = sphi 0, %s92
      %s95 = sphi 0, %s94
      %s109 = sphi 0, %s95
      %s113 = sphi 0, %s113
      %s115 = sphi 0, %s113
      %s116 = sphi 0, %s115
      %s130 = sphi 0, %s116
      %s134 = sphi 0, %s134
      %s136 = sphi 0, %s134
      %s137 = sphi 0, %s136
      %s151 = sphi 0, %s137
      %s155 = sphi 0, %s155
      %s157 = sphi 0, %s155
      %s158 = sphi 0, %s157
      %s172 = sphi 0, %s158
      %s178 = sphi 0, %s180
      %s181 = sphi 0, %s178
      %s182 = sphi 0, %s181
      %s198 = sphi 0, %s182
    $region4: #{swin_block_pallas.3} parent=1 // loop_header_branch
      %19 = sbr.rel (%p17) target = $region8
    $region5: #{swin_block_pallas.3} parent=1 // loop_body
      %s21 = ssub.s32 %s16, 1
      %s22 = ssub.s32 %s16, 2
      %s23 = sadd.s32 %s16, 1
      %s24 = ssub.s32 %s16, %s23
      %p25 = scmp.eq.s32.totalorder %s24, 0
      %s27 = sadd.s32 %s26, 1
      %s28 = scalar_select %p25, %s26, %s27
      %p31 = pneg %p25
      %p32 = scmp.eq.s32.totalorder %s16, 3
      %p33 = por %p31, %p32
      %p34 = scmp.ne.s32.totalorder %s26, %s29
      %p35 = scmp.eq.s32.totalorder %s16, 0
      %p36 = por %p34, %p35
      %p37 = scmp.ne.s32.totalorder %s26, %s29
      %p38 = scmp.eq.s32.totalorder %s21, 3
      %p39 = por %p37, %p38
      %p40 = scmp.ne.s32.totalorder %s29, %s30
      %p41 = scmp.eq.s32.totalorder %s21, 0
      %p42 = por %p40, %p41
      %p43 = scmp.ne.s32.totalorder %s29, %s30
      %p44 = scmp.eq.s32.totalorder %s22, 3
      %p45 = por %p43, %p44
      %p47 = scmp.ne.s32.totalorder %s30, %s46
      %p48 = scmp.eq.s32.totalorder %s22, 0
      %p49 = por %p47, %p48
      %s51 = sadd.s32 %s50, 1
      %p54 = scmp.eq.s32.totalorder %s16, 3
      %p55 = scmp.ne.s32.totalorder %s50, %s52
      %p56 = scmp.eq.s32.totalorder %s16, 0
      %p57 = por %p55, %p56
      %p58 = scmp.ne.s32.totalorder %s50, %s52
      %p59 = scmp.eq.s32.totalorder %s21, 3
      %p60 = por %p58, %p59
      %p61 = scmp.ne.s32.totalorder %s52, %s53
      %p62 = scmp.eq.s32.totalorder %s21, 0
      %p63 = por %p61, %p62
      %p64 = scmp.ne.s32.totalorder %s52, %s53
      %p65 = scmp.eq.s32.totalorder %s22, 3
      %p66 = por %p64, %p65
      %p68 = scmp.ne.s32.totalorder %s53, %s67
      %p69 = scmp.eq.s32.totalorder %s22, 0
      %p70 = por %p68, %p69
      %s72 = sadd.s32 %s71, 1
      %p75 = scmp.eq.s32.totalorder %s16, 3
      %p76 = scmp.ne.s32.totalorder %s71, %s73
      %p77 = scmp.eq.s32.totalorder %s16, 0
      %p78 = por %p76, %p77
      %p79 = scmp.ne.s32.totalorder %s71, %s73
      %p80 = scmp.eq.s32.totalorder %s21, 3
      %p81 = por %p79, %p80
      %p82 = scmp.ne.s32.totalorder %s73, %s74
      %p83 = scmp.eq.s32.totalorder %s21, 0
      %p84 = por %p82, %p83
      %p85 = scmp.ne.s32.totalorder %s73, %s74
      %p86 = scmp.eq.s32.totalorder %s22, 3
      %p87 = por %p85, %p86
      %p89 = scmp.ne.s32.totalorder %s74, %s88
      %p90 = scmp.eq.s32.totalorder %s22, 0
      %p91 = por %p89, %p90
      %s93 = sadd.s32 %s92, 1
      %p96 = scmp.eq.s32.totalorder %s16, 3
      %p97 = scmp.ne.s32.totalorder %s92, %s94
      %p98 = scmp.eq.s32.totalorder %s16, 0
      %p99 = por %p97, %p98
      %p100 = scmp.ne.s32.totalorder %s92, %s94
      %p101 = scmp.eq.s32.totalorder %s21, 3
      %p102 = por %p100, %p101
      %p103 = scmp.ne.s32.totalorder %s94, %s95
      %p104 = scmp.eq.s32.totalorder %s21, 0
      %p105 = por %p103, %p104
      %p106 = scmp.ne.s32.totalorder %s94, %s95
      %p107 = scmp.eq.s32.totalorder %s22, 3
      %p108 = por %p106, %p107
      %p110 = scmp.ne.s32.totalorder %s95, %s109
      %p111 = scmp.eq.s32.totalorder %s22, 0
      %p112 = por %p110, %p111
      %s114 = sadd.s32 %s113, 1
      %p117 = scmp.eq.s32.totalorder %s16, 3
      %p118 = scmp.ne.s32.totalorder %s113, %s115
      %p119 = scmp.eq.s32.totalorder %s16, 0
      %p120 = por %p118, %p119
      %p121 = scmp.ne.s32.totalorder %s113, %s115
      %p122 = scmp.eq.s32.totalorder %s21, 3
      %p123 = por %p121, %p122
      %p124 = scmp.ne.s32.totalorder %s115, %s116
      %p125 = scmp.eq.s32.totalorder %s21, 0
      %p126 = por %p124, %p125
      %p127 = scmp.ne.s32.totalorder %s115, %s116
      %p128 = scmp.eq.s32.totalorder %s22, 3
      %p129 = por %p127, %p128
      %p131 = scmp.ne.s32.totalorder %s116, %s130
      %p132 = scmp.eq.s32.totalorder %s22, 0
      %p133 = por %p131, %p132
      %s135 = sadd.s32 %s134, 1
      %p138 = scmp.eq.s32.totalorder %s16, 3
      %p139 = scmp.ne.s32.totalorder %s134, %s136
      %p140 = scmp.eq.s32.totalorder %s16, 0
      %p141 = por %p139, %p140
      %p142 = scmp.ne.s32.totalorder %s134, %s136
      %p143 = scmp.eq.s32.totalorder %s21, 3
      %p144 = por %p142, %p143
      %p145 = scmp.ne.s32.totalorder %s136, %s137
      %p146 = scmp.eq.s32.totalorder %s21, 0
      %p147 = por %p145, %p146
      %p148 = scmp.ne.s32.totalorder %s136, %s137
      %p149 = scmp.eq.s32.totalorder %s22, 3
      %p150 = por %p148, %p149
      %p152 = scmp.ne.s32.totalorder %s137, %s151
      %p153 = scmp.eq.s32.totalorder %s22, 0
      %p154 = por %p152, %p153
      %s156 = sadd.s32 %s155, 1
      %p159 = scmp.eq.s32.totalorder %s16, 3
      %p160 = scmp.ne.s32.totalorder %s155, %s157
      %p161 = scmp.eq.s32.totalorder %s16, 0
      %p162 = por %p160, %p161
      %p163 = scmp.ne.s32.totalorder %s155, %s157
      %p164 = scmp.eq.s32.totalorder %s21, 3
      %p165 = por %p163, %p164
      %p166 = scmp.ne.s32.totalorder %s157, %s158
      %p167 = scmp.eq.s32.totalorder %s21, 0
      %p168 = por %p166, %p167
      %p169 = scmp.ne.s32.totalorder %s157, %s158
      %p170 = scmp.eq.s32.totalorder %s22, 3
      %p171 = por %p169, %p170
      %p173 = scmp.ne.s32.totalorder %s158, %s172
      %p174 = scmp.eq.s32.totalorder %s22, 0
      %p175 = por %p173, %p174
      %s176 = ssub.s32 %s16, %s23
      %p177 = scmp.eq.s32.totalorder %s176, 0
      %s179 = sadd.s32 %s178, 1
      %s180 = scalar_select %p177, %s178, %s179
      %p183 = pneg %p177
      %p184 = scmp.eq.s32.totalorder %s16, 3
      %p185 = por %p183, %p184
      %p186 = scmp.ne.s32.totalorder %s178, %s181
      %p187 = scmp.eq.s32.totalorder %s16, 0
      %p188 = por %p186, %p187
      %p189 = scmp.ne.s32.totalorder %s178, %s181
      %p190 = scmp.eq.s32.totalorder %s21, 3
      %p191 = por %p189, %p190
      %p192 = scmp.ne.s32.totalorder %s181, %s182
      %p193 = scmp.eq.s32.totalorder %s21, 0
      %p194 = por %p192, %p193
      %p195 = scmp.ne.s32.totalorder %s181, %s182
      %p196 = scmp.eq.s32.totalorder %s22, 3
      %p197 = por %p195, %p196
      %p199 = scmp.ne.s32.totalorder %s182, %s198
      %p200 = scmp.eq.s32.totalorder %s22, 0
      %p201 = por %p199, %p200
      %p202 = scmp.le.s32.totalorder 1, %s16
      %p203 = scmp.lt.s32.totalorder %s16, 5
      %p204 = pnand %p202, %p203
      %p205 = pneg %p204
      // Predicated region
      $region9: #{swin_block_pallas.3} parent=5 // pred_check
        _
      $region10: #{swin_block_pallas.3} parent=5 // pred_check_branch
        %207 = sbr.rel (%p204) target = $region12
      $region11: #{swin_block_pallas.3} parent=5 // pred_region
        %s208 = ssub.s32 %s16, 1
        // Predicated region
        $region13: #{swin_block_pallas.3} parent=11 // pred_check
          %p209 = pneg %p63
        $region14: #{swin_block_pallas.3} parent=11 // pred_check_branch
          %211 = sbr.rel (%p209) target = $region16
        $region15: #{swin_block_pallas.3} parent=11 // pred_region
          _
        $region16: #{swin_block_pallas.3} parent=11 // pred_fallthru
          _
        // Predicated region
        $region17: #{swin_block_pallas.3} parent=11 // pred_check
          %p212 = pneg %p84
        $region18: #{swin_block_pallas.3} parent=11 // pred_check_branch
          %214 = sbr.rel (%p212) target = $region20
        $region19: #{swin_block_pallas.3} parent=11 // pred_region
          _
        $region20: #{swin_block_pallas.3} parent=11 // pred_fallthru
          _
        // Predicated region
        $region21: #{swin_block_pallas.3} parent=11 // pred_check
          %p215 = pneg %p105
        $region22: #{swin_block_pallas.3} parent=11 // pred_check_branch
          %217 = sbr.rel (%p215) target = $region24
        $region23: #{swin_block_pallas.3} parent=11 // pred_region
          _
        $region24: #{swin_block_pallas.3} parent=11 // pred_fallthru
          _
        // Predicated region
        $region25: #{swin_block_pallas.3} parent=11 // pred_check
          %p218 = pneg %p126
        $region26: #{swin_block_pallas.3} parent=11 // pred_check_branch
          %220 = sbr.rel (%p218) target = $region28
        $region27: #{swin_block_pallas.3} parent=11 // pred_region
          _
        $region28: #{swin_block_pallas.3} parent=11 // pred_fallthru
          _
        // Predicated region
        $region29: #{swin_block_pallas.3} parent=11 // pred_check
          %p221 = pneg %p147
        $region30: #{swin_block_pallas.3} parent=11 // pred_check_branch
          %223 = sbr.rel (%p221) target = $region32
        $region31: #{swin_block_pallas.3} parent=11 // pred_region
          _
        $region32: #{swin_block_pallas.3} parent=11 // pred_fallthru
          _
        // Predicated region
        $region33: #{swin_block_pallas.3} parent=11 // pred_check
          %p224 = pneg %p168
        $region34: #{swin_block_pallas.3} parent=11 // pred_check_branch
          %226 = sbr.rel (%p224) target = $region36
        $region35: #{swin_block_pallas.3} parent=11 // pred_region
          _
        $region36: #{swin_block_pallas.3} parent=11 // pred_fallthru
          _
      $region12: #{swin_block_pallas.3} parent=5 // pred_fallthru
        _
      %p227 = scmp.lt.s32.totalorder %s16, 4
      // Predicated region
      $region37: #{swin_block_pallas.3} parent=5 // pred_check
        %p228 = pneg %p227
      $region38: #{swin_block_pallas.3} parent=5 // pred_check_branch
        %230 = sbr.rel (%p228) target = $region40
      $region39: #{swin_block_pallas.3} parent=5 // pred_region
        // Predicated region
        $region41: #{swin_block_pallas.3} parent=39 // pred_check
          %p231 = pneg %p36
        $region42: #{swin_block_pallas.3} parent=39 // pred_check_branch
          %233 = sbr.rel (%p231) target = $region44
        $region43: #{swin_block_pallas.3} parent=39 // pred_region
          %s234 = smul.u32 16, %s16
          %p235 = scmp.lt.s32.totalorder %s234, 63
          %s236 = scalar_select %p235, %s234, 63
          %s237 = smul.addr %s236, 8
          %s238 = scalar_lea.vmem %s0, %s237
          %s239 = smul.u32 16, %s16
        $region44: #{swin_block_pallas.3} parent=39 // pred_fallthru
          _
      $region40: #{swin_block_pallas.3} parent=5 // pred_fallthru
        _
      %p240 = scmp.le.s32.totalorder 1, %s16
      %p241 = scmp.lt.s32.totalorder %s16, 5
      %p242 = pnand %p240, %p241
      %p243 = pneg %p242
      // Predicated region
      $region45: #{swin_block_pallas.3} parent=5 // pred_check
        _
      $region46: #{swin_block_pallas.3} parent=5 // pred_check_branch
        %245 = sbr.rel (%p242) target = $region48
      $region47: #{swin_block_pallas.3} parent=5 // pred_region
        %s246 = ssub.s32 %s16, 1
        %s247 = smul.u32 16, %s21
        %p248 = scmp.lt.s32.totalorder %s247, 63
        %s249 = scalar_select %p248, %s247, 63
        %s250 = smul.addr %s249, 8
        %s251 = scalar_lea.vmem %s0, %s250
        %p252 = pneg %p42
        %p253 = pneg %p39
        %p254 = pneg %p63
        %p255 = pneg %p60
        %p256 = pneg %p84
        %p257 = pneg %p81
        %p258 = pneg %p105
        %p259 = pneg %p102
        %p260 = pneg %p126
        %p261 = pneg %p123
        %p262 = pneg %p147
        %p263 = pneg %p144
        %p264 = pneg %p168
        %p265 = pneg %p165
        %p266 = pneg %p194
        %p267 = pneg %p191
        %s268 = sand.u32 %s181, 1
        %s269 = scalar_lea.sflag [#allocation3], %s268
        %s270 = sand.u32 %s181, 1
        %s271 = smul.addr %s270, 128
        %s272 = scalar_lea.vmem [#allocation2], %s271
        %s273 = smul.u32 16, %s21
        %p274 = scmp.lt.s32.totalorder %s273, 63
        %s275 = scalar_select %p274, %s273, 63
        %s276 = smul.addr %s275, 8
        %s277 = scalar_lea.vmem %s0, %s276
        %s278 = smul.u32 16, %s21
        %s279 = smul.u32 16, %s21
        %v281 = vld [vmem:[%s277] sm:$0xff]
        %v282 = vld [vmem:[%s277 + $0x8] sm:$0xff]
        %v283 = vld [vmem:[%s277 + $0x10] sm:$0xff]
        %v284 = vld [vmem:[%s277 + $0x18] sm:$0xff]
        %v285 = vld [vmem:[%s277 + $0x20] sm:$0xff]
        %v286 = vld [vmem:[%s277 + $0x28] sm:$0xff]
        %v287 = vld [vmem:[%s277 + $0x30] sm:$0xff]
        %v288 = vld [vmem:[%s277 + $0x38] sm:$0xff]
        %v289 = vld [vmem:[%s277 + $0x40] sm:$0xff]
        %v290 = vld [vmem:[%s277 + $0x48] sm:$0xff]
        %v291 = vld [vmem:[%s277 + $0x50] sm:$0xff]
        %v292 = vld [vmem:[%s277 + $0x58] sm:$0xff]
        %v293 = vld [vmem:[%s277 + $0x60] sm:$0xff]
        %v294 = vld [vmem:[%s277 + $0x68] sm:$0xff]
        %v295 = vld [vmem:[%s277 + $0x70] sm:$0xff]
        %v296 = vld [vmem:[%s277 + $0x78] sm:$0xff]
        %297 = vadd.xlane.f32.xlu0 %v281
        %v298 = vpop.xlane.xlu0 %297
        %299 = vadd.xlane.f32.xlu0 %v282
        %v300 = vpop.xlane.xlu0 %299
        %301 = vadd.xlane.f32.xlu0 %v283
        %v302 = vpop.xlane.xlu0 %301
        %303 = vadd.xlane.f32.xlu0 %v284
        %v304 = vpop.xlane.xlu0 %303
        %305 = vadd.xlane.f32.xlu0 %v285
        %v306 = vpop.xlane.xlu0 %305
        %307 = vadd.xlane.f32.xlu0 %v286
        %v308 = vpop.xlane.xlu0 %307
        %309 = vadd.xlane.f32.xlu0 %v287
        %v310 = vpop.xlane.xlu0 %309
        %311 = vadd.xlane.f32.xlu0 %v288
        %v312 = vpop.xlane.xlu0 %311
        %313 = vadd.xlane.f32.xlu0 %v289
        %v314 = vpop.xlane.xlu0 %313
        %315 = vadd.xlane.f32.xlu0 %v290
        %v316 = vpop.xlane.xlu0 %315
        %317 = vadd.xlane.f32.xlu0 %v291
        %v318 = vpop.xlane.xlu0 %317
        %319 = vadd.xlane.f32.xlu0 %v292
        %v320 = vpop.xlane.xlu0 %319
        %321 = vadd.xlane.f32.xlu0 %v293
        %v322 = vpop.xlane.xlu0 %321
        %323 = vadd.xlane.f32.xlu0 %v294
        %v324 = vpop.xlane.xlu0 %323
        %325 = vadd.xlane.f32.xlu0 %v295
        %v326 = vpop.xlane.xlu0 %325
        %327 = vadd.xlane.f32.xlu0 %v296
        %v328 = vpop.xlane.xlu0 %327
        %v329 = vrcp.pop 128.0
        %v330 = vmul.f32 %v298, %v329
        %v331 = vmul.f32 %v300, %v329
        %v332 = vmul.f32 %v302, %v329
        %v333 = vmul.f32 %v304, %v329
        %v334 = vmul.f32 %v306, %v329
        %v335 = vmul.f32 %v308, %v329
        %v336 = vmul.f32 %v310, %v329
        %v337 = vmul.f32 %v312, %v329
        %v338 = vmul.f32 %v314, %v329
        %v339 = vmul.f32 %v316, %v329
        %v340 = vmul.f32 %v318, %v329
        %v341 = vmul.f32 %v320, %v329
        %v342 = vmul.f32 %v322, %v329
        %v343 = vmul.f32 %v324, %v329
        %v344 = vmul.f32 %v326, %v329
        %v345 = vmul.f32 %v328, %v329
        %v346 = vsub.f32 %v281, %v330
        %v347 = vsub.f32 %v282, %v331
        %v348 = vsub.f32 %v283, %v332
        %v349 = vsub.f32 %v284, %v333
        %v350 = vsub.f32 %v285, %v334
        %v351 = vsub.f32 %v286, %v335
        %v352 = vsub.f32 %v287, %v336
        %v353 = vsub.f32 %v288, %v337
        %v354 = vsub.f32 %v289, %v338
        %v355 = vsub.f32 %v290, %v339
        %v356 = vsub.f32 %v291, %v340
        %v357 = vsub.f32 %v292, %v341
        %v358 = vsub.f32 %v293, %v342
        %v359 = vsub.f32 %v294, %v343
        %v360 = vsub.f32 %v295, %v344
        %v361 = vsub.f32 %v296, %v345
        %v362 = vmul.f32 %v346, %v346
        %v363 = vmul.f32 %v347, %v347
        %v364 = vmul.f32 %v348, %v348
        %v365 = vmul.f32 %v349, %v349
        %v366 = vmul.f32 %v350, %v350
        %v367 = vmul.f32 %v351, %v351
        %v368 = vmul.f32 %v352, %v352
        %v369 = vmul.f32 %v353, %v353
        %v370 = vmul.f32 %v354, %v354
        %v371 = vmul.f32 %v355, %v355
        %v372 = vmul.f32 %v356, %v356
        %v373 = vmul.f32 %v357, %v357
        %v374 = vmul.f32 %v358, %v358
        %v375 = vmul.f32 %v359, %v359
        %v376 = vmul.f32 %v360, %v360
        %v377 = vmul.f32 %v361, %v361
        %378 = vadd.xlane.f32.xlu0 %v362
        %v379 = vpop.xlane.xlu0 %378
        %380 = vadd.xlane.f32.xlu0 %v363
        %v381 = vpop.xlane.xlu0 %380
        %382 = vadd.xlane.f32.xlu0 %v364
        %v383 = vpop.xlane.xlu0 %382
        %384 = vadd.xlane.f32.xlu0 %v365
        %v385 = vpop.xlane.xlu0 %384
        %386 = vadd.xlane.f32.xlu0 %v366
        %v387 = vpop.xlane.xlu0 %386
        %388 = vadd.xlane.f32.xlu0 %v367
        %v389 = vpop.xlane.xlu0 %388
        %390 = vadd.xlane.f32.xlu0 %v368
        %v391 = vpop.xlane.xlu0 %390
        %392 = vadd.xlane.f32.xlu0 %v369
        %v393 = vpop.xlane.xlu0 %392
        %394 = vadd.xlane.f32.xlu0 %v370
        %v395 = vpop.xlane.xlu0 %394
        %396 = vadd.xlane.f32.xlu0 %v371
        %v397 = vpop.xlane.xlu0 %396
        %398 = vadd.xlane.f32.xlu0 %v372
        %v399 = vpop.xlane.xlu0 %398
        %400 = vadd.xlane.f32.xlu0 %v373
        %v401 = vpop.xlane.xlu0 %400
        %402 = vadd.xlane.f32.xlu0 %v374
        %v403 = vpop.xlane.xlu0 %402
        %404 = vadd.xlane.f32.xlu0 %v375
        %v405 = vpop.xlane.xlu0 %404
        %406 = vadd.xlane.f32.xlu0 %v376
        %v407 = vpop.xlane.xlu0 %406
        %408 = vadd.xlane.f32.xlu0 %v377
        %v409 = vpop.xlane.xlu0 %408
        %v410 = vmul.f32 %v379, %v329
        %v411 = vmul.f32 %v381, %v329
        %v412 = vmul.f32 %v383, %v329
        %v413 = vmul.f32 %v385, %v329
        %v414 = vmul.f32 %v387, %v329
        %v415 = vmul.f32 %v389, %v329
        %v416 = vmul.f32 %v391, %v329
        %v417 = vmul.f32 %v393, %v329
        %v418 = vmul.f32 %v395, %v329
        %v419 = vmul.f32 %v397, %v329
        %v420 = vmul.f32 %v399, %v329
        %v421 = vmul.f32 %v401, %v329
        %v422 = vmul.f32 %v403, %v329
        %v423 = vmul.f32 %v405, %v329
        %v424 = vmul.f32 %v407, %v329
        %v425 = vmul.f32 %v409, %v329
        %v426 = vadd.f32 %v410, 1e-05
        %v427 = vadd.f32 %v411, 1e-05
        %v428 = vadd.f32 %v412, 1e-05
        %v429 = vadd.f32 %v413, 1e-05
        %v430 = vadd.f32 %v414, 1e-05
        %v431 = vadd.f32 %v415, 1e-05
        %v432 = vadd.f32 %v416, 1e-05
        %v433 = vadd.f32 %v417, 1e-05
        %v434 = vadd.f32 %v418, 1e-05
        %v435 = vadd.f32 %v419, 1e-05
        %v436 = vadd.f32 %v420, 1e-05
        %v437 = vadd.f32 %v421, 1e-05
        %v438 = vadd.f32 %v422, 1e-05
        %v439 = vadd.f32 %v423, 1e-05
        %v440 = vadd.f32 %v424, 1e-05
        %v441 = vadd.f32 %v425, 1e-05
        %v442 = vrsqrt.pop %v426
        %v443 = vrsqrt.pop %v427
        %v444 = vrsqrt.pop %v428
        %v445 = vrsqrt.pop %v429
        %v446 = vrsqrt.pop %v430
        %v447 = vrsqrt.pop %v431
        %v448 = vrsqrt.pop %v432
        %v449 = vrsqrt.pop %v433
        %v450 = vrsqrt.pop %v434
        %v451 = vrsqrt.pop %v435
        %v452 = vrsqrt.pop %v436
        %v453 = vrsqrt.pop %v437
        %v454 = vrsqrt.pop %v438
        %v455 = vrsqrt.pop %v439
        %v456 = vrsqrt.pop %v440
        %v457 = vrsqrt.pop %v441
        %v458 = vmul.f32 %v346, %v442
        %v459 = vmul.f32 %v347, %v443
        %v460 = vmul.f32 %v348, %v444
        %v461 = vmul.f32 %v349, %v445
        %v462 = vmul.f32 %v350, %v446
        %v463 = vmul.f32 %v351, %v447
        %v464 = vmul.f32 %v352, %v448
        %v465 = vmul.f32 %v353, %v449
        %v466 = vmul.f32 %v354, %v450
        %v467 = vmul.f32 %v355, %v451
        %v468 = vmul.f32 %v356, %v452
        %v469 = vmul.f32 %v357, %v453
        %v470 = vmul.f32 %v358, %v454
        %v471 = vmul.f32 %v359, %v455
        %v472 = vmul.f32 %v360, %v456
        %v473 = vmul.f32 %v361, %v457
        %v474 = vld [vmem:[%s1] sm:$0x1]
        %v476 = vlaneseq
        %v477 = vshrl.u32 %v476, 7
        %v478 = vsub.s32 0, %v477
        %v479 = vrot.slane %v474, %v478
        %v481 = vmul.f32 %v458, %v479
        %v482 = vmul.f32 %v459, %v479
        %v483 = vmul.f32 %v460, %v479
        %v484 = vmul.f32 %v461, %v479
        %v485 = vmul.f32 %v462, %v479
        %v486 = vmul.f32 %v463, %v479
        %v487 = vmul.f32 %v464, %v479
        %v488 = vmul.f32 %v465, %v479
        %v489 = vmul.f32 %v466, %v479
        %v490 = vmul.f32 %v467, %v479
        %v491 = vmul.f32 %v468, %v479
        %v492 = vmul.f32 %v469, %v479
        %v493 = vmul.f32 %v470, %v479
        %v494 = vmul.f32 %v471, %v479
        %v495 = vmul.f32 %v472, %v479
        %v496 = vmul.f32 %v473, %v479
        %v497 = vld [vmem:[%s2] sm:$0x1]
        %v499 = vlaneseq
        %v500 = vshrl.u32 %v499, 7
        %v501 = vsub.s32 0, %v500
        %v502 = vrot.slane %v497, %v501
        %v504 = vadd.f32 %v481, %v502
        %v505 = vadd.f32 %v482, %v502
        %v506 = vadd.f32 %v483, %v502
        %v507 = vadd.f32 %v484, %v502
        %v508 = vadd.f32 %v485, %v502
        %v509 = vadd.f32 %v486, %v502
        %v510 = vadd.f32 %v487, %v502
        %v511 = vadd.f32 %v488, %v502
        %v512 = vadd.f32 %v489, %v502
        %v513 = vadd.f32 %v490, %v502
        %v514 = vadd.f32 %v491, %v502
        %v515 = vadd.f32 %v492, %v502
        %v516 = vadd.f32 %v493, %v502
        %v517 = vadd.f32 %v494, %v502
        %v518 = vadd.f32 %v495, %v502
        %v519 = vadd.f32 %v496, %v502
        %v520 = vpack.c.bf16 %v505, %v504
        %v521 = vpack.c.bf16 %v507, %v506
        %v522 = vpack.c.bf16 %v509, %v508
        %v523 = vpack.c.bf16 %v511, %v510
        %v524 = vpack.c.bf16 %v513, %v512
        %v525 = vpack.c.bf16 %v515, %v514
        %v526 = vpack.c.bf16 %v517, %v516
        %v527 = vpack.c.bf16 %v519, %v518
        %v528 = vld [vmem:[%s3] sm:$0xff]
        %v529 = vld [vmem:[%s3 + $0x8] sm:$0xff]
        %v530 = vld [vmem:[%s3 + $0x10] sm:$0xff]
        %v531 = vld [vmem:[%s3 + $0x18] sm:$0xff]
        %v532 = vld [vmem:[%s3 + $0x20] sm:$0xff]
        %v533 = vld [vmem:[%s3 + $0x28] sm:$0xff]
        %v534 = vld [vmem:[%s3 + $0x30] sm:$0xff]
        %v535 = vld [vmem:[%s3 + $0x38] sm:$0xff]
        %v536 = vld [vmem:[%s3 + $0x40] sm:$0xff]
        %v537 = vld [vmem:[%s3 + $0x48] sm:$0xff]
        %v538 = vld [vmem:[%s3 + $0x50] sm:$0xff]
        %v539 = vld [vmem:[%s3 + $0x58] sm:$0xff]
        %v540 = vld [vmem:[%s3 + $0x60] sm:$0xff]
        %v541 = vld [vmem:[%s3 + $0x68] sm:$0xff]
        %v542 = vld [vmem:[%s3 + $0x70] sm:$0xff]
        %v543 = vld [vmem:[%s3 + $0x78] sm:$0xff]
        %v544 = vld [vmem:[%s3 + $0x80] sm:$0xff]
        %v545 = vld [vmem:[%s3 + $0x88] sm:$0xff]
        %v546 = vld [vmem:[%s3 + $0x90] sm:$0xff]
        %v547 = vld [vmem:[%s3 + $0x98] sm:$0xff]
        %v548 = vld [vmem:[%s3 + $0xa0] sm:$0xff]
        %v549 = vld [vmem:[%s3 + $0xa8] sm:$0xff]
        %v550 = vld [vmem:[%s3 + $0xb0] sm:$0xff]
        %v551 = vld [vmem:[%s3 + $0xb8] sm:$0xff]
        %v552 = vld [vmem:[%s3 + $0xc0] sm:$0xff]
        %v553 = vld [vmem:[%s3 + $0xc8] sm:$0xff]
        %v554 = vld [vmem:[%s3 + $0xd0] sm:$0xff]
        %v555 = vld [vmem:[%s3 + $0xd8] sm:$0xff]
        %v556 = vld [vmem:[%s3 + $0xe0] sm:$0xff]
        %v557 = vld [vmem:[%s3 + $0xe8] sm:$0xff]
        %v558 = vld [vmem:[%s3 + $0xf0] sm:$0xff]
        %v559 = vld [vmem:[%s3 + $0xf8] sm:$0xff]
        %v560 = vld [vmem:[%s4] sm:$0xf]
        %v562 = vlaneseq
        %v563 = vshrl.u32 %v562, 7
        %v564 = vsub.s32 0, %v563
        %v565 = vrot.slane %v560, %v564
        %v566 = vlaneseq
        %v567 = vshrl.u32 %v566, 7
        %v568 = vsub.s32 1, %v567
        %v569 = vrot.slane %v560, %v568
        %v570 = vlaneseq
        %v571 = vshrl.u32 %v570, 7
        %v572 = vsub.s32 2, %v571
        %v573 = vrot.slane %v560, %v572
        %v574 = vlaneseq
        %v575 = vshrl.u32 %v574, 7
        %v576 = vsub.s32 3, %v575
        %v577 = vrot.slane %v560, %v576
        %v614 = vunpack.c.l.b16 %v528
        %v615 = vunpack.c.h.b16 %v528
        %v616 = vunpack.c.l.b16 %v529
        %v617 = vunpack.c.h.b16 %v529
        %v618 = vunpack.c.l.b16 %v530
        %v619 = vunpack.c.h.b16 %v530
        %v620 = vunpack.c.l.b16 %v531
        %v621 = vunpack.c.h.b16 %v531
        %v622 = vunpack.c.l.b16 %v532
        %v623 = vunpack.c.h.b16 %v532
        %v624 = vunpack.c.l.b16 %v533
        %v625 = vunpack.c.h.b16 %v533
        %v626 = vunpack.c.l.b16 %v534
        %v627 = vunpack.c.h.b16 %v534
        %v628 = vunpack.c.l.b16 %v535
        %v629 = vunpack.c.h.b16 %v535
        %v630 = vunpack.c.l.b16 %v536
        %v631 = vunpack.c.h.b16 %v536
        %v632 = vunpack.c.l.b16 %v537
        %v633 = vunpack.c.h.b16 %v537
        %v634 = vunpack.c.l.b16 %v538
        %v635 = vunpack.c.h.b16 %v538
        %v636 = vunpack.c.l.b16 %v539
        %v637 = vunpack.c.h.b16 %v539
        %v638 = vunpack.c.l.b16 %v540
        %v639 = vunpack.c.h.b16 %v540
        %v640 = vunpack.c.l.b16 %v541
        %v641 = vunpack.c.h.b16 %v541
        %v642 = vunpack.c.l.b16 %v542
        %v643 = vunpack.c.h.b16 %v542
        %v644 = vunpack.c.l.b16 %v543
        %v645 = vunpack.c.h.b16 %v543
        %v646 = vunpack.c.l.b16 %v544
        %v647 = vunpack.c.h.b16 %v544
        %v648 = vunpack.c.l.b16 %v545
        %v649 = vunpack.c.h.b16 %v545
        %v650 = vunpack.c.l.b16 %v546
        %v651 = vunpack.c.h.b16 %v546
        %v652 = vunpack.c.l.b16 %v547
        %v653 = vunpack.c.h.b16 %v547
        %v654 = vunpack.c.l.b16 %v548
        %v655 = vunpack.c.h.b16 %v548
        %v656 = vunpack.c.l.b16 %v549
        %v657 = vunpack.c.h.b16 %v549
        %v658 = vunpack.c.l.b16 %v550
        %v659 = vunpack.c.h.b16 %v550
        %v660 = vunpack.c.l.b16 %v551
        %v661 = vunpack.c.h.b16 %v551
        %v662 = vunpack.c.l.b16 %v552
        %v663 = vunpack.c.h.b16 %v552
        %v664 = vunpack.c.l.b16 %v553
        %v665 = vunpack.c.h.b16 %v553
        %v666 = vunpack.c.l.b16 %v554
        %v667 = vunpack.c.h.b16 %v554
        %v668 = vunpack.c.l.b16 %v555
        %v669 = vunpack.c.h.b16 %v555
        %v670 = vunpack.c.l.b16 %v556
        %v671 = vunpack.c.h.b16 %v556
        %v672 = vunpack.c.l.b16 %v557
        %v673 = vunpack.c.h.b16 %v557
        %v674 = vunpack.c.l.b16 %v558
        %v675 = vunpack.c.h.b16 %v558
        %v676 = vunpack.c.l.b16 %v559
        %v677 = vunpack.c.h.b16 %v559
        %v678 = vpack.c.b16 %v618, %v614
        %v679 = vpack.c.b16 %v619, %v615
        %v680 = vpack.c.b16 %v620, %v616
        %v681 = vpack.c.b16 %v621, %v617
        %v682 = vpack.c.b16 %v626, %v622
        %v683 = vpack.c.b16 %v627, %v623
        %v684 = vpack.c.b16 %v628, %v624
        %v685 = vpack.c.b16 %v629, %v625
        %v686 = vpack.c.b16 %v634, %v630
        %v687 = vpack.c.b16 %v635, %v631
        %v688 = vpack.c.b16 %v636, %v632
        %v689 = vpack.c.b16 %v637, %v633
        %v690 = vpack.c.b16 %v642, %v638
        %v691 = vpack.c.b16 %v643, %v639
        %v692 = vpack.c.b16 %v644, %v640
        %v693 = vpack.c.b16 %v645, %v641
        %v694 = vpack.c.b16 %v650, %v646
        %v695 = vpack.c.b16 %v651, %v647
        %v696 = vpack.c.b16 %v652, %v648
        %v697 = vpack.c.b16 %v653, %v649
        %v698 = vpack.c.b16 %v658, %v654
        %v699 = vpack.c.b16 %v659, %v655
        %v700 = vpack.c.b16 %v660, %v656
        %v701 = vpack.c.b16 %v661, %v657
        %v702 = vpack.c.b16 %v666, %v662
        %v703 = vpack.c.b16 %v667, %v663
        %v704 = vpack.c.b16 %v668, %v664
        %v705 = vpack.c.b16 %v669, %v665
        %v706 = vpack.c.b16 %v674, %v670
        %v707 = vpack.c.b16 %v675, %v671
        %v708 = vpack.c.b16 %v676, %v672
        %v709 = vpack.c.b16 %v677, %v673
        %742 = vmatprep.subr.bf16.mxu0 %v707
        %743 = vmatpush1.bf16.msra.mxu0 %v706
        %744 = vmatprep.subr.bf16.mxu0 %v703
        %745 = vmatpush1.bf16.msra.mxu0 %v702
        %746 = vmatprep.subr.bf16.mxu0 %v699
        %747 = vmatpush1.bf16.msra.mxu0 %v698
        %748 = vmatprep.subr.bf16.mxu0 %v695
        %749 = vmatpush1.bf16.msra.mxu0 %v694
        %750 = vmatprep.subr.bf16.mxu0 %v691
        %751 = vmatpush1.bf16.msra.mxu0 %v690
        %752 = vmatprep.subr.bf16.mxu0 %v687
        %753 = vmatpush1.bf16.msra.mxu0 %v686
        %754 = vmatprep.subr.bf16.mxu0 %v683
        %755 = vmatpush1.bf16.msra.mxu0 %v682
        %756 = vmatprep.subr.bf16.mxu0 %v679
        %757 = vmatpush1.bf16.msra.mxu0 %v678
        %758 = vmatprep.subr.bf16.mxu0 0
        %759 = vmatpush2.bf16.msra.mxu0 0
        %760 = vmatprep.subr.bf16.mxu0 0
        %761 = vmatpush2.bf16.msra.mxu0 0
        %762 = vmatprep.subr.bf16.mxu0 0
        %763 = vmatpush2.bf16.msra.mxu0 0
        %764 = vmatprep.subr.bf16.mxu0 0
        %765 = vmatpush2.bf16.msra.mxu0 0
        %766 = vmatprep.subr.bf16.mxu0 0
        %767 = vmatpush2.bf16.msra.mxu0 0
        %768 = vmatprep.subr.bf16.mxu0 0
        %769 = vmatpush2.bf16.msra.mxu0 0
        %770 = vmatprep.subr.bf16.mxu0 0
        %771 = vmatpush2.bf16.msra.mxu0 0
        %772 = vmatprep.subr.bf16.mxu0 0
        %773 = vmatpush2.bf16.msra.mxu0 0
        %774 = vmatprep.mubr.bf16.mxu0 0
        %775 = vmatmul.mubr.bf16.gmra.mxu0 %v520
        %v776 = vpop.f32.mrf.mxu0
        %v777 = vadd.f32 %v565, %v776
        %v778 = vpop.f32.mrf.mxu0
        %v779 = vadd.f32 %v569, %v778
        %v780 = vpop.f32.mrf.mxu0
        %v781 = vadd.f32 %v565, %v780
        %v782 = vpop.f32.mrf.mxu0
        %v783 = vadd.f32 %v569, %v782
        %784 = vmatprep.mubr.bf16.mxu0 0
        %785 = vmatmul.mubr.bf16.gmra.mxu0 %v521
        %v786 = vpop.f32.mrf.mxu0
        %v787 = vadd.f32 %v565, %v786
        %v788 = vpop.f32.mrf.mxu0
        %v789 = vadd.f32 %v569, %v788
        %v790 = vpop.f32.mrf.mxu0
        %v791 = vadd.f32 %v565, %v790
        %v792 = vpop.f32.mrf.mxu0
        %v793 = vadd.f32 %v569, %v792
        %794 = vmatprep.mubr.bf16.mxu0 0
        %795 = vmatmul.mubr.bf16.gmra.mxu0 %v522
        %v796 = vpop.f32.mrf.mxu0
        %v797 = vadd.f32 %v565, %v796
        %v798 = vpop.f32.mrf.mxu0
        %v799 = vadd.f32 %v569, %v798
        %v800 = vpop.f32.mrf.mxu0
        %v801 = vadd.f32 %v565, %v800
        %v802 = vpop.f32.mrf.mxu0
        %v803 = vadd.f32 %v569, %v802
        %804 = vmatprep.mubr.bf16.mxu0 0
        %805 = vmatmul.mubr.bf16.gmra.mxu0 %v523
        %v806 = vpop.f32.mrf.mxu0
        %v807 = vadd.f32 %v565, %v806
        %v808 = vpop.f32.mrf.mxu0
        %v809 = vadd.f32 %v569, %v808
        %v810 = vpop.f32.mrf.mxu0
        %v811 = vadd.f32 %v565, %v810
        %v812 = vpop.f32.mrf.mxu0
        %v813 = vadd.f32 %v569, %v812
        %814 = vmatprep.mubr.bf16.mxu0 0
        %815 = vmatmul.mubr.bf16.gmra.mxu0 %v524
        %v816 = vpop.f32.mrf.mxu0
        %v817 = vadd.f32 %v565, %v816
        %v818 = vpop.f32.mrf.mxu0
        %v819 = vadd.f32 %v569, %v818
        %v820 = vpop.f32.mrf.mxu0
        %v821 = vadd.f32 %v565, %v820
        %v822 = vpop.f32.mrf.mxu0
        %v823 = vadd.f32 %v569, %v822
        %824 = vmatprep.mubr.bf16.mxu0 0
        %825 = vmatmul.mubr.bf16.gmra.mxu0 %v525
        %v826 = vpop.f32.mrf.mxu0
        %v827 = vadd.f32 %v565, %v826
        %v828 = vpop.f32.mrf.mxu0
        %v829 = vadd.f32 %v569, %v828
        %v830 = vpop.f32.mrf.mxu0
        %v831 = vadd.f32 %v565, %v830
        %v832 = vpop.f32.mrf.mxu0
        %v833 = vadd.f32 %v569, %v832
        %834 = vmatprep.mubr.bf16.mxu0 0
        %835 = vmatmul.mubr.bf16.gmra.mxu0 %v526
        %v836 = vpop.f32.mrf.mxu0
        %v837 = vadd.f32 %v565, %v836
        %v838 = vpop.f32.mrf.mxu0
        %v839 = vadd.f32 %v569, %v838
        %v840 = vpop.f32.mrf.mxu0
        %v841 = vadd.f32 %v565, %v840
        %v842 = vpop.f32.mrf.mxu0
        %v843 = vadd.f32 %v569, %v842
        %844 = vmatprep.mubr.bf16.mxu0 0
        %845 = vmatmul.mubr.bf16.gmra.mxu0 %v527
        %v846 = vpop.f32.mrf.mxu0
        %v847 = vadd.f32 %v565, %v846
        %v848 = vpop.f32.mrf.mxu0
        %v849 = vadd.f32 %v569, %v848
        %v850 = vpop.f32.mrf.mxu0
        %v851 = vadd.f32 %v565, %v850
        %v852 = vpop.f32.mrf.mxu0
        %v853 = vadd.f32 %v569, %v852
        %854 = vdwg.mxu0
        %855 = vmatprep.subr.bf16.mxu0 %v709
        %856 = vmatpush1.bf16.msra.mxu0 %v708
        %857 = vmatprep.subr.bf16.mxu0 %v705
        %858 = vmatpush1.bf16.msra.mxu0 %v704
        %859 = vmatprep.subr.bf16.mxu0 %v701
        %860 = vmatpush1.bf16.msra.mxu0 %v700
        %861 = vmatprep.subr.bf16.mxu0 %v697
        %862 = vmatpush1.bf16.msra.mxu0 %v696
        %863 = vmatprep.subr.bf16.mxu0 %v693
        %864 = vmatpush1.bf16.msra.mxu0 %v692
        %865 = vmatprep.subr.bf16.mxu0 %v689
        %866 = vmatpush1.bf16.msra.mxu0 %v688
        %867 = vmatprep.subr.bf16.mxu0 %v685
        %868 = vmatpush1.bf16.msra.mxu0 %v684
        %869 = vmatprep.subr.bf16.mxu0 %v681
        %870 = vmatpush1.bf16.msra.mxu0 %v680
        %871 = vmatprep.subr.bf16.mxu0 0
        %872 = vmatpush2.bf16.msra.mxu0 0
        %873 = vmatprep.subr.bf16.mxu0 0
        %874 = vmatpush2.bf16.msra.mxu0 0
        %875 = vmatprep.subr.bf16.mxu0 0
        %876 = vmatpush2.bf16.msra.mxu0 0
        %877 = vmatprep.subr.bf16.mxu0 0
        %878 = vmatpush2.bf16.msra.mxu0 0
        %879 = vmatprep.subr.bf16.mxu0 0
        %880 = vmatpush2.bf16.msra.mxu0 0
        %881 = vmatprep.subr.bf16.mxu0 0
        %882 = vmatpush2.bf16.msra.mxu0 0
        %883 = vmatprep.subr.bf16.mxu0 0
        %884 = vmatpush2.bf16.msra.mxu0 0
        %885 = vmatprep.subr.bf16.mxu0 0
        %886 = vmatpush2.bf16.msra.mxu0 0
        %887 = vmatprep.mubr.bf16.mxu0 0
        %888 = vmatmul.mubr.bf16.gmra.mxu0 %v520
        %v889 = vpop.f32.mrf.mxu0
        %v890 = vadd.f32 %v573, %v889
        %v891 = vpop.f32.mrf.mxu0
        %v892 = vadd.f32 %v577, %v891
        %v893 = vpop.f32.mrf.mxu0
        %v894 = vadd.f32 %v573, %v893
        %v895 = vpop.f32.mrf.mxu0
        %v896 = vadd.f32 %v577, %v895
        %897 = vmatprep.mubr.bf16.mxu0 0
        %898 = vmatmul.mubr.bf16.gmra.mxu0 %v521
        %v899 = vpop.f32.mrf.mxu0
        %v900 = vadd.f32 %v573, %v899
        %v901 = vpop.f32.mrf.mxu0
        %v902 = vadd.f32 %v577, %v901
        %v903 = vpop.f32.mrf.mxu0
        %v904 = vadd.f32 %v573, %v903
        %v905 = vpop.f32.mrf.mxu0
        %v906 = vadd.f32 %v577, %v905
        %907 = vmatprep.mubr.bf16.mxu0 0
        %908 = vmatmul.mubr.bf16.gmra.mxu0 %v522
        %v909 = vpop.f32.mrf.mxu0
        %v910 = vadd.f32 %v573, %v909
        %v911 = vpop.f32.mrf.mxu0
        %v912 = vadd.f32 %v577, %v911
        %v913 = vpop.f32.mrf.mxu0
        %v914 = vadd.f32 %v573, %v913
        %v915 = vpop.f32.mrf.mxu0
        %v916 = vadd.f32 %v577, %v915
        %917 = vmatprep.mubr.bf16.mxu0 0
        %918 = vmatmul.mubr.bf16.gmra.mxu0 %v523
        %v919 = vpop.f32.mrf.mxu0
        %v920 = vadd.f32 %v573, %v919
        %v921 = vpop.f32.mrf.mxu0
        %v922 = vadd.f32 %v577, %v921
        %v923 = vpop.f32.mrf.mxu0
        %v924 = vadd.f32 %v573, %v923
        %v925 = vpop.f32.mrf.mxu0
        %v926 = vadd.f32 %v577, %v925
        %927 = vmatprep.mubr.bf16.mxu0 0
        %928 = vmatmul.mubr.bf16.gmra.mxu0 %v524
        %v929 = vpop.f32.mrf.mxu0
        %v930 = vadd.f32 %v573, %v929
        %v931 = vpop.f32.mrf.mxu0
        %v932 = vadd.f32 %v577, %v931
        %v933 = vpop.f32.mrf.mxu0
        %v934 = vadd.f32 %v573, %v933
        %v935 = vpop.f32.mrf.mxu0
        %v936 = vadd.f32 %v577, %v935
        %937 = vmatprep.mubr.bf16.mxu0 0
        %938 = vmatmul.mubr.bf16.gmra.mxu0 %v525
        %v939 = vpop.f32.mrf.mxu0
        %v940 = vadd.f32 %v573, %v939
        %v941 = vpop.f32.mrf.mxu0
        %v942 = vadd.f32 %v577, %v941
        %v943 = vpop.f32.mrf.mxu0
        %v944 = vadd.f32 %v573, %v943
        %v945 = vpop.f32.mrf.mxu0
        %v946 = vadd.f32 %v577, %v945
        %947 = vmatprep.mubr.bf16.mxu0 0
        %948 = vmatmul.mubr.bf16.gmra.mxu0 %v526
        %v949 = vpop.f32.mrf.mxu0
        %v950 = vadd.f32 %v573, %v949
        %v951 = vpop.f32.mrf.mxu0
        %v952 = vadd.f32 %v577, %v951
        %v953 = vpop.f32.mrf.mxu0
        %v954 = vadd.f32 %v573, %v953
        %v955 = vpop.f32.mrf.mxu0
        %v956 = vadd.f32 %v577, %v955
        %957 = vmatprep.mubr.bf16.mxu0 0
        %958 = vmatmul.mubr.bf16.gmra.mxu0 %v527
        %v959 = vpop.f32.mrf.mxu0
        %v960 = vadd.f32 %v573, %v959
        %v961 = vpop.f32.mrf.mxu0
        %v962 = vadd.f32 %v577, %v961
        %v963 = vpop.f32.mrf.mxu0
        %v964 = vadd.f32 %v573, %v963
        %v965 = vpop.f32.mrf.mxu0
        %v966 = vadd.f32 %v577, %v965
        %967 = vdwg.mxu0
        %v968 = vmul.f32 %v777, 0.5
        %v969 = vmul.f32 %v779, 0.5
        %v970 = vmul.f32 %v890, 0.5
        %v971 = vmul.f32 %v892, 0.5
        %v972 = vmul.f32 %v781, 0.5
        %v973 = vmul.f32 %v783, 0.5
        %v974 = vmul.f32 %v894, 0.5
        %v975 = vmul.f32 %v896, 0.5
        %v976 = vmul.f32 %v787, 0.5
        %v977 = vmul.f32 %v789, 0.5
        %v978 = vmul.f32 %v900, 0.5
        %v979 = vmul.f32 %v902, 0.5
        %v980 = vmul.f32 %v791, 0.5
        %v981 = vmul.f32 %v793, 0.5
        %v982 = vmul.f32 %v904, 0.5
        %v983 = vmul.f32 %v906, 0.5
        %v984 = vmul.f32 %v797, 0.5
        %v985 = vmul.f32 %v799, 0.5
        %v986 = vmul.f32 %v910, 0.5
        %v987 = vmul.f32 %v912, 0.5
        %v988 = vmul.f32 %v801, 0.5
        %v989 = vmul.f32 %v803, 0.5
        %v990 = vmul.f32 %v914, 0.5
        %v991 = vmul.f32 %v916, 0.5
        %v992 = vmul.f32 %v807, 0.5
        %v993 = vmul.f32 %v809, 0.5
        %v994 = vmul.f32 %v920, 0.5
        %v995 = vmul.f32 %v922, 0.5
        %v996 = vmul.f32 %v811, 0.5
        %v997 = vmul.f32 %v813, 0.5
        %v998 = vmul.f32 %v924, 0.5
        %v999 = vmul.f32 %v926, 0.5
        %v1000 = vmul.f32 %v817, 0.5
        %v1001 = vmul.f32 %v819, 0.5
        %v1002 = vmul.f32 %v930, 0.5
        %v1003 = vmul.f32 %v932, 0.5
        %v1004 = vmul.f32 %v821, 0.5
        %v1005 = vmul.f32 %v823, 0.5
        %v1006 = vmul.f32 %v934, 0.5
        %v1007 = vmul.f32 %v936, 0.5
        %v1008 = vmul.f32 %v827, 0.5
        %v1009 = vmul.f32 %v829, 0.5
        %v1010 = vmul.f32 %v940, 0.5
        %v1011 = vmul.f32 %v942, 0.5
        %v1012 = vmul.f32 %v831, 0.5
        %v1013 = vmul.f32 %v833, 0.5
        %v1014 = vmul.f32 %v944, 0.5
        %v1015 = vmul.f32 %v946, 0.5
        %v1016 = vmul.f32 %v837, 0.5
        %v1017 = vmul.f32 %v839, 0.5
        %v1018 = vmul.f32 %v950, 0.5
        %v1019 = vmul.f32 %v952, 0.5
        %v1020 = vmul.f32 %v841, 0.5
        %v1021 = vmul.f32 %v843, 0.5
        %v1022 = vmul.f32 %v954, 0.5
        %v1023 = vmul.f32 %v956, 0.5
        %v1024 = vmul.f32 %v847, 0.5
        %v1025 = vmul.f32 %v849, 0.5
        %v1026 = vmul.f32 %v960, 0.5
        %v1027 = vmul.f32 %v962, 0.5
        %v1028 = vmul.f32 %v851, 0.5
        %v1029 = vmul.f32 %v853, 0.5
        %v1030 = vmul.f32 %v964, 0.5
        %v1031 = vmul.f32 %v966, 0.5
        %v1032 = vmul.f32 %v777, 0.70710677
        %v1033 = vmul.f32 %v779, 0.70710677
        %v1034 = vmul.f32 %v890, 0.70710677
        %v1035 = vmul.f32 %v892, 0.70710677
        %v1036 = vmul.f32 %v781, 0.70710677
        %v1037 = vmul.f32 %v783, 0.70710677
        %v1038 = vmul.f32 %v894, 0.70710677
        %v1039 = vmul.f32 %v896, 0.70710677
        %v1040 = vmul.f32 %v787, 0.70710677
        %v1041 = vmul.f32 %v789, 0.70710677
        %v1042 = vmul.f32 %v900, 0.70710677
        %v1043 = vmul.f32 %v902, 0.70710677
        %v1044 = vmul.f32 %v791, 0.70710677
        %v1045 = vmul.f32 %v793, 0.70710677
        %v1046 = vmul.f32 %v904, 0.70710677
        %v1047 = vmul.f32 %v906, 0.70710677
        %v1048 = vmul.f32 %v797, 0.70710677
        %v1049 = vmul.f32 %v799, 0.70710677
        %v1050 = vmul.f32 %v910, 0.70710677
        %v1051 = vmul.f32 %v912, 0.70710677
        %v1052 = vmul.f32 %v801, 0.70710677
        %v1053 = vmul.f32 %v803, 0.70710677
        %v1054 = vmul.f32 %v914, 0.70710677
        %v1055 = vmul.f32 %v916, 0.70710677
        %v1056 = vmul.f32 %v807, 0.70710677
        %v1057 = vmul.f32 %v809, 0.70710677
        %v1058 = vmul.f32 %v920, 0.70710677
        %v1059 = vmul.f32 %v922, 0.70710677
        %v1060 = vmul.f32 %v811, 0.70710677
        %v1061 = vmul.f32 %v813, 0.70710677
        %v1062 = vmul.f32 %v924, 0.70710677
        %v1063 = vmul.f32 %v926, 0.70710677
        %v1064 = vmul.f32 %v817, 0.70710677
        %v1065 = vmul.f32 %v819, 0.70710677
        %v1066 = vmul.f32 %v930, 0.70710677
        %v1067 = vmul.f32 %v932, 0.70710677
        %v1068 = vmul.f32 %v821, 0.70710677
        %v1069 = vmul.f32 %v823, 0.70710677
        %v1070 = vmul.f32 %v934, 0.70710677
        %v1071 = vmul.f32 %v936, 0.70710677
        %v1072 = vmul.f32 %v827, 0.70710677
        %v1073 = vmul.f32 %v829, 0.70710677
        %v1074 = vmul.f32 %v940, 0.70710677
        %v1075 = vmul.f32 %v942, 0.70710677
        %v1076 = vmul.f32 %v831, 0.70710677
        %v1077 = vmul.f32 %v833, 0.70710677
        %v1078 = vmul.f32 %v944, 0.70710677
        %v1079 = vmul.f32 %v946, 0.70710677
        %v1080 = vmul.f32 %v837, 0.70710677
        %v1081 = vmul.f32 %v839, 0.70710677
        %v1082 = vmul.f32 %v950, 0.70710677
        %v1083 = vmul.f32 %v952, 0.70710677
        %v1084 = vmul.f32 %v841, 0.70710677
        %v1085 = vmul.f32 %v843, 0.70710677
        %v1086 = vmul.f32 %v954, 0.70710677
        %v1087 = vmul.f32 %v956, 0.70710677
        %v1088 = vmul.f32 %v847, 0.70710677
        %v1089 = vmul.f32 %v849, 0.70710677
        %v1090 = vmul.f32 %v960, 0.70710677
        %v1091 = vmul.f32 %v962, 0.70710677
        %v1092 = vmul.f32 %v851, 0.70710677
        %v1093 = vmul.f32 %v853, 0.70710677
        %v1094 = vmul.f32 %v964, 0.70710677
        %v1095 = vmul.f32 %v966, 0.70710677
        %v1096 = verf.f32.pop %v1032
        %v1097 = verf.f32.pop %v1033
        %v1098 = verf.f32.pop %v1034
        %v1099 = verf.f32.pop %v1035
        %v1100 = verf.f32.pop %v1036
        %v1101 = verf.f32.pop %v1037
        %v1102 = verf.f32.pop %v1038
        %v1103 = verf.f32.pop %v1039
        %v1104 = verf.f32.pop %v1040
        %v1105 = verf.f32.pop %v1041
        %v1106 = verf.f32.pop %v1042
        %v1107 = verf.f32.pop %v1043
        %v1108 = verf.f32.pop %v1044
        %v1109 = verf.f32.pop %v1045
        %v1110 = verf.f32.pop %v1046
        %v1111 = verf.f32.pop %v1047
        %v1112 = verf.f32.pop %v1048
        %v1113 = verf.f32.pop %v1049
        %v1114 = verf.f32.pop %v1050
        %v1115 = verf.f32.pop %v1051
        %v1116 = verf.f32.pop %v1052
        %v1117 = verf.f32.pop %v1053
        %v1118 = verf.f32.pop %v1054
        %v1119 = verf.f32.pop %v1055
        %v1120 = verf.f32.pop %v1056
        %v1121 = verf.f32.pop %v1057
        %v1122 = verf.f32.pop %v1058
        %v1123 = verf.f32.pop %v1059
        %v1124 = verf.f32.pop %v1060
        %v1125 = verf.f32.pop %v1061
        %v1126 = verf.f32.pop %v1062
        %v1127 = verf.f32.pop %v1063
        %v1128 = verf.f32.pop %v1064
        %v1129 = verf.f32.pop %v1065
        %v1130 = verf.f32.pop %v1066
        %v1131 = verf.f32.pop %v1067
        %v1132 = verf.f32.pop %v1068
        %v1133 = verf.f32.pop %v1069
        %v1134 = verf.f32.pop %v1070
        %v1135 = verf.f32.pop %v1071
        %v1136 = verf.f32.pop %v1072
        %v1137 = verf.f32.pop %v1073
        %v1138 = verf.f32.pop %v1074
        %v1139 = verf.f32.pop %v1075
        %v1140 = verf.f32.pop %v1076
        %v1141 = verf.f32.pop %v1077
        %v1142 = verf.f32.pop %v1078
        %v1143 = verf.f32.pop %v1079
        %v1144 = verf.f32.pop %v1080
        %v1145 = verf.f32.pop %v1081
        %v1146 = verf.f32.pop %v1082
        %v1147 = verf.f32.pop %v1083
        %v1148 = verf.f32.pop %v1084
        %v1149 = verf.f32.pop %v1085
        %v1150 = verf.f32.pop %v1086
        %v1151 = verf.f32.pop %v1087
        %v1152 = verf.f32.pop %v1088
        %v1153 = verf.f32.pop %v1089
        %v1154 = verf.f32.pop %v1090
        %v1155 = verf.f32.pop %v1091
        %v1156 = verf.f32.pop %v1092
        %v1157 = verf.f32.pop %v1093
        %v1158 = verf.f32.pop %v1094
        %v1159 = verf.f32.pop %v1095
        %v1160 = vadd.f32 %v1096, 1.0
        %v1161 = vadd.f32 %v1097, 1.0
        %v1162 = vadd.f32 %v1098, 1.0
        %v1163 = vadd.f32 %v1099, 1.0
        %v1164 = vadd.f32 %v1100, 1.0
        %v1165 = vadd.f32 %v1101, 1.0
        %v1166 = vadd.f32 %v1102, 1.0
        %v1167 = vadd.f32 %v1103, 1.0
        %v1168 = vadd.f32 %v1104, 1.0
        %v1169 = vadd.f32 %v1105, 1.0
        %v1170 = vadd.f32 %v1106, 1.0
        %v1171 = vadd.f32 %v1107, 1.0
        %v1172 = vadd.f32 %v1108, 1.0
        %v1173 = vadd.f32 %v1109, 1.0
        %v1174 = vadd.f32 %v1110, 1.0
        %v1175 = vadd.f32 %v1111, 1.0
        %v1176 = vadd.f32 %v1112, 1.0
        %v1177 = vadd.f32 %v1113, 1.0
        %v1178 = vadd.f32 %v1114, 1.0
        %v1179 = vadd.f32 %v1115, 1.0
        %v1180 = vadd.f32 %v1116, 1.0
        %v1181 = vadd.f32 %v1117, 1.0
        %v1182 = vadd.f32 %v1118, 1.0
        %v1183 = vadd.f32 %v1119, 1.0
        %v1184 = vadd.f32 %v1120, 1.0
        %v1185 = vadd.f32 %v1121, 1.0
        %v1186 = vadd.f32 %v1122, 1.0
        %v1187 = vadd.f32 %v1123, 1.0
        %v1188 = vadd.f32 %v1124, 1.0
        %v1189 = vadd.f32 %v1125, 1.0
        %v1190 = vadd.f32 %v1126, 1.0
        %v1191 = vadd.f32 %v1127, 1.0
        %v1192 = vadd.f32 %v1128, 1.0
        %v1193 = vadd.f32 %v1129, 1.0
        %v1194 = vadd.f32 %v1130, 1.0
        %v1195 = vadd.f32 %v1131, 1.0
        %v1196 = vadd.f32 %v1132, 1.0
        %v1197 = vadd.f32 %v1133, 1.0
        %v1198 = vadd.f32 %v1134, 1.0
        %v1199 = vadd.f32 %v1135, 1.0
        %v1200 = vadd.f32 %v1136, 1.0
        %v1201 = vadd.f32 %v1137, 1.0
        %v1202 = vadd.f32 %v1138, 1.0
        %v1203 = vadd.f32 %v1139, 1.0
        %v1204 = vadd.f32 %v1140, 1.0
        %v1205 = vadd.f32 %v1141, 1.0
        %v1206 = vadd.f32 %v1142, 1.0
        %v1207 = vadd.f32 %v1143, 1.0
        %v1208 = vadd.f32 %v1144, 1.0
        %v1209 = vadd.f32 %v1145, 1.0
        %v1210 = vadd.f32 %v1146, 1.0
        %v1211 = vadd.f32 %v1147, 1.0
        %v1212 = vadd.f32 %v1148, 1.0
        %v1213 = vadd.f32 %v1149, 1.0
        %v1214 = vadd.f32 %v1150, 1.0
        %v1215 = vadd.f32 %v1151, 1.0
        %v1216 = vadd.f32 %v1152, 1.0
        %v1217 = vadd.f32 %v1153, 1.0
        %v1218 = vadd.f32 %v1154, 1.0
        %v1219 = vadd.f32 %v1155, 1.0
        %v1220 = vadd.f32 %v1156, 1.0
        %v1221 = vadd.f32 %v1157, 1.0
        %v1222 = vadd.f32 %v1158, 1.0
        %v1223 = vadd.f32 %v1159, 1.0
        %v1224 = vmul.f32 %v968, %v1160
        %v1225 = vmul.f32 %v969, %v1161
        %v1226 = vmul.f32 %v970, %v1162
        %v1227 = vmul.f32 %v971, %v1163
        %v1228 = vmul.f32 %v972, %v1164
        %v1229 = vmul.f32 %v973, %v1165
        %v1230 = vmul.f32 %v974, %v1166
        %v1231 = vmul.f32 %v975, %v1167
        %v1232 = vmul.f32 %v976, %v1168
        %v1233 = vmul.f32 %v977, %v1169
        %v1234 = vmul.f32 %v978, %v1170
        %v1235 = vmul.f32 %v979, %v1171
        %v1236 = vmul.f32 %v980, %v1172
        %v1237 = vmul.f32 %v981, %v1173
        %v1238 = vmul.f32 %v982, %v1174
        %v1239 = vmul.f32 %v983, %v1175
        %v1240 = vmul.f32 %v984, %v1176
        %v1241 = vmul.f32 %v985, %v1177
        %v1242 = vmul.f32 %v986, %v1178
        %v1243 = vmul.f32 %v987, %v1179
        %v1244 = vmul.f32 %v988, %v1180
        %v1245 = vmul.f32 %v989, %v1181
        %v1246 = vmul.f32 %v990, %v1182
        %v1247 = vmul.f32 %v991, %v1183
        %v1248 = vmul.f32 %v992, %v1184
        %v1249 = vmul.f32 %v993, %v1185
        %v1250 = vmul.f32 %v994, %v1186
        %v1251 = vmul.f32 %v995, %v1187
        %v1252 = vmul.f32 %v996, %v1188
        %v1253 = vmul.f32 %v997, %v1189
        %v1254 = vmul.f32 %v998, %v1190
        %v1255 = vmul.f32 %v999, %v1191
        %v1256 = vmul.f32 %v1000, %v1192
        %v1257 = vmul.f32 %v1001, %v1193
        %v1258 = vmul.f32 %v1002, %v1194
        %v1259 = vmul.f32 %v1003, %v1195
        %v1260 = vmul.f32 %v1004, %v1196
        %v1261 = vmul.f32 %v1005, %v1197
        %v1262 = vmul.f32 %v1006, %v1198
        %v1263 = vmul.f32 %v1007, %v1199
        %v1264 = vmul.f32 %v1008, %v1200
        %v1265 = vmul.f32 %v1009, %v1201
        %v1266 = vmul.f32 %v1010, %v1202
        %v1267 = vmul.f32 %v1011, %v1203
        %v1268 = vmul.f32 %v1012, %v1204
        %v1269 = vmul.f32 %v1013, %v1205
        %v1270 = vmul.f32 %v1014, %v1206
        %v1271 = vmul.f32 %v1015, %v1207
        %v1272 = vmul.f32 %v1016, %v1208
        %v1273 = vmul.f32 %v1017, %v1209
        %v1274 = vmul.f32 %v1018, %v1210
        %v1275 = vmul.f32 %v1019, %v1211
        %v1276 = vmul.f32 %v1020, %v1212
        %v1277 = vmul.f32 %v1021, %v1213
        %v1278 = vmul.f32 %v1022, %v1214
        %v1279 = vmul.f32 %v1023, %v1215
        %v1280 = vmul.f32 %v1024, %v1216
        %v1281 = vmul.f32 %v1025, %v1217
        %v1282 = vmul.f32 %v1026, %v1218
        %v1283 = vmul.f32 %v1027, %v1219
        %v1284 = vmul.f32 %v1028, %v1220
        %v1285 = vmul.f32 %v1029, %v1221
        %v1286 = vmul.f32 %v1030, %v1222
        %v1287 = vmul.f32 %v1031, %v1223
        %v1288 = vpack.c.bf16 %v1228, %v1224
        %v1289 = vpack.c.bf16 %v1229, %v1225
        %v1290 = vpack.c.bf16 %v1230, %v1226
        %v1291 = vpack.c.bf16 %v1231, %v1227
        %v1292 = vpack.c.bf16 %v1236, %v1232
        %v1293 = vpack.c.bf16 %v1237, %v1233
        %v1294 = vpack.c.bf16 %v1238, %v1234
        %v1295 = vpack.c.bf16 %v1239, %v1235
        %v1296 = vpack.c.bf16 %v1244, %v1240
        %v1297 = vpack.c.bf16 %v1245, %v1241
        %v1298 = vpack.c.bf16 %v1246, %v1242
        %v1299 = vpack.c.bf16 %v1247, %v1243
        %v1300 = vpack.c.bf16 %v1252, %v1248
        %v1301 = vpack.c.bf16 %v1253, %v1249
        %v1302 = vpack.c.bf16 %v1254, %v1250
        %v1303 = vpack.c.bf16 %v1255, %v1251
        %v1304 = vpack.c.bf16 %v1260, %v1256
        %v1305 = vpack.c.bf16 %v1261, %v1257
        %v1306 = vpack.c.bf16 %v1262, %v1258
        %v1307 = vpack.c.bf16 %v1263, %v1259
        %v1308 = vpack.c.bf16 %v1268, %v1264
        %v1309 = vpack.c.bf16 %v1269, %v1265
        %v1310 = vpack.c.bf16 %v1270, %v1266
        %v1311 = vpack.c.bf16 %v1271, %v1267
        %v1312 = vpack.c.bf16 %v1276, %v1272
        %v1313 = vpack.c.bf16 %v1277, %v1273
        %v1314 = vpack.c.bf16 %v1278, %v1274
        %v1315 = vpack.c.bf16 %v1279, %v1275
        %v1316 = vpack.c.bf16 %v1284, %v1280
        %v1317 = vpack.c.bf16 %v1285, %v1281
        %v1318 = vpack.c.bf16 %v1286, %v1282
        %v1319 = vpack.c.bf16 %v1287, %v1283
        %v1320 = vld [vmem:[%s5] sm:$0xf]
        %v1321 = vld [vmem:[%s5 + $0x4] sm:$0xf]
        %v1322 = vld [vmem:[%s5 + $0x8] sm:$0xf]
        %v1323 = vld [vmem:[%s5 + $0xc] sm:$0xf]
        %v1324 = vld [vmem:[%s5 + $0x10] sm:$0xf]
        %v1325 = vld [vmem:[%s5 + $0x14] sm:$0xf]
        %v1326 = vld [vmem:[%s5 + $0x18] sm:$0xf]
        %v1327 = vld [vmem:[%s5 + $0x1c] sm:$0xf]
        %v1328 = vld [vmem:[%s5 + $0x20] sm:$0xf]
        %v1329 = vld [vmem:[%s5 + $0x24] sm:$0xf]
        %v1330 = vld [vmem:[%s5 + $0x28] sm:$0xf]
        %v1331 = vld [vmem:[%s5 + $0x2c] sm:$0xf]
        %v1332 = vld [vmem:[%s5 + $0x30] sm:$0xf]
        %v1333 = vld [vmem:[%s5 + $0x34] sm:$0xf]
        %v1334 = vld [vmem:[%s5 + $0x38] sm:$0xf]
        %v1335 = vld [vmem:[%s5 + $0x3c] sm:$0xf]
        %v1336 = vld [vmem:[%s5 + $0x40] sm:$0xf]
        %v1337 = vld [vmem:[%s5 + $0x44] sm:$0xf]
        %v1338 = vld [vmem:[%s5 + $0x48] sm:$0xf]
        %v1339 = vld [vmem:[%s5 + $0x4c] sm:$0xf]
        %v1340 = vld [vmem:[%s5 + $0x50] sm:$0xf]
        %v1341 = vld [vmem:[%s5 + $0x54] sm:$0xf]
        %v1342 = vld [vmem:[%s5 + $0x58] sm:$0xf]
        %v1343 = vld [vmem:[%s5 + $0x5c] sm:$0xf]
        %v1344 = vld [vmem:[%s5 + $0x60] sm:$0xf]
        %v1345 = vld [vmem:[%s5 + $0x64] sm:$0xf]
        %v1346 = vld [vmem:[%s5 + $0x68] sm:$0xf]
        %v1347 = vld [vmem:[%s5 + $0x6c] sm:$0xf]
        %v1348 = vld [vmem:[%s5 + $0x70] sm:$0xf]
        %v1349 = vld [vmem:[%s5 + $0x74] sm:$0xf]
        %v1350 = vld [vmem:[%s5 + $0x78] sm:$0xf]
        %v1351 = vld [vmem:[%s5 + $0x7c] sm:$0xf]
        %v1352 = vld [vmem:[%s5 + $0x80] sm:$0xf]
        %v1353 = vld [vmem:[%s5 + $0x84] sm:$0xf]
        %v1354 = vld [vmem:[%s5 + $0x88] sm:$0xf]
        %v1355 = vld [vmem:[%s5 + $0x8c] sm:$0xf]
        %v1356 = vld [vmem:[%s5 + $0x90] sm:$0xf]
        %v1357 = vld [vmem:[%s5 + $0x94] sm:$0xf]
        %v1358 = vld [vmem:[%s5 + $0x98] sm:$0xf]
        %v1359 = vld [vmem:[%s5 + $0x9c] sm:$0xf]
        %v1360 = vld [vmem:[%s5 + $0xa0] sm:$0xf]
        %v1361 = vld [vmem:[%s5 + $0xa4] sm:$0xf]
        %v1362 = vld [vmem:[%s5 + $0xa8] sm:$0xf]
        %v1363 = vld [vmem:[%s5 + $0xac] sm:$0xf]
        %v1364 = vld [vmem:[%s5 + $0xb0] sm:$0xf]
        %v1365 = vld [vmem:[%s5 + $0xb4] sm:$0xf]
        %v1366 = vld [vmem:[%s5 + $0xb8] sm:$0xf]
        %v1367 = vld [vmem:[%s5 + $0xbc] sm:$0xf]
        %v1368 = vld [vmem:[%s5 + $0xc0] sm:$0xf]
        %v1369 = vld [vmem:[%s5 + $0xc4] sm:$0xf]
        %v1370 = vld [vmem:[%s5 + $0xc8] sm:$0xf]
        %v1371 = vld [vmem:[%s5 + $0xcc] sm:$0xf]
        %v1372 = vld [vmem:[%s5 + $0xd0] sm:$0xf]
        %v1373 = vld [vmem:[%s5 + $0xd4] sm:$0xf]
        %v1374 = vld [vmem:[%s5 + $0xd8] sm:$0xf]
        %v1375 = vld [vmem:[%s5 + $0xdc] sm:$0xf]
        %v1376 = vld [vmem:[%s5 + $0xe0] sm:$0xf]
        %v1377 = vld [vmem:[%s5 + $0xe4] sm:$0xf]
        %v1378 = vld [vmem:[%s5 + $0xe8] sm:$0xf]
        %v1379 = vld [vmem:[%s5 + $0xec] sm:$0xf]
        %v1380 = vld [vmem:[%s5 + $0xf0] sm:$0xf]
        %v1381 = vld [vmem:[%s5 + $0xf4] sm:$0xf]
        %v1382 = vld [vmem:[%s5 + $0xf8] sm:$0xf]
        %v1383 = vld [vmem:[%s5 + $0xfc] sm:$0xf]
        %v1384 = vld [vmem:[%s6] sm:$0x1]
        %v1386 = vlaneseq
        %v1387 = vshrl.u32 %v1386, 7
        %v1388 = vsub.s32 0, %v1387
        %v1389 = vrot.slane %v1384, %v1388
        %v1455 = vunpack.c.l.b16 %v1320
        %v1456 = vunpack.c.l.b16 %v1321
        %v1457 = vunpack.c.l.b16 %v1322
        %v1458 = vunpack.c.l.b16 %v1323
        %v1459 = vunpack.c.l.b16 %v1324
        %v1460 = vunpack.c.l.b16 %v1325
        %v1461 = vunpack.c.l.b16 %v1326
        %v1462 = vunpack.c.l.b16 %v1327
        %v1463 = vunpack.c.l.b16 %v1328
        %v1464 = vunpack.c.l.b16 %v1329
        %v1465 = vunpack.c.l.b16 %v1330
        %v1466 = vunpack.c.l.b16 %v1331
        %v1467 = vunpack.c.l.b16 %v1332
        %v1468 = vunpack.c.l.b16 %v1333
        %v1469 = vunpack.c.l.b16 %v1334
        %v1470 = vunpack.c.l.b16 %v1335
        %v1471 = vunpack.c.l.b16 %v1336
        %v1472 = vunpack.c.l.b16 %v1337
        %v1473 = vunpack.c.l.b16 %v1338
        %v1474 = vunpack.c.l.b16 %v1339
        %v1475 = vunpack.c.l.b16 %v1340
        %v1476 = vunpack.c.l.b16 %v1341
        %v1477 = vunpack.c.l.b16 %v1342
        %v1478 = vunpack.c.l.b16 %v1343
        %v1479 = vunpack.c.l.b16 %v1344
        %v1480 = vunpack.c.l.b16 %v1345
        %v1481 = vunpack.c.l.b16 %v1346
        %v1482 = vunpack.c.l.b16 %v1347
        %v1483 = vunpack.c.l.b16 %v1348
        %v1484 = vunpack.c.l.b16 %v1349
        %v1485 = vunpack.c.l.b16 %v1350
        %v1486 = vunpack.c.l.b16 %v1351
        %v1487 = vunpack.c.l.b16 %v1352
        %v1488 = vunpack.c.l.b16 %v1353
        %v1489 = vunpack.c.l.b16 %v1354
        %v1490 = vunpack.c.l.b16 %v1355
        %v1491 = vunpack.c.l.b16 %v1356
        %v1492 = vunpack.c.l.b16 %v1357
        %v1493 = vunpack.c.l.b16 %v1358
        %v1494 = vunpack.c.l.b16 %v1359
        %v1495 = vunpack.c.l.b16 %v1360
        %v1496 = vunpack.c.l.b16 %v1361
        %v1497 = vunpack.c.l.b16 %v1362
        %v1498 = vunpack.c.l.b16 %v1363
        %v1499 = vunpack.c.l.b16 %v1364
        %v1500 = vunpack.c.l.b16 %v1365
        %v1501 = vunpack.c.l.b16 %v1366
        %v1502 = vunpack.c.l.b16 %v1367
        %v1503 = vunpack.c.l.b16 %v1368
        %v1504 = vunpack.c.l.b16 %v1369
        %v1505 = vunpack.c.l.b16 %v1370
        %v1506 = vunpack.c.l.b16 %v1371
        %v1507 = vunpack.c.l.b16 %v1372
        %v1508 = vunpack.c.l.b16 %v1373
        %v1509 = vunpack.c.l.b16 %v1374
        %v1510 = vunpack.c.l.b16 %v1375
        %v1511 = vunpack.c.l.b16 %v1376
        %v1512 = vunpack.c.l.b16 %v1377
        %v1513 = vunpack.c.l.b16 %v1378
        %v1514 = vunpack.c.l.b16 %v1379
        %v1515 = vunpack.c.l.b16 %v1380
        %v1516 = vunpack.c.l.b16 %v1381
        %v1517 = vunpack.c.l.b16 %v1382
        %v1518 = vunpack.c.l.b16 %v1383
        %v1519 = vpack.c.b16 %v1456, %v1455
        %v1520 = vpack.c.b16 %v1458, %v1457
        %v1521 = vpack.c.b16 %v1460, %v1459
        %v1522 = vpack.c.b16 %v1462, %v1461
        %v1523 = vpack.c.b16 %v1464, %v1463
        %v1524 = vpack.c.b16 %v1466, %v1465
        %v1525 = vpack.c.b16 %v1468, %v1467
        %v1526 = vpack.c.b16 %v1470, %v1469
        %v1527 = vpack.c.b16 %v1472, %v1471
        %v1528 = vpack.c.b16 %v1474, %v1473
        %v1529 = vpack.c.b16 %v1476, %v1475
        %v1530 = vpack.c.b16 %v1478, %v1477
        %v1531 = vpack.c.b16 %v1480, %v1479
        %v1532 = vpack.c.b16 %v1482, %v1481
        %v1533 = vpack.c.b16 %v1484, %v1483
        %v1534 = vpack.c.b16 %v1486, %v1485
        %v1535 = vpack.c.b16 %v1488, %v1487
        %v1536 = vpack.c.b16 %v1490, %v1489
        %v1537 = vpack.c.b16 %v1492, %v1491
        %v1538 = vpack.c.b16 %v1494, %v1493
        %v1539 = vpack.c.b16 %v1496, %v1495
        %v1540 = vpack.c.b16 %v1498, %v1497
        %v1541 = vpack.c.b16 %v1500, %v1499
        %v1542 = vpack.c.b16 %v1502, %v1501
        %v1543 = vpack.c.b16 %v1504, %v1503
        %v1544 = vpack.c.b16 %v1506, %v1505
        %v1545 = vpack.c.b16 %v1508, %v1507
        %v1546 = vpack.c.b16 %v1510, %v1509
        %v1547 = vpack.c.b16 %v1512, %v1511
        %v1548 = vpack.c.b16 %v1514, %v1513
        %v1549 = vpack.c.b16 %v1516, %v1515
        %v1550 = vpack.c.b16 %v1518, %v1517
        %1583 = vmatprep.subr.bf16.mxu0 0
        %1584 = vmatpush1.bf16.msra.mxu0 %v1526
        %1585 = vmatprep.subr.bf16.mxu0 0
        %1586 = vmatpush1.bf16.msra.mxu0 %v1525
        %1587 = vmatprep.subr.bf16.mxu0 0
        %1588 = vmatpush1.bf16.msra.mxu0 %v1524
        %1589 = vmatprep.subr.bf16.mxu0 0
        %1590 = vmatpush1.bf16.msra.mxu0 %v1523
        %1591 = vmatprep.subr.bf16.mxu0 0
        %1592 = vmatpush1.bf16.msra.mxu0 %v1522
        %1593 = vmatprep.subr.bf16.mxu0 0
        %1594 = vmatpush1.bf16.msra.mxu0 %v1521
        %1595 = vmatprep.subr.bf16.mxu0 0
        %1596 = vmatpush1.bf16.msra.mxu0 %v1520
        %1597 = vmatprep.subr.bf16.mxu0 0
        %1598 = vmatpush1.bf16.msra.mxu0 %v1519
        %1599 = vmatprep.subr.bf16.mxu0 0
        %1600 = vmatpush2.bf16.msra.mxu0 %v1534
        %1601 = vmatprep.subr.bf16.mxu0 0
        %1602 = vmatpush2.bf16.msra.mxu0 %v1533
        %1603 = vmatprep.subr.bf16.mxu0 0
        %1604 = vmatpush2.bf16.msra.mxu0 %v1532
        %1605 = vmatprep.subr.bf16.mxu0 0
        %1606 = vmatpush2.bf16.msra.mxu0 %v1531
        %1607 = vmatprep.subr.bf16.mxu0 0
        %1608 = vmatpush2.bf16.msra.mxu0 %v1530
        %1609 = vmatprep.subr.bf16.mxu0 0
        %1610 = vmatpush2.bf16.msra.mxu0 %v1529
        %1611 = vmatprep.subr.bf16.mxu0 0
        %1612 = vmatpush2.bf16.msra.mxu0 %v1528
        %1613 = vmatprep.subr.bf16.mxu0 0
        %1614 = vmatpush2.bf16.msra.mxu0 %v1527
        %1615 = vmatprep.mubr.bf16.mxu0 %v1289
        %1616 = vmatmul.mubr.bf16.gmra.mxu0 %v1288
        %v1617 = vpop.f32.mrf.mxu0
        %v1618 = vadd.f32 %v1389, %v1617
        %v1619 = vpop.f32.mrf.mxu0
        %v1620 = vpop.f32.mrf.mxu0
        %v1621 = vadd.f32 %v1389, %v1620
        %v1622 = vpop.f32.mrf.mxu0
        %1623 = vmatprep.mubr.bf16.mxu0 %v1293
        %1624 = vmatmul.mubr.bf16.gmra.mxu0 %v1292
        %v1625 = vpop.f32.mrf.mxu0
        %v1626 = vadd.f32 %v1389, %v1625
        %v1627 = vpop.f32.mrf.mxu0
        %v1628 = vpop.f32.mrf.mxu0
        %v1629 = vadd.f32 %v1389, %v1628
        %v1630 = vpop.f32.mrf.mxu0
        %1631 = vmatprep.mubr.bf16.mxu0 %v1297
        %1632 = vmatmul.mubr.bf16.gmra.mxu0 %v1296
        %v1633 = vpop.f32.mrf.mxu0
        %v1634 = vadd.f32 %v1389, %v1633
        %v1635 = vpop.f32.mrf.mxu0
        %v1636 = vpop.f32.mrf.mxu0
        %v1637 = vadd.f32 %v1389, %v1636
        %v1638 = vpop.f32.mrf.mxu0
        %1639 = vmatprep.mubr.bf16.mxu0 %v1301
        %1640 = vmatmul.mubr.bf16.gmra.mxu0 %v1300
        %v1641 = vpop.f32.mrf.mxu0
        %v1642 = vadd.f32 %v1389, %v1641
        %v1643 = vpop.f32.mrf.mxu0
        %v1644 = vpop.f32.mrf.mxu0
        %v1645 = vadd.f32 %v1389, %v1644
        %v1646 = vpop.f32.mrf.mxu0
        %1647 = vmatprep.mubr.bf16.mxu0 %v1305
        %1648 = vmatmul.mubr.bf16.gmra.mxu0 %v1304
        %v1649 = vpop.f32.mrf.mxu0
        %v1650 = vadd.f32 %v1389, %v1649
        %v1651 = vpop.f32.mrf.mxu0
        %v1652 = vpop.f32.mrf.mxu0
        %v1653 = vadd.f32 %v1389, %v1652
        %v1654 = vpop.f32.mrf.mxu0
        %1655 = vmatprep.mubr.bf16.mxu0 %v1309
        %1656 = vmatmul.mubr.bf16.gmra.mxu0 %v1308
        %v1657 = vpop.f32.mrf.mxu0
        %v1658 = vadd.f32 %v1389, %v1657
        %v1659 = vpop.f32.mrf.mxu0
        %v1660 = vpop.f32.mrf.mxu0
        %v1661 = vadd.f32 %v1389, %v1660
        %v1662 = vpop.f32.mrf.mxu0
        %1663 = vmatprep.mubr.bf16.mxu0 %v1313
        %1664 = vmatmul.mubr.bf16.gmra.mxu0 %v1312
        %v1665 = vpop.f32.mrf.mxu0
        %v1666 = vadd.f32 %v1389, %v1665
        %v1667 = vpop.f32.mrf.mxu0
        %v1668 = vpop.f32.mrf.mxu0
        %v1669 = vadd.f32 %v1389, %v1668
        %v1670 = vpop.f32.mrf.mxu0
        %1671 = vmatprep.mubr.bf16.mxu0 %v1317
        %1672 = vmatmul.mubr.bf16.gmra.mxu0 %v1316
        %v1673 = vpop.f32.mrf.mxu0
        %v1674 = vadd.f32 %v1389, %v1673
        %v1675 = vpop.f32.mrf.mxu0
        %v1676 = vpop.f32.mrf.mxu0
        %v1677 = vadd.f32 %v1389, %v1676
        %v1678 = vpop.f32.mrf.mxu0
        %1679 = vdwg.mxu0
        %1680 = vmatprep.subr.bf16.mxu0 0
        %1681 = vmatpush1.bf16.msra.mxu0 %v1542
        %1682 = vmatprep.subr.bf16.mxu0 0
        %1683 = vmatpush1.bf16.msra.mxu0 %v1541
        %1684 = vmatprep.subr.bf16.mxu0 0
        %1685 = vmatpush1.bf16.msra.mxu0 %v1540
        %1686 = vmatprep.subr.bf16.mxu0 0
        %1687 = vmatpush1.bf16.msra.mxu0 %v1539
        %1688 = vmatprep.subr.bf16.mxu0 0
        %1689 = vmatpush1.bf16.msra.mxu0 %v1538
        %1690 = vmatprep.subr.bf16.mxu0 0
        %1691 = vmatpush1.bf16.msra.mxu0 %v1537
        %1692 = vmatprep.subr.bf16.mxu0 0
        %1693 = vmatpush1.bf16.msra.mxu0 %v1536
        %1694 = vmatprep.subr.bf16.mxu0 0
        %1695 = vmatpush1.bf16.msra.mxu0 %v1535
        %1696 = vmatprep.subr.bf16.mxu0 0
        %1697 = vmatpush2.bf16.msra.mxu0 %v1550
        %1698 = vmatprep.subr.bf16.mxu0 0
        %1699 = vmatpush2.bf16.msra.mxu0 %v1549
        %1700 = vmatprep.subr.bf16.mxu0 0
        %1701 = vmatpush2.bf16.msra.mxu0 %v1548
        %1702 = vmatprep.subr.bf16.mxu0 0
        %1703 = vmatpush2.bf16.msra.mxu0 %v1547
        %1704 = vmatprep.subr.bf16.mxu0 0
        %1705 = vmatpush2.bf16.msra.mxu0 %v1546
        %1706 = vmatprep.subr.bf16.mxu0 0
        %1707 = vmatpush2.bf16.msra.mxu0 %v1545
        %1708 = vmatprep.subr.bf16.mxu0 0
        %1709 = vmatpush2.bf16.msra.mxu0 %v1544
        %1710 = vmatprep.subr.bf16.mxu0 0
        %1711 = vmatpush2.bf16.msra.mxu0 %v1543
        %1712 = vmatprep.mubr.bf16.mxu0 %v1291
        %1713 = vmatmul.mubr.bf16.gmra.mxu0 %v1290
        %v1714 = vpop.f32.mrf.mxu0
        %v1715 = vadd.f32 %v1618, %v1714
        %v1716 = vpop.f32.mrf.mxu0
        %v1717 = vpop.f32.mrf.mxu0
        %v1718 = vadd.f32 %v1621, %v1717
        %v1719 = vpop.f32.mrf.mxu0
        %1720 = vmatprep.mubr.bf16.mxu0 %v1295
        %1721 = vmatmul.mubr.bf16.gmra.mxu0 %v1294
        %v1722 = vpop.f32.mrf.mxu0
        %v1723 = vadd.f32 %v1626, %v1722
        %v1724 = vpop.f32.mrf.mxu0
        %v1725 = vpop.f32.mrf.mxu0
        %v1726 = vadd.f32 %v1629, %v1725
        %v1727 = vpop.f32.mrf.mxu0
        %1728 = vmatprep.mubr.bf16.mxu0 %v1299
        %1729 = vmatmul.mubr.bf16.gmra.mxu0 %v1298
        %v1730 = vpop.f32.mrf.mxu0
        %v1731 = vadd.f32 %v1634, %v1730
        %v1732 = vpop.f32.mrf.mxu0
        %v1733 = vpop.f32.mrf.mxu0
        %v1734 = vadd.f32 %v1637, %v1733
        %v1735 = vpop.f32.mrf.mxu0
        %1736 = vmatprep.mubr.bf16.mxu0 %v1303
        %1737 = vmatmul.mubr.bf16.gmra.mxu0 %v1302
        %v1738 = vpop.f32.mrf.mxu0
        %v1739 = vadd.f32 %v1642, %v1738
        %v1740 = vpop.f32.mrf.mxu0
        %v1741 = vpop.f32.mrf.mxu0
        %v1742 = vadd.f32 %v1645, %v1741
        %v1743 = vpop.f32.mrf.mxu0
        %1744 = vmatprep.mubr.bf16.mxu0 %v1307
        %1745 = vmatmul.mubr.bf16.gmra.mxu0 %v1306
        %v1746 = vpop.f32.mrf.mxu0
        %v1747 = vadd.f32 %v1650, %v1746
        %v1748 = vpop.f32.mrf.mxu0
        %v1749 = vpop.f32.mrf.mxu0
        %v1750 = vadd.f32 %v1653, %v1749
        %v1751 = vpop.f32.mrf.mxu0
        %1752 = vmatprep.mubr.bf16.mxu0 %v1311
        %1753 = vmatmul.mubr.bf16.gmra.mxu0 %v1310
        %v1754 = vpop.f32.mrf.mxu0
        %v1755 = vadd.f32 %v1658, %v1754
        %v1756 = vpop.f32.mrf.mxu0
        %v1757 = vpop.f32.mrf.mxu0
        %v1758 = vadd.f32 %v1661, %v1757
        %v1759 = vpop.f32.mrf.mxu0
        %1760 = vmatprep.mubr.bf16.mxu0 %v1315
        %1761 = vmatmul.mubr.bf16.gmra.mxu0 %v1314
        %v1762 = vpop.f32.mrf.mxu0
        %v1763 = vadd.f32 %v1666, %v1762
        %v1764 = vpop.f32.mrf.mxu0
        %v1765 = vpop.f32.mrf.mxu0
        %v1766 = vadd.f32 %v1669, %v1765
        %v1767 = vpop.f32.mrf.mxu0
        %1768 = vmatprep.mubr.bf16.mxu0 %v1319
        %1769 = vmatmul.mubr.bf16.gmra.mxu0 %v1318
        %v1770 = vpop.f32.mrf.mxu0
        %v1771 = vadd.f32 %v1674, %v1770
        %v1772 = vpop.f32.mrf.mxu0
        %v1773 = vpop.f32.mrf.mxu0
        %v1774 = vadd.f32 %v1677, %v1773
        %v1775 = vpop.f32.mrf.mxu0
        %1776 = vdwg.mxu0
        %v1777 = vadd.f32 %v281, %v1715
        %v1778 = vadd.f32 %v282, %v1718
        %v1779 = vadd.f32 %v283, %v1723
        %v1780 = vadd.f32 %v284, %v1726
        %v1781 = vadd.f32 %v285, %v1731
        %v1782 = vadd.f32 %v286, %v1734
        %v1783 = vadd.f32 %v287, %v1739
        %v1784 = vadd.f32 %v288, %v1742
        %v1785 = vadd.f32 %v289, %v1747
        %v1786 = vadd.f32 %v290, %v1750
        %v1787 = vadd.f32 %v291, %v1755
        %v1788 = vadd.f32 %v292, %v1758
        %v1789 = vadd.f32 %v293, %v1763
        %v1790 = vadd.f32 %v294, %v1766
        %v1791 = vadd.f32 %v295, %v1771
        %v1792 = vadd.f32 %v296, %v1774
        %1793 = vst [vmem:[%s272] sm:$0xff] %v1777
        %1794 = vst [vmem:[%s272 + $0x8] sm:$0xff] %v1778
        %1795 = vst [vmem:[%s272 + $0x10] sm:$0xff] %v1779
        %1796 = vst [vmem:[%s272 + $0x18] sm:$0xff] %v1780
        %1797 = vst [vmem:[%s272 + $0x20] sm:$0xff] %v1781
        %1798 = vst [vmem:[%s272 + $0x28] sm:$0xff] %v1782
        %1799 = vst [vmem:[%s272 + $0x30] sm:$0xff] %v1783
        %1800 = vst [vmem:[%s272 + $0x38] sm:$0xff] %v1784
        %1801 = vst [vmem:[%s272 + $0x40] sm:$0xff] %v1785
        %1802 = vst [vmem:[%s272 + $0x48] sm:$0xff] %v1786
        %1803 = vst [vmem:[%s272 + $0x50] sm:$0xff] %v1787
        %1804 = vst [vmem:[%s272 + $0x58] sm:$0xff] %v1788
        %1805 = vst [vmem:[%s272 + $0x60] sm:$0xff] %v1789
        %1806 = vst [vmem:[%s272 + $0x68] sm:$0xff] %v1790
        %1807 = vst [vmem:[%s272 + $0x70] sm:$0xff] %v1791
        %1808 = vst [vmem:[%s272 + $0x78] sm:$0xff] %v1792
        %s1809 = sand.u32 %s181, 1
        %s1810 = scalar_lea.sflag [#allocation3], %s1809
        %s1811 = sand.u32 %s181, 1
        %s1812 = smul.addr %s1811, 128
        %s1813 = scalar_lea.vmem [#allocation2], %s1812
        // Predicated region
        $region49: #{swin_block_pallas.3} parent=47 // pred_check
          %p1814 = pneg %p191
        $region50: #{swin_block_pallas.3} parent=47 // pred_check_branch
          %1816 = sbr.rel (%p1814) target = $region52
        $region51: #{swin_block_pallas.3} parent=47 // pred_region
          %s1817 = smul.u32 16, %s21
          %s1819 = ssub.s32 2048, 2048
          %1820 = vsyncadd %s1810, %s1819
          %s1821 = smul.addr %s1817, 128
          %s1822 = scalar_lea.hbm %s7, %s1821
          %s1823 = sshll.u32 %s1813, 4
          %s1824 = int_to_ptr.vmem [resolvable:$true] %s1823
          %1829 = dma.vmem_to_hbm [thread:$0]  %s1824, 2048, %s1822, %s1810, 128, 128, 8
        $region52: #{swin_block_pallas.3} parent=47 // pred_fallthru
          _
      $region48: #{swin_block_pallas.3} parent=5 // pred_fallthru
        _
      %p1830 = scmp.le.s32.totalorder 2, %s16
      // Predicated region
      $region53: #{swin_block_pallas.3} parent=5 // pred_check
        %p1831 = pneg %p1830
      $region54: #{swin_block_pallas.3} parent=5 // pred_check_branch
        %1833 = sbr.rel (%p1831) target = $region56
      $region55: #{swin_block_pallas.3} parent=5 // pred_region
        %s1834 = ssub.s32 %s16, 2
        // Predicated region
        $region57: #{swin_block_pallas.3} parent=55 // pred_check
          %p1835 = pneg %p197
        $region58: #{swin_block_pallas.3} parent=55 // pred_check_branch
          %1837 = sbr.rel (%p1835) target = $region60
        $region59: #{swin_block_pallas.3} parent=55 // pred_region
          %s1838 = sand.u32 %s182, 1
          %s1839 = scalar_lea.sflag [#allocation3], %s1838
          %s1840 = sand.u32 %s182, 1
          %s1841 = smul.addr %s1840, 128
          %s1842 = scalar_lea.vmem [#allocation2], %s1841
          %1843 = dma.done %s1839, 2048
        $region60: #{swin_block_pallas.3} parent=55 // pred_fallthru
          _
      $region56: #{swin_block_pallas.3} parent=5 // pred_fallthru
        _
    $region6: #{swin_block_pallas.3} parent=1 // loop_footer
      %s20 = sadd.s32 1, %s16
    $region7: #{swin_block_pallas.3} parent=1 // loop_footer_branch
      %15 = sbr.rel target = $region3
    $region8: #{swin_block_pallas.3} parent=1 // loop_exit
      _
    %1844 = vsyncpa [#allocation3], 1
    %s1845 = scalar_lea.sflag [#allocation3], 1
    %1846 = vsyncpa %s1845, 1

// kernel: swin_block_pallas.2
$region0: #{swin_block_pallas.2}
  #allocation0 [shape = 'u32[]', space=smem, size = 0x4, offset = 0x4, fixed_abs, tag = 'smem constant byte address 0x4 - core index']
  #allocation1 [shape = 'u32[144,128]{1,0:T(1,128)}', space=vmem, size = 0x12000, scoped, tag = 'internal scratch']
  %s0 = inlined_call_operand.vmem [shape: f32[2,16,16,128], index: 0, kind: input, shape index: {}]
  %s1 = inlined_call_operand.vmem [shape: f32[1,128], index: 1, kind: input, shape index: {}]
  %s2 = inlined_call_operand.vmem [shape: f32[1,128], index: 2, kind: input, shape index: {}]
  %s3 = inlined_call_operand.vmem [shape: bf16[128,384], index: 3, kind: input, shape index: {}]
  %s4 = inlined_call_operand.vmem [shape: f32[1,384], index: 4, kind: input, shape index: {}]
  %s5 = inlined_call_operand.vmem [shape: bf16[128,128], index: 5, kind: input, shape index: {}]
  %s6 = inlined_call_operand.vmem [shape: f32[1,128], index: 6, kind: input, shape index: {}]
  %s7 = inlined_call_operand.vmem [shape: f32[4,64,64], index: 7, kind: input, shape index: {}]
  %s8 = inlined_call_operand.vmem [shape: f32[4,64,64], index: 8, kind: input, shape index: {}]
  %s9 = inlined_call_operand.vmem [shape: f32[2,16,16,128], index: 9, kind: output, shape index: {}]
  %s10 = sld [smem:[#allocation0]]
  $region69: #{swin_block_pallas.2} parent=0
    _
  %s12 = ssub.s32 1, %s10
  %s13 = scalar_select 0, %s12, %s10
  loop: start=0, step=1, limit=4
  $region2: #{swin_block_pallas.2} parent=0 // loop_pre_header
    _
  $region3: #{swin_block_pallas.2} parent=0 // loop_header
    %s15 = sphi 0, %s19
    %p16 = scmp.ge.s32.totalorder %s15, 4
    %s25 = sphi 0, %s27
    %s28 = sphi 0, %s25
    %s29 = sphi 0, %s28
    %s45 = sphi 0, %s29
    %s49 = sphi 0, %s49
    %s51 = sphi 0, %s49
    %s52 = sphi 0, %s51
    %s66 = sphi 0, %s52
    %s70 = sphi 0, %s70
    %s72 = sphi 0, %s70
    %s73 = sphi 0, %s72
    %s87 = sphi 0, %s73
    %s91 = sphi 0, %s91
    %s93 = sphi 0, %s91
    %s94 = sphi 0, %s93
    %s108 = sphi 0, %s94
    %s112 = sphi 0, %s112
    %s114 = sphi 0, %s112
    %s115 = sphi 0, %s114
    %s129 = sphi 0, %s115
    %s133 = sphi 0, %s133
    %s135 = sphi 0, %s133
    %s136 = sphi 0, %s135
    %s150 = sphi 0, %s136
    %s154 = sphi 0, %s154
    %s156 = sphi 0, %s154
    %s157 = sphi 0, %s156
    %s171 = sphi 0, %s157
    %s175 = sphi 0, %s175
    %s177 = sphi 0, %s175
    %s178 = sphi 0, %s177
    %s192 = sphi 0, %s178
    %s196 = sphi 0, %s196
    %s198 = sphi 0, %s196
    %s199 = sphi 0, %s198
    %s213 = sphi 0, %s199
    %s219 = sphi 0, %s221
    %s222 = sphi 0, %s219
    %s223 = sphi 0, %s222
    %s239 = sphi 0, %s223
  $region4: #{swin_block_pallas.2} parent=0 // loop_header_branch
    %18 = sbr.rel (%p16) target = $region8
  $region5: #{swin_block_pallas.2} parent=0 // loop_body
    %s20 = ssub.s32 %s15, 1
    %s21 = ssub.s32 %s15, 2
    %s22 = sadd.s32 %s15, 1
    %s23 = ssub.s32 %s15, %s22
    %p24 = scmp.eq.s32.totalorder %s23, 0
    %s26 = sadd.s32 %s25, 1
    %s27 = scalar_select %p24, %s25, %s26
    %p30 = pneg %p24
    %p31 = scmp.eq.s32.totalorder %s15, 1
    %p32 = por %p30, %p31
    %p33 = scmp.ne.s32.totalorder %s25, %s28
    %p34 = scmp.eq.s32.totalorder %s15, 0
    %p35 = por %p33, %p34
    %p36 = scmp.ne.s32.totalorder %s25, %s28
    %p37 = scmp.eq.s32.totalorder %s20, 1
    %p38 = por %p36, %p37
    %p39 = scmp.ne.s32.totalorder %s28, %s29
    %p40 = scmp.eq.s32.totalorder %s20, 0
    %p41 = por %p39, %p40
    %p42 = scmp.ne.s32.totalorder %s28, %s29
    %p43 = scmp.eq.s32.totalorder %s21, 1
    %p44 = por %p42, %p43
    %p46 = scmp.ne.s32.totalorder %s29, %s45
    %p47 = scmp.eq.s32.totalorder %s21, 0
    %p48 = por %p46, %p47
    %s50 = sadd.s32 %s49, 1
    %p53 = scmp.eq.s32.totalorder %s15, 1
    %p54 = scmp.ne.s32.totalorder %s49, %s51
    %p55 = scmp.eq.s32.totalorder %s15, 0
    %p56 = por %p54, %p55
    %p57 = scmp.ne.s32.totalorder %s49, %s51
    %p58 = scmp.eq.s32.totalorder %s20, 1
    %p59 = por %p57, %p58
    %p60 = scmp.ne.s32.totalorder %s51, %s52
    %p61 = scmp.eq.s32.totalorder %s20, 0
    %p62 = por %p60, %p61
    %p63 = scmp.ne.s32.totalorder %s51, %s52
    %p64 = scmp.eq.s32.totalorder %s21, 1
    %p65 = por %p63, %p64
    %p67 = scmp.ne.s32.totalorder %s52, %s66
    %p68 = scmp.eq.s32.totalorder %s21, 0
    %p69 = por %p67, %p68
    %s71 = sadd.s32 %s70, 1
    %p74 = scmp.eq.s32.totalorder %s15, 1
    %p75 = scmp.ne.s32.totalorder %s70, %s72
    %p76 = scmp.eq.s32.totalorder %s15, 0
    %p77 = por %p75, %p76
    %p78 = scmp.ne.s32.totalorder %s70, %s72
    %p79 = scmp.eq.s32.totalorder %s20, 1
    %p80 = por %p78, %p79
    %p81 = scmp.ne.s32.totalorder %s72, %s73
    %p82 = scmp.eq.s32.totalorder %s20, 0
    %p83 = por %p81, %p82
    %p84 = scmp.ne.s32.totalorder %s72, %s73
    %p85 = scmp.eq.s32.totalorder %s21, 1
    %p86 = por %p84, %p85
    %p88 = scmp.ne.s32.totalorder %s73, %s87
    %p89 = scmp.eq.s32.totalorder %s21, 0
    %p90 = por %p88, %p89
    %s92 = sadd.s32 %s91, 1
    %p95 = scmp.eq.s32.totalorder %s15, 1
    %p96 = scmp.ne.s32.totalorder %s91, %s93
    %p97 = scmp.eq.s32.totalorder %s15, 0
    %p98 = por %p96, %p97
    %p99 = scmp.ne.s32.totalorder %s91, %s93
    %p100 = scmp.eq.s32.totalorder %s20, 1
    %p101 = por %p99, %p100
    %p102 = scmp.ne.s32.totalorder %s93, %s94
    %p103 = scmp.eq.s32.totalorder %s20, 0
    %p104 = por %p102, %p103
    %p105 = scmp.ne.s32.totalorder %s93, %s94
    %p106 = scmp.eq.s32.totalorder %s21, 1
    %p107 = por %p105, %p106
    %p109 = scmp.ne.s32.totalorder %s94, %s108
    %p110 = scmp.eq.s32.totalorder %s21, 0
    %p111 = por %p109, %p110
    %s113 = sadd.s32 %s112, 1
    %p116 = scmp.eq.s32.totalorder %s15, 1
    %p117 = scmp.ne.s32.totalorder %s112, %s114
    %p118 = scmp.eq.s32.totalorder %s15, 0
    %p119 = por %p117, %p118
    %p120 = scmp.ne.s32.totalorder %s112, %s114
    %p121 = scmp.eq.s32.totalorder %s20, 1
    %p122 = por %p120, %p121
    %p123 = scmp.ne.s32.totalorder %s114, %s115
    %p124 = scmp.eq.s32.totalorder %s20, 0
    %p125 = por %p123, %p124
    %p126 = scmp.ne.s32.totalorder %s114, %s115
    %p127 = scmp.eq.s32.totalorder %s21, 1
    %p128 = por %p126, %p127
    %p130 = scmp.ne.s32.totalorder %s115, %s129
    %p131 = scmp.eq.s32.totalorder %s21, 0
    %p132 = por %p130, %p131
    %s134 = sadd.s32 %s133, 1
    %p137 = scmp.eq.s32.totalorder %s15, 1
    %p138 = scmp.ne.s32.totalorder %s133, %s135
    %p139 = scmp.eq.s32.totalorder %s15, 0
    %p140 = por %p138, %p139
    %p141 = scmp.ne.s32.totalorder %s133, %s135
    %p142 = scmp.eq.s32.totalorder %s20, 1
    %p143 = por %p141, %p142
    %p144 = scmp.ne.s32.totalorder %s135, %s136
    %p145 = scmp.eq.s32.totalorder %s20, 0
    %p146 = por %p144, %p145
    %p147 = scmp.ne.s32.totalorder %s135, %s136
    %p148 = scmp.eq.s32.totalorder %s21, 1
    %p149 = por %p147, %p148
    %p151 = scmp.ne.s32.totalorder %s136, %s150
    %p152 = scmp.eq.s32.totalorder %s21, 0
    %p153 = por %p151, %p152
    %s155 = sadd.s32 %s154, 1
    %p158 = scmp.eq.s32.totalorder %s15, 1
    %p159 = scmp.ne.s32.totalorder %s154, %s156
    %p160 = scmp.eq.s32.totalorder %s15, 0
    %p161 = por %p159, %p160
    %p162 = scmp.ne.s32.totalorder %s154, %s156
    %p163 = scmp.eq.s32.totalorder %s20, 1
    %p164 = por %p162, %p163
    %p165 = scmp.ne.s32.totalorder %s156, %s157
    %p166 = scmp.eq.s32.totalorder %s20, 0
    %p167 = por %p165, %p166
    %p168 = scmp.ne.s32.totalorder %s156, %s157
    %p169 = scmp.eq.s32.totalorder %s21, 1
    %p170 = por %p168, %p169
    %p172 = scmp.ne.s32.totalorder %s157, %s171
    %p173 = scmp.eq.s32.totalorder %s21, 0
    %p174 = por %p172, %p173
    %s176 = sadd.s32 %s175, 1
    %p179 = scmp.eq.s32.totalorder %s15, 1
    %p180 = scmp.ne.s32.totalorder %s175, %s177
    %p181 = scmp.eq.s32.totalorder %s15, 0
    %p182 = por %p180, %p181
    %p183 = scmp.ne.s32.totalorder %s175, %s177
    %p184 = scmp.eq.s32.totalorder %s20, 1
    %p185 = por %p183, %p184
    %p186 = scmp.ne.s32.totalorder %s177, %s178
    %p187 = scmp.eq.s32.totalorder %s20, 0
    %p188 = por %p186, %p187
    %p189 = scmp.ne.s32.totalorder %s177, %s178
    %p190 = scmp.eq.s32.totalorder %s21, 1
    %p191 = por %p189, %p190
    %p193 = scmp.ne.s32.totalorder %s178, %s192
    %p194 = scmp.eq.s32.totalorder %s21, 0
    %p195 = por %p193, %p194
    %s197 = sadd.s32 %s196, 1
    %p200 = scmp.eq.s32.totalorder %s15, 1
    %p201 = scmp.ne.s32.totalorder %s196, %s198
    %p202 = scmp.eq.s32.totalorder %s15, 0
    %p203 = por %p201, %p202
    %p204 = scmp.ne.s32.totalorder %s196, %s198
    %p205 = scmp.eq.s32.totalorder %s20, 1
    %p206 = por %p204, %p205
    %p207 = scmp.ne.s32.totalorder %s198, %s199
    %p208 = scmp.eq.s32.totalorder %s20, 0
    %p209 = por %p207, %p208
    %p210 = scmp.ne.s32.totalorder %s198, %s199
    %p211 = scmp.eq.s32.totalorder %s21, 1
    %p212 = por %p210, %p211
    %p214 = scmp.ne.s32.totalorder %s199, %s213
    %p215 = scmp.eq.s32.totalorder %s21, 0
    %p216 = por %p214, %p215
    %s217 = ssub.s32 %s15, %s22
    %p218 = scmp.eq.s32.totalorder %s217, 0
    %s220 = sadd.s32 %s219, 1
    %s221 = scalar_select %p218, %s219, %s220
    %p224 = pneg %p218
    %p225 = scmp.eq.s32.totalorder %s15, 1
    %p226 = por %p224, %p225
    %p227 = scmp.ne.s32.totalorder %s219, %s222
    %p228 = scmp.eq.s32.totalorder %s15, 0
    %p229 = por %p227, %p228
    %p230 = scmp.ne.s32.totalorder %s219, %s222
    %p231 = scmp.eq.s32.totalorder %s20, 1
    %p232 = por %p230, %p231
    %p233 = scmp.ne.s32.totalorder %s222, %s223
    %p234 = scmp.eq.s32.totalorder %s20, 0
    %p235 = por %p233, %p234
    %p236 = scmp.ne.s32.totalorder %s222, %s223
    %p237 = scmp.eq.s32.totalorder %s21, 1
    %p238 = por %p236, %p237
    %p240 = scmp.ne.s32.totalorder %s223, %s239
    %p241 = scmp.eq.s32.totalorder %s21, 0
    %p242 = por %p240, %p241
    %p243 = scmp.le.s32.totalorder 1, %s15
    %p244 = scmp.lt.s32.totalorder %s15, 3
    %p245 = pnand %p243, %p244
    %p246 = pneg %p245
    // Predicated region
    $region9: #{swin_block_pallas.2} parent=5 // pred_check
      _
    $region10: #{swin_block_pallas.2} parent=5 // pred_check_branch
      %248 = sbr.rel (%p245) target = $region12
    $region11: #{swin_block_pallas.2} parent=5 // pred_region
      %s249 = ssub.s32 %s15, 1
      // Predicated region
      $region13: #{swin_block_pallas.2} parent=11 // pred_check
        %p250 = pneg %p62
      $region14: #{swin_block_pallas.2} parent=11 // pred_check_branch
        %252 = sbr.rel (%p250) target = $region16
      $region15: #{swin_block_pallas.2} parent=11 // pred_region
        _
      $region16: #{swin_block_pallas.2} parent=11 // pred_fallthru
        _
      // Predicated region
      $region17: #{swin_block_pallas.2} parent=11 // pred_check
        %p253 = pneg %p83
      $region18: #{swin_block_pallas.2} parent=11 // pred_check_branch
        %255 = sbr.rel (%p253) target = $region20
      $region19: #{swin_block_pallas.2} parent=11 // pred_region
        _
      $region20: #{swin_block_pallas.2} parent=11 // pred_fallthru
        _
      // Predicated region
      $region21: #{swin_block_pallas.2} parent=11 // pred_check
        %p256 = pneg %p104
      $region22: #{swin_block_pallas.2} parent=11 // pred_check_branch
        %258 = sbr.rel (%p256) target = $region24
      $region23: #{swin_block_pallas.2} parent=11 // pred_region
        _
      $region24: #{swin_block_pallas.2} parent=11 // pred_fallthru
        _
      // Predicated region
      $region25: #{swin_block_pallas.2} parent=11 // pred_check
        %p259 = pneg %p125
      $region26: #{swin_block_pallas.2} parent=11 // pred_check_branch
        %261 = sbr.rel (%p259) target = $region28
      $region27: #{swin_block_pallas.2} parent=11 // pred_region
        _
      $region28: #{swin_block_pallas.2} parent=11 // pred_fallthru
        _
      // Predicated region
      $region29: #{swin_block_pallas.2} parent=11 // pred_check
        %p262 = pneg %p146
      $region30: #{swin_block_pallas.2} parent=11 // pred_check_branch
        %264 = sbr.rel (%p262) target = $region32
      $region31: #{swin_block_pallas.2} parent=11 // pred_region
        _
      $region32: #{swin_block_pallas.2} parent=11 // pred_fallthru
        _
      // Predicated region
      $region33: #{swin_block_pallas.2} parent=11 // pred_check
        %p265 = pneg %p167
      $region34: #{swin_block_pallas.2} parent=11 // pred_check_branch
        %267 = sbr.rel (%p265) target = $region36
      $region35: #{swin_block_pallas.2} parent=11 // pred_region
        _
      $region36: #{swin_block_pallas.2} parent=11 // pred_fallthru
        _
      // Predicated region
      $region37: #{swin_block_pallas.2} parent=11 // pred_check
        %p268 = pneg %p188
      $region38: #{swin_block_pallas.2} parent=11 // pred_check_branch
        %270 = sbr.rel (%p268) target = $region40
      $region39: #{swin_block_pallas.2} parent=11 // pred_region
        _
      $region40: #{swin_block_pallas.2} parent=11 // pred_fallthru
        _
      // Predicated region
      $region41: #{swin_block_pallas.2} parent=11 // pred_check
        %p271 = pneg %p209
      $region42: #{swin_block_pallas.2} parent=11 // pred_check_branch
        %273 = sbr.rel (%p271) target = $region44
      $region43: #{swin_block_pallas.2} parent=11 // pred_region
        _
      $region44: #{swin_block_pallas.2} parent=11 // pred_fallthru
        _
    $region12: #{swin_block_pallas.2} parent=5 // pred_fallthru
      _
    %p274 = scmp.lt.s32.totalorder %s15, 2
    // Predicated region
    $region45: #{swin_block_pallas.2} parent=5 // pred_check
      %p275 = pneg %p274
    $region46: #{swin_block_pallas.2} parent=5 // pred_check_branch
      %277 = sbr.rel (%p275) target = $region48
    $region47: #{swin_block_pallas.2} parent=5 // pred_region
      // Predicated region
      $region49: #{swin_block_pallas.2} parent=47 // pred_check
        %p278 = pneg %p35
      $region50: #{swin_block_pallas.2} parent=47 // pred_check_branch
        %280 = sbr.rel (%p278) target = $region52
      $region51: #{swin_block_pallas.2} parent=47 // pred_region
        %p281 = scmp.lt.s32.totalorder %s15, 1
        %s282 = scalar_select %p281, %s15, 1
        %s283 = smul.addr %s282, 32
        %s284 = smul.addr %s283, 8
        %s285 = scalar_lea.vmem %s0, %s284
      $region52: #{swin_block_pallas.2} parent=47 // pred_fallthru
        _
    $region48: #{swin_block_pallas.2} parent=5 // pred_fallthru
      _
    %p286 = scmp.le.s32.totalorder 1, %s15
    %p287 = scmp.lt.s32.totalorder %s15, 3
    %p288 = pnand %p286, %p287
    %p289 = pneg %p288
    // Predicated region
    $region53: #{swin_block_pallas.2} parent=5 // pred_check
      _
    $region54: #{swin_block_pallas.2} parent=5 // pred_check_branch
      %291 = sbr.rel (%p288) target = $region56
    $region55: #{swin_block_pallas.2} parent=5 // pred_region
      %s292 = ssub.s32 %s15, 1
      %p293 = scmp.lt.s32.totalorder %s20, 1
      %s294 = scalar_select %p293, %s20, 1
      %s295 = smul.addr %s294, 32
      %s296 = smul.addr %s295, 8
      %s297 = scalar_lea.vmem %s0, %s296
      %p298 = pneg %p41
      %p299 = pneg %p38
      %p300 = pneg %p62
      %p301 = pneg %p59
      %p302 = pneg %p83
      %p303 = pneg %p80
      %p304 = pneg %p104
      %p305 = pneg %p101
      %p306 = pneg %p125
      %p307 = pneg %p122
      %p308 = pneg %p146
      %p309 = pneg %p143
      %p310 = pneg %p167
      %p311 = pneg %p164
      %p312 = pneg %p188
      %p313 = pneg %p185
      %p314 = pneg %p209
      %p315 = pneg %p206
      %p316 = pneg %p235
      %p317 = pneg %p232
      %p318 = scmp.lt.s32.totalorder %s20, 1
      %s319 = scalar_select %p318, %s20, 1
      %s320 = smul.addr %s319, 32
      %s321 = smul.addr %s320, 8
      %s322 = scalar_lea.vmem %s9, %s321
      %p323 = scmp.lt.s32.totalorder %s20, 1
      %s324 = scalar_select %p323, %s20, 1
      %s325 = smul.addr %s324, 32
      %s326 = smul.addr %s325, 8
      %s327 = scalar_lea.vmem %s0, %s326
      %p328 = scmp.lt.s32.totalorder %s20, 1
      %s329 = scalar_select %p328, %s20, 1
      %s330 = smul.addr %s329, 32
      %s331 = smul.addr %s330, 8
      %s332 = scalar_lea.vmem %s9, %s331
      %v334 = vld [vmem:[%s327] sm:$0xff]
      %v335 = vld [vmem:[%s327 + $0x8] sm:$0xff]
      %v336 = vld [vmem:[%s327 + $0x10] sm:$0xff]
      %v337 = vld [vmem:[%s327 + $0x18] sm:$0xff]
      %v338 = vld [vmem:[%s327 + $0x20] sm:$0xff]
      %v339 = vld [vmem:[%s327 + $0x28] sm:$0xff]
      %v340 = vld [vmem:[%s327 + $0x30] sm:$0xff]
      %v341 = vld [vmem:[%s327 + $0x38] sm:$0xff]
      %v342 = vld [vmem:[%s327 + $0x40] sm:$0xff]
      %v343 = vld [vmem:[%s327 + $0x48] sm:$0xff]
      %v344 = vld [vmem:[%s327 + $0x50] sm:$0xff]
      %v345 = vld [vmem:[%s327 + $0x58] sm:$0xff]
      %v346 = vld [vmem:[%s327 + $0x60] sm:$0xff]
      %v347 = vld [vmem:[%s327 + $0x68] sm:$0xff]
      %v348 = vld [vmem:[%s327 + $0x70] sm:$0xff]
      %v349 = vld [vmem:[%s327 + $0x78] sm:$0xff]
      %v350 = vld [vmem:[%s327 + $0x80] sm:$0xff]
      %v351 = vld [vmem:[%s327 + $0x88] sm:$0xff]
      %v352 = vld [vmem:[%s327 + $0x90] sm:$0xff]
      %v353 = vld [vmem:[%s327 + $0x98] sm:$0xff]
      %v354 = vld [vmem:[%s327 + $0xa0] sm:$0xff]
      %v355 = vld [vmem:[%s327 + $0xa8] sm:$0xff]
      %v356 = vld [vmem:[%s327 + $0xb0] sm:$0xff]
      %v357 = vld [vmem:[%s327 + $0xb8] sm:$0xff]
      %v358 = vld [vmem:[%s327 + $0xc0] sm:$0xff]
      %v359 = vld [vmem:[%s327 + $0xc8] sm:$0xff]
      %v360 = vld [vmem:[%s327 + $0xd0] sm:$0xff]
      %v361 = vld [vmem:[%s327 + $0xd8] sm:$0xff]
      %v362 = vld [vmem:[%s327 + $0xe0] sm:$0xff]
      %v363 = vld [vmem:[%s327 + $0xe8] sm:$0xff]
      %v364 = vld [vmem:[%s327 + $0xf0] sm:$0xff]
      %v365 = vld [vmem:[%s327 + $0xf8] sm:$0xff]
      %366 = vadd.xlane.f32.xlu0 %v334
      %v367 = vpop.xlane.xlu0 %366
      %368 = vadd.xlane.f32.xlu0 %v335
      %v369 = vpop.xlane.xlu0 %368
      %370 = vadd.xlane.f32.xlu0 %v336
      %v371 = vpop.xlane.xlu0 %370
      %372 = vadd.xlane.f32.xlu0 %v337
      %v373 = vpop.xlane.xlu0 %372
      %374 = vadd.xlane.f32.xlu0 %v338
      %v375 = vpop.xlane.xlu0 %374
      %376 = vadd.xlane.f32.xlu0 %v339
      %v377 = vpop.xlane.xlu0 %376
      %378 = vadd.xlane.f32.xlu0 %v340
      %v379 = vpop.xlane.xlu0 %378
      %380 = vadd.xlane.f32.xlu0 %v341
      %v381 = vpop.xlane.xlu0 %380
      %382 = vadd.xlane.f32.xlu0 %v342
      %v383 = vpop.xlane.xlu0 %382
      %384 = vadd.xlane.f32.xlu0 %v343
      %v385 = vpop.xlane.xlu0 %384
      %386 = vadd.xlane.f32.xlu0 %v344
      %v387 = vpop.xlane.xlu0 %386
      %388 = vadd.xlane.f32.xlu0 %v345
      %v389 = vpop.xlane.xlu0 %388
      %390 = vadd.xlane.f32.xlu0 %v346
      %v391 = vpop.xlane.xlu0 %390
      %392 = vadd.xlane.f32.xlu0 %v347
      %v393 = vpop.xlane.xlu0 %392
      %394 = vadd.xlane.f32.xlu0 %v348
      %v395 = vpop.xlane.xlu0 %394
      %396 = vadd.xlane.f32.xlu0 %v349
      %v397 = vpop.xlane.xlu0 %396
      %398 = vadd.xlane.f32.xlu0 %v350
      %v399 = vpop.xlane.xlu0 %398
      %400 = vadd.xlane.f32.xlu0 %v351
      %v401 = vpop.xlane.xlu0 %400
      %402 = vadd.xlane.f32.xlu0 %v352
      %v403 = vpop.xlane.xlu0 %402
      %404 = vadd.xlane.f32.xlu0 %v353
      %v405 = vpop.xlane.xlu0 %404
      %406 = vadd.xlane.f32.xlu0 %v354
      %v407 = vpop.xlane.xlu0 %406
      %408 = vadd.xlane.f32.xlu0 %v355
      %v409 = vpop.xlane.xlu0 %408
      %410 = vadd.xlane.f32.xlu0 %v356
      %v411 = vpop.xlane.xlu0 %410
      %412 = vadd.xlane.f32.xlu0 %v357
      %v413 = vpop.xlane.xlu0 %412
      %414 = vadd.xlane.f32.xlu0 %v358
      %v415 = vpop.xlane.xlu0 %414
      %416 = vadd.xlane.f32.xlu0 %v359
      %v417 = vpop.xlane.xlu0 %416
      %418 = vadd.xlane.f32.xlu0 %v360
      %v419 = vpop.xlane.xlu0 %418
      %420 = vadd.xlane.f32.xlu0 %v361
      %v421 = vpop.xlane.xlu0 %420
      %422 = vadd.xlane.f32.xlu0 %v362
      %v423 = vpop.xlane.xlu0 %422
      %424 = vadd.xlane.f32.xlu0 %v363
      %v425 = vpop.xlane.xlu0 %424
      %426 = vadd.xlane.f32.xlu0 %v364
      %v427 = vpop.xlane.xlu0 %426
      %428 = vadd.xlane.f32.xlu0 %v365
      %v429 = vpop.xlane.xlu0 %428
      %v430 = vrcp.pop 128.0
      %v431 = vmul.f32 %v367, %v430
      %v432 = vmul.f32 %v369, %v430
      %v433 = vmul.f32 %v371, %v430
      %v434 = vmul.f32 %v373, %v430
      %v435 = vmul.f32 %v375, %v430
      %v436 = vmul.f32 %v377, %v430
      %v437 = vmul.f32 %v379, %v430
      %v438 = vmul.f32 %v381, %v430
      %v439 = vmul.f32 %v383, %v430
      %v440 = vmul.f32 %v385, %v430
      %v441 = vmul.f32 %v387, %v430
      %v442 = vmul.f32 %v389, %v430
      %v443 = vmul.f32 %v391, %v430
      %v444 = vmul.f32 %v393, %v430
      %v445 = vmul.f32 %v395, %v430
      %v446 = vmul.f32 %v397, %v430
      %v447 = vmul.f32 %v399, %v430
      %v448 = vmul.f32 %v401, %v430
      %v449 = vmul.f32 %v403, %v430
      %v450 = vmul.f32 %v405, %v430
      %v451 = vmul.f32 %v407, %v430
      %v452 = vmul.f32 %v409, %v430
      %v453 = vmul.f32 %v411, %v430
      %v454 = vmul.f32 %v413, %v430
      %v455 = vmul.f32 %v415, %v430
      %v456 = vmul.f32 %v417, %v430
      %v457 = vmul.f32 %v419, %v430
      %v458 = vmul.f32 %v421, %v430
      %v459 = vmul.f32 %v423, %v430
      %v460 = vmul.f32 %v425, %v430
      %v461 = vmul.f32 %v427, %v430
      %v462 = vmul.f32 %v429, %v430
      %v463 = vsub.f32 %v334, %v431
      %v464 = vsub.f32 %v335, %v432
      %v465 = vsub.f32 %v336, %v433
      %v466 = vsub.f32 %v337, %v434
      %v467 = vsub.f32 %v338, %v435
      %v468 = vsub.f32 %v339, %v436
      %v469 = vsub.f32 %v340, %v437
      %v470 = vsub.f32 %v341, %v438
      %v471 = vsub.f32 %v342, %v439
      %v472 = vsub.f32 %v343, %v440
      %v473 = vsub.f32 %v344, %v441
      %v474 = vsub.f32 %v345, %v442
      %v475 = vsub.f32 %v346, %v443
      %v476 = vsub.f32 %v347, %v444
      %v477 = vsub.f32 %v348, %v445
      %v478 = vsub.f32 %v349, %v446
      %v479 = vsub.f32 %v350, %v447
      %v480 = vsub.f32 %v351, %v448
      %v481 = vsub.f32 %v352, %v449
      %v482 = vsub.f32 %v353, %v450
      %v483 = vsub.f32 %v354, %v451
      %v484 = vsub.f32 %v355, %v452
      %v485 = vsub.f32 %v356, %v453
      %v486 = vsub.f32 %v357, %v454
      %v487 = vsub.f32 %v358, %v455
      %v488 = vsub.f32 %v359, %v456
      %v489 = vsub.f32 %v360, %v457
      %v490 = vsub.f32 %v361, %v458
      %v491 = vsub.f32 %v362, %v459
      %v492 = vsub.f32 %v363, %v460
      %v493 = vsub.f32 %v364, %v461
      %v494 = vsub.f32 %v365, %v462
      %v495 = vmul.f32 %v463, %v463
      %v496 = vmul.f32 %v464, %v464
      %v497 = vmul.f32 %v465, %v465
      %v498 = vmul.f32 %v466, %v466
      %v499 = vmul.f32 %v467, %v467
      %v500 = vmul.f32 %v468, %v468
      %v501 = vmul.f32 %v469, %v469
      %v502 = vmul.f32 %v470, %v470
      %v503 = vmul.f32 %v471, %v471
      %v504 = vmul.f32 %v472, %v472
      %v505 = vmul.f32 %v473, %v473
      %v506 = vmul.f32 %v474, %v474
      %v507 = vmul.f32 %v475, %v475
      %v508 = vmul.f32 %v476, %v476
      %v509 = vmul.f32 %v477, %v477
      %v510 = vmul.f32 %v478, %v478
      %v511 = vmul.f32 %v479, %v479
      %v512 = vmul.f32 %v480, %v480
      %v513 = vmul.f32 %v481, %v481
      %v514 = vmul.f32 %v482, %v482
      %v515 = vmul.f32 %v483, %v483
      %v516 = vmul.f32 %v484, %v484
      %v517 = vmul.f32 %v485, %v485
      %v518 = vmul.f32 %v486, %v486
      %v519 = vmul.f32 %v487, %v487
      %v520 = vmul.f32 %v488, %v488
      %v521 = vmul.f32 %v489, %v489
      %v522 = vmul.f32 %v490, %v490
      %v523 = vmul.f32 %v491, %v491
      %v524 = vmul.f32 %v492, %v492
      %v525 = vmul.f32 %v493, %v493
      %v526 = vmul.f32 %v494, %v494
      %527 = vadd.xlane.f32.xlu0 %v495
      %v528 = vpop.xlane.xlu0 %527
      %529 = vadd.xlane.f32.xlu0 %v496
      %v530 = vpop.xlane.xlu0 %529
      %531 = vadd.xlane.f32.xlu0 %v497
      %v532 = vpop.xlane.xlu0 %531
      %533 = vadd.xlane.f32.xlu0 %v498
      %v534 = vpop.xlane.xlu0 %533
      %535 = vadd.xlane.f32.xlu0 %v499
      %v536 = vpop.xlane.xlu0 %535
      %537 = vadd.xlane.f32.xlu0 %v500
      %v538 = vpop.xlane.xlu0 %537
      %539 = vadd.xlane.f32.xlu0 %v501
      %v540 = vpop.xlane.xlu0 %539
      %541 = vadd.xlane.f32.xlu0 %v502
      %v542 = vpop.xlane.xlu0 %541
      %543 = vadd.xlane.f32.xlu0 %v503
      %v544 = vpop.xlane.xlu0 %543
      %545 = vadd.xlane.f32.xlu0 %v504
      %v546 = vpop.xlane.xlu0 %545
      %547 = vadd.xlane.f32.xlu0 %v505
      %v548 = vpop.xlane.xlu0 %547
      %549 = vadd.xlane.f32.xlu0 %v506
      %v550 = vpop.xlane.xlu0 %549
      %551 = vadd.xlane.f32.xlu0 %v507
      %v552 = vpop.xlane.xlu0 %551
      %553 = vadd.xlane.f32.xlu0 %v508
      %v554 = vpop.xlane.xlu0 %553
      %555 = vadd.xlane.f32.xlu0 %v509
      %v556 = vpop.xlane.xlu0 %555
      %557 = vadd.xlane.f32.xlu0 %v510
      %v558 = vpop.xlane.xlu0 %557
      %559 = vadd.xlane.f32.xlu0 %v511
      %v560 = vpop.xlane.xlu0 %559
      %561 = vadd.xlane.f32.xlu0 %v512
      %v562 = vpop.xlane.xlu0 %561
      %563 = vadd.xlane.f32.xlu0 %v513
      %v564 = vpop.xlane.xlu0 %563
      %565 = vadd.xlane.f32.xlu0 %v514
      %v566 = vpop.xlane.xlu0 %565
      %567 = vadd.xlane.f32.xlu0 %v515
      %v568 = vpop.xlane.xlu0 %567
      %569 = vadd.xlane.f32.xlu0 %v516
      %v570 = vpop.xlane.xlu0 %569
      %571 = vadd.xlane.f32.xlu0 %v517
      %v572 = vpop.xlane.xlu0 %571
      %573 = vadd.xlane.f32.xlu0 %v518
      %v574 = vpop.xlane.xlu0 %573
      %575 = vadd.xlane.f32.xlu0 %v519
      %v576 = vpop.xlane.xlu0 %575
      %577 = vadd.xlane.f32.xlu0 %v520
      %v578 = vpop.xlane.xlu0 %577
      %579 = vadd.xlane.f32.xlu0 %v521
      %v580 = vpop.xlane.xlu0 %579
      %581 = vadd.xlane.f32.xlu0 %v522
      %v582 = vpop.xlane.xlu0 %581
      %583 = vadd.xlane.f32.xlu0 %v523
      %v584 = vpop.xlane.xlu0 %583
      %585 = vadd.xlane.f32.xlu0 %v524
      %v586 = vpop.xlane.xlu0 %585
      %587 = vadd.xlane.f32.xlu0 %v525
      %v588 = vpop.xlane.xlu0 %587
      %589 = vadd.xlane.f32.xlu0 %v526
      %v590 = vpop.xlane.xlu0 %589
      %v591 = vmul.f32 %v528, %v430
      %v592 = vmul.f32 %v530, %v430
      %v593 = vmul.f32 %v532, %v430
      %v594 = vmul.f32 %v534, %v430
      %v595 = vmul.f32 %v536, %v430
      %v596 = vmul.f32 %v538, %v430
      %v597 = vmul.f32 %v540, %v430
      %v598 = vmul.f32 %v542, %v430
      %v599 = vmul.f32 %v544, %v430
      %v600 = vmul.f32 %v546, %v430
      %v601 = vmul.f32 %v548, %v430
      %v602 = vmul.f32 %v550, %v430
      %v603 = vmul.f32 %v552, %v430
      %v604 = vmul.f32 %v554, %v430
      %v605 = vmul.f32 %v556, %v430
      %v606 = vmul.f32 %v558, %v430
      %v607 = vmul.f32 %v560, %v430
      %v608 = vmul.f32 %v562, %v430
      %v609 = vmul.f32 %v564, %v430
      %v610 = vmul.f32 %v566, %v430
      %v611 = vmul.f32 %v568, %v430
      %v612 = vmul.f32 %v570, %v430
      %v613 = vmul.f32 %v572, %v430
      %v614 = vmul.f32 %v574, %v430
      %v615 = vmul.f32 %v576, %v430
      %v616 = vmul.f32 %v578, %v430
      %v617 = vmul.f32 %v580, %v430
      %v618 = vmul.f32 %v582, %v430
      %v619 = vmul.f32 %v584, %v430
      %v620 = vmul.f32 %v586, %v430
      %v621 = vmul.f32 %v588, %v430
      %v622 = vmul.f32 %v590, %v430
      %v623 = vadd.f32 %v591, 1e-05
      %v624 = vadd.f32 %v592, 1e-05
      %v625 = vadd.f32 %v593, 1e-05
      %v626 = vadd.f32 %v594, 1e-05
      %v627 = vadd.f32 %v595, 1e-05
      %v628 = vadd.f32 %v596, 1e-05
      %v629 = vadd.f32 %v597, 1e-05
      %v630 = vadd.f32 %v598, 1e-05
      %v631 = vadd.f32 %v599, 1e-05
      %v632 = vadd.f32 %v600, 1e-05
      %v633 = vadd.f32 %v601, 1e-05
      %v634 = vadd.f32 %v602, 1e-05
      %v635 = vadd.f32 %v603, 1e-05
      %v636 = vadd.f32 %v604, 1e-05
      %v637 = vadd.f32 %v605, 1e-05
      %v638 = vadd.f32 %v606, 1e-05
      %v639 = vadd.f32 %v607, 1e-05
      %v640 = vadd.f32 %v608, 1e-05
      %v641 = vadd.f32 %v609, 1e-05
      %v642 = vadd.f32 %v610, 1e-05
      %v643 = vadd.f32 %v611, 1e-05
      %v644 = vadd.f32 %v612, 1e-05
      %v645 = vadd.f32 %v613, 1e-05
      %v646 = vadd.f32 %v614, 1e-05
      %v647 = vadd.f32 %v615, 1e-05
      %v648 = vadd.f32 %v616, 1e-05
      %v649 = vadd.f32 %v617, 1e-05
      %v650 = vadd.f32 %v618, 1e-05
      %v651 = vadd.f32 %v619, 1e-05
      %v652 = vadd.f32 %v620, 1e-05
      %v653 = vadd.f32 %v621, 1e-05
      %v654 = vadd.f32 %v622, 1e-05
      %v655 = vrsqrt.pop %v623
      %v656 = vrsqrt.pop %v624
      %v657 = vrsqrt.pop %v625
      %v658 = vrsqrt.pop %v626
      %v659 = vrsqrt.pop %v627
      %v660 = vrsqrt.pop %v628
      %v661 = vrsqrt.pop %v629
      %v662 = vrsqrt.pop %v630
      %v663 = vrsqrt.pop %v631
      %v664 = vrsqrt.pop %v632
      %v665 = vrsqrt.pop %v633
      %v666 = vrsqrt.pop %v634
      %v667 = vrsqrt.pop %v635
      %v668 = vrsqrt.pop %v636
      %v669 = vrsqrt.pop %v637
      %v670 = vrsqrt.pop %v638
      %v671 = vrsqrt.pop %v639
      %v672 = vrsqrt.pop %v640
      %v673 = vrsqrt.pop %v641
      %v674 = vrsqrt.pop %v642
      %v675 = vrsqrt.pop %v643
      %v676 = vrsqrt.pop %v644
      %v677 = vrsqrt.pop %v645
      %v678 = vrsqrt.pop %v646
      %v679 = vrsqrt.pop %v647
      %v680 = vrsqrt.pop %v648
      %v681 = vrsqrt.pop %v649
      %v682 = vrsqrt.pop %v650
      %v683 = vrsqrt.pop %v651
      %v684 = vrsqrt.pop %v652
      %v685 = vrsqrt.pop %v653
      %v686 = vrsqrt.pop %v654
      %v687 = vmul.f32 %v463, %v655
      %v688 = vmul.f32 %v464, %v656
      %v689 = vmul.f32 %v465, %v657
      %v690 = vmul.f32 %v466, %v658
      %v691 = vmul.f32 %v467, %v659
      %v692 = vmul.f32 %v468, %v660
      %v693 = vmul.f32 %v469, %v661
      %v694 = vmul.f32 %v470, %v662
      %v695 = vmul.f32 %v471, %v663
      %v696 = vmul.f32 %v472, %v664
      %v697 = vmul.f32 %v473, %v665
      %v698 = vmul.f32 %v474, %v666
      %v699 = vmul.f32 %v475, %v667
      %v700 = vmul.f32 %v476, %v668
      %v701 = vmul.f32 %v477, %v669
      %v702 = vmul.f32 %v478, %v670
      %v703 = vmul.f32 %v479, %v671
      %v704 = vmul.f32 %v480, %v672
      %v705 = vmul.f32 %v481, %v673
      %v706 = vmul.f32 %v482, %v674
      %v707 = vmul.f32 %v483, %v675
      %v708 = vmul.f32 %v484, %v676
      %v709 = vmul.f32 %v485, %v677
      %v710 = vmul.f32 %v486, %v678
      %v711 = vmul.f32 %v487, %v679
      %v712 = vmul.f32 %v488, %v680
      %v713 = vmul.f32 %v489, %v681
      %v714 = vmul.f32 %v490, %v682
      %v715 = vmul.f32 %v491, %v683
      %v716 = vmul.f32 %v492, %v684
      %v717 = vmul.f32 %v493, %v685
      %v718 = vmul.f32 %v494, %v686
      %v719 = vld [vmem:[%s1] sm:$0x1]
      %v721 = vlaneseq
      %v722 = vshrl.u32 %v721, 7
      %v723 = vsub.s32 0, %v722
      %v724 = vrot.slane %v719, %v723
      %v726 = vmul.f32 %v687, %v724
      %v727 = vmul.f32 %v688, %v724
      %v728 = vmul.f32 %v689, %v724
      %v729 = vmul.f32 %v690, %v724
      %v730 = vmul.f32 %v691, %v724
      %v731 = vmul.f32 %v692, %v724
      %v732 = vmul.f32 %v693, %v724
      %v733 = vmul.f32 %v694, %v724
      %v734 = vmul.f32 %v695, %v724
      %v735 = vmul.f32 %v696, %v724
      %v736 = vmul.f32 %v697, %v724
      %v737 = vmul.f32 %v698, %v724
      %v738 = vmul.f32 %v699, %v724
      %v739 = vmul.f32 %v700, %v724
      %v740 = vmul.f32 %v701, %v724
      %v741 = vmul.f32 %v702, %v724
      %v742 = vmul.f32 %v703, %v724
      %v743 = vmul.f32 %v704, %v724
      %v744 = vmul.f32 %v705, %v724
      %v745 = vmul.f32 %v706, %v724
      %v746 = vmul.f32 %v707, %v724
      %v747 = vmul.f32 %v708, %v724
      %v748 = vmul.f32 %v709, %v724
      %v749 = vmul.f32 %v710, %v724
      %v750 = vmul.f32 %v711, %v724
      %v751 = vmul.f32 %v712, %v724
      %v752 = vmul.f32 %v713, %v724
      %v753 = vmul.f32 %v714, %v724
      %v754 = vmul.f32 %v715, %v724
      %v755 = vmul.f32 %v716, %v724
      %v756 = vmul.f32 %v717, %v724
      %v757 = vmul.f32 %v718, %v724
      %v758 = vld [vmem:[%s2] sm:$0x1]
      %v760 = vlaneseq
      %v761 = vshrl.u32 %v760, 7
      %v762 = vsub.s32 0, %v761
      %v763 = vrot.slane %v758, %v762
      %v765 = vadd.f32 %v726, %v763
      %v766 = vadd.f32 %v727, %v763
      %v767 = vadd.f32 %v728, %v763
      %v768 = vadd.f32 %v729, %v763
      %v769 = vadd.f32 %v730, %v763
      %v770 = vadd.f32 %v731, %v763
      %v771 = vadd.f32 %v732, %v763
      %v772 = vadd.f32 %v733, %v763
      %v773 = vadd.f32 %v734, %v763
      %v774 = vadd.f32 %v735, %v763
      %v775 = vadd.f32 %v736, %v763
      %v776 = vadd.f32 %v737, %v763
      %v777 = vadd.f32 %v738, %v763
      %v778 = vadd.f32 %v739, %v763
      %v779 = vadd.f32 %v740, %v763
      %v780 = vadd.f32 %v741, %v763
      %v781 = vadd.f32 %v742, %v763
      %v782 = vadd.f32 %v743, %v763
      %v783 = vadd.f32 %v744, %v763
      %v784 = vadd.f32 %v745, %v763
      %v785 = vadd.f32 %v746, %v763
      %v786 = vadd.f32 %v747, %v763
      %v787 = vadd.f32 %v748, %v763
      %v788 = vadd.f32 %v749, %v763
      %v789 = vadd.f32 %v750, %v763
      %v790 = vadd.f32 %v751, %v763
      %v791 = vadd.f32 %v752, %v763
      %v792 = vadd.f32 %v753, %v763
      %v793 = vadd.f32 %v754, %v763
      %v794 = vadd.f32 %v755, %v763
      %v795 = vadd.f32 %v756, %v763
      %v796 = vadd.f32 %v757, %v763
      %v797 = vpack.c.bf16 %v767, %v765
      %v798 = vpack.c.bf16 %v771, %v769
      %v799 = vpack.c.bf16 %v775, %v773
      %v800 = vpack.c.bf16 %v779, %v777
      %v801 = vpack.c.bf16 %v768, %v766
      %v802 = vpack.c.bf16 %v772, %v770
      %v803 = vpack.c.bf16 %v776, %v774
      %v804 = vpack.c.bf16 %v780, %v778
      %v805 = vpack.c.bf16 %v783, %v781
      %v806 = vpack.c.bf16 %v787, %v785
      %v807 = vpack.c.bf16 %v791, %v789
      %v808 = vpack.c.bf16 %v795, %v793
      %v809 = vpack.c.bf16 %v784, %v782
      %v810 = vpack.c.bf16 %v788, %v786
      %v811 = vpack.c.bf16 %v792, %v790
      %v812 = vpack.c.bf16 %v796, %v794
      %v813 = vld [vmem:[%s3] sm:$0xff]
      %v814 = vld [vmem:[%s3 + $0x8] sm:$0xf]
      %v815 = vld [vmem:[%s3 + $0xc] sm:$0xff]
      %v816 = vld [vmem:[%s3 + $0x14] sm:$0xf]
      %v817 = vld [vmem:[%s3 + $0x18] sm:$0xff]
      %v818 = vld [vmem:[%s3 + $0x20] sm:$0xf]
      %v819 = vld [vmem:[%s3 + $0x24] sm:$0xff]
      %v820 = vld [vmem:[%s3 + $0x2c] sm:$0xf]
      %v821 = vld [vmem:[%s3 + $0x30] sm:$0xff]
      %v822 = vld [vmem:[%s3 + $0x38] sm:$0xf]
      %v823 = vld [vmem:[%s3 + $0x3c] sm:$0xff]
      %v824 = vld [vmem:[%s3 + $0x44] sm:$0xf]
      %v825 = vld [vmem:[%s3 + $0x48] sm:$0xff]
      %v826 = vld [vmem:[%s3 + $0x50] sm:$0xf]
      %v827 = vld [vmem:[%s3 + $0x54] sm:$0xff]
      %v828 = vld [vmem:[%s3 + $0x5c] sm:$0xf]
      %v829 = vld [vmem:[%s3 + $0x60] sm:$0xff]
      %v830 = vld [vmem:[%s3 + $0x68] sm:$0xf]
      %v831 = vld [vmem:[%s3 + $0x6c] sm:$0xff]
      %v832 = vld [vmem:[%s3 + $0x74] sm:$0xf]
      %v833 = vld [vmem:[%s3 + $0x78] sm:$0xff]
      %v834 = vld [vmem:[%s3 + $0x80] sm:$0xf]
      %v835 = vld [vmem:[%s3 + $0x84] sm:$0xff]
      %v836 = vld [vmem:[%s3 + $0x8c] sm:$0xf]
      %v837 = vld [vmem:[%s3 + $0x90] sm:$0xff]
      %v838 = vld [vmem:[%s3 + $0x98] sm:$0xf]
      %v839 = vld [vmem:[%s3 + $0x9c] sm:$0xff]
      %v840 = vld [vmem:[%s3 + $0xa4] sm:$0xf]
      %v841 = vld [vmem:[%s3 + $0xa8] sm:$0xff]
      %v842 = vld [vmem:[%s3 + $0xb0] sm:$0xf]
      %v843 = vld [vmem:[%s3 + $0xb4] sm:$0xff]
      %v844 = vld [vmem:[%s3 + $0xbc] sm:$0xf]
      %v845 = vld [vmem:[%s4] sm:$0x7]
      %v847 = vlaneseq
      %v848 = vshrl.u32 %v847, 7
      %v849 = vsub.s32 0, %v848
      %v850 = vrot.slane %v845, %v849
      %v851 = vlaneseq
      %v852 = vshrl.u32 %v851, 7
      %v853 = vsub.s32 1, %v852
      %v854 = vrot.slane %v845, %v853
      %v855 = vlaneseq
      %v856 = vshrl.u32 %v855, 7
      %v857 = vsub.s32 2, %v856
      %v858 = vrot.slane %v845, %v857
      %v894 = vunpack.c.l.b16 %v813
      %v895 = vunpack.c.h.b16 %v813
      %v896 = vunpack.c.l.b16 %v814
      %v897 = vunpack.c.l.b16 %v815
      %v898 = vunpack.c.h.b16 %v815
      %v899 = vunpack.c.l.b16 %v816
      %v900 = vunpack.c.l.b16 %v817
      %v901 = vunpack.c.h.b16 %v817
      %v902 = vunpack.c.l.b16 %v818
      %v903 = vunpack.c.l.b16 %v819
      %v904 = vunpack.c.h.b16 %v819
      %v905 = vunpack.c.l.b16 %v820
      %v906 = vunpack.c.l.b16 %v821
      %v907 = vunpack.c.h.b16 %v821
      %v908 = vunpack.c.l.b16 %v822
      %v909 = vunpack.c.l.b16 %v823
      %v910 = vunpack.c.h.b16 %v823
      %v911 = vunpack.c.l.b16 %v824
      %v912 = vunpack.c.l.b16 %v825
      %v913 = vunpack.c.h.b16 %v825
      %v914 = vunpack.c.l.b16 %v826
      %v915 = vunpack.c.l.b16 %v827
      %v916 = vunpack.c.h.b16 %v827
      %v917 = vunpack.c.l.b16 %v828
      %v918 = vunpack.c.l.b16 %v829
      %v919 = vunpack.c.h.b16 %v829
      %v920 = vunpack.c.l.b16 %v830
      %v921 = vunpack.c.l.b16 %v831
      %v922 = vunpack.c.h.b16 %v831
      %v923 = vunpack.c.l.b16 %v832
      %v924 = vunpack.c.l.b16 %v833
      %v925 = vunpack.c.h.b16 %v833
      %v926 = vunpack.c.l.b16 %v834
      %v927 = vunpack.c.l.b16 %v835
      %v928 = vunpack.c.h.b16 %v835
      %v929 = vunpack.c.l.b16 %v836
      %v930 = vunpack.c.l.b16 %v837
      %v931 = vunpack.c.h.b16 %v837
      %v932 = vunpack.c.l.b16 %v838
      %v933 = vunpack.c.l.b16 %v839
      %v934 = vunpack.c.h.b16 %v839
      %v935 = vunpack.c.l.b16 %v840
      %v936 = vunpack.c.l.b16 %v841
      %v937 = vunpack.c.h.b16 %v841
      %v938 = vunpack.c.l.b16 %v842
      %v939 = vunpack.c.l.b16 %v843
      %v940 = vunpack.c.h.b16 %v843
      %v941 = vunpack.c.l.b16 %v844
      %v942 = vpack.c.b16 %v897, %v894
      %v943 = vpack.c.b16 %v898, %v895
      %v944 = vpack.c.b16 %v899, %v896
      %v945 = vpack.c.b16 %v903, %v900
      %v946 = vpack.c.b16 %v904, %v901
      %v947 = vpack.c.b16 %v905, %v902
      %v948 = vpack.c.b16 %v909, %v906
      %v949 = vpack.c.b16 %v910, %v907
      %v950 = vpack.c.b16 %v911, %v908
      %v951 = vpack.c.b16 %v915, %v912
      %v952 = vpack.c.b16 %v916, %v913
      %v953 = vpack.c.b16 %v917, %v914
      %v954 = vpack.c.b16 %v921, %v918
      %v955 = vpack.c.b16 %v922, %v919
      %v956 = vpack.c.b16 %v923, %v920
      %v957 = vpack.c.b16 %v927, %v924
      %v958 = vpack.c.b16 %v928, %v925
      %v959 = vpack.c.b16 %v929, %v926
      %v960 = vpack.c.b16 %v933, %v930
      %v961 = vpack.c.b16 %v934, %v931
      %v962 = vpack.c.b16 %v935, %v932
      %v963 = vpack.c.b16 %v939, %v936
      %v964 = vpack.c.b16 %v940, %v937
      %v965 = vpack.c.b16 %v941, %v938
      %990 = vmatprep.subr.bf16.mxu0 %v964
      %991 = vmatpush1.bf16.msra.mxu0 %v963
      %992 = vmatprep.subr.bf16.mxu0 %v961
      %993 = vmatpush1.bf16.msra.mxu0 %v960
      %994 = vmatprep.subr.bf16.mxu0 %v958
      %995 = vmatpush1.bf16.msra.mxu0 %v957
      %996 = vmatprep.subr.bf16.mxu0 %v955
      %997 = vmatpush1.bf16.msra.mxu0 %v954
      %998 = vmatprep.subr.bf16.mxu0 %v952
      %999 = vmatpush1.bf16.msra.mxu0 %v951
      %1000 = vmatprep.subr.bf16.mxu0 %v949
      %1001 = vmatpush1.bf16.msra.mxu0 %v948
      %1002 = vmatprep.subr.bf16.mxu0 %v946
      %1003 = vmatpush1.bf16.msra.mxu0 %v945
      %1004 = vmatprep.subr.bf16.mxu0 %v943
      %1005 = vmatpush1.bf16.msra.mxu0 %v942
      %1006 = vmatprep.subr.bf16.mxu0 0
      %1007 = vmatpush2.bf16.msra.mxu0 0
      %1008 = vmatprep.subr.bf16.mxu0 0
      %1009 = vmatpush2.bf16.msra.mxu0 0
      %1010 = vmatprep.subr.bf16.mxu0 0
      %1011 = vmatpush2.bf16.msra.mxu0 0
      %1012 = vmatprep.subr.bf16.mxu0 0
      %1013 = vmatpush2.bf16.msra.mxu0 0
      %1014 = vmatprep.subr.bf16.mxu0 0
      %1015 = vmatpush2.bf16.msra.mxu0 0
      %1016 = vmatprep.subr.bf16.mxu0 0
      %1017 = vmatpush2.bf16.msra.mxu0 0
      %1018 = vmatprep.subr.bf16.mxu0 0
      %1019 = vmatpush2.bf16.msra.mxu0 0
      %1020 = vmatprep.subr.bf16.mxu0 0
      %1021 = vmatpush2.bf16.msra.mxu0 0
      %1022 = vmatprep.mubr.bf16.mxu0 0
      %1023 = vmatmul.mubr.bf16.gmra.mxu0 %v797
      %v1024 = vpop.f32.mrf.mxu0
      %v1025 = vadd.f32 %v850, %v1024
      %v1026 = vpop.f32.mrf.mxu0
      %v1027 = vadd.f32 %v854, %v1026
      %v1028 = vpop.f32.mrf.mxu0
      %v1029 = vadd.f32 %v850, %v1028
      %v1030 = vpop.f32.mrf.mxu0
      %v1031 = vadd.f32 %v854, %v1030
      %1032 = vmatprep.mubr.bf16.mxu0 0
      %1033 = vmatmul.mubr.bf16.gmra.mxu0 %v798
      %v1034 = vpop.f32.mrf.mxu0
      %v1035 = vadd.f32 %v850, %v1034
      %v1036 = vpop.f32.mrf.mxu0
      %v1037 = vadd.f32 %v854, %v1036
      %v1038 = vpop.f32.mrf.mxu0
      %v1039 = vadd.f32 %v850, %v1038
      %v1040 = vpop.f32.mrf.mxu0
      %v1041 = vadd.f32 %v854, %v1040
      %1042 = vmatprep.mubr.bf16.mxu0 0
      %1043 = vmatmul.mubr.bf16.gmra.mxu0 %v799
      %v1044 = vpop.f32.mrf.mxu0
      %v1045 = vadd.f32 %v850, %v1044
      %v1046 = vpop.f32.mrf.mxu0
      %v1047 = vadd.f32 %v854, %v1046
      %v1048 = vpop.f32.mrf.mxu0
      %v1049 = vadd.f32 %v850, %v1048
      %v1050 = vpop.f32.mrf.mxu0
      %v1051 = vadd.f32 %v854, %v1050
      %1052 = vmatprep.mubr.bf16.mxu0 0
      %1053 = vmatmul.mubr.bf16.gmra.mxu0 %v800
      %v1054 = vpop.f32.mrf.mxu0
      %v1055 = vadd.f32 %v850, %v1054
      %v1056 = vpop.f32.mrf.mxu0
      %v1057 = vadd.f32 %v854, %v1056
      %v1058 = vpop.f32.mrf.mxu0
      %v1059 = vadd.f32 %v850, %v1058
      %v1060 = vpop.f32.mrf.mxu0
      %v1061 = vadd.f32 %v854, %v1060
      %1062 = vmatprep.mubr.bf16.mxu0 0
      %1063 = vmatmul.mubr.bf16.gmra.mxu0 %v801
      %v1064 = vpop.f32.mrf.mxu0
      %v1065 = vadd.f32 %v850, %v1064
      %v1066 = vpop.f32.mrf.mxu0
      %v1067 = vadd.f32 %v854, %v1066
      %v1068 = vpop.f32.mrf.mxu0
      %v1069 = vadd.f32 %v850, %v1068
      %v1070 = vpop.f32.mrf.mxu0
      %v1071 = vadd.f32 %v854, %v1070
      %1072 = vmatprep.mubr.bf16.mxu0 0
      %1073 = vmatmul.mubr.bf16.gmra.mxu0 %v802
      %v1074 = vpop.f32.mrf.mxu0
      %v1075 = vadd.f32 %v850, %v1074
      %v1076 = vpop.f32.mrf.mxu0
      %v1077 = vadd.f32 %v854, %v1076
      %v1078 = vpop.f32.mrf.mxu0
      %v1079 = vadd.f32 %v850, %v1078
      %v1080 = vpop.f32.mrf.mxu0
      %v1081 = vadd.f32 %v854, %v1080
      %1082 = vmatprep.mubr.bf16.mxu0 0
      %1083 = vmatmul.mubr.bf16.gmra.mxu0 %v803
      %v1084 = vpop.f32.mrf.mxu0
      %v1085 = vadd.f32 %v850, %v1084
      %v1086 = vpop.f32.mrf.mxu0
      %v1087 = vadd.f32 %v854, %v1086
      %v1088 = vpop.f32.mrf.mxu0
      %v1089 = vadd.f32 %v850, %v1088
      %v1090 = vpop.f32.mrf.mxu0
      %v1091 = vadd.f32 %v854, %v1090
      %1092 = vmatprep.mubr.bf16.mxu0 0
      %1093 = vmatmul.mubr.bf16.gmra.mxu0 %v804
      %v1094 = vpop.f32.mrf.mxu0
      %v1095 = vadd.f32 %v850, %v1094
      %v1096 = vpop.f32.mrf.mxu0
      %v1097 = vadd.f32 %v854, %v1096
      %v1098 = vpop.f32.mrf.mxu0
      %v1099 = vadd.f32 %v850, %v1098
      %v1100 = vpop.f32.mrf.mxu0
      %v1101 = vadd.f32 %v854, %v1100
      %1102 = vmatprep.mubr.bf16.mxu0 0
      %1103 = vmatmul.mubr.bf16.gmra.mxu0 %v805
      %v1104 = vpop.f32.mrf.mxu0
      %v1105 = vadd.f32 %v850, %v1104
      %v1106 = vpop.f32.mrf.mxu0
      %v1107 = vadd.f32 %v854, %v1106
      %v1108 = vpop.f32.mrf.mxu0
      %v1109 = vadd.f32 %v850, %v1108
      %v1110 = vpop.f32.mrf.mxu0
      %v1111 = vadd.f32 %v854, %v1110
      %1112 = vmatprep.mubr.bf16.mxu0 0
      %1113 = vmatmul.mubr.bf16.gmra.mxu0 %v806
      %v1114 = vpop.f32.mrf.mxu0
      %v1115 = vadd.f32 %v850, %v1114
      %v1116 = vpop.f32.mrf.mxu0
      %v1117 = vadd.f32 %v854, %v1116
      %v1118 = vpop.f32.mrf.mxu0
      %v1119 = vadd.f32 %v850, %v1118
      %v1120 = vpop.f32.mrf.mxu0
      %v1121 = vadd.f32 %v854, %v1120
      %1122 = vmatprep.mubr.bf16.mxu0 0
      %1123 = vmatmul.mubr.bf16.gmra.mxu0 %v807
      %v1124 = vpop.f32.mrf.mxu0
      %v1125 = vadd.f32 %v850, %v1124
      %v1126 = vpop.f32.mrf.mxu0
      %v1127 = vadd.f32 %v854, %v1126
      %v1128 = vpop.f32.mrf.mxu0
      %v1129 = vadd.f32 %v850, %v1128
      %v1130 = vpop.f32.mrf.mxu0
      %v1131 = vadd.f32 %v854, %v1130
      %1132 = vmatprep.mubr.bf16.mxu0 0
      %1133 = vmatmul.mubr.bf16.gmra.mxu0 %v808
      %v1134 = vpop.f32.mrf.mxu0
      %v1135 = vadd.f32 %v850, %v1134
      %v1136 = vpop.f32.mrf.mxu0
      %v1137 = vadd.f32 %v854, %v1136
      %v1138 = vpop.f32.mrf.mxu0
      %v1139 = vadd.f32 %v850, %v1138
      %v1140 = vpop.f32.mrf.mxu0
      %v1141 = vadd.f32 %v854, %v1140
      %1142 = vmatprep.mubr.bf16.mxu0 0
      %1143 = vmatmul.mubr.bf16.gmra.mxu0 %v809
      %v1144 = vpop.f32.mrf.mxu0
      %v1145 = vadd.f32 %v850, %v1144
      %v1146 = vpop.f32.mrf.mxu0
      %v1147 = vadd.f32 %v854, %v1146
      %v1148 = vpop.f32.mrf.mxu0
      %v1149 = vadd.f32 %v850, %v1148
      %v1150 = vpop.f32.mrf.mxu0
      %v1151 = vadd.f32 %v854, %v1150
      %1152 = vmatprep.mubr.bf16.mxu0 0
      %1153 = vmatmul.mubr.bf16.gmra.mxu0 %v810
      %v1154 = vpop.f32.mrf.mxu0
      %v1155 = vadd.f32 %v850, %v1154
      %v1156 = vpop.f32.mrf.mxu0
      %v1157 = vadd.f32 %v854, %v1156
      %v1158 = vpop.f32.mrf.mxu0
      %v1159 = vadd.f32 %v850, %v1158
      %v1160 = vpop.f32.mrf.mxu0
      %v1161 = vadd.f32 %v854, %v1160
      %1162 = vmatprep.mubr.bf16.mxu0 0
      %1163 = vmatmul.mubr.bf16.gmra.mxu0 %v811
      %v1164 = vpop.f32.mrf.mxu0
      %v1165 = vadd.f32 %v850, %v1164
      %v1166 = vpop.f32.mrf.mxu0
      %v1167 = vadd.f32 %v854, %v1166
      %v1168 = vpop.f32.mrf.mxu0
      %v1169 = vadd.f32 %v850, %v1168
      %v1170 = vpop.f32.mrf.mxu0
      %v1171 = vadd.f32 %v854, %v1170
      %1172 = vmatprep.mubr.bf16.mxu0 0
      %1173 = vmatmul.mubr.bf16.gmra.mxu0 %v812
      %v1174 = vpop.f32.mrf.mxu0
      %v1175 = vadd.f32 %v850, %v1174
      %v1176 = vpop.f32.mrf.mxu0
      %v1177 = vadd.f32 %v854, %v1176
      %v1178 = vpop.f32.mrf.mxu0
      %v1179 = vadd.f32 %v850, %v1178
      %v1180 = vpop.f32.mrf.mxu0
      %v1181 = vadd.f32 %v854, %v1180
      %1182 = vdwg.mxu0
      %1183 = vmatprep.subr.bf16.mxu0 0
      %1184 = vmatpush1.bf16.msra.mxu0 %v965
      %1185 = vmatprep.subr.bf16.mxu0 0
      %1186 = vmatpush1.bf16.msra.mxu0 %v962
      %1187 = vmatprep.subr.bf16.mxu0 0
      %1188 = vmatpush1.bf16.msra.mxu0 %v959
      %1189 = vmatprep.subr.bf16.mxu0 0
      %1190 = vmatpush1.bf16.msra.mxu0 %v956
      %1191 = vmatprep.subr.bf16.mxu0 0
      %1192 = vmatpush1.bf16.msra.mxu0 %v953
      %1193 = vmatprep.subr.bf16.mxu0 0
      %1194 = vmatpush1.bf16.msra.mxu0 %v950
      %1195 = vmatprep.subr.bf16.mxu0 0
      %1196 = vmatpush1.bf16.msra.mxu0 %v947
      %1197 = vmatprep.subr.bf16.mxu0 0
      %1198 = vmatpush1.bf16.msra.mxu0 %v944
      %1199 = vmatprep.subr.bf16.mxu0 0
      %1200 = vmatpush2.bf16.msra.mxu0 0
      %1201 = vmatprep.subr.bf16.mxu0 0
      %1202 = vmatpush2.bf16.msra.mxu0 0
      %1203 = vmatprep.subr.bf16.mxu0 0
      %1204 = vmatpush2.bf16.msra.mxu0 0
      %1205 = vmatprep.subr.bf16.mxu0 0
      %1206 = vmatpush2.bf16.msra.mxu0 0
      %1207 = vmatprep.subr.bf16.mxu0 0
      %1208 = vmatpush2.bf16.msra.mxu0 0
      %1209 = vmatprep.subr.bf16.mxu0 0
      %1210 = vmatpush2.bf16.msra.mxu0 0
      %1211 = vmatprep.subr.bf16.mxu0 0
      %1212 = vmatpush2.bf16.msra.mxu0 0
      %1213 = vmatprep.subr.bf16.mxu0 0
      %1214 = vmatpush2.bf16.msra.mxu0 0
      %1215 = vmatprep.mubr.bf16.mxu0 0
      %1216 = vmatmul.mubr.bf16.gmra.mxu0 %v797
      %v1217 = vpop.f32.mrf.mxu0
      %v1218 = vadd.f32 %v858, %v1217
      %v1219 = vpop.f32.mrf.mxu0
      %v1220 = vpop.f32.mrf.mxu0
      %v1221 = vadd.f32 %v858, %v1220
      %v1222 = vpop.f32.mrf.mxu0
      %1223 = vmatprep.mubr.bf16.mxu0 0
      %1224 = vmatmul.mubr.bf16.gmra.mxu0 %v798
      %v1225 = vpop.f32.mrf.mxu0
      %v1226 = vadd.f32 %v858, %v1225
      %v1227 = vpop.f32.mrf.mxu0
      %v1228 = vpop.f32.mrf.mxu0
      %v1229 = vadd.f32 %v858, %v1228
      %v1230 = vpop.f32.mrf.mxu0
      %1231 = vmatprep.mubr.bf16.mxu0 0
      %1232 = vmatmul.mubr.bf16.gmra.mxu0 %v799
      %v1233 = vpop.f32.mrf.mxu0
      %v1234 = vadd.f32 %v858, %v1233
      %v1235 = vpop.f32.mrf.mxu0
      %v1236 = vpop.f32.mrf.mxu0
      %v1237 = vadd.f32 %v858, %v1236
      %v1238 = vpop.f32.mrf.mxu0
      %1239 = vmatprep.mubr.bf16.mxu0 0
      %1240 = vmatmul.mubr.bf16.gmra.mxu0 %v800
      %v1241 = vpop.f32.mrf.mxu0
      %v1242 = vadd.f32 %v858, %v1241
      %v1243 = vpop.f32.mrf.mxu0
      %v1244 = vpop.f32.mrf.mxu0
      %v1245 = vadd.f32 %v858, %v1244
      %v1246 = vpop.f32.mrf.mxu0
      %1247 = vmatprep.mubr.bf16.mxu0 0
      %1248 = vmatmul.mubr.bf16.gmra.mxu0 %v801
      %v1249 = vpop.f32.mrf.mxu0
      %v1250 = vadd.f32 %v858, %v1249
      %v1251 = vpop.f32.mrf.mxu0
      %v1252 = vpop.f32.mrf.mxu0
      %v1253 = vadd.f32 %v858, %v1252
      %v1254 = vpop.f32.mrf.mxu0
      %1255 = vmatprep.mubr.bf16.mxu0 0
      %1256 = vmatmul.mubr.bf16.gmra.mxu0 %v802
      %v1257 = vpop.f32.mrf.mxu0
      %v1258 = vadd.f32 %v858, %v1257
      %v1259 = vpop.f32.mrf.mxu0
      %v1260 = vpop.f32.mrf.mxu0
      %v1261 = vadd.f32 %v858, %v1260
      %v1262 = vpop.f32.mrf.mxu0
      %1263 = vmatprep.mubr.bf16.mxu0 0
      %1264 = vmatmul.mubr.bf16.gmra.mxu0 %v803
      %v1265 = vpop.f32.mrf.mxu0
      %v1266 = vadd.f32 %v858, %v1265
      %v1267 = vpop.f32.mrf.mxu0
      %v1268 = vpop.f32.mrf.mxu0
      %v1269 = vadd.f32 %v858, %v1268
      %v1270 = vpop.f32.mrf.mxu0
      %1271 = vmatprep.mubr.bf16.mxu0 0
      %1272 = vmatmul.mubr.bf16.gmra.mxu0 %v804
      %v1273 = vpop.f32.mrf.mxu0
      %v1274 = vadd.f32 %v858, %v1273
      %v1275 = vpop.f32.mrf.mxu0
      %v1276 = vpop.f32.mrf.mxu0
      %v1277 = vadd.f32 %v858, %v1276
      %v1278 = vpop.f32.mrf.mxu0
      %1279 = vmatprep.mubr.bf16.mxu0 0
      %1280 = vmatmul.mubr.bf16.gmra.mxu0 %v805
      %v1281 = vpop.f32.mrf.mxu0
      %v1282 = vadd.f32 %v858, %v1281
      %v1283 = vpop.f32.mrf.mxu0
      %v1284 = vpop.f32.mrf.mxu0
      %v1285 = vadd.f32 %v858, %v1284
      %v1286 = vpop.f32.mrf.mxu0
      %1287 = vmatprep.mubr.bf16.mxu0 0
      %1288 = vmatmul.mubr.bf16.gmra.mxu0 %v806
      %v1289 = vpop.f32.mrf.mxu0
      %v1290 = vadd.f32 %v858, %v1289
      %v1291 = vpop.f32.mrf.mxu0
      %v1292 = vpop.f32.mrf.mxu0
      %v1293 = vadd.f32 %v858, %v1292
      %v1294 = vpop.f32.mrf.mxu0
      %1295 = vmatprep.mubr.bf16.mxu0 0
      %1296 = vmatmul.mubr.bf16.gmra.mxu0 %v807
      %v1297 = vpop.f32.mrf.mxu0
      %v1298 = vadd.f32 %v858, %v1297
      %v1299 = vpop.f32.mrf.mxu0
      %v1300 = vpop.f32.mrf.mxu0
      %v1301 = vadd.f32 %v858, %v1300
      %v1302 = vpop.f32.mrf.mxu0
      %1303 = vmatprep.mubr.bf16.mxu0 0
      %1304 = vmatmul.mubr.bf16.gmra.mxu0 %v808
      %v1305 = vpop.f32.mrf.mxu0
      %v1306 = vadd.f32 %v858, %v1305
      %v1307 = vpop.f32.mrf.mxu0
      %v1308 = vpop.f32.mrf.mxu0
      %v1309 = vadd.f32 %v858, %v1308
      %v1310 = vpop.f32.mrf.mxu0
      %1311 = vmatprep.mubr.bf16.mxu0 0
      %1312 = vmatmul.mubr.bf16.gmra.mxu0 %v809
      %v1313 = vpop.f32.mrf.mxu0
      %v1314 = vadd.f32 %v858, %v1313
      %v1315 = vpop.f32.mrf.mxu0
      %v1316 = vpop.f32.mrf.mxu0
      %v1317 = vadd.f32 %v858, %v1316
      %v1318 = vpop.f32.mrf.mxu0
      %1319 = vmatprep.mubr.bf16.mxu0 0
      %1320 = vmatmul.mubr.bf16.gmra.mxu0 %v810
      %v1321 = vpop.f32.mrf.mxu0
      %v1322 = vadd.f32 %v858, %v1321
      %v1323 = vpop.f32.mrf.mxu0
      %v1324 = vpop.f32.mrf.mxu0
      %v1325 = vadd.f32 %v858, %v1324
      %v1326 = vpop.f32.mrf.mxu0
      %1327 = vmatprep.mubr.bf16.mxu0 0
      %1328 = vmatmul.mubr.bf16.gmra.mxu0 %v811
      %v1329 = vpop.f32.mrf.mxu0
      %v1330 = vadd.f32 %v858, %v1329
      %v1331 = vpop.f32.mrf.mxu0
      %v1332 = vpop.f32.mrf.mxu0
      %v1333 = vadd.f32 %v858, %v1332
      %v1334 = vpop.f32.mrf.mxu0
      %1335 = vmatprep.mubr.bf16.mxu0 0
      %1336 = vmatmul.mubr.bf16.gmra.mxu0 %v812
      %v1337 = vpop.f32.mrf.mxu0
      %v1338 = vadd.f32 %v858, %v1337
      %v1339 = vpop.f32.mrf.mxu0
      %v1340 = vpop.f32.mrf.mxu0
      %v1341 = vadd.f32 %v858, %v1340
      %v1342 = vpop.f32.mrf.mxu0
      %1343 = vdwg.mxu0
      %v1344 = vmul.f32 %v1025, 0.17677669
      %v1345 = vmul.f32 %v1029, 0.17677669
      %v1346 = vmul.f32 %v1035, 0.17677669
      %v1347 = vmul.f32 %v1039, 0.17677669
      %v1348 = vmul.f32 %v1045, 0.17677669
      %v1349 = vmul.f32 %v1049, 0.17677669
      %v1350 = vmul.f32 %v1055, 0.17677669
      %v1351 = vmul.f32 %v1059, 0.17677669
      %v1352 = vmul.f32 %v1065, 0.17677669
      %v1353 = vmul.f32 %v1069, 0.17677669
      %v1354 = vmul.f32 %v1075, 0.17677669
      %v1355 = vmul.f32 %v1079, 0.17677669
      %v1356 = vmul.f32 %v1085, 0.17677669
      %v1357 = vmul.f32 %v1089, 0.17677669
      %v1358 = vmul.f32 %v1095, 0.17677669
      %v1359 = vmul.f32 %v1099, 0.17677669
      %v1360 = vmul.f32 %v1105, 0.17677669
      %v1361 = vmul.f32 %v1109, 0.17677669
      %v1362 = vmul.f32 %v1115, 0.17677669
      %v1363 = vmul.f32 %v1119, 0.17677669
      %v1364 = vmul.f32 %v1125, 0.17677669
      %v1365 = vmul.f32 %v1129, 0.17677669
      %v1366 = vmul.f32 %v1135, 0.17677669
      %v1367 = vmul.f32 %v1139, 0.17677669
      %v1368 = vmul.f32 %v1145, 0.17677669
      %v1369 = vmul.f32 %v1149, 0.17677669
      %v1370 = vmul.f32 %v1155, 0.17677669
      %v1371 = vmul.f32 %v1159, 0.17677669
      %v1372 = vmul.f32 %v1165, 0.17677669
      %v1373 = vmul.f32 %v1169, 0.17677669
      %v1374 = vmul.f32 %v1175, 0.17677669
      %v1375 = vmul.f32 %v1179, 0.17677669
      %v1376 = vpack.c.bf16 %v1345, %v1344
      %v1377 = vpack.c.bf16 %v1347, %v1346
      %v1378 = vpack.c.bf16 %v1349, %v1348
      %v1379 = vpack.c.bf16 %v1351, %v1350
      %v1380 = vpack.c.bf16 %v1353, %v1352
      %v1381 = vpack.c.bf16 %v1355, %v1354
      %v1382 = vpack.c.bf16 %v1357, %v1356
      %v1383 = vpack.c.bf16 %v1359, %v1358
      %v1384 = vpack.c.bf16 %v1361, %v1360
      %v1385 = vpack.c.bf16 %v1363, %v1362
      %v1386 = vpack.c.bf16 %v1365, %v1364
      %v1387 = vpack.c.bf16 %v1367, %v1366
      %v1388 = vpack.c.bf16 %v1369, %v1368
      %v1389 = vpack.c.bf16 %v1371, %v1370
      %v1390 = vpack.c.bf16 %v1373, %v1372
      %v1391 = vpack.c.bf16 %v1375, %v1374
      %1408 = vrot.lane.b32.xlu0 %v1376, 96
      %v1409 = vpop.permute.xlu0 %1408
      %1410 = vrot.lane.b32.xlu0 %v1377, 96
      %v1411 = vpop.permute.xlu0 %1410
      %1412 = vrot.lane.b32.xlu0 %v1378, 96
      %v1413 = vpop.permute.xlu0 %1412
      %1414 = vrot.lane.b32.xlu0 %v1379, 96
      %v1415 = vpop.permute.xlu0 %1414
      %1416 = vrot.lane.b32.xlu0 %v1380, 96
      %v1417 = vpop.permute.xlu0 %1416
      %1418 = vrot.lane.b32.xlu0 %v1381, 96
      %v1419 = vpop.permute.xlu0 %1418
      %1420 = vrot.lane.b32.xlu0 %v1382, 96
      %v1421 = vpop.permute.xlu0 %1420
      %1422 = vrot.lane.b32.xlu0 %v1383, 96
      %v1423 = vpop.permute.xlu0 %1422
      %1424 = vrot.lane.b32.xlu0 %v1384, 96
      %v1425 = vpop.permute.xlu0 %1424
      %1426 = vrot.lane.b32.xlu0 %v1385, 96
      %v1427 = vpop.permute.xlu0 %1426
      %1428 = vrot.lane.b32.xlu0 %v1386, 96
      %v1429 = vpop.permute.xlu0 %1428
      %1430 = vrot.lane.b32.xlu0 %v1387, 96
      %v1431 = vpop.permute.xlu0 %1430
      %1432 = vrot.lane.b32.xlu0 %v1388, 96
      %v1433 = vpop.permute.xlu0 %1432
      %1434 = vrot.lane.b32.xlu0 %v1389, 96
      %v1435 = vpop.permute.xlu0 %1434
      %1436 = vrot.lane.b32.xlu0 %v1390, 96
      %v1437 = vpop.permute.xlu0 %1436
      %1438 = vrot.lane.b32.xlu0 %v1391, 96
      %v1439 = vpop.permute.xlu0 %1438
      %1440 = vrot.lane.b32.xlu0 %v1376, 64
      %v1441 = vpop.permute.xlu0 %1440
      %1442 = vrot.lane.b32.xlu0 %v1377, 64
      %v1443 = vpop.permute.xlu0 %1442
      %1444 = vrot.lane.b32.xlu0 %v1378, 64
      %v1445 = vpop.permute.xlu0 %1444
      %1446 = vrot.lane.b32.xlu0 %v1379, 64
      %v1447 = vpop.permute.xlu0 %1446
      %1448 = vrot.lane.b32.xlu0 %v1380, 64
      %v1449 = vpop.permute.xlu0 %1448
      %1450 = vrot.lane.b32.xlu0 %v1381, 64
      %v1451 = vpop.permute.xlu0 %1450
      %1452 = vrot.lane.b32.xlu0 %v1382, 64
      %v1453 = vpop.permute.xlu0 %1452
      %1454 = vrot.lane.b32.xlu0 %v1383, 64
      %v1455 = vpop.permute.xlu0 %1454
      %1456 = vrot.lane.b32.xlu0 %v1384, 64
      %v1457 = vpop.permute.xlu0 %1456
      %1458 = vrot.lane.b32.xlu0 %v1385, 64
      %v1459 = vpop.permute.xlu0 %1458
      %1460 = vrot.lane.b32.xlu0 %v1386, 64
      %v1461 = vpop.permute.xlu0 %1460
      %1462 = vrot.lane.b32.xlu0 %v1387, 64
      %v1463 = vpop.permute.xlu0 %1462
      %1464 = vrot.lane.b32.xlu0 %v1388, 64
      %v1465 = vpop.permute.xlu0 %1464
      %1466 = vrot.lane.b32.xlu0 %v1389, 64
      %v1467 = vpop.permute.xlu0 %1466
      %1468 = vrot.lane.b32.xlu0 %v1390, 64
      %v1469 = vpop.permute.xlu0 %1468
      %1470 = vrot.lane.b32.xlu0 %v1391, 64
      %v1471 = vpop.permute.xlu0 %1470
      %1472 = vrot.lane.b32.xlu0 %v1376, 32
      %v1473 = vpop.permute.xlu0 %1472
      %1474 = vrot.lane.b32.xlu0 %v1377, 32
      %v1475 = vpop.permute.xlu0 %1474
      %1476 = vrot.lane.b32.xlu0 %v1378, 32
      %v1477 = vpop.permute.xlu0 %1476
      %1478 = vrot.lane.b32.xlu0 %v1379, 32
      %v1479 = vpop.permute.xlu0 %1478
      %1480 = vrot.lane.b32.xlu0 %v1380, 32
      %v1481 = vpop.permute.xlu0 %1480
      %1482 = vrot.lane.b32.xlu0 %v1381, 32
      %v1483 = vpop.permute.xlu0 %1482
      %1484 = vrot.lane.b32.xlu0 %v1382, 32
      %v1485 = vpop.permute.xlu0 %1484
      %1486 = vrot.lane.b32.xlu0 %v1383, 32
      %v1487 = vpop.permute.xlu0 %1486
      %1488 = vrot.lane.b32.xlu0 %v1384, 32
      %v1489 = vpop.permute.xlu0 %1488
      %1490 = vrot.lane.b32.xlu0 %v1385, 32
      %v1491 = vpop.permute.xlu0 %1490
      %1492 = vrot.lane.b32.xlu0 %v1386, 32
      %v1493 = vpop.permute.xlu0 %1492
      %1494 = vrot.lane.b32.xlu0 %v1387, 32
      %v1495 = vpop.permute.xlu0 %1494
      %1496 = vrot.lane.b32.xlu0 %v1388, 32
      %v1497 = vpop.permute.xlu0 %1496
      %1498 = vrot.lane.b32.xlu0 %v1389, 32
      %v1499 = vpop.permute.xlu0 %1498
      %1500 = vrot.lane.b32.xlu0 %v1390, 32
      %v1501 = vpop.permute.xlu0 %1500
      %1502 = vrot.lane.b32.xlu0 %v1391, 32
      %v1503 = vpop.permute.xlu0 %1502
      %v1504 = vpack.c.bf16 %v1031, %v1027
      %v1505 = vpack.c.bf16 %v1041, %v1037
      %v1506 = vpack.c.bf16 %v1051, %v1047
      %v1507 = vpack.c.bf16 %v1061, %v1057
      %v1508 = vpack.c.bf16 %v1071, %v1067
      %v1509 = vpack.c.bf16 %v1081, %v1077
      %v1510 = vpack.c.bf16 %v1091, %v1087
      %v1511 = vpack.c.bf16 %v1101, %v1097
      %v1512 = vpack.c.bf16 %v1111, %v1107
      %v1513 = vpack.c.bf16 %v1121, %v1117
      %v1514 = vpack.c.bf16 %v1131, %v1127
      %v1515 = vpack.c.bf16 %v1141, %v1137
      %v1516 = vpack.c.bf16 %v1151, %v1147
      %v1517 = vpack.c.bf16 %v1161, %v1157
      %v1518 = vpack.c.bf16 %v1171, %v1167
      %v1519 = vpack.c.bf16 %v1181, %v1177
      %1536 = vrot.lane.b32.xlu0 %v1504, 96
      %v1537 = vpop.permute.xlu0 %1536
      %1538 = vrot.lane.b32.xlu0 %v1505, 96
      %v1539 = vpop.permute.xlu0 %1538
      %1540 = vrot.lane.b32.xlu0 %v1506, 96
      %v1541 = vpop.permute.xlu0 %1540
      %1542 = vrot.lane.b32.xlu0 %v1507, 96
      %v1543 = vpop.permute.xlu0 %1542
      %1544 = vrot.lane.b32.xlu0 %v1508, 96
      %v1545 = vpop.permute.xlu0 %1544
      %1546 = vrot.lane.b32.xlu0 %v1509, 96
      %v1547 = vpop.permute.xlu0 %1546
      %1548 = vrot.lane.b32.xlu0 %v1510, 96
      %v1549 = vpop.permute.xlu0 %1548
      %1550 = vrot.lane.b32.xlu0 %v1511, 96
      %v1551 = vpop.permute.xlu0 %1550
      %1552 = vrot.lane.b32.xlu0 %v1512, 96
      %v1553 = vpop.permute.xlu0 %1552
      %1554 = vrot.lane.b32.xlu0 %v1513, 96
      %v1555 = vpop.permute.xlu0 %1554
      %1556 = vrot.lane.b32.xlu0 %v1514, 96
      %v1557 = vpop.permute.xlu0 %1556
      %1558 = vrot.lane.b32.xlu0 %v1515, 96
      %v1559 = vpop.permute.xlu0 %1558
      %1560 = vrot.lane.b32.xlu0 %v1516, 96
      %v1561 = vpop.permute.xlu0 %1560
      %1562 = vrot.lane.b32.xlu0 %v1517, 96
      %v1563 = vpop.permute.xlu0 %1562
      %1564 = vrot.lane.b32.xlu0 %v1518, 96
      %v1565 = vpop.permute.xlu0 %1564
      %1566 = vrot.lane.b32.xlu0 %v1519, 96
      %v1567 = vpop.permute.xlu0 %1566
      %1568 = vrot.lane.b32.xlu0 %v1504, 64
      %v1569 = vpop.permute.xlu0 %1568
      %1570 = vrot.lane.b32.xlu0 %v1505, 64
      %v1571 = vpop.permute.xlu0 %1570
      %1572 = vrot.lane.b32.xlu0 %v1506, 64
      %v1573 = vpop.permute.xlu0 %1572
      %1574 = vrot.lane.b32.xlu0 %v1507, 64
      %v1575 = vpop.permute.xlu0 %1574
      %1576 = vrot.lane.b32.xlu0 %v1508, 64
      %v1577 = vpop.permute.xlu0 %1576
      %1578 = vrot.lane.b32.xlu0 %v1509, 64
      %v1579 = vpop.permute.xlu0 %1578
      %1580 = vrot.lane.b32.xlu0 %v1510, 64
      %v1581 = vpop.permute.xlu0 %1580
      %1582 = vrot.lane.b32.xlu0 %v1511, 64
      %v1583 = vpop.permute.xlu0 %1582
      %1584 = vrot.lane.b32.xlu0 %v1512, 64
      %v1585 = vpop.permute.xlu0 %1584
      %1586 = vrot.lane.b32.xlu0 %v1513, 64
      %v1587 = vpop.permute.xlu0 %1586
      %1588 = vrot.lane.b32.xlu0 %v1514, 64
      %v1589 = vpop.permute.xlu0 %1588
      %1590 = vrot.lane.b32.xlu0 %v1515, 64
      %v1591 = vpop.permute.xlu0 %1590
      %1592 = vrot.lane.b32.xlu0 %v1516, 64
      %v1593 = vpop.permute.xlu0 %1592
      %1594 = vrot.lane.b32.xlu0 %v1517, 64
      %v1595 = vpop.permute.xlu0 %1594
      %1596 = vrot.lane.b32.xlu0 %v1518, 64
      %v1597 = vpop.permute.xlu0 %1596
      %1598 = vrot.lane.b32.xlu0 %v1519, 64
      %v1599 = vpop.permute.xlu0 %1598
      %1600 = vrot.lane.b32.xlu0 %v1504, 32
      %v1601 = vpop.permute.xlu0 %1600
      %1602 = vrot.lane.b32.xlu0 %v1505, 32
      %v1603 = vpop.permute.xlu0 %1602
      %1604 = vrot.lane.b32.xlu0 %v1506, 32
      %v1605 = vpop.permute.xlu0 %1604
      %1606 = vrot.lane.b32.xlu0 %v1507, 32
      %v1607 = vpop.permute.xlu0 %1606
      %1608 = vrot.lane.b32.xlu0 %v1508, 32
      %v1609 = vpop.permute.xlu0 %1608
      %1610 = vrot.lane.b32.xlu0 %v1509, 32
      %v1611 = vpop.permute.xlu0 %1610
      %1612 = vrot.lane.b32.xlu0 %v1510, 32
      %v1613 = vpop.permute.xlu0 %1612
      %1614 = vrot.lane.b32.xlu0 %v1511, 32
      %v1615 = vpop.permute.xlu0 %1614
      %1616 = vrot.lane.b32.xlu0 %v1512, 32
      %v1617 = vpop.permute.xlu0 %1616
      %1618 = vrot.lane.b32.xlu0 %v1513, 32
      %v1619 = vpop.permute.xlu0 %1618
      %1620 = vrot.lane.b32.xlu0 %v1514, 32
      %v1621 = vpop.permute.xlu0 %1620
      %1622 = vrot.lane.b32.xlu0 %v1515, 32
      %v1623 = vpop.permute.xlu0 %1622
      %1624 = vrot.lane.b32.xlu0 %v1516, 32
      %v1625 = vpop.permute.xlu0 %1624
      %1626 = vrot.lane.b32.xlu0 %v1517, 32
      %v1627 = vpop.permute.xlu0 %1626
      %1628 = vrot.lane.b32.xlu0 %v1518, 32
      %v1629 = vpop.permute.xlu0 %1628
      %1630 = vrot.lane.b32.xlu0 %v1519, 32
      %v1631 = vpop.permute.xlu0 %1630
      %v1632 = vpack.c.bf16 %v1221, %v1218
      %v1633 = vpack.c.bf16 %v1229, %v1226
      %v1634 = vpack.c.bf16 %v1237, %v1234
      %v1635 = vpack.c.bf16 %v1245, %v1242
      %v1636 = vpack.c.bf16 %v1253, %v1250
      %v1637 = vpack.c.bf16 %v1261, %v1258
      %v1638 = vpack.c.bf16 %v1269, %v1266
      %v1639 = vpack.c.bf16 %v1277, %v1274
      %v1640 = vpack.c.bf16 %v1285, %v1282
      %v1641 = vpack.c.bf16 %v1293, %v1290
      %v1642 = vpack.c.bf16 %v1301, %v1298
      %v1643 = vpack.c.bf16 %v1309, %v1306
      %v1644 = vpack.c.bf16 %v1317, %v1314
      %v1645 = vpack.c.bf16 %v1325, %v1322
      %v1646 = vpack.c.bf16 %v1333, %v1330
      %v1647 = vpack.c.bf16 %v1341, %v1338
      %1664 = vrot.lane.b32.xlu0 %v1632, 96
      %v1665 = vpop.permute.xlu0 %1664
      %1666 = vrot.lane.b32.xlu0 %v1633, 96
      %v1667 = vpop.permute.xlu0 %1666
      %1668 = vrot.lane.b32.xlu0 %v1634, 96
      %v1669 = vpop.permute.xlu0 %1668
      %1670 = vrot.lane.b32.xlu0 %v1635, 96
      %v1671 = vpop.permute.xlu0 %1670
      %1672 = vrot.lane.b32.xlu0 %v1636, 96
      %v1673 = vpop.permute.xlu0 %1672
      %1674 = vrot.lane.b32.xlu0 %v1637, 96
      %v1675 = vpop.permute.xlu0 %1674
      %1676 = vrot.lane.b32.xlu0 %v1638, 96
      %v1677 = vpop.permute.xlu0 %1676
      %1678 = vrot.lane.b32.xlu0 %v1639, 96
      %v1679 = vpop.permute.xlu0 %1678
      %1680 = vrot.lane.b32.xlu0 %v1640, 96
      %v1681 = vpop.permute.xlu0 %1680
      %1682 = vrot.lane.b32.xlu0 %v1641, 96
      %v1683 = vpop.permute.xlu0 %1682
      %1684 = vrot.lane.b32.xlu0 %v1642, 96
      %v1685 = vpop.permute.xlu0 %1684
      %1686 = vrot.lane.b32.xlu0 %v1643, 96
      %v1687 = vpop.permute.xlu0 %1686
      %1688 = vrot.lane.b32.xlu0 %v1644, 96
      %v1689 = vpop.permute.xlu0 %1688
      %1690 = vrot.lane.b32.xlu0 %v1645, 96
      %v1691 = vpop.permute.xlu0 %1690
      %1692 = vrot.lane.b32.xlu0 %v1646, 96
      %v1693 = vpop.permute.xlu0 %1692
      %1694 = vrot.lane.b32.xlu0 %v1647, 96
      %v1695 = vpop.permute.xlu0 %1694
      %1712 = vrot.lane.b32.xlu0 %v1632, 64
      %v1713 = vpop.permute.xlu0 %1712
      %1714 = vrot.lane.b32.xlu0 %v1633, 64
      %v1715 = vpop.permute.xlu0 %1714
      %1716 = vrot.lane.b32.xlu0 %v1634, 64
      %v1717 = vpop.permute.xlu0 %1716
      %1718 = vrot.lane.b32.xlu0 %v1635, 64
      %v1719 = vpop.permute.xlu0 %1718
      %1720 = vrot.lane.b32.xlu0 %v1636, 64
      %v1721 = vpop.permute.xlu0 %1720
      %1722 = vrot.lane.b32.xlu0 %v1637, 64
      %v1723 = vpop.permute.xlu0 %1722
      %1724 = vrot.lane.b32.xlu0 %v1638, 64
      %v1725 = vpop.permute.xlu0 %1724
      %1726 = vrot.lane.b32.xlu0 %v1639, 64
      %v1727 = vpop.permute.xlu0 %1726
      %1728 = vrot.lane.b32.xlu0 %v1640, 64
      %v1729 = vpop.permute.xlu0 %1728
      %1730 = vrot.lane.b32.xlu0 %v1641, 64
      %v1731 = vpop.permute.xlu0 %1730
      %1732 = vrot.lane.b32.xlu0 %v1642, 64
      %v1733 = vpop.permute.xlu0 %1732
      %1734 = vrot.lane.b32.xlu0 %v1643, 64
      %v1735 = vpop.permute.xlu0 %1734
      %1736 = vrot.lane.b32.xlu0 %v1644, 64
      %v1737 = vpop.permute.xlu0 %1736
      %1738 = vrot.lane.b32.xlu0 %v1645, 64
      %v1739 = vpop.permute.xlu0 %1738
      %1740 = vrot.lane.b32.xlu0 %v1646, 64
      %v1741 = vpop.permute.xlu0 %1740
      %1742 = vrot.lane.b32.xlu0 %v1647, 64
      %v1743 = vpop.permute.xlu0 %1742
      %1760 = vrot.lane.b32.xlu0 %v1632, 32
      %v1761 = vpop.permute.xlu0 %1760
      %1762 = vrot.lane.b32.xlu0 %v1633, 32
      %v1763 = vpop.permute.xlu0 %1762
      %1764 = vrot.lane.b32.xlu0 %v1634, 32
      %v1765 = vpop.permute.xlu0 %1764
      %1766 = vrot.lane.b32.xlu0 %v1635, 32
      %v1767 = vpop.permute.xlu0 %1766
      %1768 = vrot.lane.b32.xlu0 %v1636, 32
      %v1769 = vpop.permute.xlu0 %1768
      %1770 = vrot.lane.b32.xlu0 %v1637, 32
      %v1771 = vpop.permute.xlu0 %1770
      %1772 = vrot.lane.b32.xlu0 %v1638, 32
      %v1773 = vpop.permute.xlu0 %1772
      %1774 = vrot.lane.b32.xlu0 %v1639, 32
      %v1775 = vpop.permute.xlu0 %1774
      %1776 = vrot.lane.b32.xlu0 %v1640, 32
      %v1777 = vpop.permute.xlu0 %1776
      %1778 = vrot.lane.b32.xlu0 %v1641, 32
      %v1779 = vpop.permute.xlu0 %1778
      %1780 = vrot.lane.b32.xlu0 %v1642, 32
      %v1781 = vpop.permute.xlu0 %1780
      %1782 = vrot.lane.b32.xlu0 %v1643, 32
      %v1783 = vpop.permute.xlu0 %1782
      %1784 = vrot.lane.b32.xlu0 %v1644, 32
      %v1785 = vpop.permute.xlu0 %1784
      %1786 = vrot.lane.b32.xlu0 %v1645, 32
      %v1787 = vpop.permute.xlu0 %1786
      %1788 = vrot.lane.b32.xlu0 %v1646, 32
      %v1789 = vpop.permute.xlu0 %1788
      %1790 = vrot.lane.b32.xlu0 %v1647, 32
      %v1791 = vpop.permute.xlu0 %1790
      %vm1808 = vcmask 261120
      %v1810 = vsel %vm1808, %v1376, 0
      %v1813 = vsel %vm1808, %v1377, 0
      %v1816 = vsel %vm1808, %v1378, 0
      %v1819 = vsel %vm1808, %v1379, 0
      %v1822 = vsel %vm1808, %v1504, 0
      %v1825 = vsel %vm1808, %v1505, 0
      %v1828 = vsel %vm1808, %v1506, 0
      %v1831 = vsel %vm1808, %v1507, 0
      %1833 = vmatprep.subr.bf16.mxu0 0
      %1834 = vmatpush1.bf16.xpose.msra.mxu0 0
      %1835 = vmatprep.subr.bf16.mxu0 0
      %1836 = vmatpush1.bf16.xpose.msra.mxu0 0
      %1837 = vmatprep.subr.bf16.mxu0 0
      %1838 = vmatpush1.bf16.xpose.msra.mxu0 0
      %1839 = vmatprep.subr.bf16.mxu0 0
      %1840 = vmatpush1.bf16.xpose.msra.mxu0 0
      %1841 = vmatprep.subr.bf16.mxu0 0
      %1842 = vmatpush1.bf16.xpose.msra.mxu0 %v1831
      %1843 = vmatprep.subr.bf16.mxu0 0
      %1844 = vmatpush1.bf16.xpose.msra.mxu0 %v1828
      %1845 = vmatprep.subr.bf16.mxu0 0
      %1846 = vmatpush1.bf16.xpose.msra.mxu0 %v1825
      %1847 = vmatprep.subr.bf16.mxu0 0
      %1848 = vmatpush1.bf16.xpose.msra.mxu0 %v1822
      %1849 = vmatprep.subr.bf16.mxu0 0
      %1850 = vmatpush2.bf16.xpose.msra.mxu0 0
      %1851 = vmatprep.subr.bf16.mxu0 0
      %1852 = vmatpush2.bf16.xpose.msra.mxu0 0
      %1853 = vmatprep.subr.bf16.mxu0 0
      %1854 = vmatpush2.bf16.xpose.msra.mxu0 0
      %1855 = vmatprep.subr.bf16.mxu0 0
      %1856 = vmatpush2.bf16.xpose.msra.mxu0 0
      %1857 = vmatprep.subr.bf16.mxu0 0
      %1858 = vmatpush2.bf16.xpose.msra.mxu0 0
      %1859 = vmatprep.subr.bf16.mxu0 0
      %1860 = vmatpush2.bf16.xpose.msra.mxu0 0
      %1861 = vmatprep.subr.bf16.mxu0 0
      %1862 = vmatpush2.bf16.xpose.msra.mxu0 0
      %1863 = vmatprep.subr.bf16.mxu0 0
      %1864 = vmatpush2.bf16.xpose.msra.mxu0 0
      %1865 = vmatprep.mubr.bf16.mxu0 0
      %1866 = vmatmul.mubr.bf16.gmra.mxu0 %v1810
      %v1867 = vpop.f32.mrf.mxu0
      %v1868 = vadd.f32 0.0, %v1867
      %v1869 = vpop.f32.mrf.mxu0
      %v1870 = vpop.f32.mrf.mxu0
      %v1871 = vadd.f32 0.0, %v1870
      %v1872 = vpop.f32.mrf.mxu0
      %1873 = vmatprep.mubr.bf16.mxu0 0
      %1874 = vmatmul.mubr.bf16.gmra.mxu0 %v1813
      %v1875 = vpop.f32.mrf.mxu0
      %v1876 = vadd.f32 0.0, %v1875
      %v1877 = vpop.f32.mrf.mxu0
      %v1878 = vpop.f32.mrf.mxu0
      %v1879 = vadd.f32 0.0, %v1878
      %v1880 = vpop.f32.mrf.mxu0
      %1881 = vmatprep.mubr.bf16.mxu0 0
      %1882 = vmatmul.mubr.bf16.gmra.mxu0 %v1816
      %v1883 = vpop.f32.mrf.mxu0
      %v1884 = vadd.f32 0.0, %v1883
      %v1885 = vpop.f32.mrf.mxu0
      %v1886 = vpop.f32.mrf.mxu0
      %v1887 = vadd.f32 0.0, %v1886
      %v1888 = vpop.f32.mrf.mxu0
      %1889 = vmatprep.mubr.bf16.mxu0 0
      %1890 = vmatmul.mubr.bf16.gmra.mxu0 %v1819
      %v1891 = vpop.f32.mrf.mxu0
      %v1892 = vadd.f32 0.0, %v1891
      %v1893 = vpop.f32.mrf.mxu0
      %v1894 = vpop.f32.mrf.mxu0
      %v1895 = vadd.f32 0.0, %v1894
      %v1896 = vpop.f32.mrf.mxu0
      %1897 = vdwg.mxu0
      %v1899 = vsel %vm1808, %v1380, 0
      %v1902 = vsel %vm1808, %v1381, 0
      %v1905 = vsel %vm1808, %v1382, 0
      %v1908 = vsel %vm1808, %v1383, 0
      %v1911 = vsel %vm1808, %v1508, 0
      %v1914 = vsel %vm1808, %v1509, 0
      %v1917 = vsel %vm1808, %v1510, 0
      %v1920 = vsel %vm1808, %v1511, 0
      %1922 = vmatprep.subr.bf16.mxu0 0
      %1923 = vmatpush1.bf16.xpose.msra.mxu0 0
      %1924 = vmatprep.subr.bf16.mxu0 0
      %1925 = vmatpush1.bf16.xpose.msra.mxu0 0
      %1926 = vmatprep.subr.bf16.mxu0 0
      %1927 = vmatpush1.bf16.xpose.msra.mxu0 0
      %1928 = vmatprep.subr.bf16.mxu0 0
      %1929 = vmatpush1.bf16.xpose.msra.mxu0 0
      %1930 = vmatprep.subr.bf16.mxu0 0
      %1931 = vmatpush1.bf16.xpose.msra.mxu0 %v1920
      %1932 = vmatprep.subr.bf16.mxu0 0
      %1933 = vmatpush1.bf16.xpose.msra.mxu0 %v1917
      %1934 = vmatprep.subr.bf16.mxu0 0
      %1935 = vmatpush1.bf16.xpose.msra.mxu0 %v1914
      %1936 = vmatprep.subr.bf16.mxu0 0
      %1937 = vmatpush1.bf16.xpose.msra.mxu0 %v1911
      %1938 = vmatprep.subr.bf16.mxu0 0
      %1939 = vmatpush2.bf16.xpose.msra.mxu0 0
      %1940 = vmatprep.subr.bf16.mxu0 0
      %1941 = vmatpush2.bf16.xpose.msra.mxu0 0
      %1942 = vmatprep.subr.bf16.mxu0 0
      %1943 = vmatpush2.bf16.xpose.msra.mxu0 0
      %1944 = vmatprep.subr.bf16.mxu0 0
      %1945 = vmatpush2.bf16.xpose.msra.mxu0 0
      %1946 = vmatprep.subr.bf16.mxu0 0
      %1947 = vmatpush2.bf16.xpose.msra.mxu0 0
      %1948 = vmatprep.subr.bf16.mxu0 0
      %1949 = vmatpush2.bf16.xpose.msra.mxu0 0
      %1950 = vmatprep.subr.bf16.mxu0 0
      %1951 = vmatpush2.bf16.xpose.msra.mxu0 0
      %1952 = vmatprep.subr.bf16.mxu0 0
      %1953 = vmatpush2.bf16.xpose.msra.mxu0 0
      %1954 = vmatprep.mubr.bf16.mxu0 0
      %1955 = vmatmul.mubr.bf16.gmra.mxu0 %v1899
      %v1956 = vpop.f32.mrf.mxu0
      %v1957 = vadd.f32 0.0, %v1956
      %v1958 = vpop.f32.mrf.mxu0
      %v1959 = vpop.f32.mrf.mxu0
      %v1960 = vadd.f32 0.0, %v1959
      %v1961 = vpop.f32.mrf.mxu0
      %1962 = vmatprep.mubr.bf16.mxu0 0
      %1963 = vmatmul.mubr.bf16.gmra.mxu0 %v1902
      %v1964 = vpop.f32.mrf.mxu0
      %v1965 = vadd.f32 0.0, %v1964
      %v1966 = vpop.f32.mrf.mxu0
      %v1967 = vpop.f32.mrf.mxu0
      %v1968 = vadd.f32 0.0, %v1967
      %v1969 = vpop.f32.mrf.mxu0
      %1970 = vmatprep.mubr.bf16.mxu0 0
      %1971 = vmatmul.mubr.bf16.gmra.mxu0 %v1905
      %v1972 = vpop.f32.mrf.mxu0
      %v1973 = vadd.f32 0.0, %v1972
      %v1974 = vpop.f32.mrf.mxu0
      %v1975 = vpop.f32.mrf.mxu0
      %v1976 = vadd.f32 0.0, %v1975
      %v1977 = vpop.f32.mrf.mxu0
      %1978 = vmatprep.mubr.bf16.mxu0 0
      %1979 = vmatmul.mubr.bf16.gmra.mxu0 %v1908
      %v1980 = vpop.f32.mrf.mxu0
      %v1981 = vadd.f32 0.0, %v1980
      %v1982 = vpop.f32.mrf.mxu0
      %v1983 = vpop.f32.mrf.mxu0
      %v1984 = vadd.f32 0.0, %v1983
      %v1985 = vpop.f32.mrf.mxu0
      %1986 = vdwg.mxu0
      %v1988 = vsel %vm1808, %v1384, 0
      %v1991 = vsel %vm1808, %v1385, 0
      %v1994 = vsel %vm1808, %v1386, 0
      %v1997 = vsel %vm1808, %v1387, 0
      %v2000 = vsel %vm1808, %v1512, 0
      %v2003 = vsel %vm1808, %v1513, 0
      %v2006 = vsel %vm1808, %v1514, 0
      %v2009 = vsel %vm1808, %v1515, 0
      %2011 = vmatprep.subr.bf16.mxu0 0
      %2012 = vmatpush1.bf16.xpose.msra.mxu0 0
      %2013 = vmatprep.subr.bf16.mxu0 0
      %2014 = vmatpush1.bf16.xpose.msra.mxu0 0
      %2015 = vmatprep.subr.bf16.mxu0 0
      %2016 = vmatpush1.bf16.xpose.msra.mxu0 0
      %2017 = vmatprep.subr.bf16.mxu0 0
      %2018 = vmatpush1.bf16.xpose.msra.mxu0 0
      %2019 = vmatprep.subr.bf16.mxu0 0
      %2020 = vmatpush1.bf16.xpose.msra.mxu0 %v2009
      %2021 = vmatprep.subr.bf16.mxu0 0
      %2022 = vmatpush1.bf16.xpose.msra.mxu0 %v2006
      %2023 = vmatprep.subr.bf16.mxu0 0
      %2024 = vmatpush1.bf16.xpose.msra.mxu0 %v2003
      %2025 = vmatprep.subr.bf16.mxu0 0
      %2026 = vmatpush1.bf16.xpose.msra.mxu0 %v2000
      %2027 = vmatprep.subr.bf16.mxu0 0
      %2028 = vmatpush2.bf16.xpose.msra.mxu0 0
      %2029 = vmatprep.subr.bf16.mxu0 0
      %2030 = vmatpush2.bf16.xpose.msra.mxu0 0
      %2031 = vmatprep.subr.bf16.mxu0 0
      %2032 = vmatpush2.bf16.xpose.msra.mxu0 0
      %2033 = vmatprep.subr.bf16.mxu0 0
      %2034 = vmatpush2.bf16.xpose.msra.mxu0 0
      %2035 = vmatprep.subr.bf16.mxu0 0
      %2036 = vmatpush2.bf16.xpose.msra.mxu0 0
      %2037 = vmatprep.subr.bf16.mxu0 0
      %2038 = vmatpush2.bf16.xpose.msra.mxu0 0
      %2039 = vmatprep.subr.bf16.mxu0 0
      %2040 = vmatpush2.bf16.xpose.msra.mxu0 0
      %2041 = vmatprep.subr.bf16.mxu0 0
      %2042 = vmatpush2.bf16.xpose.msra.mxu0 0
      %2043 = vmatprep.mubr.bf16.mxu0 0
      %2044 = vmatmul.mubr.bf16.gmra.mxu0 %v1988
      %v2045 = vpop.f32.mrf.mxu0
      %v2046 = vadd.f32 0.0, %v2045
      %v2047 = vpop.f32.mrf.mxu0
      %v2048 = vpop.f32.mrf.mxu0
      %v2049 = vadd.f32 0.0, %v2048
      %v2050 = vpop.f32.mrf.mxu0
      %2051 = vmatprep.mubr.bf16.mxu0 0
      %2052 = vmatmul.mubr.bf16.gmra.mxu0 %v1991
      %v2053 = vpop.f32.mrf.mxu0
      %v2054 = vadd.f32 0.0, %v2053
      %v2055 = vpop.f32.mrf.mxu0
      %v2056 = vpop.f32.mrf.mxu0
      %v2057 = vadd.f32 0.0, %v2056
      %v2058 = vpop.f32.mrf.mxu0
      %2059 = vmatprep.mubr.bf16.mxu0 0
      %2060 = vmatmul.mubr.bf16.gmra.mxu0 %v1994
      %v2061 = vpop.f32.mrf.mxu0
      %v2062 = vadd.f32 0.0, %v2061
      %v2063 = vpop.f32.mrf.mxu0
      %v2064 = vpop.f32.mrf.mxu0
      %v2065 = vadd.f32 0.0, %v2064
      %v2066 = vpop.f32.mrf.mxu0
      %2067 = vmatprep.mubr.bf16.mxu0 0
      %2068 = vmatmul.mubr.bf16.gmra.mxu0 %v1997
      %v2069 = vpop.f32.mrf.mxu0
      %v2070 = vadd.f32 0.0, %v2069
      %v2071 = vpop.f32.mrf.mxu0
      %v2072 = vpop.f32.mrf.mxu0
      %v2073 = vadd.f32 0.0, %v2072
      %v2074 = vpop.f32.mrf.mxu0
      %2075 = vdwg.mxu0
      %v2077 = vsel %vm1808, %v1388, 0
      %v2080 = vsel %vm1808, %v1389, 0
      %v2083 = vsel %vm1808, %v1390, 0
      %v2086 = vsel %vm1808, %v1391, 0
      %v2089 = vsel %vm1808, %v1516, 0
      %v2092 = vsel %vm1808, %v1517, 0
      %v2095 = vsel %vm1808, %v1518, 0
      %v2098 = vsel %vm1808, %v1519, 0
      %2100 = vmatprep.subr.bf16.mxu0 0
      %2101 = vmatpush1.bf16.xpose.msra.mxu0 0
      %2102 = vmatprep.subr.bf16.mxu0 0
      %2103 = vmatpush1.bf16.xpose.msra.mxu0 0
      %2104 = vmatprep.subr.bf16.mxu0 0
      %2105 = vmatpush1.bf16.xpose.msra.mxu0 0
      %2106 = vmatprep.subr.bf16.mxu0 0
      %2107 = vmatpush1.bf16.xpose.msra.mxu0 0
      %2108 = vmatprep.subr.bf16.mxu0 0
      %2109 = vmatpush1.bf16.xpose.msra.mxu0 %v2098
      %2110 = vmatprep.subr.bf16.mxu0 0
      %2111 = vmatpush1.bf16.xpose.msra.mxu0 %v2095
      %2112 = vmatprep.subr.bf16.mxu0 0
      %2113 = vmatpush1.bf16.xpose.msra.mxu0 %v2092
      %2114 = vmatprep.subr.bf16.mxu0 0
      %2115 = vmatpush1.bf16.xpose.msra.mxu0 %v2089
      %2116 = vmatprep.subr.bf16.mxu0 0
      %2117 = vmatpush2.bf16.xpose.msra.mxu0 0
      %2118 = vmatprep.subr.bf16.mxu0 0
      %2119 = vmatpush2.bf16.xpose.msra.mxu0 0
      %2120 = vmatprep.subr.bf16.mxu0 0
      %2121 = vmatpush2.bf16.xpose.msra.mxu0 0
      %2122 = vmatprep.subr.bf16.mxu0 0
      %2123 = vmatpush2.bf16.xpose.msra.mxu0 0
      %2124 = vmatprep.subr.bf16.mxu0 0
      %2125 = vmatpush2.bf16.xpose.msra.mxu0 0
      %2126 = vmatprep.subr.bf16.mxu0 0
      %2127 = vmatpush2.bf16.xpose.msra.mxu0 0
      %2128 = vmatprep.subr.bf16.mxu0 0
      %2129 = vmatpush2.bf16.xpose.msra.mxu0 0
      %2130 = vmatprep.subr.bf16.mxu0 0
      %2131 = vmatpush2.bf16.xpose.msra.mxu0 0
      %2132 = vmatprep.mubr.bf16.mxu0 0
      %2133 = vmatmul.mubr.bf16.gmra.mxu0 %v2077
      %v2134 = vpop.f32.mrf.mxu0
      %v2135 = vadd.f32 0.0, %v2134
      %v2136 = vpop.f32.mrf.mxu0
      %v2137 = vpop.f32.mrf.mxu0
      %v2138 = vadd.f32 0.0, %v2137
      %v2139 = vpop.f32.mrf.mxu0
      %2140 = vmatprep.mubr.bf16.mxu0 0
      %2141 = vmatmul.mubr.bf16.gmra.mxu0 %v2080
      %v2142 = vpop.f32.mrf.mxu0
      %v2143 = vadd.f32 0.0, %v2142
      %v2144 = vpop.f32.mrf.mxu0
      %v2145 = vpop.f32.mrf.mxu0
      %v2146 = vadd.f32 0.0, %v2145
      %v2147 = vpop.f32.mrf.mxu0
      %2148 = vmatprep.mubr.bf16.mxu0 0
      %2149 = vmatmul.mubr.bf16.gmra.mxu0 %v2083
      %v2150 = vpop.f32.mrf.mxu0
      %v2151 = vadd.f32 0.0, %v2150
      %v2152 = vpop.f32.mrf.mxu0
      %v2153 = vpop.f32.mrf.mxu0
      %v2154 = vadd.f32 0.0, %v2153
      %v2155 = vpop.f32.mrf.mxu0
      %2156 = vmatprep.mubr.bf16.mxu0 0
      %2157 = vmatmul.mubr.bf16.gmra.mxu0 %v2086
      %v2158 = vpop.f32.mrf.mxu0
      %v2159 = vadd.f32 0.0, %v2158
      %v2160 = vpop.f32.mrf.mxu0
      %v2161 = vpop.f32.mrf.mxu0
      %v2162 = vadd.f32 0.0, %v2161
      %v2163 = vpop.f32.mrf.mxu0
      %2164 = vdwg.mxu0
      %v2166 = vsel %vm1808, %v1409, 0
      %v2169 = vsel %vm1808, %v1411, 0
      %v2172 = vsel %vm1808, %v1413, 0
      %v2175 = vsel %vm1808, %v1415, 0
      %v2178 = vsel %vm1808, %v1537, 0
      %v2181 = vsel %vm1808, %v1539, 0
      %v2184 = vsel %vm1808, %v1541, 0
      %v2187 = vsel %vm1808, %v1543, 0
      %2189 = vmatprep.subr.bf16.mxu0 0
      %2190 = vmatpush1.bf16.xpose.msra.mxu0 0
      %2191 = vmatprep.subr.bf16.mxu0 0
      %2192 = vmatpush1.bf16.xpose.msra.mxu0 0
      %2193 = vmatprep.subr.bf16.mxu0 0
      %2194 = vmatpush1.bf16.xpose.msra.mxu0 0
      %2195 = vmatprep.subr.bf16.mxu0 0
      %2196 = vmatpush1.bf16.xpose.msra.mxu0 0
      %2197 = vmatprep.subr.bf16.mxu0 0
      %2198 = vmatpush1.bf16.xpose.msra.mxu0 %v2187
      %2199 = vmatprep.subr.bf16.mxu0 0
      %2200 = vmatpush1.bf16.xpose.msra.mxu0 %v2184
      %2201 = vmatprep.subr.bf16.mxu0 0
      %2202 = vmatpush1.bf16.xpose.msra.mxu0 %v2181
      %2203 = vmatprep.subr.bf16.mxu0 0
      %2204 = vmatpush1.bf16.xpose.msra.mxu0 %v2178
      %2205 = vmatprep.subr.bf16.mxu0 0
      %2206 = vmatpush2.bf16.xpose.msra.mxu0 0
      %2207 = vmatprep.subr.bf16.mxu0 0
      %2208 = vmatpush2.bf16.xpose.msra.mxu0 0
      %2209 = vmatprep.subr.bf16.mxu0 0
      %2210 = vmatpush2.bf16.xpose.msra.mxu0 0
      %2211 = vmatprep.subr.bf16.mxu0 0
      %2212 = vmatpush2.bf16.xpose.msra.mxu0 0
      %2213 = vmatprep.subr.bf16.mxu0 0
      %2214 = vmatpush2.bf16.xpose.msra.mxu0 0
      %2215 = vmatprep.subr.bf16.mxu0 0
      %2216 = vmatpush2.bf16.xpose.msra.mxu0 0
      %2217 = vmatprep.subr.bf16.mxu0 0
      %2218 = vmatpush2.bf16.xpose.msra.mxu0 0
      %2219 = vmatprep.subr.bf16.mxu0 0
      %2220 = vmatpush2.bf16.xpose.msra.mxu0 0
      %2221 = vmatprep.mubr.bf16.mxu0 0
      %2222 = vmatmul.mubr.bf16.gmra.mxu0 %v2166
      %v2223 = vpop.f32.mrf.mxu0
      %v2224 = vadd.f32 0.0, %v2223
      %v2225 = vpop.f32.mrf.mxu0
      %v2226 = vpop.f32.mrf.mxu0
      %v2227 = vadd.f32 0.0, %v2226
      %v2228 = vpop.f32.mrf.mxu0
      %2229 = vmatprep.mubr.bf16.mxu0 0
      %2230 = vmatmul.mubr.bf16.gmra.mxu0 %v2169
      %v2231 = vpop.f32.mrf.mxu0
      %v2232 = vadd.f32 0.0, %v2231
      %v2233 = vpop.f32.mrf.mxu0
      %v2234 = vpop.f32.mrf.mxu0
      %v2235 = vadd.f32 0.0, %v2234
      %v2236 = vpop.f32.mrf.mxu0
      %2237 = vmatprep.mubr.bf16.mxu0 0
      %2238 = vmatmul.mubr.bf16.gmra.mxu0 %v2172
      %v2239 = vpop.f32.mrf.mxu0
      %v2240 = vadd.f32 0.0, %v2239
      %v2241 = vpop.f32.mrf.mxu0
      %v2242 = vpop.f32.mrf.mxu0
      %v2243 = vadd.f32 0.0, %v2242
      %v2244 = vpop.f32.mrf.mxu0
      %2245 = vmatprep.mubr.bf16.mxu0 0
      %2246 = vmatmul.mubr.bf16.gmra.mxu0 %v2175
      %v2247 = vpop.f32.mrf.mxu0
      %v2248 = vadd.f32 0.0, %v2247
      %v2249 = vpop.f32.mrf.mxu0
      %v2250 = vpop.f32.mrf.mxu0
      %v2251 = vadd.f32 0.0, %v2250
      %v2252 = vpop.f32.mrf.mxu0
      %2253 = vdwg.mxu0
      %v2255 = vsel %vm1808, %v1417, 0
      %v2258 = vsel %vm1808, %v1419, 0
      %v2261 = vsel %vm1808, %v1421, 0
      %v2264 = vsel %vm1808, %v1423, 0
      %v2267 = vsel %vm1808, %v1545, 0
      %v2270 = vsel %vm1808, %v1547, 0
      %v2273 = vsel %vm1808, %v1549, 0
      %v2276 = vsel %vm1808, %v1551, 0
      %2278 = vmatprep.subr.bf16.mxu0 0
      %2279 = vmatpush1.bf16.xpose.msra.mxu0 0
      %2280 = vmatprep.subr.bf16.mxu0 0
      %2281 = vmatpush1.bf16.xpose.msra.mxu0 0
      %2282 = vmatprep.subr.bf16.mxu0 0
      %2283 = vmatpush1.bf16.xpose.msra.mxu0 0
      %2284 = vmatprep.subr.bf16.mxu0 0
      %2285 = vmatpush1.bf16.xpose.msra.mxu0 0
      %2286 = vmatprep.subr.bf16.mxu0 0
      %2287 = vmatpush1.bf16.xpose.msra.mxu0 %v2276
      %2288 = vmatprep.subr.bf16.mxu0 0
      %2289 = vmatpush1.bf16.xpose.msra.mxu0 %v2273
      %2290 = vmatprep.subr.bf16.mxu0 0
      %2291 = vmatpush1.bf16.xpose.msra.mxu0 %v2270
      %2292 = vmatprep.subr.bf16.mxu0 0
      %2293 = vmatpush1.bf16.xpose.msra.mxu0 %v2267
      %2294 = vmatprep.subr.bf16.mxu0 0
      %2295 = vmatpush2.bf16.xpose.msra.mxu0 0
      %2296 = vmatprep.subr.bf16.mxu0 0
      %2297 = vmatpush2.bf16.xpose.msra.mxu0 0
      %2298 = vmatprep.subr.bf16.mxu0 0
      %2299 = vmatpush2.bf16.xpose.msra.mxu0 0
      %2300 = vmatprep.subr.bf16.mxu0 0
      %2301 = vmatpush2.bf16.xpose.msra.mxu0 0
      %2302 = vmatprep.subr.bf16.mxu0 0
      %2303 = vmatpush2.bf16.xpose.msra.mxu0 0
      %2304 = vmatprep.subr.bf16.mxu0 0
      %2305 = vmatpush2.bf16.xpose.msra.mxu0 0
      %2306 = vmatprep.subr.bf16.mxu0 0
      %2307 = vmatpush2.bf16.xpose.msra.mxu0 0
      %2308 = vmatprep.subr.bf16.mxu0 0
      %2309 = vmatpush2.bf16.xpose.msra.mxu0 0
      %2310 = vmatprep.mubr.bf16.mxu0 0
      %2311 = vmatmul.mubr.bf16.gmra.mxu0 %v2255
      %v2312 = vpop.f32.mrf.mxu0
      %v2313 = vadd.f32 0.0, %v2312
      %v2314 = vpop.f32.mrf.mxu0
      %v2315 = vpop.f32.mrf.mxu0
      %v2316 = vadd.f32 0.0, %v2315
      %v2317 = vpop.f32.mrf.mxu0
      %2318 = vmatprep.mubr.bf16.mxu0 0
      %2319 = vmatmul.mubr.bf16.gmra.mxu0 %v2258
      %v2320 = vpop.f32.mrf.mxu0
      %v2321 = vadd.f32 0.0, %v2320
      %v2322 = vpop.f32.mrf.mxu0
      %v2323 = vpop.f32.mrf.mxu0
      %v2324 = vadd.f32 0.0, %v2323
      %v2325 = vpop.f32.mrf.mxu0
      %2326 = vmatprep.mubr.bf16.mxu0 0
      %2327 = vmatmul.mubr.bf16.gmra.mxu0 %v2261
      %v2328 = vpop.f32.mrf.mxu0
      %v2329 = vadd.f32 0.0, %v2328
      %v2330 = vpop.f32.mrf.mxu0
      %v2331 = vpop.f32.mrf.mxu0
      %v2332 = vadd.f32 0.0, %v2331
      %v2333 = vpop.f32.mrf.mxu0
      %2334 = vmatprep.mubr.bf16.mxu0 0
      %2335 = vmatmul.mubr.bf16.gmra.mxu0 %v2264
      %v2336 = vpop.f32.mrf.mxu0
      %v2337 = vadd.f32 0.0, %v2336
      %v2338 = vpop.f32.mrf.mxu0
      %v2339 = vpop.f32.mrf.mxu0
      %v2340 = vadd.f32 0.0, %v2339
      %v2341 = vpop.f32.mrf.mxu0
      %2342 = vdwg.mxu0
      %v2344 = vsel %vm1808, %v1425, 0
      %v2347 = vsel %vm1808, %v1427, 0
      %v2350 = vsel %vm1808, %v1429, 0
      %v2353 = vsel %vm1808, %v1431, 0
      %v2356 = vsel %vm1808, %v1553, 0
      %v2359 = vsel %vm1808, %v1555, 0
      %v2362 = vsel %vm1808, %v1557, 0
      %v2365 = vsel %vm1808, %v1559, 0
      %2367 = vmatprep.subr.bf16.mxu0 0
      %2368 = vmatpush1.bf16.xpose.msra.mxu0 0
      %2369 = vmatprep.subr.bf16.mxu0 0
      %2370 = vmatpush1.bf16.xpose.msra.mxu0 0
      %2371 = vmatprep.subr.bf16.mxu0 0
      %2372 = vmatpush1.bf16.xpose.msra.mxu0 0
      %2373 = vmatprep.subr.bf16.mxu0 0
      %2374 = vmatpush1.bf16.xpose.msra.mxu0 0
      %2375 = vmatprep.subr.bf16.mxu0 0
      %2376 = vmatpush1.bf16.xpose.msra.mxu0 %v2365
      %2377 = vmatprep.subr.bf16.mxu0 0
      %2378 = vmatpush1.bf16.xpose.msra.mxu0 %v2362
      %2379 = vmatprep.subr.bf16.mxu0 0
      %2380 = vmatpush1.bf16.xpose.msra.mxu0 %v2359
      %2381 = vmatprep.subr.bf16.mxu0 0
      %2382 = vmatpush1.bf16.xpose.msra.mxu0 %v2356
      %2383 = vmatprep.subr.bf16.mxu0 0
      %2384 = vmatpush2.bf16.xpose.msra.mxu0 0
      %2385 = vmatprep.subr.bf16.mxu0 0
      %2386 = vmatpush2.bf16.xpose.msra.mxu0 0
      %2387 = vmatprep.subr.bf16.mxu0 0
      %2388 = vmatpush2.bf16.xpose.msra.mxu0 0
      %2389 = vmatprep.subr.bf16.mxu0 0
      %2390 = vmatpush2.bf16.xpose.msra.mxu0 0
      %2391 = vmatprep.subr.bf16.mxu0 0
      %2392 = vmatpush2.bf16.xpose.msra.mxu0 0
      %2393 = vmatprep.subr.bf16.mxu0 0
      %2394 = vmatpush2.bf16.xpose.msra.mxu0 0
      %2395 = vmatprep.subr.bf16.mxu0 0
      %2396 = vmatpush2.bf16.xpose.msra.mxu0 0
      %2397 = vmatprep.subr.bf16.mxu0 0
      %2398 = vmatpush2.bf16.xpose.msra.mxu0 0
      %2399 = vmatprep.mubr.bf16.mxu0 0
      %2400 = vmatmul.mubr.bf16.gmra.mxu0 %v2344
      %v2401 = vpop.f32.mrf.mxu0
      %v2402 = vadd.f32 0.0, %v2401
      %v2403 = vpop.f32.mrf.mxu0
      %v2404 = vpop.f32.mrf.mxu0
      %v2405 = vadd.f32 0.0, %v2404
      %v2406 = vpop.f32.mrf.mxu0
      %2407 = vmatprep.mubr.bf16.mxu0 0
      %2408 = vmatmul.mubr.bf16.gmra.mxu0 %v2347
      %v2409 = vpop.f32.mrf.mxu0
      %v2410 = vadd.f32 0.0, %v2409
      %v2411 = vpop.f32.mrf.mxu0
      %v2412 = vpop.f32.mrf.mxu0
      %v2413 = vadd.f32 0.0, %v2412
      %v2414 = vpop.f32.mrf.mxu0
      %2415 = vmatprep.mubr.bf16.mxu0 0
      %2416 = vmatmul.mubr.bf16.gmra.mxu0 %v2350
      %v2417 = vpop.f32.mrf.mxu0
      %v2418 = vadd.f32 0.0, %v2417
      %v2419 = vpop.f32.mrf.mxu0
      %v2420 = vpop.f32.mrf.mxu0
      %v2421 = vadd.f32 0.0, %v2420
      %v2422 = vpop.f32.mrf.mxu0
      %2423 = vmatprep.mubr.bf16.mxu0 0
      %2424 = vmatmul.mubr.bf16.gmra.mxu0 %v2353
      %v2425 = vpop.f32.mrf.mxu0
      %v2426 = vadd.f32 0.0, %v2425
      %v2427 = vpop.f32.mrf.mxu0
      %v2428 = vpop.f32.mrf.mxu0
      %v2429 = vadd.f32 0.0, %v2428
      %v2430 = vpop.f32.mrf.mxu0
      %2431 = vdwg.mxu0
      %v2433 = vsel %vm1808, %v1433, 0
      %v2436 = vsel %vm1808, %v1435, 0
      %v2439 = vsel %vm1808, %v1437, 0
      %v2442 = vsel %vm1808, %v1439, 0
      %v2445 = vsel %vm1808, %v1561, 0
      %v2448 = vsel %vm1808, %v1563, 0
      %v2451 = vsel %vm1808, %v1565, 0
      %v2454 = vsel %vm1808, %v1567, 0
      %2456 = vmatprep.subr.bf16.mxu0 0
      %2457 = vmatpush1.bf16.xpose.msra.mxu0 0
      %2458 = vmatprep.subr.bf16.mxu0 0
      %2459 = vmatpush1.bf16.xpose.msra.mxu0 0
      %2460 = vmatprep.subr.bf16.mxu0 0
      %2461 = vmatpush1.bf16.xpose.msra.mxu0 0
      %2462 = vmatprep.subr.bf16.mxu0 0
      %2463 = vmatpush1.bf16.xpose.msra.mxu0 0
      %2464 = vmatprep.subr.bf16.mxu0 0
      %2465 = vmatpush1.bf16.xpose.msra.mxu0 %v2454
      %2466 = vmatprep.subr.bf16.mxu0 0
      %2467 = vmatpush1.bf16.xpose.msra.mxu0 %v2451
      %2468 = vmatprep.subr.bf16.mxu0 0
      %2469 = vmatpush1.bf16.xpose.msra.mxu0 %v2448
      %2470 = vmatprep.subr.bf16.mxu0 0
      %2471 = vmatpush1.bf16.xpose.msra.mxu0 %v2445
      %2472 = vmatprep.subr.bf16.mxu0 0
      %2473 = vmatpush2.bf16.xpose.msra.mxu0 0
      %2474 = vmatprep.subr.bf16.mxu0 0
      %2475 = vmatpush2.bf16.xpose.msra.mxu0 0
      %2476 = vmatprep.subr.bf16.mxu0 0
      %2477 = vmatpush2.bf16.xpose.msra.mxu0 0
      %2478 = vmatprep.subr.bf16.mxu0 0
      %2479 = vmatpush2.bf16.xpose.msra.mxu0 0
      %2480 = vmatprep.subr.bf16.mxu0 0
      %2481 = vmatpush2.bf16.xpose.msra.mxu0 0
      %2482 = vmatprep.subr.bf16.mxu0 0
      %2483 = vmatpush2.bf16.xpose.msra.mxu0 0
      %2484 = vmatprep.subr.bf16.mxu0 0
      %2485 = vmatpush2.bf16.xpose.msra.mxu0 0
      %2486 = vmatprep.subr.bf16.mxu0 0
      %2487 = vmatpush2.bf16.xpose.msra.mxu0 0
      %2488 = vmatprep.mubr.bf16.mxu0 0
      %2489 = vmatmul.mubr.bf16.gmra.mxu0 %v2433
      %v2490 = vpop.f32.mrf.mxu0
      %v2491 = vadd.f32 0.0, %v2490
      %v2492 = vpop.f32.mrf.mxu0
      %v2493 = vpop.f32.mrf.mxu0
      %v2494 = vadd.f32 0.0, %v2493
      %v2495 = vpop.f32.mrf.mxu0
      %2496 = vmatprep.mubr.bf16.mxu0 0
      %2497 = vmatmul.mubr.bf16.gmra.mxu0 %v2436
      %v2498 = vpop.f32.mrf.mxu0
      %v2499 = vadd.f32 0.0, %v2498
      %v2500 = vpop.f32.mrf.mxu0
      %v2501 = vpop.f32.mrf.mxu0
      %v2502 = vadd.f32 0.0, %v2501
      %v2503 = vpop.f32.mrf.mxu0
      %2504 = vmatprep.mubr.bf16.mxu0 0
      %2505 = vmatmul.mubr.bf16.gmra.mxu0 %v2439
      %v2506 = vpop.f32.mrf.mxu0
      %v2507 = vadd.f32 0.0, %v2506
      %v2508 = vpop.f32.mrf.mxu0
      %v2509 = vpop.f32.mrf.mxu0
      %v2510 = vadd.f32 0.0, %v2509
      %v2511 = vpop.f32.mrf.mxu0
      %2512 = vmatprep.mubr.bf16.mxu0 0
      %2513 = vmatmul.mubr.bf16.gmra.mxu0 %v2442
      %v2514 = vpop.f32.mrf.mxu0
      %v2515 = vadd.f32 0.0, %v2514
      %v2516 = vpop.f32.mrf.mxu0
      %v2517 = vpop.f32.mrf.mxu0
      %v2518 = vadd.f32 0.0, %v2517
      %v2519 = vpop.f32.mrf.mxu0
      %2520 = vdwg.mxu0
      %v2522 = vsel %vm1808, %v1441, 0
      %v2525 = vsel %vm1808, %v1443, 0
      %v2528 = vsel %vm1808, %v1445, 0
      %v2531 = vsel %vm1808, %v1447, 0
      %v2534 = vsel %vm1808, %v1569, 0
      %v2537 = vsel %vm1808, %v1571, 0
      %v2540 = vsel %vm1808, %v1573, 0
      %v2543 = vsel %vm1808, %v1575, 0
      %2545 = vmatprep.subr.bf16.mxu0 0
      %2546 = vmatpush1.bf16.xpose.msra.mxu0 0
      %2547 = vmatprep.subr.bf16.mxu0 0
      %2548 = vmatpush1.bf16.xpose.msra.mxu0 0
      %2549 = vmatprep.subr.bf16.mxu0 0
      %2550 = vmatpush1.bf16.xpose.msra.mxu0 0
      %2551 = vmatprep.subr.bf16.mxu0 0
      %2552 = vmatpush1.bf16.xpose.msra.mxu0 0
      %2553 = vmatprep.subr.bf16.mxu0 0
      %2554 = vmatpush1.bf16.xpose.msra.mxu0 %v2543
      %2555 = vmatprep.subr.bf16.mxu0 0
      %2556 = vmatpush1.bf16.xpose.msra.mxu0 %v2540
      %2557 = vmatprep.subr.bf16.mxu0 0
      %2558 = vmatpush1.bf16.xpose.msra.mxu0 %v2537
      %2559 = vmatprep.subr.bf16.mxu0 0
      %2560 = vmatpush1.bf16.xpose.msra.mxu0 %v2534
      %2561 = vmatprep.subr.bf16.mxu0 0
      %2562 = vmatpush2.bf16.xpose.msra.mxu0 0
      %2563 = vmatprep.subr.bf16.mxu0 0
      %2564 = vmatpush2.bf16.xpose.msra.mxu0 0
      %2565 = vmatprep.subr.bf16.mxu0 0
      %2566 = vmatpush2.bf16.xpose.msra.mxu0 0
      %2567 = vmatprep.subr.bf16.mxu0 0
      %2568 = vmatpush2.bf16.xpose.msra.mxu0 0
      %2569 = vmatprep.subr.bf16.mxu0 0
      %2570 = vmatpush2.bf16.xpose.msra.mxu0 0
      %2571 = vmatprep.subr.bf16.mxu0 0
      %2572 = vmatpush2.bf16.xpose.msra.mxu0 0
      %2573 = vmatprep.subr.bf16.mxu0 0
      %2574 = vmatpush2.bf16.xpose.msra.mxu0 0
      %2575 = vmatprep.subr.bf16.mxu0 0
      %2576 = vmatpush2.bf16.xpose.msra.mxu0 0
      %2577 = vmatprep.mubr.bf16.mxu0 0
      %2578 = vmatmul.mubr.bf16.gmra.mxu0 %v2522
      %v2579 = vpop.f32.mrf.mxu0
      %v2580 = vadd.f32 0.0, %v2579
      %v2581 = vpop.f32.mrf.mxu0
      %v2582 = vpop.f32.mrf.mxu0
      %v2583 = vadd.f32 0.0, %v2582
      %v2584 = vpop.f32.mrf.mxu0
      %2585 = vmatprep.mubr.bf16.mxu0 0
      %2586 = vmatmul.mubr.bf16.gmra.mxu0 %v2525
      %v2587 = vpop.f32.mrf.mxu0
      %v2588 = vadd.f32 0.0, %v2587
      %v2589 = vpop.f32.mrf.mxu0
      %v2590 = vpop.f32.mrf.mxu0
      %v2591 = vadd.f32 0.0, %v2590
      %v2592 = vpop.f32.mrf.mxu0
      %2593 = vmatprep.mubr.bf16.mxu0 0
      %2594 = vmatmul.mubr.bf16.gmra.mxu0 %v2528
      %v2595 = vpop.f32.mrf.mxu0
      %v2596 = vadd.f32 0.0, %v2595
      %v2597 = vpop.f32.mrf.mxu0
      %v2598 = vpop.f32.mrf.mxu0
      %v2599 = vadd.f32 0.0, %v2598
      %v2600 = vpop.f32.mrf.mxu0
      %2601 = vmatprep.mubr.bf16.mxu0 0
      %2602 = vmatmul.mubr.bf16.gmra.mxu0 %v2531
      %v2603 = vpop.f32.mrf.mxu0
      %v2604 = vadd.f32 0.0, %v2603
      %v2605 = vpop.f32.mrf.mxu0
      %v2606 = vpop.f32.mrf.mxu0
      %v2607 = vadd.f32 0.0, %v2606
      %v2608 = vpop.f32.mrf.mxu0
      %2609 = vdwg.mxu0
      %v2611 = vsel %vm1808, %v1449, 0
      %v2614 = vsel %vm1808, %v1451, 0
      %v2617 = vsel %vm1808, %v1453, 0
      %v2620 = vsel %vm1808, %v1455, 0
      %v2623 = vsel %vm1808, %v1577, 0
      %v2626 = vsel %vm1808, %v1579, 0
      %v2629 = vsel %vm1808, %v1581, 0
      %v2632 = vsel %vm1808, %v1583, 0
      %2634 = vmatprep.subr.bf16.mxu0 0
      %2635 = vmatpush1.bf16.xpose.msra.mxu0 0
      %2636 = vmatprep.subr.bf16.mxu0 0
      %2637 = vmatpush1.bf16.xpose.msra.mxu0 0
      %2638 = vmatprep.subr.bf16.mxu0 0
      %2639 = vmatpush1.bf16.xpose.msra.mxu0 0
      %2640 = vmatprep.subr.bf16.mxu0 0
      %2641 = vmatpush1.bf16.xpose.msra.mxu0 0
      %2642 = vmatprep.subr.bf16.mxu0 0
      %2643 = vmatpush1.bf16.xpose.msra.mxu0 %v2632
      %2644 = vmatprep.subr.bf16.mxu0 0
      %2645 = vmatpush1.bf16.xpose.msra.mxu0 %v2629
      %2646 = vmatprep.subr.bf16.mxu0 0
      %2647 = vmatpush1.bf16.xpose.msra.mxu0 %v2626
      %2648 = vmatprep.subr.bf16.mxu0 0
      %2649 = vmatpush1.bf16.xpose.msra.mxu0 %v2623
      %2650 = vmatprep.subr.bf16.mxu0 0
      %2651 = vmatpush2.bf16.xpose.msra.mxu0 0
      %2652 = vmatprep.subr.bf16.mxu0 0
      %2653 = vmatpush2.bf16.xpose.msra.mxu0 0
      %2654 = vmatprep.subr.bf16.mxu0 0
      %2655 = vmatpush2.bf16.xpose.msra.mxu0 0
      %2656 = vmatprep.subr.bf16.mxu0 0
      %2657 = vmatpush2.bf16.xpose.msra.mxu0 0
      %2658 = vmatprep.subr.bf16.mxu0 0
      %2659 = vmatpush2.bf16.xpose.msra.mxu0 0
      %2660 = vmatprep.subr.bf16.mxu0 0
      %2661 = vmatpush2.bf16.xpose.msra.mxu0 0
      %2662 = vmatprep.subr.bf16.mxu0 0
      %2663 = vmatpush2.bf16.xpose.msra.mxu0 0
      %2664 = vmatprep.subr.bf16.mxu0 0
      %2665 = vmatpush2.bf16.xpose.msra.mxu0 0
      %2666 = vmatprep.mubr.bf16.mxu0 0
      %2667 = vmatmul.mubr.bf16.gmra.mxu0 %v2611
      %v2668 = vpop.f32.mrf.mxu0
      %v2669 = vadd.f32 0.0, %v2668
      %v2670 = vpop.f32.mrf.mxu0
      %v2671 = vpop.f32.mrf.mxu0
      %v2672 = vadd.f32 0.0, %v2671
      %v2673 = vpop.f32.mrf.mxu0
      %2674 = vmatprep.mubr.bf16.mxu0 0
      %2675 = vmatmul.mubr.bf16.gmra.mxu0 %v2614
      %v2676 = vpop.f32.mrf.mxu0
      %v2677 = vadd.f32 0.0, %v2676
      %v2678 = vpop.f32.mrf.mxu0
      %v2679 = vpop.f32.mrf.mxu0
      %v2680 = vadd.f32 0.0, %v2679
      %v2681 = vpop.f32.mrf.mxu0
      %2682 = vmatprep.mubr.bf16.mxu0 0
      %2683 = vmatmul.mubr.bf16.gmra.mxu0 %v2617
      %v2684 = vpop.f32.mrf.mxu0
      %v2685 = vadd.f32 0.0, %v2684
      %v2686 = vpop.f32.mrf.mxu0
      %v2687 = vpop.f32.mrf.mxu0
      %v2688 = vadd.f32 0.0, %v2687
      %v2689 = vpop.f32.mrf.mxu0
      %2690 = vmatprep.mubr.bf16.mxu0 0
      %2691 = vmatmul.mubr.bf16.gmra.mxu0 %v2620
      %v2692 = vpop.f32.mrf.mxu0
      %v2693 = vadd.f32 0.0, %v2692
      %v2694 = vpop.f32.mrf.mxu0
      %v2695 = vpop.f32.mrf.mxu0
      %v2696 = vadd.f32 0.0, %v2695
      %v2697 = vpop.f32.mrf.mxu0
      %2698 = vdwg.mxu0
      %v2700 = vsel %vm1808, %v1457, 0
      %v2703 = vsel %vm1808, %v1459, 0
      %v2706 = vsel %vm1808, %v1461, 0
      %v2709 = vsel %vm1808, %v1463, 0
      %v2712 = vsel %vm1808, %v1585, 0
      %v2715 = vsel %vm1808, %v1587, 0
      %v2718 = vsel %vm1808, %v1589, 0
      %v2721 = vsel %vm1808, %v1591, 0
      %2723 = vmatprep.subr.bf16.mxu0 0
      %2724 = vmatpush1.bf16.xpose.msra.mxu0 0
      %2725 = vmatprep.subr.bf16.mxu0 0
      %2726 = vmatpush1.bf16.xpose.msra.mxu0 0
      %2727 = vmatprep.subr.bf16.mxu0 0
      %2728 = vmatpush1.bf16.xpose.msra.mxu0 0
      %2729 = vmatprep.subr.bf16.mxu0 0
      %2730 = vmatpush1.bf16.xpose.msra.mxu0 0
      %2731 = vmatprep.subr.bf16.mxu0 0
      %2732 = vmatpush1.bf16.xpose.msra.mxu0 %v2721
      %2733 = vmatprep.subr.bf16.mxu0 0
      %2734 = vmatpush1.bf16.xpose.msra.mxu0 %v2718
      %2735 = vmatprep.subr.bf16.mxu0 0
      %2736 = vmatpush1.bf16.xpose.msra.mxu0 %v2715
      %2737 = vmatprep.subr.bf16.mxu0 0
      %2738 = vmatpush1.bf16.xpose.msra.mxu0 %v2712
      %2739 = vmatprep.subr.bf16.mxu0 0
      %2740 = vmatpush2.bf16.xpose.msra.mxu0 0
      %2741 = vmatprep.subr.bf16.mxu0 0
      %2742 = vmatpush2.bf16.xpose.msra.mxu0 0
      %2743 = vmatprep.subr.bf16.mxu0 0
      %2744 = vmatpush2.bf16.xpose.msra.mxu0 0
      %2745 = vmatprep.subr.bf16.mxu0 0
      %2746 = vmatpush2.bf16.xpose.msra.mxu0 0
      %2747 = vmatprep.subr.bf16.mxu0 0
      %2748 = vmatpush2.bf16.xpose.msra.mxu0 0
      %2749 = vmatprep.subr.bf16.mxu0 0
      %2750 = vmatpush2.bf16.xpose.msra.mxu0 0
      %2751 = vmatprep.subr.bf16.mxu0 0
      %2752 = vmatpush2.bf16.xpose.msra.mxu0 0
      %2753 = vmatprep.subr.bf16.mxu0 0
      %2754 = vmatpush2.bf16.xpose.msra.mxu0 0
      %2755 = vmatprep.mubr.bf16.mxu0 0
      %2756 = vmatmul.mubr.bf16.gmra.mxu0 %v2700
      %v2757 = vpop.f32.mrf.mxu0
      %v2758 = vadd.f32 0.0, %v2757
      %v2759 = vpop.f32.mrf.mxu0
      %v2760 = vpop.f32.mrf.mxu0
      %v2761 = vadd.f32 0.0, %v2760
      %v2762 = vpop.f32.mrf.mxu0
      %2763 = vmatprep.mubr.bf16.mxu0 0
      %2764 = vmatmul.mubr.bf16.gmra.mxu0 %v2703
      %v2765 = vpop.f32.mrf.mxu0
      %v2766 = vadd.f32 0.0, %v2765
      %v2767 = vpop.f32.mrf.mxu0
      %v2768 = vpop.f32.mrf.mxu0
      %v2769 = vadd.f32 0.0, %v2768
      %v2770 = vpop.f32.mrf.mxu0
      %2771 = vmatprep.mubr.bf16.mxu0 0
      %2772 = vmatmul.mubr.bf16.gmra.mxu0 %v2706
      %v2773 = vpop.f32.mrf.mxu0
      %v2774 = vadd.f32 0.0, %v2773
      %v2775 = vpop.f32.mrf.mxu0
      %v2776 = vpop.f32.mrf.mxu0
      %v2777 = vadd.f32 0.0, %v2776
      %v2778 = vpop.f32.mrf.mxu0
      %2779 = vmatprep.mubr.bf16.mxu0 0
      %2780 = vmatmul.mubr.bf16.gmra.mxu0 %v2709
      %v2781 = vpop.f32.mrf.mxu0
      %v2782 = vadd.f32 0.0, %v2781
      %v2783 = vpop.f32.mrf.mxu0
      %v2784 = vpop.f32.mrf.mxu0
      %v2785 = vadd.f32 0.0, %v2784
      %v2786 = vpop.f32.mrf.mxu0
      %2787 = vdwg.mxu0
      %v2789 = vsel %vm1808, %v1465, 0
      %v2792 = vsel %vm1808, %v1467, 0
      %v2795 = vsel %vm1808, %v1469, 0
      %v2798 = vsel %vm1808, %v1471, 0
      %v2801 = vsel %vm1808, %v1593, 0
      %v2804 = vsel %vm1808, %v1595, 0
      %v2807 = vsel %vm1808, %v1597, 0
      %v2810 = vsel %vm1808, %v1599, 0
      %2812 = vmatprep.subr.bf16.mxu0 0
      %2813 = vmatpush1.bf16.xpose.msra.mxu0 0
      %2814 = vmatprep.subr.bf16.mxu0 0
      %2815 = vmatpush1.bf16.xpose.msra.mxu0 0
      %2816 = vmatprep.subr.bf16.mxu0 0
      %2817 = vmatpush1.bf16.xpose.msra.mxu0 0
      %2818 = vmatprep.subr.bf16.mxu0 0
      %2819 = vmatpush1.bf16.xpose.msra.mxu0 0
      %2820 = vmatprep.subr.bf16.mxu0 0
      %2821 = vmatpush1.bf16.xpose.msra.mxu0 %v2810
      %2822 = vmatprep.subr.bf16.mxu0 0
      %2823 = vmatpush1.bf16.xpose.msra.mxu0 %v2807
      %2824 = vmatprep.subr.bf16.mxu0 0
      %2825 = vmatpush1.bf16.xpose.msra.mxu0 %v2804
      %2826 = vmatprep.subr.bf16.mxu0 0
      %2827 = vmatpush1.bf16.xpose.msra.mxu0 %v2801
      %2828 = vmatprep.subr.bf16.mxu0 0
      %2829 = vmatpush2.bf16.xpose.msra.mxu0 0
      %2830 = vmatprep.subr.bf16.mxu0 0
      %2831 = vmatpush2.bf16.xpose.msra.mxu0 0
      %2832 = vmatprep.subr.bf16.mxu0 0
      %2833 = vmatpush2.bf16.xpose.msra.mxu0 0
      %2834 = vmatprep.subr.bf16.mxu0 0
      %2835 = vmatpush2.bf16.xpose.msra.mxu0 0
      %2836 = vmatprep.subr.bf16.mxu0 0
      %2837 = vmatpush2.bf16.xpose.msra.mxu0 0
      %2838 = vmatprep.subr.bf16.mxu0 0
      %2839 = vmatpush2.bf16.xpose.msra.mxu0 0
      %2840 = vmatprep.subr.bf16.mxu0 0
      %2841 = vmatpush2.bf16.xpose.msra.mxu0 0
      %2842 = vmatprep.subr.bf16.mxu0 0
      %2843 = vmatpush2.bf16.xpose.msra.mxu0 0
      %2844 = vmatprep.mubr.bf16.mxu0 0
      %2845 = vmatmul.mubr.bf16.gmra.mxu0 %v2789
      %v2846 = vpop.f32.mrf.mxu0
      %v2847 = vadd.f32 0.0, %v2846
      %v2848 = vpop.f32.mrf.mxu0
      %v2849 = vpop.f32.mrf.mxu0
      %v2850 = vadd.f32 0.0, %v2849
      %v2851 = vpop.f32.mrf.mxu0
      %2852 = vmatprep.mubr.bf16.mxu0 0
      %2853 = vmatmul.mubr.bf16.gmra.mxu0 %v2792
      %v2854 = vpop.f32.mrf.mxu0
      %v2855 = vadd.f32 0.0, %v2854
      %v2856 = vpop.f32.mrf.mxu0
      %v2857 = vpop.f32.mrf.mxu0
      %v2858 = vadd.f32 0.0, %v2857
      %v2859 = vpop.f32.mrf.mxu0
      %2860 = vmatprep.mubr.bf16.mxu0 0
      %2861 = vmatmul.mubr.bf16.gmra.mxu0 %v2795
      %v2862 = vpop.f32.mrf.mxu0
      %v2863 = vadd.f32 0.0, %v2862
      %v2864 = vpop.f32.mrf.mxu0
      %v2865 = vpop.f32.mrf.mxu0
      %v2866 = vadd.f32 0.0, %v2865
      %v2867 = vpop.f32.mrf.mxu0
      %2868 = vmatprep.mubr.bf16.mxu0 0
      %2869 = vmatmul.mubr.bf16.gmra.mxu0 %v2798
      %v2870 = vpop.f32.mrf.mxu0
      %v2871 = vadd.f32 0.0, %v2870
      %v2872 = vpop.f32.mrf.mxu0
      %v2873 = vpop.f32.mrf.mxu0
      %v2874 = vadd.f32 0.0, %v2873
      %v2875 = vpop.f32.mrf.mxu0
      %2876 = vdwg.mxu0
      %v2878 = vsel %vm1808, %v1473, 0
      %v2881 = vsel %vm1808, %v1475, 0
      %v2884 = vsel %vm1808, %v1477, 0
      %v2887 = vsel %vm1808, %v1479, 0
      %v2890 = vsel %vm1808, %v1601, 0
      %v2893 = vsel %vm1808, %v1603, 0
      %v2896 = vsel %vm1808, %v1605, 0
      %v2899 = vsel %vm1808, %v1607, 0
      %2901 = vmatprep.subr.bf16.mxu0 0
      %2902 = vmatpush1.bf16.xpose.msra.mxu0 0
      %2903 = vmatprep.subr.bf16.mxu0 0
      %2904 = vmatpush1.bf16.xpose.msra.mxu0 0
      %2905 = vmatprep.subr.bf16.mxu0 0
      %2906 = vmatpush1.bf16.xpose.msra.mxu0 0
      %2907 = vmatprep.subr.bf16.mxu0 0
      %2908 = vmatpush1.bf16.xpose.msra.mxu0 0
      %2909 = vmatprep.subr.bf16.mxu0 0
      %2910 = vmatpush1.bf16.xpose.msra.mxu0 %v2899
      %2911 = vmatprep.subr.bf16.mxu0 0
      %2912 = vmatpush1.bf16.xpose.msra.mxu0 %v2896
      %2913 = vmatprep.subr.bf16.mxu0 0
      %2914 = vmatpush1.bf16.xpose.msra.mxu0 %v2893
      %2915 = vmatprep.subr.bf16.mxu0 0
      %2916 = vmatpush1.bf16.xpose.msra.mxu0 %v2890
      %2917 = vmatprep.subr.bf16.mxu0 0
      %2918 = vmatpush2.bf16.xpose.msra.mxu0 0
      %2919 = vmatprep.subr.bf16.mxu0 0
      %2920 = vmatpush2.bf16.xpose.msra.mxu0 0
      %2921 = vmatprep.subr.bf16.mxu0 0
      %2922 = vmatpush2.bf16.xpose.msra.mxu0 0
      %2923 = vmatprep.subr.bf16.mxu0 0
      %2924 = vmatpush2.bf16.xpose.msra.mxu0 0
      %2925 = vmatprep.subr.bf16.mxu0 0
      %2926 = vmatpush2.bf16.xpose.msra.mxu0 0
      %2927 = vmatprep.subr.bf16.mxu0 0
      %2928 = vmatpush2.bf16.xpose.msra.mxu0 0
      %2929 = vmatprep.subr.bf16.mxu0 0
      %2930 = vmatpush2.bf16.xpose.msra.mxu0 0
      %2931 = vmatprep.subr.bf16.mxu0 0
      %2932 = vmatpush2.bf16.xpose.msra.mxu0 0
      %2933 = vmatprep.mubr.bf16.mxu0 0
      %2934 = vmatmul.mubr.bf16.gmra.mxu0 %v2878
      %v2935 = vpop.f32.mrf.mxu0
      %v2936 = vadd.f32 0.0, %v2935
      %v2937 = vpop.f32.mrf.mxu0
      %v2938 = vpop.f32.mrf.mxu0
      %v2939 = vadd.f32 0.0, %v2938
      %v2940 = vpop.f32.mrf.mxu0
      %2941 = vmatprep.mubr.bf16.mxu0 0
      %2942 = vmatmul.mubr.bf16.gmra.mxu0 %v2881
      %v2943 = vpop.f32.mrf.mxu0
      %v2944 = vadd.f32 0.0, %v2943
      %v2945 = vpop.f32.mrf.mxu0
      %v2946 = vpop.f32.mrf.mxu0
      %v2947 = vadd.f32 0.0, %v2946
      %v2948 = vpop.f32.mrf.mxu0
      %2949 = vmatprep.mubr.bf16.mxu0 0
      %2950 = vmatmul.mubr.bf16.gmra.mxu0 %v2884
      %v2951 = vpop.f32.mrf.mxu0
      %v2952 = vadd.f32 0.0, %v2951
      %v2953 = vpop.f32.mrf.mxu0
      %v2954 = vpop.f32.mrf.mxu0
      %v2955 = vadd.f32 0.0, %v2954
      %v2956 = vpop.f32.mrf.mxu0
      %2957 = vmatprep.mubr.bf16.mxu0 0
      %2958 = vmatmul.mubr.bf16.gmra.mxu0 %v2887
      %v2959 = vpop.f32.mrf.mxu0
      %v2960 = vadd.f32 0.0, %v2959
      %v2961 = vpop.f32.mrf.mxu0
      %v2962 = vpop.f32.mrf.mxu0
      %v2963 = vadd.f32 0.0, %v2962
      %v2964 = vpop.f32.mrf.mxu0
      %2965 = vdwg.mxu0
      %v2967 = vsel %vm1808, %v1481, 0
      %v2970 = vsel %vm1808, %v1483, 0
      %v2973 = vsel %vm1808, %v1485, 0
      %v2976 = vsel %vm1808, %v1487, 0
      %v2979 = vsel %vm1808, %v1609, 0
      %v2982 = vsel %vm1808, %v1611, 0
      %v2985 = vsel %vm1808, %v1613, 0
      %v2988 = vsel %vm1808, %v1615, 0
      %2990 = vmatprep.subr.bf16.mxu0 0
      %2991 = vmatpush1.bf16.xpose.msra.mxu0 0
      %2992 = vmatprep.subr.bf16.mxu0 0
      %2993 = vmatpush1.bf16.xpose.msra.mxu0 0
      %2994 = vmatprep.subr.bf16.mxu0 0
      %2995 = vmatpush1.bf16.xpose.msra.mxu0 0
      %2996 = vmatprep.subr.bf16.mxu0 0
      %2997 = vmatpush1.bf16.xpose.msra.mxu0 0
      %2998 = vmatprep.subr.bf16.mxu0 0
      %2999 = vmatpush1.bf16.xpose.msra.mxu0 %v2988
      %3000 = vmatprep.subr.bf16.mxu0 0
      %3001 = vmatpush1.bf16.xpose.msra.mxu0 %v2985
      %3002 = vmatprep.subr.bf16.mxu0 0
      %3003 = vmatpush1.bf16.xpose.msra.mxu0 %v2982
      %3004 = vmatprep.subr.bf16.mxu0 0
      %3005 = vmatpush1.bf16.xpose.msra.mxu0 %v2979
      %3006 = vmatprep.subr.bf16.mxu0 0
      %3007 = vmatpush2.bf16.xpose.msra.mxu0 0
      %3008 = vmatprep.subr.bf16.mxu0 0
      %3009 = vmatpush2.bf16.xpose.msra.mxu0 0
      %3010 = vmatprep.subr.bf16.mxu0 0
      %3011 = vmatpush2.bf16.xpose.msra.mxu0 0
      %3012 = vmatprep.subr.bf16.mxu0 0
      %3013 = vmatpush2.bf16.xpose.msra.mxu0 0
      %3014 = vmatprep.subr.bf16.mxu0 0
      %3015 = vmatpush2.bf16.xpose.msra.mxu0 0
      %3016 = vmatprep.subr.bf16.mxu0 0
      %3017 = vmatpush2.bf16.xpose.msra.mxu0 0
      %3018 = vmatprep.subr.bf16.mxu0 0
      %3019 = vmatpush2.bf16.xpose.msra.mxu0 0
      %3020 = vmatprep.subr.bf16.mxu0 0
      %3021 = vmatpush2.bf16.xpose.msra.mxu0 0
      %3022 = vmatprep.mubr.bf16.mxu0 0
      %3023 = vmatmul.mubr.bf16.gmra.mxu0 %v2967
      %v3024 = vpop.f32.mrf.mxu0
      %v3025 = vadd.f32 0.0, %v3024
      %v3026 = vpop.f32.mrf.mxu0
      %v3027 = vpop.f32.mrf.mxu0
      %v3028 = vadd.f32 0.0, %v3027
      %v3029 = vpop.f32.mrf.mxu0
      %3030 = vmatprep.mubr.bf16.mxu0 0
      %3031 = vmatmul.mubr.bf16.gmra.mxu0 %v2970
      %v3032 = vpop.f32.mrf.mxu0
      %v3033 = vadd.f32 0.0, %v3032
      %v3034 = vpop.f32.mrf.mxu0
      %v3035 = vpop.f32.mrf.mxu0
      %v3036 = vadd.f32 0.0, %v3035
      %v3037 = vpop.f32.mrf.mxu0
      %3038 = vmatprep.mubr.bf16.mxu0 0
      %3039 = vmatmul.mubr.bf16.gmra.mxu0 %v2973
      %v3040 = vpop.f32.mrf.mxu0
      %v3041 = vadd.f32 0.0, %v3040
      %v3042 = vpop.f32.mrf.mxu0
      %v3043 = vpop.f32.mrf.mxu0
      %v3044 = vadd.f32 0.0, %v3043
      %v3045 = vpop.f32.mrf.mxu0
      %3046 = vmatprep.mubr.bf16.mxu0 0
      %3047 = vmatmul.mubr.bf16.gmra.mxu0 %v2976
      %v3048 = vpop.f32.mrf.mxu0
      %v3049 = vadd.f32 0.0, %v3048
      %v3050 = vpop.f32.mrf.mxu0
      %v3051 = vpop.f32.mrf.mxu0
      %v3052 = vadd.f32 0.0, %v3051
      %v3053 = vpop.f32.mrf.mxu0
      %3054 = vdwg.mxu0
      %v3056 = vsel %vm1808, %v1489, 0
      %v3059 = vsel %vm1808, %v1491, 0
      %v3062 = vsel %vm1808, %v1493, 0
      %v3065 = vsel %vm1808, %v1495, 0
      %v3068 = vsel %vm1808, %v1617, 0
      %v3071 = vsel %vm1808, %v1619, 0
      %v3074 = vsel %vm1808, %v1621, 0
      %v3077 = vsel %vm1808, %v1623, 0
      %3079 = vmatprep.subr.bf16.mxu0 0
      %3080 = vmatpush1.bf16.xpose.msra.mxu0 0
      %3081 = vmatprep.subr.bf16.mxu0 0
      %3082 = vmatpush1.bf16.xpose.msra.mxu0 0
      %3083 = vmatprep.subr.bf16.mxu0 0
      %3084 = vmatpush1.bf16.xpose.msra.mxu0 0
      %3085 = vmatprep.subr.bf16.mxu0 0
      %3086 = vmatpush1.bf16.xpose.msra.mxu0 0
      %3087 = vmatprep.subr.bf16.mxu0 0
      %3088 = vmatpush1.bf16.xpose.msra.mxu0 %v3077
      %3089 = vmatprep.subr.bf16.mxu0 0
      %3090 = vmatpush1.bf16.xpose.msra.mxu0 %v3074
      %3091 = vmatprep.subr.bf16.mxu0 0
      %3092 = vmatpush1.bf16.xpose.msra.mxu0 %v3071
      %3093 = vmatprep.subr.bf16.mxu0 0
      %3094 = vmatpush1.bf16.xpose.msra.mxu0 %v3068
      %3095 = vmatprep.subr.bf16.mxu0 0
      %3096 = vmatpush2.bf16.xpose.msra.mxu0 0
      %3097 = vmatprep.subr.bf16.mxu0 0
      %3098 = vmatpush2.bf16.xpose.msra.mxu0 0
      %3099 = vmatprep.subr.bf16.mxu0 0
      %3100 = vmatpush2.bf16.xpose.msra.mxu0 0
      %3101 = vmatprep.subr.bf16.mxu0 0
      %3102 = vmatpush2.bf16.xpose.msra.mxu0 0
      %3103 = vmatprep.subr.bf16.mxu0 0
      %3104 = vmatpush2.bf16.xpose.msra.mxu0 0
      %3105 = vmatprep.subr.bf16.mxu0 0
      %3106 = vmatpush2.bf16.xpose.msra.mxu0 0
      %3107 = vmatprep.subr.bf16.mxu0 0
      %3108 = vmatpush2.bf16.xpose.msra.mxu0 0
      %3109 = vmatprep.subr.bf16.mxu0 0
      %3110 = vmatpush2.bf16.xpose.msra.mxu0 0
      %3111 = vmatprep.mubr.bf16.mxu0 0
      %3112 = vmatmul.mubr.bf16.gmra.mxu0 %v3056
      %v3113 = vpop.f32.mrf.mxu0
      %v3114 = vadd.f32 0.0, %v3113
      %v3115 = vpop.f32.mrf.mxu0
      %v3116 = vpop.f32.mrf.mxu0
      %v3117 = vadd.f32 0.0, %v3116
      %v3118 = vpop.f32.mrf.mxu0
      %3119 = vmatprep.mubr.bf16.mxu0 0
      %3120 = vmatmul.mubr.bf16.gmra.mxu0 %v3059
      %v3121 = vpop.f32.mrf.mxu0
      %v3122 = vadd.f32 0.0, %v3121
      %v3123 = vpop.f32.mrf.mxu0
      %v3124 = vpop.f32.mrf.mxu0
      %v3125 = vadd.f32 0.0, %v3124
      %v3126 = vpop.f32.mrf.mxu0
      %3127 = vmatprep.mubr.bf16.mxu0 0
      %3128 = vmatmul.mubr.bf16.gmra.mxu0 %v3062
      %v3129 = vpop.f32.mrf.mxu0
      %v3130 = vadd.f32 0.0, %v3129
      %v3131 = vpop.f32.mrf.mxu0
      %v3132 = vpop.f32.mrf.mxu0
      %v3133 = vadd.f32 0.0, %v3132
      %v3134 = vpop.f32.mrf.mxu0
      %3135 = vmatprep.mubr.bf16.mxu0 0
      %3136 = vmatmul.mubr.bf16.gmra.mxu0 %v3065
      %v3137 = vpop.f32.mrf.mxu0
      %v3138 = vadd.f32 0.0, %v3137
      %v3139 = vpop.f32.mrf.mxu0
      %v3140 = vpop.f32.mrf.mxu0
      %v3141 = vadd.f32 0.0, %v3140
      %v3142 = vpop.f32.mrf.mxu0
      %3143 = vdwg.mxu0
      %v3145 = vsel %vm1808, %v1497, 0
      %v3148 = vsel %vm1808, %v1499, 0
      %v3151 = vsel %vm1808, %v1501, 0
      %v3154 = vsel %vm1808, %v1503, 0
      %v3157 = vsel %vm1808, %v1625, 0
      %v3160 = vsel %vm1808, %v1627, 0
      %v3163 = vsel %vm1808, %v1629, 0
      %v3166 = vsel %vm1808, %v1631, 0
      %3168 = vmatprep.subr.bf16.mxu0 0
      %3169 = vmatpush1.bf16.xpose.msra.mxu0 0
      %3170 = vmatprep.subr.bf16.mxu0 0
      %3171 = vmatpush1.bf16.xpose.msra.mxu0 0
      %3172 = vmatprep.subr.bf16.mxu0 0
      %3173 = vmatpush1.bf16.xpose.msra.mxu0 0
      %3174 = vmatprep.subr.bf16.mxu0 0
      %3175 = vmatpush1.bf16.xpose.msra.mxu0 0
      %3176 = vmatprep.subr.bf16.mxu0 0
      %3177 = vmatpush1.bf16.xpose.msra.mxu0 %v3166
      %3178 = vmatprep.subr.bf16.mxu0 0
      %3179 = vmatpush1.bf16.xpose.msra.mxu0 %v3163
      %3180 = vmatprep.subr.bf16.mxu0 0
      %3181 = vmatpush1.bf16.xpose.msra.mxu0 %v3160
      %3182 = vmatprep.subr.bf16.mxu0 0
      %3183 = vmatpush1.bf16.xpose.msra.mxu0 %v3157
      %3184 = vmatprep.subr.bf16.mxu0 0
      %3185 = vmatpush2.bf16.xpose.msra.mxu0 0
      %3186 = vmatprep.subr.bf16.mxu0 0
      %3187 = vmatpush2.bf16.xpose.msra.mxu0 0
      %3188 = vmatprep.subr.bf16.mxu0 0
      %3189 = vmatpush2.bf16.xpose.msra.mxu0 0
      %3190 = vmatprep.subr.bf16.mxu0 0
      %3191 = vmatpush2.bf16.xpose.msra.mxu0 0
      %3192 = vmatprep.subr.bf16.mxu0 0
      %3193 = vmatpush2.bf16.xpose.msra.mxu0 0
      %3194 = vmatprep.subr.bf16.mxu0 0
      %3195 = vmatpush2.bf16.xpose.msra.mxu0 0
      %3196 = vmatprep.subr.bf16.mxu0 0
      %3197 = vmatpush2.bf16.xpose.msra.mxu0 0
      %3198 = vmatprep.subr.bf16.mxu0 0
      %3199 = vmatpush2.bf16.xpose.msra.mxu0 0
      %3200 = vmatprep.mubr.bf16.mxu0 0
      %3201 = vmatmul.mubr.bf16.gmra.mxu0 %v3145
      %v3202 = vpop.f32.mrf.mxu0
      %v3203 = vadd.f32 0.0, %v3202
      %v3204 = vpop.f32.mrf.mxu0
      %v3205 = vpop.f32.mrf.mxu0
      %v3206 = vadd.f32 0.0, %v3205
      %v3207 = vpop.f32.mrf.mxu0
      %3208 = vmatprep.mubr.bf16.mxu0 0
      %3209 = vmatmul.mubr.bf16.gmra.mxu0 %v3148
      %v3210 = vpop.f32.mrf.mxu0
      %v3211 = vadd.f32 0.0, %v3210
      %v3212 = vpop.f32.mrf.mxu0
      %v3213 = vpop.f32.mrf.mxu0
      %v3214 = vadd.f32 0.0, %v3213
      %v3215 = vpop.f32.mrf.mxu0
      %3216 = vmatprep.mubr.bf16.mxu0 0
      %3217 = vmatmul.mubr.bf16.gmra.mxu0 %v3151
      %v3218 = vpop.f32.mrf.mxu0
      %v3219 = vadd.f32 0.0, %v3218
      %v3220 = vpop.f32.mrf.mxu0
      %v3221 = vpop.f32.mrf.mxu0
      %v3222 = vadd.f32 0.0, %v3221
      %v3223 = vpop.f32.mrf.mxu0
      %3224 = vmatprep.mubr.bf16.mxu0 0
      %3225 = vmatmul.mubr.bf16.gmra.mxu0 %v3154
      %v3226 = vpop.f32.mrf.mxu0
      %v3227 = vadd.f32 0.0, %v3226
      %v3228 = vpop.f32.mrf.mxu0
      %v3229 = vpop.f32.mrf.mxu0
      %v3230 = vadd.f32 0.0, %v3229
      %v3231 = vpop.f32.mrf.mxu0
      %3232 = vdwg.mxu0
      %v3233 = vld [vmem:[%s7] sm:$0xff]
      %v3234 = vld [vmem:[%s7 + $0x8] sm:$0xff]
      %v3235 = vld [vmem:[%s7 + $0x10] sm:$0xff]
      %v3236 = vld [vmem:[%s7 + $0x18] sm:$0xff]
      %v3237 = vld [vmem:[%s7 + $0x20] sm:$0xff]
      %v3238 = vld [vmem:[%s7 + $0x28] sm:$0xff]
      %v3239 = vld [vmem:[%s7 + $0x30] sm:$0xff]
      %v3240 = vld [vmem:[%s7 + $0x38] sm:$0xff]
      %v3241 = vld [vmem:[%s7 + $0x40] sm:$0xff]
      %v3242 = vld [vmem:[%s7 + $0x48] sm:$0xff]
      %v3243 = vld [vmem:[%s7 + $0x50] sm:$0xff]
      %v3244 = vld [vmem:[%s7 + $0x58] sm:$0xff]
      %v3245 = vld [vmem:[%s7 + $0x60] sm:$0xff]
      %v3246 = vld [vmem:[%s7 + $0x68] sm:$0xff]
      %v3247 = vld [vmem:[%s7 + $0x70] sm:$0xff]
      %v3248 = vld [vmem:[%s7 + $0x78] sm:$0xff]
      %v3249 = vld [vmem:[%s7 + $0x80] sm:$0xff]
      %v3250 = vld [vmem:[%s7 + $0x88] sm:$0xff]
      %v3251 = vld [vmem:[%s7 + $0x90] sm:$0xff]
      %v3252 = vld [vmem:[%s7 + $0x98] sm:$0xff]
      %v3253 = vld [vmem:[%s7 + $0xa0] sm:$0xff]
      %v3254 = vld [vmem:[%s7 + $0xa8] sm:$0xff]
      %v3255 = vld [vmem:[%s7 + $0xb0] sm:$0xff]
      %v3256 = vld [vmem:[%s7 + $0xb8] sm:$0xff]
      %v3257 = vld [vmem:[%s7 + $0xc0] sm:$0xff]
      %v3258 = vld [vmem:[%s7 + $0xc8] sm:$0xff]
      %v3259 = vld [vmem:[%s7 + $0xd0] sm:$0xff]
      %v3260 = vld [vmem:[%s7 + $0xd8] sm:$0xff]
      %v3261 = vld [vmem:[%s7 + $0xe0] sm:$0xff]
      %v3262 = vld [vmem:[%s7 + $0xe8] sm:$0xff]
      %v3263 = vld [vmem:[%s7 + $0xf0] sm:$0xff]
      %v3264 = vld [vmem:[%s7 + $0xf8] sm:$0xff]
      %v3265 = vadd.f32 %v1868, %v3233
      %v3266 = vadd.f32 %v1871, %v3234
      %v3267 = vadd.f32 %v1876, %v3235
      %v3268 = vadd.f32 %v1879, %v3236
      %v3269 = vadd.f32 %v1884, %v3237
      %v3270 = vadd.f32 %v1887, %v3238
      %v3271 = vadd.f32 %v1892, %v3239
      %v3272 = vadd.f32 %v1895, %v3240
      %v3273 = vadd.f32 %v1957, %v3233
      %v3274 = vadd.f32 %v1960, %v3234
      %v3275 = vadd.f32 %v1965, %v3235
      %v3276 = vadd.f32 %v1968, %v3236
      %v3277 = vadd.f32 %v1973, %v3237
      %v3278 = vadd.f32 %v1976, %v3238
      %v3279 = vadd.f32 %v1981, %v3239
      %v3280 = vadd.f32 %v1984, %v3240
      %v3281 = vadd.f32 %v2046, %v3233
      %v3282 = vadd.f32 %v2049, %v3234
      %v3283 = vadd.f32 %v2054, %v3235
      %v3284 = vadd.f32 %v2057, %v3236
      %v3285 = vadd.f32 %v2062, %v3237
      %v3286 = vadd.f32 %v2065, %v3238
      %v3287 = vadd.f32 %v2070, %v3239
      %v3288 = vadd.f32 %v2073, %v3240
      %v3289 = vadd.f32 %v2135, %v3233
      %v3290 = vadd.f32 %v2138, %v3234
      %v3291 = vadd.f32 %v2143, %v3235
      %v3292 = vadd.f32 %v2146, %v3236
      %v3293 = vadd.f32 %v2151, %v3237
      %v3294 = vadd.f32 %v2154, %v3238
      %v3295 = vadd.f32 %v2159, %v3239
      %v3296 = vadd.f32 %v2162, %v3240
      %v3297 = vadd.f32 %v2224, %v3241
      %v3298 = vadd.f32 %v2227, %v3242
      %v3299 = vadd.f32 %v2232, %v3243
      %v3300 = vadd.f32 %v2235, %v3244
      %v3301 = vadd.f32 %v2240, %v3245
      %v3302 = vadd.f32 %v2243, %v3246
      %v3303 = vadd.f32 %v2248, %v3247
      %v3304 = vadd.f32 %v2251, %v3248
      %v3305 = vadd.f32 %v2313, %v3241
      %v3306 = vadd.f32 %v2316, %v3242
      %v3307 = vadd.f32 %v2321, %v3243
      %v3308 = vadd.f32 %v2324, %v3244
      %v3309 = vadd.f32 %v2329, %v3245
      %v3310 = vadd.f32 %v2332, %v3246
      %v3311 = vadd.f32 %v2337, %v3247
      %v3312 = vadd.f32 %v2340, %v3248
      %v3313 = vadd.f32 %v2402, %v3241
      %v3314 = vadd.f32 %v2405, %v3242
      %v3315 = vadd.f32 %v2410, %v3243
      %v3316 = vadd.f32 %v2413, %v3244
      %v3317 = vadd.f32 %v2418, %v3245
      %v3318 = vadd.f32 %v2421, %v3246
      %v3319 = vadd.f32 %v2426, %v3247
      %v3320 = vadd.f32 %v2429, %v3248
      %v3321 = vadd.f32 %v2491, %v3241
      %v3322 = vadd.f32 %v2494, %v3242
      %v3323 = vadd.f32 %v2499, %v3243
      %v3324 = vadd.f32 %v2502, %v3244
      %v3325 = vadd.f32 %v2507, %v3245
      %v3326 = vadd.f32 %v2510, %v3246
      %v3327 = vadd.f32 %v2515, %v3247
      %v3328 = vadd.f32 %v2518, %v3248
      %v3329 = vadd.f32 %v2580, %v3249
      %v3330 = vadd.f32 %v2583, %v3250
      %v3331 = vadd.f32 %v2588, %v3251
      %v3332 = vadd.f32 %v2591, %v3252
      %v3333 = vadd.f32 %v2596, %v3253
      %v3334 = vadd.f32 %v2599, %v3254
      %v3335 = vadd.f32 %v2604, %v3255
      %v3336 = vadd.f32 %v2607, %v3256
      %v3337 = vadd.f32 %v2669, %v3249
      %v3338 = vadd.f32 %v2672, %v3250
      %v3339 = vadd.f32 %v2677, %v3251
      %v3340 = vadd.f32 %v2680, %v3252
      %v3341 = vadd.f32 %v2685, %v3253
      %v3342 = vadd.f32 %v2688, %v3254
      %v3343 = vadd.f32 %v2693, %v3255
      %v3344 = vadd.f32 %v2696, %v3256
      %v3345 = vadd.f32 %v2758, %v3249
      %v3346 = vadd.f32 %v2761, %v3250
      %v3347 = vadd.f32 %v2766, %v3251
      %v3348 = vadd.f32 %v2769, %v3252
      %v3349 = vadd.f32 %v2774, %v3253
      %v3350 = vadd.f32 %v2777, %v3254
      %v3351 = vadd.f32 %v2782, %v3255
      %v3352 = vadd.f32 %v2785, %v3256
      %v3353 = vadd.f32 %v2847, %v3249
      %v3354 = vadd.f32 %v2850, %v3250
      %v3355 = vadd.f32 %v2855, %v3251
      %v3356 = vadd.f32 %v2858, %v3252
      %v3357 = vadd.f32 %v2863, %v3253
      %v3358 = vadd.f32 %v2866, %v3254
      %v3359 = vadd.f32 %v2871, %v3255
      %v3360 = vadd.f32 %v2874, %v3256
      %v3361 = vadd.f32 %v2936, %v3257
      %v3362 = vadd.f32 %v2939, %v3258
      %v3363 = vadd.f32 %v2944, %v3259
      %v3364 = vadd.f32 %v2947, %v3260
      %v3365 = vadd.f32 %v2952, %v3261
      %v3366 = vadd.f32 %v2955, %v3262
      %v3367 = vadd.f32 %v2960, %v3263
      %v3368 = vadd.f32 %v2963, %v3264
      %v3369 = vadd.f32 %v3025, %v3257
      %v3370 = vadd.f32 %v3028, %v3258
      %v3371 = vadd.f32 %v3033, %v3259
      %v3372 = vadd.f32 %v3036, %v3260
      %v3373 = vadd.f32 %v3041, %v3261
      %v3374 = vadd.f32 %v3044, %v3262
      %v3375 = vadd.f32 %v3049, %v3263
      %v3376 = vadd.f32 %v3052, %v3264
      %v3377 = vadd.f32 %v3114, %v3257
      %v3378 = vadd.f32 %v3117, %v3258
      %v3379 = vadd.f32 %v3122, %v3259
      %v3380 = vadd.f32 %v3125, %v3260
      %v3381 = vadd.f32 %v3130, %v3261
      %v3382 = vadd.f32 %v3133, %v3262
      %v3383 = vadd.f32 %v3138, %v3263
      %v3384 = vadd.f32 %v3141, %v3264
      %v3385 = vadd.f32 %v3203, %v3257
      %v3386 = vadd.f32 %v3206, %v3258
      %v3387 = vadd.f32 %v3211, %v3259
      %v3388 = vadd.f32 %v3214, %v3260
      %v3389 = vadd.f32 %v3219, %v3261
      %v3390 = vadd.f32 %v3222, %v3262
      %v3391 = vadd.f32 %v3227, %v3263
      %v3392 = vadd.f32 %v3230, %v3264
      %vm3393 = vcmask 523264
      %v3394 = vsel %vm3393, %v3265, -inf
      %3395 = vmax.xlane.f32.xlu0 %v3394
      %v3396 = vpop.xlane.xlu0 %3395
      %v3397 = vsel %vm3393, %v3266, -inf
      %3398 = vmax.xlane.f32.xlu0 %v3397
      %v3399 = vpop.xlane.xlu0 %3398
      %v3400 = vsel %vm3393, %v3267, -inf
      %3401 = vmax.xlane.f32.xlu0 %v3400
      %v3402 = vpop.xlane.xlu0 %3401
      %v3403 = vsel %vm3393, %v3268, -inf
      %3404 = vmax.xlane.f32.xlu0 %v3403
      %v3405 = vpop.xlane.xlu0 %3404
      %v3406 = vsel %vm3393, %v3269, -inf
      %3407 = vmax.xlane.f32.xlu0 %v3406
      %v3408 = vpop.xlane.xlu0 %3407
      %v3409 = vsel %vm3393, %v3270, -inf
      %3410 = vmax.xlane.f32.xlu0 %v3409
      %v3411 = vpop.xlane.xlu0 %3410
      %v3412 = vsel %vm3393, %v3271, -inf
      %3413 = vmax.xlane.f32.xlu0 %v3412
      %v3414 = vpop.xlane.xlu0 %3413
      %v3415 = vsel %vm3393, %v3272, -inf
      %3416 = vmax.xlane.f32.xlu0 %v3415
      %v3417 = vpop.xlane.xlu0 %3416
      %v3418 = vsel %vm3393, %v3273, -inf
      %3419 = vmax.xlane.f32.xlu0 %v3418
      %v3420 = vpop.xlane.xlu0 %3419
      %v3421 = vsel %vm3393, %v3274, -inf
      %3422 = vmax.xlane.f32.xlu0 %v3421
      %v3423 = vpop.xlane.xlu0 %3422
      %v3424 = vsel %vm3393, %v3275, -inf
      %3425 = vmax.xlane.f32.xlu0 %v3424
      %v3426 = vpop.xlane.xlu0 %3425
      %v3427 = vsel %vm3393, %v3276, -inf
      %3428 = vmax.xlane.f32.xlu0 %v3427
      %v3429 = vpop.xlane.xlu0 %3428
      %v3430 = vsel %vm3393, %v3277, -inf
      %3431 = vmax.xlane.f32.xlu0 %v3430
      %v3432 = vpop.xlane.xlu0 %3431
      %v3433 = vsel %vm3393, %v3278, -inf
      %3434 = vmax.xlane.f32.xlu0 %v3433
      %v3435 = vpop.xlane.xlu0 %3434
      %v3436 = vsel %vm3393, %v3279, -inf
      %3437 = vmax.xlane.f32.xlu0 %v3436
      %v3438 = vpop.xlane.xlu0 %3437
      %v3439 = vsel %vm3393, %v3280, -inf
      %3440 = vmax.xlane.f32.xlu0 %v3439
      %v3441 = vpop.xlane.xlu0 %3440
      %v3442 = vsel %vm3393, %v3281, -inf
      %3443 = vmax.xlane.f32.xlu0 %v3442
      %v3444 = vpop.xlane.xlu0 %3443
      %v3445 = vsel %vm3393, %v3282, -inf
      %3446 = vmax.xlane.f32.xlu0 %v3445
      %v3447 = vpop.xlane.xlu0 %3446
      %v3448 = vsel %vm3393, %v3283, -inf
      %3449 = vmax.xlane.f32.xlu0 %v3448
      %v3450 = vpop.xlane.xlu0 %3449
      %v3451 = vsel %vm3393, %v3284, -inf
      %3452 = vmax.xlane.f32.xlu0 %v3451
      %v3453 = vpop.xlane.xlu0 %3452
      %v3454 = vsel %vm3393, %v3285, -inf
      %3455 = vmax.xlane.f32.xlu0 %v3454
      %v3456 = vpop.xlane.xlu0 %3455
      %v3457 = vsel %vm3393, %v3286, -inf
      %3458 = vmax.xlane.f32.xlu0 %v3457
      %v3459 = vpop.xlane.xlu0 %3458
      %v3460 = vsel %vm3393, %v3287, -inf
      %3461 = vmax.xlane.f32.xlu0 %v3460
      %v3462 = vpop.xlane.xlu0 %3461
      %v3463 = vsel %vm3393, %v3288, -inf
      %3464 = vmax.xlane.f32.xlu0 %v3463
      %v3465 = vpop.xlane.xlu0 %3464
      %v3466 = vsel %vm3393, %v3289, -inf
      %3467 = vmax.xlane.f32.xlu0 %v3466
      %v3468 = vpop.xlane.xlu0 %3467
      %v3469 = vsel %vm3393, %v3290, -inf
      %3470 = vmax.xlane.f32.xlu0 %v3469
      %v3471 = vpop.xlane.xlu0 %3470
      %v3472 = vsel %vm3393, %v3291, -inf
      %3473 = vmax.xlane.f32.xlu0 %v3472
      %v3474 = vpop.xlane.xlu0 %3473
      %v3475 = vsel %vm3393, %v3292, -inf
      %3476 = vmax.xlane.f32.xlu0 %v3475
      %v3477 = vpop.xlane.xlu0 %3476
      %v3478 = vsel %vm3393, %v3293, -inf
      %3479 = vmax.xlane.f32.xlu0 %v3478
      %v3480 = vpop.xlane.xlu0 %3479
      %v3481 = vsel %vm3393, %v3294, -inf
      %3482 = vmax.xlane.f32.xlu0 %v3481
      %v3483 = vpop.xlane.xlu0 %3482
      %v3484 = vsel %vm3393, %v3295, -inf
      %3485 = vmax.xlane.f32.xlu0 %v3484
      %v3486 = vpop.xlane.xlu0 %3485
      %v3487 = vsel %vm3393, %v3296, -inf
      %3488 = vmax.xlane.f32.xlu0 %v3487
      %v3489 = vpop.xlane.xlu0 %3488
      %v3490 = vsel %vm3393, %v3297, -inf
      %3491 = vmax.xlane.f32.xlu0 %v3490
      %v3492 = vpop.xlane.xlu0 %3491
      %v3493 = vsel %vm3393, %v3298, -inf
      %3494 = vmax.xlane.f32.xlu0 %v3493
      %v3495 = vpop.xlane.xlu0 %3494
      %v3496 = vsel %vm3393, %v3299, -inf
      %3497 = vmax.xlane.f32.xlu0 %v3496
      %v3498 = vpop.xlane.xlu0 %3497
      %v3499 = vsel %vm3393, %v3300, -inf
      %3500 = vmax.xlane.f32.xlu0 %v3499
      %v3501 = vpop.xlane.xlu0 %3500
      %v3502 = vsel %vm3393, %v3301, -inf
      %3503 = vmax.xlane.f32.xlu0 %v3502
      %v3504 = vpop.xlane.xlu0 %3503
      %v3505 = vsel %vm3393, %v3302, -inf
      %3506 = vmax.xlane.f32.xlu0 %v3505
      %v3507 = vpop.xlane.xlu0 %3506
      %v3508 = vsel %vm3393, %v3303, -inf
      %3509 = vmax.xlane.f32.xlu0 %v3508
      %v3510 = vpop.xlane.xlu0 %3509
      %v3511 = vsel %vm3393, %v3304, -inf
      %3512 = vmax.xlane.f32.xlu0 %v3511
      %v3513 = vpop.xlane.xlu0 %3512
      %v3514 = vsel %vm3393, %v3305, -inf
      %3515 = vmax.xlane.f32.xlu0 %v3514
      %v3516 = vpop.xlane.xlu0 %3515
      %v3517 = vsel %vm3393, %v3306, -inf
      %3518 = vmax.xlane.f32.xlu0 %v3517
      %v3519 = vpop.xlane.xlu0 %3518
      %v3520 = vsel %vm3393, %v3307, -inf
      %3521 = vmax.xlane.f32.xlu0 %v3520
      %v3522 = vpop.xlane.xlu0 %3521
      %v3523 = vsel %vm3393, %v3308, -inf
      %3524 = vmax.xlane.f32.xlu0 %v3523
      %v3525 = vpop.xlane.xlu0 %3524
      %v3526 = vsel %vm3393, %v3309, -inf
      %3527 = vmax.xlane.f32.xlu0 %v3526
      %v3528 = vpop.xlane.xlu0 %3527
      %v3529 = vsel %vm3393, %v3310, -inf
      %3530 = vmax.xlane.f32.xlu0 %v3529
      %v3531 = vpop.xlane.xlu0 %3530
      %v3532 = vsel %vm3393, %v3311, -inf
      %3533 = vmax.xlane.f32.xlu0 %v3532
      %v3534 = vpop.xlane.xlu0 %3533
      %v3535 = vsel %vm3393, %v3312, -inf
      %3536 = vmax.xlane.f32.xlu0 %v3535
      %v3537 = vpop.xlane.xlu0 %3536
      %v3538 = vsel %vm3393, %v3313, -inf
      %3539 = vmax.xlane.f32.xlu0 %v3538
      %v3540 = vpop.xlane.xlu0 %3539
      %v3541 = vsel %vm3393, %v3314, -inf
      %3542 = vmax.xlane.f32.xlu0 %v3541
      %v3543 = vpop.xlane.xlu0 %3542
      %v3544 = vsel %vm3393, %v3315, -inf
      %3545 = vmax.xlane.f32.xlu0 %v3544
      %v3546 = vpop.xlane.xlu0 %3545
      %v3547 = vsel %vm3393, %v3316, -inf
      %3548 = vmax.xlane.f32.xlu0 %v3547
      %v3549 = vpop.xlane.xlu0 %3548
      %v3550 = vsel %vm3393, %v3317, -inf
      %3551 = vmax.xlane.f32.xlu0 %v3550
      %v3552 = vpop.xlane.xlu0 %3551
      %v3553 = vsel %vm3393, %v3318, -inf
      %3554 = vmax.xlane.f32.xlu0 %v3553
      %v3555 = vpop.xlane.xlu0 %3554
      %v3556 = vsel %vm3393, %v3319, -inf
      %3557 = vmax.xlane.f32.xlu0 %v3556
      %v3558 = vpop.xlane.xlu0 %3557
      %v3559 = vsel %vm3393, %v3320, -inf
      %3560 = vmax.xlane.f32.xlu0 %v3559
      %v3561 = vpop.xlane.xlu0 %3560
      %v3562 = vsel %vm3393, %v3321, -inf
      %3563 = vmax.xlane.f32.xlu0 %v3562
      %v3564 = vpop.xlane.xlu0 %3563
      %v3565 = vsel %vm3393, %v3322, -inf
      %3566 = vmax.xlane.f32.xlu0 %v3565
      %v3567 = vpop.xlane.xlu0 %3566
      %v3568 = vsel %vm3393, %v3323, -inf
      %3569 = vmax.xlane.f32.xlu0 %v3568
      %v3570 = vpop.xlane.xlu0 %3569
      %v3571 = vsel %vm3393, %v3324, -inf
      %3572 = vmax.xlane.f32.xlu0 %v3571
      %v3573 = vpop.xlane.xlu0 %3572
      %v3574 = vsel %vm3393, %v3325, -inf
      %3575 = vmax.xlane.f32.xlu0 %v3574
      %v3576 = vpop.xlane.xlu0 %3575
      %v3577 = vsel %vm3393, %v3326, -inf
      %3578 = vmax.xlane.f32.xlu0 %v3577
      %v3579 = vpop.xlane.xlu0 %3578
      %v3580 = vsel %vm3393, %v3327, -inf
      %3581 = vmax.xlane.f32.xlu0 %v3580
      %v3582 = vpop.xlane.xlu0 %3581
      %v3583 = vsel %vm3393, %v3328, -inf
      %3584 = vmax.xlane.f32.xlu0 %v3583
      %v3585 = vpop.xlane.xlu0 %3584
      %v3586 = vsel %vm3393, %v3329, -inf
      %3587 = vmax.xlane.f32.xlu0 %v3586
      %v3588 = vpop.xlane.xlu0 %3587
      %v3589 = vsel %vm3393, %v3330, -inf
      %3590 = vmax.xlane.f32.xlu0 %v3589
      %v3591 = vpop.xlane.xlu0 %3590
      %v3592 = vsel %vm3393, %v3331, -inf
      %3593 = vmax.xlane.f32.xlu0 %v3592
      %v3594 = vpop.xlane.xlu0 %3593
      %v3595 = vsel %vm3393, %v3332, -inf
      %3596 = vmax.xlane.f32.xlu0 %v3595
      %v3597 = vpop.xlane.xlu0 %3596
      %v3598 = vsel %vm3393, %v3333, -inf
      %3599 = vmax.xlane.f32.xlu0 %v3598
      %v3600 = vpop.xlane.xlu0 %3599
      %v3601 = vsel %vm3393, %v3334, -inf
      %3602 = vmax.xlane.f32.xlu0 %v3601
      %v3603 = vpop.xlane.xlu0 %3602
      %v3604 = vsel %vm3393, %v3335, -inf
      %3605 = vmax.xlane.f32.xlu0 %v3604
      %v3606 = vpop.xlane.xlu0 %3605
      %v3607 = vsel %vm3393, %v3336, -inf
      %3608 = vmax.xlane.f32.xlu0 %v3607
      %v3609 = vpop.xlane.xlu0 %3608
      %v3610 = vsel %vm3393, %v3337, -inf
      %3611 = vmax.xlane.f32.xlu0 %v3610
      %v3612 = vpop.xlane.xlu0 %3611
      %v3613 = vsel %vm3393, %v3338, -inf
      %3614 = vmax.xlane.f32.xlu0 %v3613
      %v3615 = vpop.xlane.xlu0 %3614
      %v3616 = vsel %vm3393, %v3339, -inf
      %3617 = vmax.xlane.f32.xlu0 %v3616
      %v3618 = vpop.xlane.xlu0 %3617
      %v3619 = vsel %vm3393, %v3340, -inf
      %3620 = vmax.xlane.f32.xlu0 %v3619
      %v3621 = vpop.xlane.xlu0 %3620
      %v3622 = vsel %vm3393, %v3341, -inf
      %3623 = vmax.xlane.f32.xlu0 %v3622
      %v3624 = vpop.xlane.xlu0 %3623
      %v3625 = vsel %vm3393, %v3342, -inf
      %3626 = vmax.xlane.f32.xlu0 %v3625
      %v3627 = vpop.xlane.xlu0 %3626
      %v3628 = vsel %vm3393, %v3343, -inf
      %3629 = vmax.xlane.f32.xlu0 %v3628
      %v3630 = vpop.xlane.xlu0 %3629
      %v3631 = vsel %vm3393, %v3344, -inf
      %3632 = vmax.xlane.f32.xlu0 %v3631
      %v3633 = vpop.xlane.xlu0 %3632
      %v3634 = vsel %vm3393, %v3345, -inf
      %3635 = vmax.xlane.f32.xlu0 %v3634
      %v3636 = vpop.xlane.xlu0 %3635
      %v3637 = vsel %vm3393, %v3346, -inf
      %3638 = vmax.xlane.f32.xlu0 %v3637
      %v3639 = vpop.xlane.xlu0 %3638
      %v3640 = vsel %vm3393, %v3347, -inf
      %3641 = vmax.xlane.f32.xlu0 %v3640
      %v3642 = vpop.xlane.xlu0 %3641
      %v3643 = vsel %vm3393, %v3348, -inf
      %3644 = vmax.xlane.f32.xlu0 %v3643
      %v3645 = vpop.xlane.xlu0 %3644
      %v3646 = vsel %vm3393, %v3349, -inf
      %3647 = vmax.xlane.f32.xlu0 %v3646
      %v3648 = vpop.xlane.xlu0 %3647
      %v3649 = vsel %vm3393, %v3350, -inf
      %3650 = vmax.xlane.f32.xlu0 %v3649
      %v3651 = vpop.xlane.xlu0 %3650
      %v3652 = vsel %vm3393, %v3351, -inf
      %3653 = vmax.xlane.f32.xlu0 %v3652
      %v3654 = vpop.xlane.xlu0 %3653
      %v3655 = vsel %vm3393, %v3352, -inf
      %3656 = vmax.xlane.f32.xlu0 %v3655
      %v3657 = vpop.xlane.xlu0 %3656
      %v3658 = vsel %vm3393, %v3353, -inf
      %3659 = vmax.xlane.f32.xlu0 %v3658
      %v3660 = vpop.xlane.xlu0 %3659
      %v3661 = vsel %vm3393, %v3354, -inf
      %3662 = vmax.xlane.f32.xlu0 %v3661
      %v3663 = vpop.xlane.xlu0 %3662
      %v3664 = vsel %vm3393, %v3355, -inf
      %3665 = vmax.xlane.f32.xlu0 %v3664
      %v3666 = vpop.xlane.xlu0 %3665
      %v3667 = vsel %vm3393, %v3356, -inf
      %3668 = vmax.xlane.f32.xlu0 %v3667
      %v3669 = vpop.xlane.xlu0 %3668
      %v3670 = vsel %vm3393, %v3357, -inf
      %3671 = vmax.xlane.f32.xlu0 %v3670
      %v3672 = vpop.xlane.xlu0 %3671
      %v3673 = vsel %vm3393, %v3358, -inf
      %3674 = vmax.xlane.f32.xlu0 %v3673
      %v3675 = vpop.xlane.xlu0 %3674
      %v3676 = vsel %vm3393, %v3359, -inf
      %3677 = vmax.xlane.f32.xlu0 %v3676
      %v3678 = vpop.xlane.xlu0 %3677
      %v3679 = vsel %vm3393, %v3360, -inf
      %3680 = vmax.xlane.f32.xlu0 %v3679
      %v3681 = vpop.xlane.xlu0 %3680
      %v3682 = vsel %vm3393, %v3361, -inf
      %3683 = vmax.xlane.f32.xlu0 %v3682
      %v3684 = vpop.xlane.xlu0 %3683
      %v3685 = vsel %vm3393, %v3362, -inf
      %3686 = vmax.xlane.f32.xlu0 %v3685
      %v3687 = vpop.xlane.xlu0 %3686
      %v3688 = vsel %vm3393, %v3363, -inf
      %3689 = vmax.xlane.f32.xlu0 %v3688
      %v3690 = vpop.xlane.xlu0 %3689
      %v3691 = vsel %vm3393, %v3364, -inf
      %3692 = vmax.xlane.f32.xlu0 %v3691
      %v3693 = vpop.xlane.xlu0 %3692
      %v3694 = vsel %vm3393, %v3365, -inf
      %3695 = vmax.xlane.f32.xlu0 %v3694
      %v3696 = vpop.xlane.xlu0 %3695
      %v3697 = vsel %vm3393, %v3366, -inf
      %3698 = vmax.xlane.f32.xlu0 %v3697
      %v3699 = vpop.xlane.xlu0 %3698
      %v3700 = vsel %vm3393, %v3367, -inf
      %3701 = vmax.xlane.f32.xlu0 %v3700
      %v3702 = vpop.xlane.xlu0 %3701
      %v3703 = vsel %vm3393, %v3368, -inf
      %3704 = vmax.xlane.f32.xlu0 %v3703
      %v3705 = vpop.xlane.xlu0 %3704
      %v3706 = vsel %vm3393, %v3369, -inf
      %3707 = vmax.xlane.f32.xlu0 %v3706
      %v3708 = vpop.xlane.xlu0 %3707
      %v3709 = vsel %vm3393, %v3370, -inf
      %3710 = vmax.xlane.f32.xlu0 %v3709
      %v3711 = vpop.xlane.xlu0 %3710
      %v3712 = vsel %vm3393, %v3371, -inf
      %3713 = vmax.xlane.f32.xlu0 %v3712
      %v3714 = vpop.xlane.xlu0 %3713
      %v3715 = vsel %vm3393, %v3372, -inf
      %3716 = vmax.xlane.f32.xlu0 %v3715
      %v3717 = vpop.xlane.xlu0 %3716
      %v3718 = vsel %vm3393, %v3373, -inf
      %3719 = vmax.xlane.f32.xlu0 %v3718
      %v3720 = vpop.xlane.xlu0 %3719
      %v3721 = vsel %vm3393, %v3374, -inf
      %3722 = vmax.xlane.f32.xlu0 %v3721
      %v3723 = vpop.xlane.xlu0 %3722
      %v3724 = vsel %vm3393, %v3375, -inf
      %3725 = vmax.xlane.f32.xlu0 %v3724
      %v3726 = vpop.xlane.xlu0 %3725
      %v3727 = vsel %vm3393, %v3376, -inf
      %3728 = vmax.xlane.f32.xlu0 %v3727
      %v3729 = vpop.xlane.xlu0 %3728
      %v3730 = vsel %vm3393, %v3377, -inf
      %3731 = vmax.xlane.f32.xlu0 %v3730
      %v3732 = vpop.xlane.xlu0 %3731
      %v3733 = vsel %vm3393, %v3378, -inf
      %3734 = vmax.xlane.f32.xlu0 %v3733
      %v3735 = vpop.xlane.xlu0 %3734
      %v3736 = vsel %vm3393, %v3379, -inf
      %3737 = vmax.xlane.f32.xlu0 %v3736
      %v3738 = vpop.xlane.xlu0 %3737
      %v3739 = vsel %vm3393, %v3380, -inf
      %3740 = vmax.xlane.f32.xlu0 %v3739
      %v3741 = vpop.xlane.xlu0 %3740
      %v3742 = vsel %vm3393, %v3381, -inf
      %3743 = vmax.xlane.f32.xlu0 %v3742
      %v3744 = vpop.xlane.xlu0 %3743
      %v3745 = vsel %vm3393, %v3382, -inf
      %3746 = vmax.xlane.f32.xlu0 %v3745
      %v3747 = vpop.xlane.xlu0 %3746
      %v3748 = vsel %vm3393, %v3383, -inf
      %3749 = vmax.xlane.f32.xlu0 %v3748
      %v3750 = vpop.xlane.xlu0 %3749
      %v3751 = vsel %vm3393, %v3384, -inf
      %3752 = vmax.xlane.f32.xlu0 %v3751
      %v3753 = vpop.xlane.xlu0 %3752
      %v3754 = vsel %vm3393, %v3385, -inf
      %3755 = vmax.xlane.f32.xlu0 %v3754
      %v3756 = vpop.xlane.xlu0 %3755
      %v3757 = vsel %vm3393, %v3386, -inf
      %3758 = vmax.xlane.f32.xlu0 %v3757
      %v3759 = vpop.xlane.xlu0 %3758
      %v3760 = vsel %vm3393, %v3387, -inf
      %3761 = vmax.xlane.f32.xlu0 %v3760
      %v3762 = vpop.xlane.xlu0 %3761
      %v3763 = vsel %vm3393, %v3388, -inf
      %3764 = vmax.xlane.f32.xlu0 %v3763
      %v3765 = vpop.xlane.xlu0 %3764
      %v3766 = vsel %vm3393, %v3389, -inf
      %3767 = vmax.xlane.f32.xlu0 %v3766
      %v3768 = vpop.xlane.xlu0 %3767
      %v3769 = vsel %vm3393, %v3390, -inf
      %3770 = vmax.xlane.f32.xlu0 %v3769
      %v3771 = vpop.xlane.xlu0 %3770
      %v3772 = vsel %vm3393, %v3391, -inf
      %3773 = vmax.xlane.f32.xlu0 %v3772
      %v3774 = vpop.xlane.xlu0 %3773
      %v3775 = vsel %vm3393, %v3392, -inf
      %3776 = vmax.xlane.f32.xlu0 %v3775
      %v3777 = vpop.xlane.xlu0 %3776
      %v3778 = vsub.f32 %v3265, %v3396
      %v3779 = vsub.f32 %v3266, %v3399
      %v3780 = vsub.f32 %v3267, %v3402
      %v3781 = vsub.f32 %v3268, %v3405
      %v3782 = vsub.f32 %v3269, %v3408
      %v3783 = vsub.f32 %v3270, %v3411
      %v3784 = vsub.f32 %v3271, %v3414
      %v3785 = vsub.f32 %v3272, %v3417
      %v3786 = vsub.f32 %v3273, %v3420
      %v3787 = vsub.f32 %v3274, %v3423
      %v3788 = vsub.f32 %v3275, %v3426
      %v3789 = vsub.f32 %v3276, %v3429
      %v3790 = vsub.f32 %v3277, %v3432
      %v3791 = vsub.f32 %v3278, %v3435
      %v3792 = vsub.f32 %v3279, %v3438
      %v3793 = vsub.f32 %v3280, %v3441
      %v3794 = vsub.f32 %v3281, %v3444
      %v3795 = vsub.f32 %v3282, %v3447
      %v3796 = vsub.f32 %v3283, %v3450
      %v3797 = vsub.f32 %v3284, %v3453
      %v3798 = vsub.f32 %v3285, %v3456
      %v3799 = vsub.f32 %v3286, %v3459
      %v3800 = vsub.f32 %v3287, %v3462
      %v3801 = vsub.f32 %v3288, %v3465
      %v3802 = vsub.f32 %v3289, %v3468
      %v3803 = vsub.f32 %v3290, %v3471
      %v3804 = vsub.f32 %v3291, %v3474
      %v3805 = vsub.f32 %v3292, %v3477
      %v3806 = vsub.f32 %v3293, %v3480
      %v3807 = vsub.f32 %v3294, %v3483
      %v3808 = vsub.f32 %v3295, %v3486
      %v3809 = vsub.f32 %v3296, %v3489
      %v3810 = vsub.f32 %v3297, %v3492
      %v3811 = vsub.f32 %v3298, %v3495
      %v3812 = vsub.f32 %v3299, %v3498
      %v3813 = vsub.f32 %v3300, %v3501
      %v3814 = vsub.f32 %v3301, %v3504
      %v3815 = vsub.f32 %v3302, %v3507
      %v3816 = vsub.f32 %v3303, %v3510
      %v3817 = vsub.f32 %v3304, %v3513
      %v3818 = vsub.f32 %v3305, %v3516
      %v3819 = vsub.f32 %v3306, %v3519
      %v3820 = vsub.f32 %v3307, %v3522
      %v3821 = vsub.f32 %v3308, %v3525
      %v3822 = vsub.f32 %v3309, %v3528
      %v3823 = vsub.f32 %v3310, %v3531
      %v3824 = vsub.f32 %v3311, %v3534
      %v3825 = vsub.f32 %v3312, %v3537
      %v3826 = vsub.f32 %v3313, %v3540
      %v3827 = vsub.f32 %v3314, %v3543
      %v3828 = vsub.f32 %v3315, %v3546
      %v3829 = vsub.f32 %v3316, %v3549
      %v3830 = vsub.f32 %v3317, %v3552
      %v3831 = vsub.f32 %v3318, %v3555
      %v3832 = vsub.f32 %v3319, %v3558
      %v3833 = vsub.f32 %v3320, %v3561
      %v3834 = vsub.f32 %v3321, %v3564
      %v3835 = vsub.f32 %v3322, %v3567
      %v3836 = vsub.f32 %v3323, %v3570
      %v3837 = vsub.f32 %v3324, %v3573
      %v3838 = vsub.f32 %v3325, %v3576
      %v3839 = vsub.f32 %v3326, %v3579
      %v3840 = vsub.f32 %v3327, %v3582
      %v3841 = vsub.f32 %v3328, %v3585
      %v3842 = vsub.f32 %v3329, %v3588
      %v3843 = vsub.f32 %v3330, %v3591
      %v3844 = vsub.f32 %v3331, %v3594
      %v3845 = vsub.f32 %v3332, %v3597
      %v3846 = vsub.f32 %v3333, %v3600
      %v3847 = vsub.f32 %v3334, %v3603
      %v3848 = vsub.f32 %v3335, %v3606
      %v3849 = vsub.f32 %v3336, %v3609
      %v3850 = vsub.f32 %v3337, %v3612
      %v3851 = vsub.f32 %v3338, %v3615
      %v3852 = vsub.f32 %v3339, %v3618
      %v3853 = vsub.f32 %v3340, %v3621
      %v3854 = vsub.f32 %v3341, %v3624
      %v3855 = vsub.f32 %v3342, %v3627
      %v3856 = vsub.f32 %v3343, %v3630
      %v3857 = vsub.f32 %v3344, %v3633
      %v3858 = vsub.f32 %v3345, %v3636
      %v3859 = vsub.f32 %v3346, %v3639
      %v3860 = vsub.f32 %v3347, %v3642
      %v3861 = vsub.f32 %v3348, %v3645
      %v3862 = vsub.f32 %v3349, %v3648
      %v3863 = vsub.f32 %v3350, %v3651
      %v3864 = vsub.f32 %v3351, %v3654
      %v3865 = vsub.f32 %v3352, %v3657
      %v3866 = vsub.f32 %v3353, %v3660
      %v3867 = vsub.f32 %v3354, %v3663
      %v3868 = vsub.f32 %v3355, %v3666
      %v3869 = vsub.f32 %v3356, %v3669
      %v3870 = vsub.f32 %v3357, %v3672
      %v3871 = vsub.f32 %v3358, %v3675
      %v3872 = vsub.f32 %v3359, %v3678
      %v3873 = vsub.f32 %v3360, %v3681
      %v3874 = vsub.f32 %v3361, %v3684
      %v3875 = vsub.f32 %v3362, %v3687
      %v3876 = vsub.f32 %v3363, %v3690
      %v3877 = vsub.f32 %v3364, %v3693
      %v3878 = vsub.f32 %v3365, %v3696
      %v3879 = vsub.f32 %v3366, %v3699
      %v3880 = vsub.f32 %v3367, %v3702
      %v3881 = vsub.f32 %v3368, %v3705
      %v3882 = vsub.f32 %v3369, %v3708
      %v3883 = vsub.f32 %v3370, %v3711
      %v3884 = vsub.f32 %v3371, %v3714
      %v3885 = vsub.f32 %v3372, %v3717
      %v3886 = vsub.f32 %v3373, %v3720
      %v3887 = vsub.f32 %v3374, %v3723
      %v3888 = vsub.f32 %v3375, %v3726
      %v3889 = vsub.f32 %v3376, %v3729
      %v3890 = vsub.f32 %v3377, %v3732
      %v3891 = vsub.f32 %v3378, %v3735
      %v3892 = vsub.f32 %v3379, %v3738
      %v3893 = vsub.f32 %v3380, %v3741
      %v3894 = vsub.f32 %v3381, %v3744
      %v3895 = vsub.f32 %v3382, %v3747
      %v3896 = vsub.f32 %v3383, %v3750
      %v3897 = vsub.f32 %v3384, %v3753
      %v3898 = vsub.f32 %v3385, %v3756
      %v3899 = vsub.f32 %v3386, %v3759
      %v3900 = vsub.f32 %v3387, %v3762
      %v3901 = vsub.f32 %v3388, %v3765
      %v3902 = vsub.f32 %v3389, %v3768
      %v3903 = vsub.f32 %v3390, %v3771
      %v3904 = vsub.f32 %v3391, %v3774
      %v3905 = vsub.f32 %v3392, %v3777
      %v3906 = vmul.f32 %v3778, 1.442695
      %v3907 = vpow.pop %v3906
      %v3908 = vmul.f32 %v3779, 1.442695
      %v3909 = vpow.pop %v3908
      %v3910 = vmul.f32 %v3780, 1.442695
      %v3911 = vpow.pop %v3910
      %v3912 = vmul.f32 %v3781, 1.442695
      %v3913 = vpow.pop %v3912
      %v3914 = vmul.f32 %v3782, 1.442695
      %v3915 = vpow.pop %v3914
      %v3916 = vmul.f32 %v3783, 1.442695
      %v3917 = vpow.pop %v3916
      %v3918 = vmul.f32 %v3784, 1.442695
      %v3919 = vpow.pop %v3918
      %v3920 = vmul.f32 %v3785, 1.442695
      %v3921 = vpow.pop %v3920
      %v3922 = vmul.f32 %v3786, 1.442695
      %v3923 = vpow.pop %v3922
      %v3924 = vmul.f32 %v3787, 1.442695
      %v3925 = vpow.pop %v3924
      %v3926 = vmul.f32 %v3788, 1.442695
      %v3927 = vpow.pop %v3926
      %v3928 = vmul.f32 %v3789, 1.442695
      %v3929 = vpow.pop %v3928
      %v3930 = vmul.f32 %v3790, 1.442695
      %v3931 = vpow.pop %v3930
      %v3932 = vmul.f32 %v3791, 1.442695
      %v3933 = vpow.pop %v3932
      %v3934 = vmul.f32 %v3792, 1.442695
      %v3935 = vpow.pop %v3934
      %v3936 = vmul.f32 %v3793, 1.442695
      %v3937 = vpow.pop %v3936
      %v3938 = vmul.f32 %v3794, 1.442695
      %v3939 = vpow.pop %v3938
      %v3940 = vmul.f32 %v3795, 1.442695
      %v3941 = vpow.pop %v3940
      %v3942 = vmul.f32 %v3796, 1.442695
      %v3943 = vpow.pop %v3942
      %v3944 = vmul.f32 %v3797, 1.442695
      %v3945 = vpow.pop %v3944
      %v3946 = vmul.f32 %v3798, 1.442695
      %v3947 = vpow.pop %v3946
      %v3948 = vmul.f32 %v3799, 1.442695
      %v3949 = vpow.pop %v3948
      %v3950 = vmul.f32 %v3800, 1.442695
      %v3951 = vpow.pop %v3950
      %v3952 = vmul.f32 %v3801, 1.442695
      %v3953 = vpow.pop %v3952
      %v3954 = vmul.f32 %v3802, 1.442695
      %v3955 = vpow.pop %v3954
      %v3956 = vmul.f32 %v3803, 1.442695
      %v3957 = vpow.pop %v3956
      %v3958 = vmul.f32 %v3804, 1.442695
      %v3959 = vpow.pop %v3958
      %v3960 = vmul.f32 %v3805, 1.442695
      %v3961 = vpow.pop %v3960
      %v3962 = vmul.f32 %v3806, 1.442695
      %v3963 = vpow.pop %v3962
      %v3964 = vmul.f32 %v3807, 1.442695
      %v3965 = vpow.pop %v3964
      %v3966 = vmul.f32 %v3808, 1.442695
      %v3967 = vpow.pop %v3966
      %v3968 = vmul.f32 %v3809, 1.442695
      %v3969 = vpow.pop %v3968
      %v3970 = vmul.f32 %v3810, 1.442695
      %v3971 = vpow.pop %v3970
      %v3972 = vmul.f32 %v3811, 1.442695
      %v3973 = vpow.pop %v3972
      %v3974 = vmul.f32 %v3812, 1.442695
      %v3975 = vpow.pop %v3974
      %v3976 = vmul.f32 %v3813, 1.442695
      %v3977 = vpow.pop %v3976
      %v3978 = vmul.f32 %v3814, 1.442695
      %v3979 = vpow.pop %v3978
      %v3980 = vmul.f32 %v3815, 1.442695
      %v3981 = vpow.pop %v3980
      %v3982 = vmul.f32 %v3816, 1.442695
      %v3983 = vpow.pop %v3982
      %v3984 = vmul.f32 %v3817, 1.442695
      %v3985 = vpow.pop %v3984
      %v3986 = vmul.f32 %v3818, 1.442695
      %v3987 = vpow.pop %v3986
      %v3988 = vmul.f32 %v3819, 1.442695
      %v3989 = vpow.pop %v3988
      %v3990 = vmul.f32 %v3820, 1.442695
      %v3991 = vpow.pop %v3990
      %v3992 = vmul.f32 %v3821, 1.442695
      %v3993 = vpow.pop %v3992
      %v3994 = vmul.f32 %v3822, 1.442695
      %v3995 = vpow.pop %v3994
      %v3996 = vmul.f32 %v3823, 1.442695
      %v3997 = vpow.pop %v3996
      %v3998 = vmul.f32 %v3824, 1.442695
      %v3999 = vpow.pop %v3998
      %v4000 = vmul.f32 %v3825, 1.442695
      %v4001 = vpow.pop %v4000
      %v4002 = vmul.f32 %v3826, 1.442695
      %v4003 = vpow.pop %v4002
      %v4004 = vmul.f32 %v3827, 1.442695
      %v4005 = vpow.pop %v4004
      %v4006 = vmul.f32 %v3828, 1.442695
      %v4007 = vpow.pop %v4006
      %v4008 = vmul.f32 %v3829, 1.442695
      %v4009 = vpow.pop %v4008
      %v4010 = vmul.f32 %v3830, 1.442695
      %v4011 = vpow.pop %v4010
      %v4012 = vmul.f32 %v3831, 1.442695
      %v4013 = vpow.pop %v4012
      %v4014 = vmul.f32 %v3832, 1.442695
      %v4015 = vpow.pop %v4014
      %v4016 = vmul.f32 %v3833, 1.442695
      %v4017 = vpow.pop %v4016
      %v4018 = vmul.f32 %v3834, 1.442695
      %v4019 = vpow.pop %v4018
      %v4020 = vmul.f32 %v3835, 1.442695
      %v4021 = vpow.pop %v4020
      %v4022 = vmul.f32 %v3836, 1.442695
      %v4023 = vpow.pop %v4022
      %v4024 = vmul.f32 %v3837, 1.442695
      %v4025 = vpow.pop %v4024
      %v4026 = vmul.f32 %v3838, 1.442695
      %v4027 = vpow.pop %v4026
      %v4028 = vmul.f32 %v3839, 1.442695
      %v4029 = vpow.pop %v4028
      %v4030 = vmul.f32 %v3840, 1.442695
      %v4031 = vpow.pop %v4030
      %v4032 = vmul.f32 %v3841, 1.442695
      %v4033 = vpow.pop %v4032
      %v4034 = vmul.f32 %v3842, 1.442695
      %v4035 = vpow.pop %v4034
      %v4036 = vmul.f32 %v3843, 1.442695
      %v4037 = vpow.pop %v4036
      %v4038 = vmul.f32 %v3844, 1.442695
      %v4039 = vpow.pop %v4038
      %v4040 = vmul.f32 %v3845, 1.442695
      %v4041 = vpow.pop %v4040
      %v4042 = vmul.f32 %v3846, 1.442695
      %v4043 = vpow.pop %v4042
      %v4044 = vmul.f32 %v3847, 1.442695
      %v4045 = vpow.pop %v4044
      %v4046 = vmul.f32 %v3848, 1.442695
      %v4047 = vpow.pop %v4046
      %v4048 = vmul.f32 %v3849, 1.442695
      %v4049 = vpow.pop %v4048
      %v4050 = vmul.f32 %v3850, 1.442695
      %v4051 = vpow.pop %v4050
      %v4052 = vmul.f32 %v3851, 1.442695
      %v4053 = vpow.pop %v4052
      %v4054 = vmul.f32 %v3852, 1.442695
      %v4055 = vpow.pop %v4054
      %v4056 = vmul.f32 %v3853, 1.442695
      %v4057 = vpow.pop %v4056
      %v4058 = vmul.f32 %v3854, 1.442695
      %v4059 = vpow.pop %v4058
      %v4060 = vmul.f32 %v3855, 1.442695
      %v4061 = vpow.pop %v4060
      %v4062 = vmul.f32 %v3856, 1.442695
      %v4063 = vpow.pop %v4062
      %v4064 = vmul.f32 %v3857, 1.442695
      %v4065 = vpow.pop %v4064
      %v4066 = vmul.f32 %v3858, 1.442695
      %v4067 = vpow.pop %v4066
      %v4068 = vmul.f32 %v3859, 1.442695
      %v4069 = vpow.pop %v4068
      %v4070 = vmul.f32 %v3860, 1.442695
      %v4071 = vpow.pop %v4070
      %v4072 = vmul.f32 %v3861, 1.442695
      %v4073 = vpow.pop %v4072
      %v4074 = vmul.f32 %v3862, 1.442695
      %v4075 = vpow.pop %v4074
      %v4076 = vmul.f32 %v3863, 1.442695
      %v4077 = vpow.pop %v4076
      %v4078 = vmul.f32 %v3864, 1.442695
      %v4079 = vpow.pop %v4078
      %v4080 = vmul.f32 %v3865, 1.442695
      %v4081 = vpow.pop %v4080
      %v4082 = vmul.f32 %v3866, 1.442695
      %v4083 = vpow.pop %v4082
      %v4084 = vmul.f32 %v3867, 1.442695
      %v4085 = vpow.pop %v4084
      %v4086 = vmul.f32 %v3868, 1.442695
      %v4087 = vpow.pop %v4086
      %v4088 = vmul.f32 %v3869, 1.442695
      %v4089 = vpow.pop %v4088
      %v4090 = vmul.f32 %v3870, 1.442695
      %v4091 = vpow.pop %v4090
      %v4092 = vmul.f32 %v3871, 1.442695
      %v4093 = vpow.pop %v4092
      %v4094 = vmul.f32 %v3872, 1.442695
      %v4095 = vpow.pop %v4094
      %v4096 = vmul.f32 %v3873, 1.442695
      %v4097 = vpow.pop %v4096
      %v4098 = vmul.f32 %v3874, 1.442695
      %v4099 = vpow.pop %v4098
      %v4100 = vmul.f32 %v3875, 1.442695
      %v4101 = vpow.pop %v4100
      %v4102 = vmul.f32 %v3876, 1.442695
      %v4103 = vpow.pop %v4102
      %v4104 = vmul.f32 %v3877, 1.442695
      %v4105 = vpow.pop %v4104
      %v4106 = vmul.f32 %v3878, 1.442695
      %v4107 = vpow.pop %v4106
      %v4108 = vmul.f32 %v3879, 1.442695
      %v4109 = vpow.pop %v4108
      %v4110 = vmul.f32 %v3880, 1.442695
      %v4111 = vpow.pop %v4110
      %v4112 = vmul.f32 %v3881, 1.442695
      %v4113 = vpow.pop %v4112
      %v4114 = vmul.f32 %v3882, 1.442695
      %v4115 = vpow.pop %v4114
      %v4116 = vmul.f32 %v3883, 1.442695
      %v4117 = vpow.pop %v4116
      %v4118 = vmul.f32 %v3884, 1.442695
      %v4119 = vpow.pop %v4118
      %v4120 = vmul.f32 %v3885, 1.442695
      %v4121 = vpow.pop %v4120
      %v4122 = vmul.f32 %v3886, 1.442695
      %v4123 = vpow.pop %v4122
      %v4124 = vmul.f32 %v3887, 1.442695
      %v4125 = vpow.pop %v4124
      %v4126 = vmul.f32 %v3888, 1.442695
      %v4127 = vpow.pop %v4126
      %v4128 = vmul.f32 %v3889, 1.442695
      %v4129 = vpow.pop %v4128
      %v4130 = vmul.f32 %v3890, 1.442695
      %v4131 = vpow.pop %v4130
      %v4132 = vmul.f32 %v3891, 1.442695
      %v4133 = vpow.pop %v4132
      %v4134 = vmul.f32 %v3892, 1.442695
      %v4135 = vpow.pop %v4134
      %v4136 = vmul.f32 %v3893, 1.442695
      %v4137 = vpow.pop %v4136
      %v4138 = vmul.f32 %v3894, 1.442695
      %v4139 = vpow.pop %v4138
      %v4140 = vmul.f32 %v3895, 1.442695
      %v4141 = vpow.pop %v4140
      %v4142 = vmul.f32 %v3896, 1.442695
      %v4143 = vpow.pop %v4142
      %v4144 = vmul.f32 %v3897, 1.442695
      %v4145 = vpow.pop %v4144
      %v4146 = vmul.f32 %v3898, 1.442695
      %v4147 = vpow.pop %v4146
      %v4148 = vmul.f32 %v3899, 1.442695
      %v4149 = vpow.pop %v4148
      %v4150 = vmul.f32 %v3900, 1.442695
      %v4151 = vpow.pop %v4150
      %v4152 = vmul.f32 %v3901, 1.442695
      %v4153 = vpow.pop %v4152
      %v4154 = vmul.f32 %v3902, 1.442695
      %v4155 = vpow.pop %v4154
      %v4156 = vmul.f32 %v3903, 1.442695
      %v4157 = vpow.pop %v4156
      %v4158 = vmul.f32 %v3904, 1.442695
      %v4159 = vpow.pop %v4158
      %v4160 = vmul.f32 %v3905, 1.442695
      %v4161 = vpow.pop %v4160
      %v4162 = vsel %vm3393, %v3907, 0.0
      %4163 = vadd.xlane.f32.xlu0 %v4162
      %v4164 = vpop.xlane.xlu0 %4163
      %v4165 = vsel %vm3393, %v3909, 0.0
      %4166 = vadd.xlane.f32.xlu0 %v4165
      %v4167 = vpop.xlane.xlu0 %4166
      %v4168 = vsel %vm3393, %v3911, 0.0
      %4169 = vadd.xlane.f32.xlu0 %v4168
      %v4170 = vpop.xlane.xlu0 %4169
      %v4171 = vsel %vm3393, %v3913, 0.0
      %4172 = vadd.xlane.f32.xlu0 %v4171
      %v4173 = vpop.xlane.xlu0 %4172
      %v4174 = vsel %vm3393, %v3915, 0.0
      %4175 = vadd.xlane.f32.xlu0 %v4174
      %v4176 = vpop.xlane.xlu0 %4175
      %v4177 = vsel %vm3393, %v3917, 0.0
      %4178 = vadd.xlane.f32.xlu0 %v4177
      %v4179 = vpop.xlane.xlu0 %4178
      %v4180 = vsel %vm3393, %v3919, 0.0
      %4181 = vadd.xlane.f32.xlu0 %v4180
      %v4182 = vpop.xlane.xlu0 %4181
      %v4183 = vsel %vm3393, %v3921, 0.0
      %4184 = vadd.xlane.f32.xlu0 %v4183
      %v4185 = vpop.xlane.xlu0 %4184
      %v4186 = vsel %vm3393, %v3923, 0.0
      %4187 = vadd.xlane.f32.xlu0 %v4186
      %v4188 = vpop.xlane.xlu0 %4187
      %v4189 = vsel %vm3393, %v3925, 0.0
      %4190 = vadd.xlane.f32.xlu0 %v4189
      %v4191 = vpop.xlane.xlu0 %4190
      %v4192 = vsel %vm3393, %v3927, 0.0
      %4193 = vadd.xlane.f32.xlu0 %v4192
      %v4194 = vpop.xlane.xlu0 %4193
      %v4195 = vsel %vm3393, %v3929, 0.0
      %4196 = vadd.xlane.f32.xlu0 %v4195
      %v4197 = vpop.xlane.xlu0 %4196
      %v4198 = vsel %vm3393, %v3931, 0.0
      %4199 = vadd.xlane.f32.xlu0 %v4198
      %v4200 = vpop.xlane.xlu0 %4199
      %v4201 = vsel %vm3393, %v3933, 0.0
      %4202 = vadd.xlane.f32.xlu0 %v4201
      %v4203 = vpop.xlane.xlu0 %4202
      %v4204 = vsel %vm3393, %v3935, 0.0
      %4205 = vadd.xlane.f32.xlu0 %v4204
      %v4206 = vpop.xlane.xlu0 %4205
      %v4207 = vsel %vm3393, %v3937, 0.0
      %4208 = vadd.xlane.f32.xlu0 %v4207
      %v4209 = vpop.xlane.xlu0 %4208
      %v4210 = vsel %vm3393, %v3939, 0.0
      %4211 = vadd.xlane.f32.xlu0 %v4210
      %v4212 = vpop.xlane.xlu0 %4211
      %v4213 = vsel %vm3393, %v3941, 0.0
      %4214 = vadd.xlane.f32.xlu0 %v4213
      %v4215 = vpop.xlane.xlu0 %4214
      %v4216 = vsel %vm3393, %v3943, 0.0
      %4217 = vadd.xlane.f32.xlu0 %v4216
      %v4218 = vpop.xlane.xlu0 %4217
      %v4219 = vsel %vm3393, %v3945, 0.0
      %4220 = vadd.xlane.f32.xlu0 %v4219
      %v4221 = vpop.xlane.xlu0 %4220
      %v4222 = vsel %vm3393, %v3947, 0.0
      %4223 = vadd.xlane.f32.xlu0 %v4222
      %v4224 = vpop.xlane.xlu0 %4223
      %v4225 = vsel %vm3393, %v3949, 0.0
      %4226 = vadd.xlane.f32.xlu0 %v4225
      %v4227 = vpop.xlane.xlu0 %4226
      %v4228 = vsel %vm3393, %v3951, 0.0
      %4229 = vadd.xlane.f32.xlu0 %v4228
      %v4230 = vpop.xlane.xlu0 %4229
      %v4231 = vsel %vm3393, %v3953, 0.0
      %4232 = vadd.xlane.f32.xlu0 %v4231
      %v4233 = vpop.xlane.xlu0 %4232
      %v4234 = vsel %vm3393, %v3955, 0.0
      %4235 = vadd.xlane.f32.xlu0 %v4234
      %v4236 = vpop.xlane.xlu0 %4235
      %v4237 = vsel %vm3393, %v3957, 0.0
      %4238 = vadd.xlane.f32.xlu0 %v4237
      %v4239 = vpop.xlane.xlu0 %4238
      %v4240 = vsel %vm3393, %v3959, 0.0
      %4241 = vadd.xlane.f32.xlu0 %v4240
      %v4242 = vpop.xlane.xlu0 %4241
      %v4243 = vsel %vm3393, %v3961, 0.0
      %4244 = vadd.xlane.f32.xlu0 %v4243
      %v4245 = vpop.xlane.xlu0 %4244
      %v4246 = vsel %vm3393, %v3963, 0.0
      %4247 = vadd.xlane.f32.xlu0 %v4246
      %v4248 = vpop.xlane.xlu0 %4247
      %v4249 = vsel %vm3393, %v3965, 0.0
      %4250 = vadd.xlane.f32.xlu0 %v4249
      %v4251 = vpop.xlane.xlu0 %4250
      %v4252 = vsel %vm3393, %v3967, 0.0
      %4253 = vadd.xlane.f32.xlu0 %v4252
      %v4254 = vpop.xlane.xlu0 %4253
      %v4255 = vsel %vm3393, %v3969, 0.0
      %4256 = vadd.xlane.f32.xlu0 %v4255
      %v4257 = vpop.xlane.xlu0 %4256
      %v4258 = vsel %vm3393, %v3971, 0.0
      %4259 = vadd.xlane.f32.xlu0 %v4258
      %v4260 = vpop.xlane.xlu0 %4259
      %v4261 = vsel %vm3393, %v3973, 0.0
      %4262 = vadd.xlane.f32.xlu0 %v4261
      %v4263 = vpop.xlane.xlu0 %4262
      %v4264 = vsel %vm3393, %v3975, 0.0
      %4265 = vadd.xlane.f32.xlu0 %v4264
      %v4266 = vpop.xlane.xlu0 %4265
      %v4267 = vsel %vm3393, %v3977, 0.0
      %4268 = vadd.xlane.f32.xlu0 %v4267
      %v4269 = vpop.xlane.xlu0 %4268
      %v4270 = vsel %vm3393, %v3979, 0.0
      %4271 = vadd.xlane.f32.xlu0 %v4270
      %v4272 = vpop.xlane.xlu0 %4271
      %v4273 = vsel %vm3393, %v3981, 0.0
      %4274 = vadd.xlane.f32.xlu0 %v4273
      %v4275 = vpop.xlane.xlu0 %4274
      %v4276 = vsel %vm3393, %v3983, 0.0
      %4277 = vadd.xlane.f32.xlu0 %v4276
      %v4278 = vpop.xlane.xlu0 %4277
      %v4279 = vsel %vm3393, %v3985, 0.0
      %4280 = vadd.xlane.f32.xlu0 %v4279
      %v4281 = vpop.xlane.xlu0 %4280
      %v4282 = vsel %vm3393, %v3987, 0.0
      %4283 = vadd.xlane.f32.xlu0 %v4282
      %v4284 = vpop.xlane.xlu0 %4283
      %v4285 = vsel %vm3393, %v3989, 0.0
      %4286 = vadd.xlane.f32.xlu0 %v4285
      %v4287 = vpop.xlane.xlu0 %4286
      %v4288 = vsel %vm3393, %v3991, 0.0
      %4289 = vadd.xlane.f32.xlu0 %v4288
      %v4290 = vpop.xlane.xlu0 %4289
      %v4291 = vsel %vm3393, %v3993, 0.0
      %4292 = vadd.xlane.f32.xlu0 %v4291
      %v4293 = vpop.xlane.xlu0 %4292
      %v4294 = vsel %vm3393, %v3995, 0.0
      %4295 = vadd.xlane.f32.xlu0 %v4294
      %v4296 = vpop.xlane.xlu0 %4295
      %v4297 = vsel %vm3393, %v3997, 0.0
      %4298 = vadd.xlane.f32.xlu0 %v4297
      %v4299 = vpop.xlane.xlu0 %4298
      %v4300 = vsel %vm3393, %v3999, 0.0
      %4301 = vadd.xlane.f32.xlu0 %v4300
      %v4302 = vpop.xlane.xlu0 %4301
      %v4303 = vsel %vm3393, %v4001, 0.0
      %4304 = vadd.xlane.f32.xlu0 %v4303
      %v4305 = vpop.xlane.xlu0 %4304
      %v4306 = vsel %vm3393, %v4003, 0.0
      %4307 = vadd.xlane.f32.xlu0 %v4306
      %v4308 = vpop.xlane.xlu0 %4307
      %v4309 = vsel %vm3393, %v4005, 0.0
      %4310 = vadd.xlane.f32.xlu0 %v4309
      %v4311 = vpop.xlane.xlu0 %4310
      %v4312 = vsel %vm3393, %v4007, 0.0
      %4313 = vadd.xlane.f32.xlu0 %v4312
      %v4314 = vpop.xlane.xlu0 %4313
      %v4315 = vsel %vm3393, %v4009, 0.0
      %4316 = vadd.xlane.f32.xlu0 %v4315
      %v4317 = vpop.xlane.xlu0 %4316
      %v4318 = vsel %vm3393, %v4011, 0.0
      %4319 = vadd.xlane.f32.xlu0 %v4318
      %v4320 = vpop.xlane.xlu0 %4319
      %v4321 = vsel %vm3393, %v4013, 0.0
      %4322 = vadd.xlane.f32.xlu0 %v4321
      %v4323 = vpop.xlane.xlu0 %4322
      %v4324 = vsel %vm3393, %v4015, 0.0
      %4325 = vadd.xlane.f32.xlu0 %v4324
      %v4326 = vpop.xlane.xlu0 %4325
      %v4327 = vsel %vm3393, %v4017, 0.0
      %4328 = vadd.xlane.f32.xlu0 %v4327
      %v4329 = vpop.xlane.xlu0 %4328
      %v4330 = vsel %vm3393, %v4019, 0.0
      %4331 = vadd.xlane.f32.xlu0 %v4330
      %v4332 = vpop.xlane.xlu0 %4331
      %v4333 = vsel %vm3393, %v4021, 0.0
      %4334 = vadd.xlane.f32.xlu0 %v4333
      %v4335 = vpop.xlane.xlu0 %4334
      %v4336 = vsel %vm3393, %v4023, 0.0
      %4337 = vadd.xlane.f32.xlu0 %v4336
      %v4338 = vpop.xlane.xlu0 %4337
      %v4339 = vsel %vm3393, %v4025, 0.0
      %4340 = vadd.xlane.f32.xlu0 %v4339
      %v4341 = vpop.xlane.xlu0 %4340
      %v4342 = vsel %vm3393, %v4027, 0.0
      %4343 = vadd.xlane.f32.xlu0 %v4342
      %v4344 = vpop.xlane.xlu0 %4343
      %v4345 = vsel %vm3393, %v4029, 0.0
      %4346 = vadd.xlane.f32.xlu0 %v4345
      %v4347 = vpop.xlane.xlu0 %4346
      %v4348 = vsel %vm3393, %v4031, 0.0
      %4349 = vadd.xlane.f32.xlu0 %v4348
      %v4350 = vpop.xlane.xlu0 %4349
      %v4351 = vsel %vm3393, %v4033, 0.0
      %4352 = vadd.xlane.f32.xlu0 %v4351
      %v4353 = vpop.xlane.xlu0 %4352
      %v4354 = vsel %vm3393, %v4035, 0.0
      %4355 = vadd.xlane.f32.xlu0 %v4354
      %v4356 = vpop.xlane.xlu0 %4355
      %v4357 = vsel %vm3393, %v4037, 0.0
      %4358 = vadd.xlane.f32.xlu0 %v4357
      %v4359 = vpop.xlane.xlu0 %4358
      %v4360 = vsel %vm3393, %v4039, 0.0
      %4361 = vadd.xlane.f32.xlu0 %v4360
      %v4362 = vpop.xlane.xlu0 %4361
      %v4363 = vsel %vm3393, %v4041, 0.0
      %4364 = vadd.xlane.f32.xlu0 %v4363
      %v4365 = vpop.xlane.xlu0 %4364
      %v4366 = vsel %vm3393, %v4043, 0.0
      %4367 = vadd.xlane.f32.xlu0 %v4366
      %v4368 = vpop.xlane.xlu0 %4367
      %v4369 = vsel %vm3393, %v4045, 0.0
      %4370 = vadd.xlane.f32.xlu0 %v4369
      %v4371 = vpop.xlane.xlu0 %4370
      %v4372 = vsel %vm3393, %v4047, 0.0
      %4373 = vadd.xlane.f32.xlu0 %v4372
      %v4374 = vpop.xlane.xlu0 %4373
      %v4375 = vsel %vm3393, %v4049, 0.0
      %4376 = vadd.xlane.f32.xlu0 %v4375
      %v4377 = vpop.xlane.xlu0 %4376
      %v4378 = vsel %vm3393, %v4051, 0.0
      %4379 = vadd.xlane.f32.xlu0 %v4378
      %v4380 = vpop.xlane.xlu0 %4379
      %v4381 = vsel %vm3393, %v4053, 0.0
      %4382 = vadd.xlane.f32.xlu0 %v4381
      %v4383 = vpop.xlane.xlu0 %4382
      %v4384 = vsel %vm3393, %v4055, 0.0
      %4385 = vadd.xlane.f32.xlu0 %v4384
      %v4386 = vpop.xlane.xlu0 %4385
      %v4387 = vsel %vm3393, %v4057, 0.0
      %4388 = vadd.xlane.f32.xlu0 %v4387
      %v4389 = vpop.xlane.xlu0 %4388
      %v4390 = vsel %vm3393, %v4059, 0.0
      %4391 = vadd.xlane.f32.xlu0 %v4390
      %v4392 = vpop.xlane.xlu0 %4391
      %v4393 = vsel %vm3393, %v4061, 0.0
      %4394 = vadd.xlane.f32.xlu0 %v4393
      %v4395 = vpop.xlane.xlu0 %4394
      %v4396 = vsel %vm3393, %v4063, 0.0
      %4397 = vadd.xlane.f32.xlu0 %v4396
      %v4398 = vpop.xlane.xlu0 %4397
      %v4399 = vsel %vm3393, %v4065, 0.0
      %4400 = vadd.xlane.f32.xlu0 %v4399
      %v4401 = vpop.xlane.xlu0 %4400
      %v4402 = vsel %vm3393, %v4067, 0.0
      %4403 = vadd.xlane.f32.xlu0 %v4402
      %v4404 = vpop.xlane.xlu0 %4403
      %v4405 = vsel %vm3393, %v4069, 0.0
      %4406 = vadd.xlane.f32.xlu0 %v4405
      %v4407 = vpop.xlane.xlu0 %4406
      %v4408 = vsel %vm3393, %v4071, 0.0
      %4409 = vadd.xlane.f32.xlu0 %v4408
      %v4410 = vpop.xlane.xlu0 %4409
      %v4411 = vsel %vm3393, %v4073, 0.0
      %4412 = vadd.xlane.f32.xlu0 %v4411
      %v4413 = vpop.xlane.xlu0 %4412
      %v4414 = vsel %vm3393, %v4075, 0.0
      %4415 = vadd.xlane.f32.xlu0 %v4414
      %v4416 = vpop.xlane.xlu0 %4415
      %v4417 = vsel %vm3393, %v4077, 0.0
      %4418 = vadd.xlane.f32.xlu0 %v4417
      %v4419 = vpop.xlane.xlu0 %4418
      %v4420 = vsel %vm3393, %v4079, 0.0
      %4421 = vadd.xlane.f32.xlu0 %v4420
      %v4422 = vpop.xlane.xlu0 %4421
      %v4423 = vsel %vm3393, %v4081, 0.0
      %4424 = vadd.xlane.f32.xlu0 %v4423
      %v4425 = vpop.xlane.xlu0 %4424
      %v4426 = vsel %vm3393, %v4083, 0.0
      %4427 = vadd.xlane.f32.xlu0 %v4426
      %v4428 = vpop.xlane.xlu0 %4427
      %v4429 = vsel %vm3393, %v4085, 0.0
      %4430 = vadd.xlane.f32.xlu0 %v4429
      %v4431 = vpop.xlane.xlu0 %4430
      %v4432 = vsel %vm3393, %v4087, 0.0
      %4433 = vadd.xlane.f32.xlu0 %v4432
      %v4434 = vpop.xlane.xlu0 %4433
      %v4435 = vsel %vm3393, %v4089, 0.0
      %4436 = vadd.xlane.f32.xlu0 %v4435
      %v4437 = vpop.xlane.xlu0 %4436
      %v4438 = vsel %vm3393, %v4091, 0.0
      %4439 = vadd.xlane.f32.xlu0 %v4438
      %v4440 = vpop.xlane.xlu0 %4439
      %v4441 = vsel %vm3393, %v4093, 0.0
      %4442 = vadd.xlane.f32.xlu0 %v4441
      %v4443 = vpop.xlane.xlu0 %4442
      %v4444 = vsel %vm3393, %v4095, 0.0
      %4445 = vadd.xlane.f32.xlu0 %v4444
      %v4446 = vpop.xlane.xlu0 %4445
      %v4447 = vsel %vm3393, %v4097, 0.0
      %4448 = vadd.xlane.f32.xlu0 %v4447
      %v4449 = vpop.xlane.xlu0 %4448
      %v4450 = vsel %vm3393, %v4099, 0.0
      %4451 = vadd.xlane.f32.xlu0 %v4450
      %v4452 = vpop.xlane.xlu0 %4451
      %v4453 = vsel %vm3393, %v4101, 0.0
      %4454 = vadd.xlane.f32.xlu0 %v4453
      %v4455 = vpop.xlane.xlu0 %4454
      %v4456 = vsel %vm3393, %v4103, 0.0
      %4457 = vadd.xlane.f32.xlu0 %v4456
      %v4458 = vpop.xlane.xlu0 %4457
      %v4459 = vsel %vm3393, %v4105, 0.0
      %4460 = vadd.xlane.f32.xlu0 %v4459
      %v4461 = vpop.xlane.xlu0 %4460
      %v4462 = vsel %vm3393, %v4107, 0.0
      %4463 = vadd.xlane.f32.xlu0 %v4462
      %v4464 = vpop.xlane.xlu0 %4463
      %v4465 = vsel %vm3393, %v4109, 0.0
      %4466 = vadd.xlane.f32.xlu0 %v4465
      %v4467 = vpop.xlane.xlu0 %4466
      %v4468 = vsel %vm3393, %v4111, 0.0
      %4469 = vadd.xlane.f32.xlu0 %v4468
      %v4470 = vpop.xlane.xlu0 %4469
      %v4471 = vsel %vm3393, %v4113, 0.0
      %4472 = vadd.xlane.f32.xlu0 %v4471
      %v4473 = vpop.xlane.xlu0 %4472
      %v4474 = vsel %vm3393, %v4115, 0.0
      %4475 = vadd.xlane.f32.xlu0 %v4474
      %v4476 = vpop.xlane.xlu0 %4475
      %v4477 = vsel %vm3393, %v4117, 0.0
      %4478 = vadd.xlane.f32.xlu0 %v4477
      %v4479 = vpop.xlane.xlu0 %4478
      %v4480 = vsel %vm3393, %v4119, 0.0
      %4481 = vadd.xlane.f32.xlu0 %v4480
      %v4482 = vpop.xlane.xlu0 %4481
      %v4483 = vsel %vm3393, %v4121, 0.0
      %4484 = vadd.xlane.f32.xlu0 %v4483
      %v4485 = vpop.xlane.xlu0 %4484
      %v4486 = vsel %vm3393, %v4123, 0.0
      %4487 = vadd.xlane.f32.xlu0 %v4486
      %v4488 = vpop.xlane.xlu0 %4487
      %v4489 = vsel %vm3393, %v4125, 0.0
      %4490 = vadd.xlane.f32.xlu0 %v4489
      %v4491 = vpop.xlane.xlu0 %4490
      %v4492 = vsel %vm3393, %v4127, 0.0
      %4493 = vadd.xlane.f32.xlu0 %v4492
      %v4494 = vpop.xlane.xlu0 %4493
      %v4495 = vsel %vm3393, %v4129, 0.0
      %4496 = vadd.xlane.f32.xlu0 %v4495
      %v4497 = vpop.xlane.xlu0 %4496
      %v4498 = vsel %vm3393, %v4131, 0.0
      %4499 = vadd.xlane.f32.xlu0 %v4498
      %v4500 = vpop.xlane.xlu0 %4499
      %v4501 = vsel %vm3393, %v4133, 0.0
      %4502 = vadd.xlane.f32.xlu0 %v4501
      %v4503 = vpop.xlane.xlu0 %4502
      %v4504 = vsel %vm3393, %v4135, 0.0
      %4505 = vadd.xlane.f32.xlu0 %v4504
      %v4506 = vpop.xlane.xlu0 %4505
      %v4507 = vsel %vm3393, %v4137, 0.0
      %4508 = vadd.xlane.f32.xlu0 %v4507
      %v4509 = vpop.xlane.xlu0 %4508
      %v4510 = vsel %vm3393, %v4139, 0.0
      %4511 = vadd.xlane.f32.xlu0 %v4510
      %v4512 = vpop.xlane.xlu0 %4511
      %v4513 = vsel %vm3393, %v4141, 0.0
      %4514 = vadd.xlane.f32.xlu0 %v4513
      %v4515 = vpop.xlane.xlu0 %4514
      %v4516 = vsel %vm3393, %v4143, 0.0
      %4517 = vadd.xlane.f32.xlu0 %v4516
      %v4518 = vpop.xlane.xlu0 %4517
      %v4519 = vsel %vm3393, %v4145, 0.0
      %4520 = vadd.xlane.f32.xlu0 %v4519
      %v4521 = vpop.xlane.xlu0 %4520
      %v4522 = vsel %vm3393, %v4147, 0.0
      %4523 = vadd.xlane.f32.xlu0 %v4522
      %v4524 = vpop.xlane.xlu0 %4523
      %v4525 = vsel %vm3393, %v4149, 0.0
      %4526 = vadd.xlane.f32.xlu0 %v4525
      %v4527 = vpop.xlane.xlu0 %4526
      %v4528 = vsel %vm3393, %v4151, 0.0
      %4529 = vadd.xlane.f32.xlu0 %v4528
      %v4530 = vpop.xlane.xlu0 %4529
      %v4531 = vsel %vm3393, %v4153, 0.0
      %4532 = vadd.xlane.f32.xlu0 %v4531
      %v4533 = vpop.xlane.xlu0 %4532
      %v4534 = vsel %vm3393, %v4155, 0.0
      %4535 = vadd.xlane.f32.xlu0 %v4534
      %v4536 = vpop.xlane.xlu0 %4535
      %v4537 = vsel %vm3393, %v4157, 0.0
      %4538 = vadd.xlane.f32.xlu0 %v4537
      %v4539 = vpop.xlane.xlu0 %4538
      %v4540 = vsel %vm3393, %v4159, 0.0
      %4541 = vadd.xlane.f32.xlu0 %v4540
      %v4542 = vpop.xlane.xlu0 %4541
      %v4543 = vsel %vm3393, %v4161, 0.0
      %4544 = vadd.xlane.f32.xlu0 %v4543
      %v4545 = vpop.xlane.xlu0 %4544
      %v4546 = vrcp.pop %v4164
      %v4547 = vrcp.pop %v4167
      %v4548 = vrcp.pop %v4170
      %v4549 = vrcp.pop %v4173
      %v4550 = vrcp.pop %v4176
      %v4551 = vrcp.pop %v4179
      %v4552 = vrcp.pop %v4182
      %v4553 = vrcp.pop %v4185
      %v4554 = vrcp.pop %v4188
      %v4555 = vrcp.pop %v4191
      %v4556 = vrcp.pop %v4194
      %v4557 = vrcp.pop %v4197
      %v4558 = vrcp.pop %v4200
      %v4559 = vrcp.pop %v4203
      %v4560 = vrcp.pop %v4206
      %v4561 = vrcp.pop %v4209
      %v4562 = vrcp.pop %v4212
      %v4563 = vrcp.pop %v4215
      %v4564 = vrcp.pop %v4218
      %v4565 = vrcp.pop %v4221
      %v4566 = vrcp.pop %v4224
      %v4567 = vrcp.pop %v4227
      %v4568 = vrcp.pop %v4230
      %v4569 = vrcp.pop %v4233
      %v4570 = vrcp.pop %v4236
      %v4571 = vrcp.pop %v4239
      %v4572 = vrcp.pop %v4242
      %v4573 = vrcp.pop %v4245
      %v4574 = vrcp.pop %v4248
      %v4575 = vrcp.pop %v4251
      %v4576 = vrcp.pop %v4254
      %v4577 = vrcp.pop %v4257
      %v4578 = vrcp.pop %v4260
      %v4579 = vrcp.pop %v4263
      %v4580 = vrcp.pop %v4266
      %v4581 = vrcp.pop %v4269
      %v4582 = vrcp.pop %v4272
      %v4583 = vrcp.pop %v4275
      %v4584 = vrcp.pop %v4278
      %v4585 = vrcp.pop %v4281
      %v4586 = vrcp.pop %v4284
      %v4587 = vrcp.pop %v4287
      %v4588 = vrcp.pop %v4290
      %v4589 = vrcp.pop %v4293
      %v4590 = vrcp.pop %v4296
      %v4591 = vrcp.pop %v4299
      %v4592 = vrcp.pop %v4302
      %v4593 = vrcp.pop %v4305
      %v4594 = vrcp.pop %v4308
      %v4595 = vrcp.pop %v4311
      %v4596 = vrcp.pop %v4314
      %v4597 = vrcp.pop %v4317
      %v4598 = vrcp.pop %v4320
      %v4599 = vrcp.pop %v4323
      %v4600 = vrcp.pop %v4326
      %v4601 = vrcp.pop %v4329
      %v4602 = vrcp.pop %v4332
      %v4603 = vrcp.pop %v4335
      %v4604 = vrcp.pop %v4338
      %v4605 = vrcp.pop %v4341
      %v4606 = vrcp.pop %v4344
      %v4607 = vrcp.pop %v4347
      %v4608 = vrcp.pop %v4350
      %v4609 = vrcp.pop %v4353
      %v4610 = vrcp.pop %v4356
      %v4611 = vrcp.pop %v4359
      %v4612 = vrcp.pop %v4362
      %v4613 = vrcp.pop %v4365
      %v4614 = vrcp.pop %v4368
      %v4615 = vrcp.pop %v4371
      %v4616 = vrcp.pop %v4374
      %v4617 = vrcp.pop %v4377
      %v4618 = vrcp.pop %v4380
      %v4619 = vrcp.pop %v4383
      %v4620 = vrcp.pop %v4386
      %v4621 = vrcp.pop %v4389
      %v4622 = vrcp.pop %v4392
      %v4623 = vrcp.pop %v4395
      %v4624 = vrcp.pop %v4398
      %v4625 = vrcp.pop %v4401
      %v4626 = vrcp.pop %v4404
      %v4627 = vrcp.pop %v4407
      %v4628 = vrcp.pop %v4410
      %v4629 = vrcp.pop %v4413
      %v4630 = vrcp.pop %v4416
      %v4631 = vrcp.pop %v4419
      %v4632 = vrcp.pop %v4422
      %v4633 = vrcp.pop %v4425
      %v4634 = vrcp.pop %v4428
      %v4635 = vrcp.pop %v4431
      %v4636 = vrcp.pop %v4434
      %v4637 = vrcp.pop %v4437
      %v4638 = vrcp.pop %v4440
      %v4639 = vrcp.pop %v4443
      %v4640 = vrcp.pop %v4446
      %v4641 = vrcp.pop %v4449
      %v4642 = vrcp.pop %v4452
      %v4643 = vrcp.pop %v4455
      %v4644 = vrcp.pop %v4458
      %v4645 = vrcp.pop %v4461
      %v4646 = vrcp.pop %v4464
      %v4647 = vrcp.pop %v4467
      %v4648 = vrcp.pop %v4470
      %v4649 = vrcp.pop %v4473
      %v4650 = vrcp.pop %v4476
      %v4651 = vrcp.pop %v4479
      %v4652 = vrcp.pop %v4482
      %v4653 = vrcp.pop %v4485
      %v4654 = vrcp.pop %v4488
      %v4655 = vrcp.pop %v4491
      %v4656 = vrcp.pop %v4494
      %v4657 = vrcp.pop %v4497
      %v4658 = vrcp.pop %v4500
      %v4659 = vrcp.pop %v4503
      %v4660 = vrcp.pop %v4506
      %v4661 = vrcp.pop %v4509
      %v4662 = vrcp.pop %v4512
      %v4663 = vrcp.pop %v4515
      %v4664 = vrcp.pop %v4518
      %v4665 = vrcp.pop %v4521
      %v4666 = vrcp.pop %v4524
      %v4667 = vrcp.pop %v4527
      %v4668 = vrcp.pop %v4530
      %v4669 = vrcp.pop %v4533
      %v4670 = vrcp.pop %v4536
      %v4671 = vrcp.pop %v4539
      %v4672 = vrcp.pop %v4542
      %v4673 = vrcp.pop %v4545
      %v4674 = vmul.f32 %v3907, %v4546
      %v4675 = vmul.f32 %v3909, %v4547
      %v4676 = vmul.f32 %v3911, %v4548
      %v4677 = vmul.f32 %v3913, %v4549
      %v4678 = vmul.f32 %v3915, %v4550
      %v4679 = vmul.f32 %v3917, %v4551
      %v4680 = vmul.f32 %v3919, %v4552
      %v4681 = vmul.f32 %v3921, %v4553
      %v4682 = vmul.f32 %v3923, %v4554
      %v4683 = vmul.f32 %v3925, %v4555
      %v4684 = vmul.f32 %v3927, %v4556
      %v4685 = vmul.f32 %v3929, %v4557
      %v4686 = vmul.f32 %v3931, %v4558
      %v4687 = vmul.f32 %v3933, %v4559
      %v4688 = vmul.f32 %v3935, %v4560
      %v4689 = vmul.f32 %v3937, %v4561
      %v4690 = vmul.f32 %v3939, %v4562
      %v4691 = vmul.f32 %v3941, %v4563
      %v4692 = vmul.f32 %v3943, %v4564
      %v4693 = vmul.f32 %v3945, %v4565
      %v4694 = vmul.f32 %v3947, %v4566
      %v4695 = vmul.f32 %v3949, %v4567
      %v4696 = vmul.f32 %v3951, %v4568
      %v4697 = vmul.f32 %v3953, %v4569
      %v4698 = vmul.f32 %v3955, %v4570
      %v4699 = vmul.f32 %v3957, %v4571
      %v4700 = vmul.f32 %v3959, %v4572
      %v4701 = vmul.f32 %v3961, %v4573
      %v4702 = vmul.f32 %v3963, %v4574
      %v4703 = vmul.f32 %v3965, %v4575
      %v4704 = vmul.f32 %v3967, %v4576
      %v4705 = vmul.f32 %v3969, %v4577
      %v4706 = vmul.f32 %v3971, %v4578
      %v4707 = vmul.f32 %v3973, %v4579
      %v4708 = vmul.f32 %v3975, %v4580
      %v4709 = vmul.f32 %v3977, %v4581
      %v4710 = vmul.f32 %v3979, %v4582
      %v4711 = vmul.f32 %v3981, %v4583
      %v4712 = vmul.f32 %v3983, %v4584
      %v4713 = vmul.f32 %v3985, %v4585
      %v4714 = vmul.f32 %v3987, %v4586
      %v4715 = vmul.f32 %v3989, %v4587
      %v4716 = vmul.f32 %v3991, %v4588
      %v4717 = vmul.f32 %v3993, %v4589
      %v4718 = vmul.f32 %v3995, %v4590
      %v4719 = vmul.f32 %v3997, %v4591
      %v4720 = vmul.f32 %v3999, %v4592
      %v4721 = vmul.f32 %v4001, %v4593
      %v4722 = vmul.f32 %v4003, %v4594
      %v4723 = vmul.f32 %v4005, %v4595
      %v4724 = vmul.f32 %v4007, %v4596
      %v4725 = vmul.f32 %v4009, %v4597
      %v4726 = vmul.f32 %v4011, %v4598
      %v4727 = vmul.f32 %v4013, %v4599
      %v4728 = vmul.f32 %v4015, %v4600
      %v4729 = vmul.f32 %v4017, %v4601
      %v4730 = vmul.f32 %v4019, %v4602
      %v4731 = vmul.f32 %v4021, %v4603
      %v4732 = vmul.f32 %v4023, %v4604
      %v4733 = vmul.f32 %v4025, %v4605
      %v4734 = vmul.f32 %v4027, %v4606
      %v4735 = vmul.f32 %v4029, %v4607
      %v4736 = vmul.f32 %v4031, %v4608
      %v4737 = vmul.f32 %v4033, %v4609
      %v4738 = vmul.f32 %v4035, %v4610
      %v4739 = vmul.f32 %v4037, %v4611
      %v4740 = vmul.f32 %v4039, %v4612
      %v4741 = vmul.f32 %v4041, %v4613
      %v4742 = vmul.f32 %v4043, %v4614
      %v4743 = vmul.f32 %v4045, %v4615
      %v4744 = vmul.f32 %v4047, %v4616
      %v4745 = vmul.f32 %v4049, %v4617
      %v4746 = vmul.f32 %v4051, %v4618
      %v4747 = vmul.f32 %v4053, %v4619
      %v4748 = vmul.f32 %v4055, %v4620
      %v4749 = vmul.f32 %v4057, %v4621
      %v4750 = vmul.f32 %v4059, %v4622
      %v4751 = vmul.f32 %v4061, %v4623
      %v4752 = vmul.f32 %v4063, %v4624
      %v4753 = vmul.f32 %v4065, %v4625
      %v4754 = vmul.f32 %v4067, %v4626
      %v4755 = vmul.f32 %v4069, %v4627
      %v4756 = vmul.f32 %v4071, %v4628
      %v4757 = vmul.f32 %v4073, %v4629
      %v4758 = vmul.f32 %v4075, %v4630
      %v4759 = vmul.f32 %v4077, %v4631
      %v4760 = vmul.f32 %v4079, %v4632
      %v4761 = vmul.f32 %v4081, %v4633
      %v4762 = vmul.f32 %v4083, %v4634
      %v4763 = vmul.f32 %v4085, %v4635
      %v4764 = vmul.f32 %v4087, %v4636
      %v4765 = vmul.f32 %v4089, %v4637
      %v4766 = vmul.f32 %v4091, %v4638
      %v4767 = vmul.f32 %v4093, %v4639
      %v4768 = vmul.f32 %v4095, %v4640
      %v4769 = vmul.f32 %v4097, %v4641
      %v4770 = vmul.f32 %v4099, %v4642
      %v4771 = vmul.f32 %v4101, %v4643
      %v4772 = vmul.f32 %v4103, %v4644
      %v4773 = vmul.f32 %v4105, %v4645
      %v4774 = vmul.f32 %v4107, %v4646
      %v4775 = vmul.f32 %v4109, %v4647
      %v4776 = vmul.f32 %v4111, %v4648
      %v4777 = vmul.f32 %v4113, %v4649
      %v4778 = vmul.f32 %v4115, %v4650
      %v4779 = vmul.f32 %v4117, %v4651
      %v4780 = vmul.f32 %v4119, %v4652
      %v4781 = vmul.f32 %v4121, %v4653
      %v4782 = vmul.f32 %v4123, %v4654
      %v4783 = vmul.f32 %v4125, %v4655
      %v4784 = vmul.f32 %v4127, %v4656
      %v4785 = vmul.f32 %v4129, %v4657
      %v4786 = vmul.f32 %v4131, %v4658
      %v4787 = vmul.f32 %v4133, %v4659
      %v4788 = vmul.f32 %v4135, %v4660
      %v4789 = vmul.f32 %v4137, %v4661
      %v4790 = vmul.f32 %v4139, %v4662
      %v4791 = vmul.f32 %v4141, %v4663
      %v4792 = vmul.f32 %v4143, %v4664
      %v4793 = vmul.f32 %v4145, %v4665
      %v4794 = vmul.f32 %v4147, %v4666
      %v4795 = vmul.f32 %v4149, %v4667
      %v4796 = vmul.f32 %v4151, %v4668
      %v4797 = vmul.f32 %v4153, %v4669
      %v4798 = vmul.f32 %v4155, %v4670
      %v4799 = vmul.f32 %v4157, %v4671
      %v4800 = vmul.f32 %v4159, %v4672
      %v4801 = vmul.f32 %v4161, %v4673
      %v4802 = vpack.c.bf16 %v4675, %v4674
      %v4803 = vpack.c.bf16 %v4677, %v4676
      %v4804 = vpack.c.bf16 %v4679, %v4678
      %v4805 = vpack.c.bf16 %v4681, %v4680
      %v4806 = vpack.c.bf16 %v4683, %v4682
      %v4807 = vpack.c.bf16 %v4685, %v4684
      %v4808 = vpack.c.bf16 %v4687, %v4686
      %v4809 = vpack.c.bf16 %v4689, %v4688
      %v4810 = vpack.c.bf16 %v4691, %v4690
      %v4811 = vpack.c.bf16 %v4693, %v4692
      %v4812 = vpack.c.bf16 %v4695, %v4694
      %v4813 = vpack.c.bf16 %v4697, %v4696
      %v4814 = vpack.c.bf16 %v4699, %v4698
      %v4815 = vpack.c.bf16 %v4701, %v4700
      %v4816 = vpack.c.bf16 %v4703, %v4702
      %v4817 = vpack.c.bf16 %v4705, %v4704
      %v4818 = vpack.c.bf16 %v4707, %v4706
      %v4819 = vpack.c.bf16 %v4709, %v4708
      %v4820 = vpack.c.bf16 %v4711, %v4710
      %v4821 = vpack.c.bf16 %v4713, %v4712
      %v4822 = vpack.c.bf16 %v4715, %v4714
      %v4823 = vpack.c.bf16 %v4717, %v4716
      %v4824 = vpack.c.bf16 %v4719, %v4718
      %v4825 = vpack.c.bf16 %v4721, %v4720
      %v4826 = vpack.c.bf16 %v4723, %v4722
      %v4827 = vpack.c.bf16 %v4725, %v4724
      %v4828 = vpack.c.bf16 %v4727, %v4726
      %v4829 = vpack.c.bf16 %v4729, %v4728
      %v4830 = vpack.c.bf16 %v4731, %v4730
      %v4831 = vpack.c.bf16 %v4733, %v4732
      %v4832 = vpack.c.bf16 %v4735, %v4734
      %v4833 = vpack.c.bf16 %v4737, %v4736
      %v4834 = vpack.c.bf16 %v4739, %v4738
      %v4835 = vpack.c.bf16 %v4741, %v4740
      %v4836 = vpack.c.bf16 %v4743, %v4742
      %v4837 = vpack.c.bf16 %v4745, %v4744
      %v4838 = vpack.c.bf16 %v4747, %v4746
      %v4839 = vpack.c.bf16 %v4749, %v4748
      %v4840 = vpack.c.bf16 %v4751, %v4750
      %v4841 = vpack.c.bf16 %v4753, %v4752
      %v4842 = vpack.c.bf16 %v4755, %v4754
      %v4843 = vpack.c.bf16 %v4757, %v4756
      %v4844 = vpack.c.bf16 %v4759, %v4758
      %v4845 = vpack.c.bf16 %v4761, %v4760
      %v4846 = vpack.c.bf16 %v4763, %v4762
      %v4847 = vpack.c.bf16 %v4765, %v4764
      %v4848 = vpack.c.bf16 %v4767, %v4766
      %v4849 = vpack.c.bf16 %v4769, %v4768
      %v4850 = vpack.c.bf16 %v4771, %v4770
      %v4851 = vpack.c.bf16 %v4773, %v4772
      %v4852 = vpack.c.bf16 %v4775, %v4774
      %v4853 = vpack.c.bf16 %v4777, %v4776
      %v4854 = vpack.c.bf16 %v4779, %v4778
      %v4855 = vpack.c.bf16 %v4781, %v4780
      %v4856 = vpack.c.bf16 %v4783, %v4782
      %v4857 = vpack.c.bf16 %v4785, %v4784
      %v4858 = vpack.c.bf16 %v4787, %v4786
      %v4859 = vpack.c.bf16 %v4789, %v4788
      %v4860 = vpack.c.bf16 %v4791, %v4790
      %v4861 = vpack.c.bf16 %v4793, %v4792
      %v4862 = vpack.c.bf16 %v4795, %v4794
      %v4863 = vpack.c.bf16 %v4797, %v4796
      %v4864 = vpack.c.bf16 %v4799, %v4798
      %v4865 = vpack.c.bf16 %v4801, %v4800
      %v4867 = vsel %vm3393, %v4802, 0
      %v4870 = vsel %vm3393, %v4803, 0
      %v4873 = vsel %vm3393, %v4804, 0
      %v4876 = vsel %vm3393, %v4805, 0
      %4878 = vmatprep.subr.bf16.mxu0 0
      %4879 = vmatpush1.bf16.msra.mxu0 0
      %4880 = vmatprep.subr.bf16.mxu0 0
      %4881 = vmatpush1.bf16.msra.mxu0 0
      %4882 = vmatprep.subr.bf16.mxu0 0
      %4883 = vmatpush1.bf16.msra.mxu0 0
      %4884 = vmatprep.subr.bf16.mxu0 0
      %4885 = vmatpush1.bf16.msra.mxu0 0
      %4886 = vmatprep.subr.bf16.mxu0 0
      %4887 = vmatpush1.bf16.msra.mxu0 %v1635
      %4888 = vmatprep.subr.bf16.mxu0 0
      %4889 = vmatpush1.bf16.msra.mxu0 %v1634
      %4890 = vmatprep.subr.bf16.mxu0 0
      %4891 = vmatpush1.bf16.msra.mxu0 %v1633
      %4892 = vmatprep.subr.bf16.mxu0 0
      %4893 = vmatpush1.bf16.msra.mxu0 %v1632
      %4894 = vmatprep.subr.bf16.mxu0 0
      %4895 = vmatpush2.bf16.msra.mxu0 0
      %4896 = vmatprep.subr.bf16.mxu0 0
      %4897 = vmatpush2.bf16.msra.mxu0 0
      %4898 = vmatprep.subr.bf16.mxu0 0
      %4899 = vmatpush2.bf16.msra.mxu0 0
      %4900 = vmatprep.subr.bf16.mxu0 0
      %4901 = vmatpush2.bf16.msra.mxu0 0
      %4902 = vmatprep.subr.bf16.mxu0 0
      %4903 = vmatpush2.bf16.msra.mxu0 0
      %4904 = vmatprep.subr.bf16.mxu0 0
      %4905 = vmatpush2.bf16.msra.mxu0 0
      %4906 = vmatprep.subr.bf16.mxu0 0
      %4907 = vmatpush2.bf16.msra.mxu0 0
      %4908 = vmatprep.subr.bf16.mxu0 0
      %4909 = vmatpush2.bf16.msra.mxu0 0
      %4910 = vmatprep.mubr.bf16.mxu0 0
      %4911 = vmatmul.mubr.bf16.gmra.mxu0 %v4867
      %v4912 = vpop.f32.mrf.mxu0
      %v4913 = vadd.f32 0.0, %v4912
      %v4914 = vpop.f32.mrf.mxu0
      %v4915 = vpop.f32.mrf.mxu0
      %v4916 = vadd.f32 0.0, %v4915
      %v4917 = vpop.f32.mrf.mxu0
      %4918 = vmatprep.mubr.bf16.mxu0 0
      %4919 = vmatmul.mubr.bf16.gmra.mxu0 %v4870
      %v4920 = vpop.f32.mrf.mxu0
      %v4921 = vadd.f32 0.0, %v4920
      %v4922 = vpop.f32.mrf.mxu0
      %v4923 = vpop.f32.mrf.mxu0
      %v4924 = vadd.f32 0.0, %v4923
      %v4925 = vpop.f32.mrf.mxu0
      %4926 = vmatprep.mubr.bf16.mxu0 0
      %4927 = vmatmul.mubr.bf16.gmra.mxu0 %v4873
      %v4928 = vpop.f32.mrf.mxu0
      %v4929 = vadd.f32 0.0, %v4928
      %v4930 = vpop.f32.mrf.mxu0
      %v4931 = vpop.f32.mrf.mxu0
      %v4932 = vadd.f32 0.0, %v4931
      %v4933 = vpop.f32.mrf.mxu0
      %4934 = vmatprep.mubr.bf16.mxu0 0
      %4935 = vmatmul.mubr.bf16.gmra.mxu0 %v4876
      %v4936 = vpop.f32.mrf.mxu0
      %v4937 = vadd.f32 0.0, %v4936
      %v4938 = vpop.f32.mrf.mxu0
      %v4939 = vpop.f32.mrf.mxu0
      %v4940 = vadd.f32 0.0, %v4939
      %v4941 = vpop.f32.mrf.mxu0
      %4942 = vdwg.mxu0
      %v4944 = vsel %vm3393, %v4806, 0
      %v4947 = vsel %vm3393, %v4807, 0
      %v4950 = vsel %vm3393, %v4808, 0
      %v4953 = vsel %vm3393, %v4809, 0
      %4955 = vmatprep.subr.bf16.mxu0 0
      %4956 = vmatpush1.bf16.msra.mxu0 0
      %4957 = vmatprep.subr.bf16.mxu0 0
      %4958 = vmatpush1.bf16.msra.mxu0 0
      %4959 = vmatprep.subr.bf16.mxu0 0
      %4960 = vmatpush1.bf16.msra.mxu0 0
      %4961 = vmatprep.subr.bf16.mxu0 0
      %4962 = vmatpush1.bf16.msra.mxu0 0
      %4963 = vmatprep.subr.bf16.mxu0 0
      %4964 = vmatpush1.bf16.msra.mxu0 %v1639
      %4965 = vmatprep.subr.bf16.mxu0 0
      %4966 = vmatpush1.bf16.msra.mxu0 %v1638
      %4967 = vmatprep.subr.bf16.mxu0 0
      %4968 = vmatpush1.bf16.msra.mxu0 %v1637
      %4969 = vmatprep.subr.bf16.mxu0 0
      %4970 = vmatpush1.bf16.msra.mxu0 %v1636
      %4971 = vmatprep.subr.bf16.mxu0 0
      %4972 = vmatpush2.bf16.msra.mxu0 0
      %4973 = vmatprep.subr.bf16.mxu0 0
      %4974 = vmatpush2.bf16.msra.mxu0 0
      %4975 = vmatprep.subr.bf16.mxu0 0
      %4976 = vmatpush2.bf16.msra.mxu0 0
      %4977 = vmatprep.subr.bf16.mxu0 0
      %4978 = vmatpush2.bf16.msra.mxu0 0
      %4979 = vmatprep.subr.bf16.mxu0 0
      %4980 = vmatpush2.bf16.msra.mxu0 0
      %4981 = vmatprep.subr.bf16.mxu0 0
      %4982 = vmatpush2.bf16.msra.mxu0 0
      %4983 = vmatprep.subr.bf16.mxu0 0
      %4984 = vmatpush2.bf16.msra.mxu0 0
      %4985 = vmatprep.subr.bf16.mxu0 0
      %4986 = vmatpush2.bf16.msra.mxu0 0
      %4987 = vmatprep.mubr.bf16.mxu0 0
      %4988 = vmatmul.mubr.bf16.gmra.mxu0 %v4944
      %v4989 = vpop.f32.mrf.mxu0
      %v4990 = vadd.f32 0.0, %v4989
      %v4991 = vpop.f32.mrf.mxu0
      %v4992 = vpop.f32.mrf.mxu0
      %v4993 = vadd.f32 0.0, %v4992
      %v4994 = vpop.f32.mrf.mxu0
      %4995 = vmatprep.mubr.bf16.mxu0 0
      %4996 = vmatmul.mubr.bf16.gmra.mxu0 %v4947
      %v4997 = vpop.f32.mrf.mxu0
      %v4998 = vadd.f32 0.0, %v4997
      %v4999 = vpop.f32.mrf.mxu0
      %v5000 = vpop.f32.mrf.mxu0
      %v5001 = vadd.f32 0.0, %v5000
      %v5002 = vpop.f32.mrf.mxu0
      %5003 = vmatprep.mubr.bf16.mxu0 0
      %5004 = vmatmul.mubr.bf16.gmra.mxu0 %v4950
      %v5005 = vpop.f32.mrf.mxu0
      %v5006 = vadd.f32 0.0, %v5005
      %v5007 = vpop.f32.mrf.mxu0
      %v5008 = vpop.f32.mrf.mxu0
      %v5009 = vadd.f32 0.0, %v5008
      %v5010 = vpop.f32.mrf.mxu0
      %5011 = vmatprep.mubr.bf16.mxu0 0
      %5012 = vmatmul.mubr.bf16.gmra.mxu0 %v4953
      %v5013 = vpop.f32.mrf.mxu0
      %v5014 = vadd.f32 0.0, %v5013
      %v5015 = vpop.f32.mrf.mxu0
      %v5016 = vpop.f32.mrf.mxu0
      %v5017 = vadd.f32 0.0, %v5016
      %v5018 = vpop.f32.mrf.mxu0
      %5019 = vdwg.mxu0
      %v5021 = vsel %vm3393, %v4810, 0
      %v5024 = vsel %vm3393, %v4811, 0
      %v5027 = vsel %vm3393, %v4812, 0
      %v5030 = vsel %vm3393, %v4813, 0
      %5032 = vmatprep.subr.bf16.mxu0 0
      %5033 = vmatpush1.bf16.msra.mxu0 0
      %5034 = vmatprep.subr.bf16.mxu0 0
      %5035 = vmatpush1.bf16.msra.mxu0 0
      %5036 = vmatprep.subr.bf16.mxu0 0
      %5037 = vmatpush1.bf16.msra.mxu0 0
      %5038 = vmatprep.subr.bf16.mxu0 0
      %5039 = vmatpush1.bf16.msra.mxu0 0
      %5040 = vmatprep.subr.bf16.mxu0 0
      %5041 = vmatpush1.bf16.msra.mxu0 %v1643
      %5042 = vmatprep.subr.bf16.mxu0 0
      %5043 = vmatpush1.bf16.msra.mxu0 %v1642
      %5044 = vmatprep.subr.bf16.mxu0 0
      %5045 = vmatpush1.bf16.msra.mxu0 %v1641
      %5046 = vmatprep.subr.bf16.mxu0 0
      %5047 = vmatpush1.bf16.msra.mxu0 %v1640
      %5048 = vmatprep.subr.bf16.mxu0 0
      %5049 = vmatpush2.bf16.msra.mxu0 0
      %5050 = vmatprep.subr.bf16.mxu0 0
      %5051 = vmatpush2.bf16.msra.mxu0 0
      %5052 = vmatprep.subr.bf16.mxu0 0
      %5053 = vmatpush2.bf16.msra.mxu0 0
      %5054 = vmatprep.subr.bf16.mxu0 0
      %5055 = vmatpush2.bf16.msra.mxu0 0
      %5056 = vmatprep.subr.bf16.mxu0 0
      %5057 = vmatpush2.bf16.msra.mxu0 0
      %5058 = vmatprep.subr.bf16.mxu0 0
      %5059 = vmatpush2.bf16.msra.mxu0 0
      %5060 = vmatprep.subr.bf16.mxu0 0
      %5061 = vmatpush2.bf16.msra.mxu0 0
      %5062 = vmatprep.subr.bf16.mxu0 0
      %5063 = vmatpush2.bf16.msra.mxu0 0
      %5064 = vmatprep.mubr.bf16.mxu0 0
      %5065 = vmatmul.mubr.bf16.gmra.mxu0 %v5021
      %v5066 = vpop.f32.mrf.mxu0
      %v5067 = vadd.f32 0.0, %v5066
      %v5068 = vpop.f32.mrf.mxu0
      %v5069 = vpop.f32.mrf.mxu0
      %v5070 = vadd.f32 0.0, %v5069
      %v5071 = vpop.f32.mrf.mxu0
      %5072 = vmatprep.mubr.bf16.mxu0 0
      %5073 = vmatmul.mubr.bf16.gmra.mxu0 %v5024
      %v5074 = vpop.f32.mrf.mxu0
      %v5075 = vadd.f32 0.0, %v5074
      %v5076 = vpop.f32.mrf.mxu0
      %v5077 = vpop.f32.mrf.mxu0
      %v5078 = vadd.f32 0.0, %v5077
      %v5079 = vpop.f32.mrf.mxu0
      %5080 = vmatprep.mubr.bf16.mxu0 0
      %5081 = vmatmul.mubr.bf16.gmra.mxu0 %v5027
      %v5082 = vpop.f32.mrf.mxu0
      %v5083 = vadd.f32 0.0, %v5082
      %v5084 = vpop.f32.mrf.mxu0
      %v5085 = vpop.f32.mrf.mxu0
      %v5086 = vadd.f32 0.0, %v5085
      %v5087 = vpop.f32.mrf.mxu0
      %5088 = vmatprep.mubr.bf16.mxu0 0
      %5089 = vmatmul.mubr.bf16.gmra.mxu0 %v5030
      %v5090 = vpop.f32.mrf.mxu0
      %v5091 = vadd.f32 0.0, %v5090
      %v5092 = vpop.f32.mrf.mxu0
      %v5093 = vpop.f32.mrf.mxu0
      %v5094 = vadd.f32 0.0, %v5093
      %v5095 = vpop.f32.mrf.mxu0
      %5096 = vdwg.mxu0
      %v5098 = vsel %vm3393, %v4814, 0
      %v5101 = vsel %vm3393, %v4815, 0
      %v5104 = vsel %vm3393, %v4816, 0
      %v5107 = vsel %vm3393, %v4817, 0
      %5109 = vmatprep.subr.bf16.mxu0 0
      %5110 = vmatpush1.bf16.msra.mxu0 0
      %5111 = vmatprep.subr.bf16.mxu0 0
      %5112 = vmatpush1.bf16.msra.mxu0 0
      %5113 = vmatprep.subr.bf16.mxu0 0
      %5114 = vmatpush1.bf16.msra.mxu0 0
      %5115 = vmatprep.subr.bf16.mxu0 0
      %5116 = vmatpush1.bf16.msra.mxu0 0
      %5117 = vmatprep.subr.bf16.mxu0 0
      %5118 = vmatpush1.bf16.msra.mxu0 %v1647
      %5119 = vmatprep.subr.bf16.mxu0 0
      %5120 = vmatpush1.bf16.msra.mxu0 %v1646
      %5121 = vmatprep.subr.bf16.mxu0 0
      %5122 = vmatpush1.bf16.msra.mxu0 %v1645
      %5123 = vmatprep.subr.bf16.mxu0 0
      %5124 = vmatpush1.bf16.msra.mxu0 %v1644
      %5125 = vmatprep.subr.bf16.mxu0 0
      %5126 = vmatpush2.bf16.msra.mxu0 0
      %5127 = vmatprep.subr.bf16.mxu0 0
      %5128 = vmatpush2.bf16.msra.mxu0 0
      %5129 = vmatprep.subr.bf16.mxu0 0
      %5130 = vmatpush2.bf16.msra.mxu0 0
      %5131 = vmatprep.subr.bf16.mxu0 0
      %5132 = vmatpush2.bf16.msra.mxu0 0
      %5133 = vmatprep.subr.bf16.mxu0 0
      %5134 = vmatpush2.bf16.msra.mxu0 0
      %5135 = vmatprep.subr.bf16.mxu0 0
      %5136 = vmatpush2.bf16.msra.mxu0 0
      %5137 = vmatprep.subr.bf16.mxu0 0
      %5138 = vmatpush2.bf16.msra.mxu0 0
      %5139 = vmatprep.subr.bf16.mxu0 0
      %5140 = vmatpush2.bf16.msra.mxu0 0
      %5141 = vmatprep.mubr.bf16.mxu0 0
      %5142 = vmatmul.mubr.bf16.gmra.mxu0 %v5098
      %v5143 = vpop.f32.mrf.mxu0
      %v5144 = vadd.f32 0.0, %v5143
      %v5145 = vpop.f32.mrf.mxu0
      %v5146 = vpop.f32.mrf.mxu0
      %v5147 = vadd.f32 0.0, %v5146
      %v5148 = vpop.f32.mrf.mxu0
      %5149 = vmatprep.mubr.bf16.mxu0 0
      %5150 = vmatmul.mubr.bf16.gmra.mxu0 %v5101
      %v5151 = vpop.f32.mrf.mxu0
      %v5152 = vadd.f32 0.0, %v5151
      %v5153 = vpop.f32.mrf.mxu0
      %v5154 = vpop.f32.mrf.mxu0
      %v5155 = vadd.f32 0.0, %v5154
      %v5156 = vpop.f32.mrf.mxu0
      %5157 = vmatprep.mubr.bf16.mxu0 0
      %5158 = vmatmul.mubr.bf16.gmra.mxu0 %v5104
      %v5159 = vpop.f32.mrf.mxu0
      %v5160 = vadd.f32 0.0, %v5159
      %v5161 = vpop.f32.mrf.mxu0
      %v5162 = vpop.f32.mrf.mxu0
      %v5163 = vadd.f32 0.0, %v5162
      %v5164 = vpop.f32.mrf.mxu0
      %5165 = vmatprep.mubr.bf16.mxu0 0
      %5166 = vmatmul.mubr.bf16.gmra.mxu0 %v5107
      %v5167 = vpop.f32.mrf.mxu0
      %v5168 = vadd.f32 0.0, %v5167
      %v5169 = vpop.f32.mrf.mxu0
      %v5170 = vpop.f32.mrf.mxu0
      %v5171 = vadd.f32 0.0, %v5170
      %v5172 = vpop.f32.mrf.mxu0
      %5173 = vdwg.mxu0
      %v5175 = vsel %vm3393, %v4818, 0
      %v5178 = vsel %vm3393, %v4819, 0
      %v5181 = vsel %vm3393, %v4820, 0
      %v5184 = vsel %vm3393, %v4821, 0
      %5186 = vmatprep.subr.bf16.mxu0 0
      %5187 = vmatpush1.bf16.msra.mxu0 0
      %5188 = vmatprep.subr.bf16.mxu0 0
      %5189 = vmatpush1.bf16.msra.mxu0 0
      %5190 = vmatprep.subr.bf16.mxu0 0
      %5191 = vmatpush1.bf16.msra.mxu0 0
      %5192 = vmatprep.subr.bf16.mxu0 0
      %5193 = vmatpush1.bf16.msra.mxu0 0
      %5194 = vmatprep.subr.bf16.mxu0 0
      %5195 = vmatpush1.bf16.msra.mxu0 %v1671
      %5196 = vmatprep.subr.bf16.mxu0 0
      %5197 = vmatpush1.bf16.msra.mxu0 %v1669
      %5198 = vmatprep.subr.bf16.mxu0 0
      %5199 = vmatpush1.bf16.msra.mxu0 %v1667
      %5200 = vmatprep.subr.bf16.mxu0 0
      %5201 = vmatpush1.bf16.msra.mxu0 %v1665
      %5202 = vmatprep.subr.bf16.mxu0 0
      %5203 = vmatpush2.bf16.msra.mxu0 0
      %5204 = vmatprep.subr.bf16.mxu0 0
      %5205 = vmatpush2.bf16.msra.mxu0 0
      %5206 = vmatprep.subr.bf16.mxu0 0
      %5207 = vmatpush2.bf16.msra.mxu0 0
      %5208 = vmatprep.subr.bf16.mxu0 0
      %5209 = vmatpush2.bf16.msra.mxu0 0
      %5210 = vmatprep.subr.bf16.mxu0 0
      %5211 = vmatpush2.bf16.msra.mxu0 0
      %5212 = vmatprep.subr.bf16.mxu0 0
      %5213 = vmatpush2.bf16.msra.mxu0 0
      %5214 = vmatprep.subr.bf16.mxu0 0
      %5215 = vmatpush2.bf16.msra.mxu0 0
      %5216 = vmatprep.subr.bf16.mxu0 0
      %5217 = vmatpush2.bf16.msra.mxu0 0
      %5218 = vmatprep.mubr.bf16.mxu0 0
      %5219 = vmatmul.mubr.bf16.gmra.mxu0 %v5175
      %v5220 = vpop.f32.mrf.mxu0
      %v5221 = vadd.f32 0.0, %v5220
      %v5222 = vpop.f32.mrf.mxu0
      %v5223 = vpop.f32.mrf.mxu0
      %v5224 = vadd.f32 0.0, %v5223
      %v5225 = vpop.f32.mrf.mxu0
      %5226 = vmatprep.mubr.bf16.mxu0 0
      %5227 = vmatmul.mubr.bf16.gmra.mxu0 %v5178
      %v5228 = vpop.f32.mrf.mxu0
      %v5229 = vadd.f32 0.0, %v5228
      %v5230 = vpop.f32.mrf.mxu0
      %v5231 = vpop.f32.mrf.mxu0
      %v5232 = vadd.f32 0.0, %v5231
      %v5233 = vpop.f32.mrf.mxu0
      %5234 = vmatprep.mubr.bf16.mxu0 0
      %5235 = vmatmul.mubr.bf16.gmra.mxu0 %v5181
      %v5236 = vpop.f32.mrf.mxu0
      %v5237 = vadd.f32 0.0, %v5236
      %v5238 = vpop.f32.mrf.mxu0
      %v5239 = vpop.f32.mrf.mxu0
      %v5240 = vadd.f32 0.0, %v5239
      %v5241 = vpop.f32.mrf.mxu0
      %5242 = vmatprep.mubr.bf16.mxu0 0
      %5243 = vmatmul.mubr.bf16.gmra.mxu0 %v5184
      %v5244 = vpop.f32.mrf.mxu0
      %v5245 = vadd.f32 0.0, %v5244
      %v5246 = vpop.f32.mrf.mxu0
      %v5247 = vpop.f32.mrf.mxu0
      %v5248 = vadd.f32 0.0, %v5247
      %v5249 = vpop.f32.mrf.mxu0
      %5250 = vdwg.mxu0
      %v5252 = vsel %vm3393, %v4822, 0
      %v5255 = vsel %vm3393, %v4823, 0
      %v5258 = vsel %vm3393, %v4824, 0
      %v5261 = vsel %vm3393, %v4825, 0
      %5263 = vmatprep.subr.bf16.mxu0 0
      %5264 = vmatpush1.bf16.msra.mxu0 0
      %5265 = vmatprep.subr.bf16.mxu0 0
      %5266 = vmatpush1.bf16.msra.mxu0 0
      %5267 = vmatprep.subr.bf16.mxu0 0
      %5268 = vmatpush1.bf16.msra.mxu0 0
      %5269 = vmatprep.subr.bf16.mxu0 0
      %5270 = vmatpush1.bf16.msra.mxu0 0
      %5271 = vmatprep.subr.bf16.mxu0 0
      %5272 = vmatpush1.bf16.msra.mxu0 %v1679
      %5273 = vmatprep.subr.bf16.mxu0 0
      %5274 = vmatpush1.bf16.msra.mxu0 %v1677
      %5275 = vmatprep.subr.bf16.mxu0 0
      %5276 = vmatpush1.bf16.msra.mxu0 %v1675
      %5277 = vmatprep.subr.bf16.mxu0 0
      %5278 = vmatpush1.bf16.msra.mxu0 %v1673
      %5279 = vmatprep.subr.bf16.mxu0 0
      %5280 = vmatpush2.bf16.msra.mxu0 0
      %5281 = vmatprep.subr.bf16.mxu0 0
      %5282 = vmatpush2.bf16.msra.mxu0 0
      %5283 = vmatprep.subr.bf16.mxu0 0
      %5284 = vmatpush2.bf16.msra.mxu0 0
      %5285 = vmatprep.subr.bf16.mxu0 0
      %5286 = vmatpush2.bf16.msra.mxu0 0
      %5287 = vmatprep.subr.bf16.mxu0 0
      %5288 = vmatpush2.bf16.msra.mxu0 0
      %5289 = vmatprep.subr.bf16.mxu0 0
      %5290 = vmatpush2.bf16.msra.mxu0 0
      %5291 = vmatprep.subr.bf16.mxu0 0
      %5292 = vmatpush2.bf16.msra.mxu0 0
      %5293 = vmatprep.subr.bf16.mxu0 0
      %5294 = vmatpush2.bf16.msra.mxu0 0
      %5295 = vmatprep.mubr.bf16.mxu0 0
      %5296 = vmatmul.mubr.bf16.gmra.mxu0 %v5252
      %v5297 = vpop.f32.mrf.mxu0
      %v5298 = vadd.f32 0.0, %v5297
      %v5299 = vpop.f32.mrf.mxu0
      %v5300 = vpop.f32.mrf.mxu0
      %v5301 = vadd.f32 0.0, %v5300
      %v5302 = vpop.f32.mrf.mxu0
      %5303 = vmatprep.mubr.bf16.mxu0 0
      %5304 = vmatmul.mubr.bf16.gmra.mxu0 %v5255
      %v5305 = vpop.f32.mrf.mxu0
      %v5306 = vadd.f32 0.0, %v5305
      %v5307 = vpop.f32.mrf.mxu0
      %v5308 = vpop.f32.mrf.mxu0
      %v5309 = vadd.f32 0.0, %v5308
      %v5310 = vpop.f32.mrf.mxu0
      %5311 = vmatprep.mubr.bf16.mxu0 0
      %5312 = vmatmul.mubr.bf16.gmra.mxu0 %v5258
      %v5313 = vpop.f32.mrf.mxu0
      %v5314 = vadd.f32 0.0, %v5313
      %v5315 = vpop.f32.mrf.mxu0
      %v5316 = vpop.f32.mrf.mxu0
      %v5317 = vadd.f32 0.0, %v5316
      %v5318 = vpop.f32.mrf.mxu0
      %5319 = vmatprep.mubr.bf16.mxu0 0
      %5320 = vmatmul.mubr.bf16.gmra.mxu0 %v5261
      %v5321 = vpop.f32.mrf.mxu0
      %v5322 = vadd.f32 0.0, %v5321
      %v5323 = vpop.f32.mrf.mxu0
      %v5324 = vpop.f32.mrf.mxu0
      %v5325 = vadd.f32 0.0, %v5324
      %v5326 = vpop.f32.mrf.mxu0
      %5327 = vdwg.mxu0
      %v5329 = vsel %vm3393, %v4826, 0
      %v5332 = vsel %vm3393, %v4827, 0
      %v5335 = vsel %vm3393, %v4828, 0
      %v5338 = vsel %vm3393, %v4829, 0
      %5340 = vmatprep.subr.bf16.mxu0 0
      %5341 = vmatpush1.bf16.msra.mxu0 0
      %5342 = vmatprep.subr.bf16.mxu0 0
      %5343 = vmatpush1.bf16.msra.mxu0 0
      %5344 = vmatprep.subr.bf16.mxu0 0
      %5345 = vmatpush1.bf16.msra.mxu0 0
      %5346 = vmatprep.subr.bf16.mxu0 0
      %5347 = vmatpush1.bf16.msra.mxu0 0
      %5348 = vmatprep.subr.bf16.mxu0 0
      %5349 = vmatpush1.bf16.msra.mxu0 %v1687
      %5350 = vmatprep.subr.bf16.mxu0 0
      %5351 = vmatpush1.bf16.msra.mxu0 %v1685
      %5352 = vmatprep.subr.bf16.mxu0 0
      %5353 = vmatpush1.bf16.msra.mxu0 %v1683
      %5354 = vmatprep.subr.bf16.mxu0 0
      %5355 = vmatpush1.bf16.msra.mxu0 %v1681
      %5356 = vmatprep.subr.bf16.mxu0 0
      %5357 = vmatpush2.bf16.msra.mxu0 0
      %5358 = vmatprep.subr.bf16.mxu0 0
      %5359 = vmatpush2.bf16.msra.mxu0 0
      %5360 = vmatprep.subr.bf16.mxu0 0
      %5361 = vmatpush2.bf16.msra.mxu0 0
      %5362 = vmatprep.subr.bf16.mxu0 0
      %5363 = vmatpush2.bf16.msra.mxu0 0
      %5364 = vmatprep.subr.bf16.mxu0 0
      %5365 = vmatpush2.bf16.msra.mxu0 0
      %5366 = vmatprep.subr.bf16.mxu0 0
      %5367 = vmatpush2.bf16.msra.mxu0 0
      %5368 = vmatprep.subr.bf16.mxu0 0
      %5369 = vmatpush2.bf16.msra.mxu0 0
      %5370 = vmatprep.subr.bf16.mxu0 0
      %5371 = vmatpush2.bf16.msra.mxu0 0
      %5372 = vmatprep.mubr.bf16.mxu0 0
      %5373 = vmatmul.mubr.bf16.gmra.mxu0 %v5329
      %v5374 = vpop.f32.mrf.mxu0
      %v5375 = vadd.f32 0.0, %v5374
      %v5376 = vpop.f32.mrf.mxu0
      %v5377 = vpop.f32.mrf.mxu0
      %v5378 = vadd.f32 0.0, %v5377
      %v5379 = vpop.f32.mrf.mxu0
      %5380 = vmatprep.mubr.bf16.mxu0 0
      %5381 = vmatmul.mubr.bf16.gmra.mxu0 %v5332
      %v5382 = vpop.f32.mrf.mxu0
      %v5383 = vadd.f32 0.0, %v5382
      %v5384 = vpop.f32.mrf.mxu0
      %v5385 = vpop.f32.mrf.mxu0
      %v5386 = vadd.f32 0.0, %v5385
      %v5387 = vpop.f32.mrf.mxu0
      %5388 = vmatprep.mubr.bf16.mxu0 0
      %5389 = vmatmul.mubr.bf16.gmra.mxu0 %v5335
      %v5390 = vpop.f32.mrf.mxu0
      %v5391 = vadd.f32 0.0, %v5390
      %v5392 = vpop.f32.mrf.mxu0
      %v5393 = vpop.f32.mrf.mxu0
      %v5394 = vadd.f32 0.0, %v5393
      %v5395 = vpop.f32.mrf.mxu0
      %5396 = vmatprep.mubr.bf16.mxu0 0
      %5397 = vmatmul.mubr.bf16.gmra.mxu0 %v5338
      %v5398 = vpop.f32.mrf.mxu0
      %v5399 = vadd.f32 0.0, %v5398
      %v5400 = vpop.f32.mrf.mxu0
      %v5401 = vpop.f32.mrf.mxu0
      %v5402 = vadd.f32 0.0, %v5401
      %v5403 = vpop.f32.mrf.mxu0
      %5404 = vdwg.mxu0
      %v5406 = vsel %vm3393, %v4830, 0
      %v5409 = vsel %vm3393, %v4831, 0
      %v5412 = vsel %vm3393, %v4832, 0
      %v5415 = vsel %vm3393, %v4833, 0
      %5417 = vmatprep.subr.bf16.mxu0 0
      %5418 = vmatpush1.bf16.msra.mxu0 0
      %5419 = vmatprep.subr.bf16.mxu0 0
      %5420 = vmatpush1.bf16.msra.mxu0 0
      %5421 = vmatprep.subr.bf16.mxu0 0
      %5422 = vmatpush1.bf16.msra.mxu0 0
      %5423 = vmatprep.subr.bf16.mxu0 0
      %5424 = vmatpush1.bf16.msra.mxu0 0
      %5425 = vmatprep.subr.bf16.mxu0 0
      %5426 = vmatpush1.bf16.msra.mxu0 %v1695
      %5427 = vmatprep.subr.bf16.mxu0 0
      %5428 = vmatpush1.bf16.msra.mxu0 %v1693
      %5429 = vmatprep.subr.bf16.mxu0 0
      %5430 = vmatpush1.bf16.msra.mxu0 %v1691
      %5431 = vmatprep.subr.bf16.mxu0 0
      %5432 = vmatpush1.bf16.msra.mxu0 %v1689
      %5433 = vmatprep.subr.bf16.mxu0 0
      %5434 = vmatpush2.bf16.msra.mxu0 0
      %5435 = vmatprep.subr.bf16.mxu0 0
      %5436 = vmatpush2.bf16.msra.mxu0 0
      %5437 = vmatprep.subr.bf16.mxu0 0
      %5438 = vmatpush2.bf16.msra.mxu0 0
      %5439 = vmatprep.subr.bf16.mxu0 0
      %5440 = vmatpush2.bf16.msra.mxu0 0
      %5441 = vmatprep.subr.bf16.mxu0 0
      %5442 = vmatpush2.bf16.msra.mxu0 0
      %5443 = vmatprep.subr.bf16.mxu0 0
      %5444 = vmatpush2.bf16.msra.mxu0 0
      %5445 = vmatprep.subr.bf16.mxu0 0
      %5446 = vmatpush2.bf16.msra.mxu0 0
      %5447 = vmatprep.subr.bf16.mxu0 0
      %5448 = vmatpush2.bf16.msra.mxu0 0
      %5449 = vmatprep.mubr.bf16.mxu0 0
      %5450 = vmatmul.mubr.bf16.gmra.mxu0 %v5406
      %v5451 = vpop.f32.mrf.mxu0
      %v5452 = vadd.f32 0.0, %v5451
      %v5453 = vpop.f32.mrf.mxu0
      %v5454 = vpop.f32.mrf.mxu0
      %v5455 = vadd.f32 0.0, %v5454
      %v5456 = vpop.f32.mrf.mxu0
      %5457 = vmatprep.mubr.bf16.mxu0 0
      %5458 = vmatmul.mubr.bf16.gmra.mxu0 %v5409
      %v5459 = vpop.f32.mrf.mxu0
      %v5460 = vadd.f32 0.0, %v5459
      %v5461 = vpop.f32.mrf.mxu0
      %v5462 = vpop.f32.mrf.mxu0
      %v5463 = vadd.f32 0.0, %v5462
      %v5464 = vpop.f32.mrf.mxu0
      %5465 = vmatprep.mubr.bf16.mxu0 0
      %5466 = vmatmul.mubr.bf16.gmra.mxu0 %v5412
      %v5467 = vpop.f32.mrf.mxu0
      %v5468 = vadd.f32 0.0, %v5467
      %v5469 = vpop.f32.mrf.mxu0
      %v5470 = vpop.f32.mrf.mxu0
      %v5471 = vadd.f32 0.0, %v5470
      %v5472 = vpop.f32.mrf.mxu0
      %5473 = vmatprep.mubr.bf16.mxu0 0
      %5474 = vmatmul.mubr.bf16.gmra.mxu0 %v5415
      %v5475 = vpop.f32.mrf.mxu0
      %v5476 = vadd.f32 0.0, %v5475
      %v5477 = vpop.f32.mrf.mxu0
      %v5478 = vpop.f32.mrf.mxu0
      %v5479 = vadd.f32 0.0, %v5478
      %v5480 = vpop.f32.mrf.mxu0
      %5481 = vdwg.mxu0
      %v5483 = vsel %vm3393, %v4834, 0
      %v5486 = vsel %vm3393, %v4835, 0
      %v5489 = vsel %vm3393, %v4836, 0
      %v5492 = vsel %vm3393, %v4837, 0
      %5494 = vmatprep.subr.bf16.mxu0 0
      %5495 = vmatpush1.bf16.msra.mxu0 0
      %5496 = vmatprep.subr.bf16.mxu0 0
      %5497 = vmatpush1.bf16.msra.mxu0 0
      %5498 = vmatprep.subr.bf16.mxu0 0
      %5499 = vmatpush1.bf16.msra.mxu0 0
      %5500 = vmatprep.subr.bf16.mxu0 0
      %5501 = vmatpush1.bf16.msra.mxu0 0
      %5502 = vmatprep.subr.bf16.mxu0 0
      %5503 = vmatpush1.bf16.msra.mxu0 %v1719
      %5504 = vmatprep.subr.bf16.mxu0 0
      %5505 = vmatpush1.bf16.msra.mxu0 %v1717
      %5506 = vmatprep.subr.bf16.mxu0 0
      %5507 = vmatpush1.bf16.msra.mxu0 %v1715
      %5508 = vmatprep.subr.bf16.mxu0 0
      %5509 = vmatpush1.bf16.msra.mxu0 %v1713
      %5510 = vmatprep.subr.bf16.mxu0 0
      %5511 = vmatpush2.bf16.msra.mxu0 0
      %5512 = vmatprep.subr.bf16.mxu0 0
      %5513 = vmatpush2.bf16.msra.mxu0 0
      %5514 = vmatprep.subr.bf16.mxu0 0
      %5515 = vmatpush2.bf16.msra.mxu0 0
      %5516 = vmatprep.subr.bf16.mxu0 0
      %5517 = vmatpush2.bf16.msra.mxu0 0
      %5518 = vmatprep.subr.bf16.mxu0 0
      %5519 = vmatpush2.bf16.msra.mxu0 0
      %5520 = vmatprep.subr.bf16.mxu0 0
      %5521 = vmatpush2.bf16.msra.mxu0 0
      %5522 = vmatprep.subr.bf16.mxu0 0
      %5523 = vmatpush2.bf16.msra.mxu0 0
      %5524 = vmatprep.subr.bf16.mxu0 0
      %5525 = vmatpush2.bf16.msra.mxu0 0
      %5526 = vmatprep.mubr.bf16.mxu0 0
      %5527 = vmatmul.mubr.bf16.gmra.mxu0 %v5483
      %v5528 = vpop.f32.mrf.mxu0
      %v5529 = vadd.f32 0.0, %v5528
      %v5530 = vpop.f32.mrf.mxu0
      %v5531 = vpop.f32.mrf.mxu0
      %v5532 = vadd.f32 0.0, %v5531
      %v5533 = vpop.f32.mrf.mxu0
      %5534 = vmatprep.mubr.bf16.mxu0 0
      %5535 = vmatmul.mubr.bf16.gmra.mxu0 %v5486
      %v5536 = vpop.f32.mrf.mxu0
      %v5537 = vadd.f32 0.0, %v5536
      %v5538 = vpop.f32.mrf.mxu0
      %v5539 = vpop.f32.mrf.mxu0
      %v5540 = vadd.f32 0.0, %v5539
      %v5541 = vpop.f32.mrf.mxu0
      %5542 = vmatprep.mubr.bf16.mxu0 0
      %5543 = vmatmul.mubr.bf16.gmra.mxu0 %v5489
      %v5544 = vpop.f32.mrf.mxu0
      %v5545 = vadd.f32 0.0, %v5544
      %v5546 = vpop.f32.mrf.mxu0
      %v5547 = vpop.f32.mrf.mxu0
      %v5548 = vadd.f32 0.0, %v5547
      %v5549 = vpop.f32.mrf.mxu0
      %5550 = vmatprep.mubr.bf16.mxu0 0
      %5551 = vmatmul.mubr.bf16.gmra.mxu0 %v5492
      %v5552 = vpop.f32.mrf.mxu0
      %v5553 = vadd.f32 0.0, %v5552
      %v5554 = vpop.f32.mrf.mxu0
      %v5555 = vpop.f32.mrf.mxu0
      %v5556 = vadd.f32 0.0, %v5555
      %v5557 = vpop.f32.mrf.mxu0
      %5558 = vdwg.mxu0
      %v5560 = vsel %vm3393, %v4838, 0
      %v5563 = vsel %vm3393, %v4839, 0
      %v5566 = vsel %vm3393, %v4840, 0
      %v5569 = vsel %vm3393, %v4841, 0
      %5571 = vmatprep.subr.bf16.mxu0 0
      %5572 = vmatpush1.bf16.msra.mxu0 0
      %5573 = vmatprep.subr.bf16.mxu0 0
      %5574 = vmatpush1.bf16.msra.mxu0 0
      %5575 = vmatprep.subr.bf16.mxu0 0
      %5576 = vmatpush1.bf16.msra.mxu0 0
      %5577 = vmatprep.subr.bf16.mxu0 0
      %5578 = vmatpush1.bf16.msra.mxu0 0
      %5579 = vmatprep.subr.bf16.mxu0 0
      %5580 = vmatpush1.bf16.msra.mxu0 %v1727
      %5581 = vmatprep.subr.bf16.mxu0 0
      %5582 = vmatpush1.bf16.msra.mxu0 %v1725
      %5583 = vmatprep.subr.bf16.mxu0 0
      %5584 = vmatpush1.bf16.msra.mxu0 %v1723
      %5585 = vmatprep.subr.bf16.mxu0 0
      %5586 = vmatpush1.bf16.msra.mxu0 %v1721
      %5587 = vmatprep.subr.bf16.mxu0 0
      %5588 = vmatpush2.bf16.msra.mxu0 0
      %5589 = vmatprep.subr.bf16.mxu0 0
      %5590 = vmatpush2.bf16.msra.mxu0 0
      %5591 = vmatprep.subr.bf16.mxu0 0
      %5592 = vmatpush2.bf16.msra.mxu0 0
      %5593 = vmatprep.subr.bf16.mxu0 0
      %5594 = vmatpush2.bf16.msra.mxu0 0
      %5595 = vmatprep.subr.bf16.mxu0 0
      %5596 = vmatpush2.bf16.msra.mxu0 0
      %5597 = vmatprep.subr.bf16.mxu0 0
      %5598 = vmatpush2.bf16.msra.mxu0 0
      %5599 = vmatprep.subr.bf16.mxu0 0
      %5600 = vmatpush2.bf16.msra.mxu0 0
      %5601 = vmatprep.subr.bf16.mxu0 0
      %5602 = vmatpush2.bf16.msra.mxu0 0
      %5603 = vmatprep.mubr.bf16.mxu0 0
      %5604 = vmatmul.mubr.bf16.gmra.mxu0 %v5560
      %v5605 = vpop.f32.mrf.mxu0
      %v5606 = vadd.f32 0.0, %v5605
      %v5607 = vpop.f32.mrf.mxu0
      %v5608 = vpop.f32.mrf.mxu0
      %v5609 = vadd.f32 0.0, %v5608
      %v5610 = vpop.f32.mrf.mxu0
      %5611 = vmatprep.mubr.bf16.mxu0 0
      %5612 = vmatmul.mubr.bf16.gmra.mxu0 %v5563
      %v5613 = vpop.f32.mrf.mxu0
      %v5614 = vadd.f32 0.0, %v5613
      %v5615 = vpop.f32.mrf.mxu0
      %v5616 = vpop.f32.mrf.mxu0
      %v5617 = vadd.f32 0.0, %v5616
      %v5618 = vpop.f32.mrf.mxu0
      %5619 = vmatprep.mubr.bf16.mxu0 0
      %5620 = vmatmul.mubr.bf16.gmra.mxu0 %v5566
      %v5621 = vpop.f32.mrf.mxu0
      %v5622 = vadd.f32 0.0, %v5621
      %v5623 = vpop.f32.mrf.mxu0
      %v5624 = vpop.f32.mrf.mxu0
      %v5625 = vadd.f32 0.0, %v5624
      %v5626 = vpop.f32.mrf.mxu0
      %5627 = vmatprep.mubr.bf16.mxu0 0
      %5628 = vmatmul.mubr.bf16.gmra.mxu0 %v5569
      %v5629 = vpop.f32.mrf.mxu0
      %v5630 = vadd.f32 0.0, %v5629
      %v5631 = vpop.f32.mrf.mxu0
      %v5632 = vpop.f32.mrf.mxu0
      %v5633 = vadd.f32 0.0, %v5632
      %v5634 = vpop.f32.mrf.mxu0
      %5635 = vdwg.mxu0
      %v5637 = vsel %vm3393, %v4842, 0
      %v5640 = vsel %vm3393, %v4843, 0
      %v5643 = vsel %vm3393, %v4844, 0
      %v5646 = vsel %vm3393, %v4845, 0
      %5648 = vmatprep.subr.bf16.mxu0 0
      %5649 = vmatpush1.bf16.msra.mxu0 0
      %5650 = vmatprep.subr.bf16.mxu0 0
      %5651 = vmatpush1.bf16.msra.mxu0 0
      %5652 = vmatprep.subr.bf16.mxu0 0
      %5653 = vmatpush1.bf16.msra.mxu0 0
      %5654 = vmatprep.subr.bf16.mxu0 0
      %5655 = vmatpush1.bf16.msra.mxu0 0
      %5656 = vmatprep.subr.bf16.mxu0 0
      %5657 = vmatpush1.bf16.msra.mxu0 %v1735
      %5658 = vmatprep.subr.bf16.mxu0 0
      %5659 = vmatpush1.bf16.msra.mxu0 %v1733
      %5660 = vmatprep.subr.bf16.mxu0 0
      %5661 = vmatpush1.bf16.msra.mxu0 %v1731
      %5662 = vmatprep.subr.bf16.mxu0 0
      %5663 = vmatpush1.bf16.msra.mxu0 %v1729
      %5664 = vmatprep.subr.bf16.mxu0 0
      %5665 = vmatpush2.bf16.msra.mxu0 0
      %5666 = vmatprep.subr.bf16.mxu0 0
      %5667 = vmatpush2.bf16.msra.mxu0 0
      %5668 = vmatprep.subr.bf16.mxu0 0
      %5669 = vmatpush2.bf16.msra.mxu0 0
      %5670 = vmatprep.subr.bf16.mxu0 0
      %5671 = vmatpush2.bf16.msra.mxu0 0
      %5672 = vmatprep.subr.bf16.mxu0 0
      %5673 = vmatpush2.bf16.msra.mxu0 0
      %5674 = vmatprep.subr.bf16.mxu0 0
      %5675 = vmatpush2.bf16.msra.mxu0 0
      %5676 = vmatprep.subr.bf16.mxu0 0
      %5677 = vmatpush2.bf16.msra.mxu0 0
      %5678 = vmatprep.subr.bf16.mxu0 0
      %5679 = vmatpush2.bf16.msra.mxu0 0
      %5680 = vmatprep.mubr.bf16.mxu0 0
      %5681 = vmatmul.mubr.bf16.gmra.mxu0 %v5637
      %v5682 = vpop.f32.mrf.mxu0
      %v5683 = vadd.f32 0.0, %v5682
      %v5684 = vpop.f32.mrf.mxu0
      %v5685 = vpop.f32.mrf.mxu0
      %v5686 = vadd.f32 0.0, %v5685
      %v5687 = vpop.f32.mrf.mxu0
      %5688 = vmatprep.mubr.bf16.mxu0 0
      %5689 = vmatmul.mubr.bf16.gmra.mxu0 %v5640
      %v5690 = vpop.f32.mrf.mxu0
      %v5691 = vadd.f32 0.0, %v5690
      %v5692 = vpop.f32.mrf.mxu0
      %v5693 = vpop.f32.mrf.mxu0
      %v5694 = vadd.f32 0.0, %v5693
      %v5695 = vpop.f32.mrf.mxu0
      %5696 = vmatprep.mubr.bf16.mxu0 0
      %5697 = vmatmul.mubr.bf16.gmra.mxu0 %v5643
      %v5698 = vpop.f32.mrf.mxu0
      %v5699 = vadd.f32 0.0, %v5698
      %v5700 = vpop.f32.mrf.mxu0
      %v5701 = vpop.f32.mrf.mxu0
      %v5702 = vadd.f32 0.0, %v5701
      %v5703 = vpop.f32.mrf.mxu0
      %5704 = vmatprep.mubr.bf16.mxu0 0
      %5705 = vmatmul.mubr.bf16.gmra.mxu0 %v5646
      %v5706 = vpop.f32.mrf.mxu0
      %v5707 = vadd.f32 0.0, %v5706
      %v5708 = vpop.f32.mrf.mxu0
      %v5709 = vpop.f32.mrf.mxu0
      %v5710 = vadd.f32 0.0, %v5709
      %v5711 = vpop.f32.mrf.mxu0
      %5712 = vdwg.mxu0
      %v5714 = vsel %vm3393, %v4846, 0
      %v5717 = vsel %vm3393, %v4847, 0
      %v5720 = vsel %vm3393, %v4848, 0
      %v5723 = vsel %vm3393, %v4849, 0
      %5725 = vmatprep.subr.bf16.mxu0 0
      %5726 = vmatpush1.bf16.msra.mxu0 0
      %5727 = vmatprep.subr.bf16.mxu0 0
      %5728 = vmatpush1.bf16.msra.mxu0 0
      %5729 = vmatprep.subr.bf16.mxu0 0
      %5730 = vmatpush1.bf16.msra.mxu0 0
      %5731 = vmatprep.subr.bf16.mxu0 0
      %5732 = vmatpush1.bf16.msra.mxu0 0
      %5733 = vmatprep.subr.bf16.mxu0 0
      %5734 = vmatpush1.bf16.msra.mxu0 %v1743
      %5735 = vmatprep.subr.bf16.mxu0 0
      %5736 = vmatpush1.bf16.msra.mxu0 %v1741
      %5737 = vmatprep.subr.bf16.mxu0 0
      %5738 = vmatpush1.bf16.msra.mxu0 %v1739
      %5739 = vmatprep.subr.bf16.mxu0 0
      %5740 = vmatpush1.bf16.msra.mxu0 %v1737
      %5741 = vmatprep.subr.bf16.mxu0 0
      %5742 = vmatpush2.bf16.msra.mxu0 0
      %5743 = vmatprep.subr.bf16.mxu0 0
      %5744 = vmatpush2.bf16.msra.mxu0 0
      %5745 = vmatprep.subr.bf16.mxu0 0
      %5746 = vmatpush2.bf16.msra.mxu0 0
      %5747 = vmatprep.subr.bf16.mxu0 0
      %5748 = vmatpush2.bf16.msra.mxu0 0
      %5749 = vmatprep.subr.bf16.mxu0 0
      %5750 = vmatpush2.bf16.msra.mxu0 0
      %5751 = vmatprep.subr.bf16.mxu0 0
      %5752 = vmatpush2.bf16.msra.mxu0 0
      %5753 = vmatprep.subr.bf16.mxu0 0
      %5754 = vmatpush2.bf16.msra.mxu0 0
      %5755 = vmatprep.subr.bf16.mxu0 0
      %5756 = vmatpush2.bf16.msra.mxu0 0
      %5757 = vmatprep.mubr.bf16.mxu0 0
      %5758 = vmatmul.mubr.bf16.gmra.mxu0 %v5714
      %v5759 = vpop.f32.mrf.mxu0
      %v5760 = vadd.f32 0.0, %v5759
      %v5761 = vpop.f32.mrf.mxu0
      %v5762 = vpop.f32.mrf.mxu0
      %v5763 = vadd.f32 0.0, %v5762
      %v5764 = vpop.f32.mrf.mxu0
      %5765 = vmatprep.mubr.bf16.mxu0 0
      %5766 = vmatmul.mubr.bf16.gmra.mxu0 %v5717
      %v5767 = vpop.f32.mrf.mxu0
      %v5768 = vadd.f32 0.0, %v5767
      %v5769 = vpop.f32.mrf.mxu0
      %v5770 = vpop.f32.mrf.mxu0
      %v5771 = vadd.f32 0.0, %v5770
      %v5772 = vpop.f32.mrf.mxu0
      %5773 = vmatprep.mubr.bf16.mxu0 0
      %5774 = vmatmul.mubr.bf16.gmra.mxu0 %v5720
      %v5775 = vpop.f32.mrf.mxu0
      %v5776 = vadd.f32 0.0, %v5775
      %v5777 = vpop.f32.mrf.mxu0
      %v5778 = vpop.f32.mrf.mxu0
      %v5779 = vadd.f32 0.0, %v5778
      %v5780 = vpop.f32.mrf.mxu0
      %5781 = vmatprep.mubr.bf16.mxu0 0
      %5782 = vmatmul.mubr.bf16.gmra.mxu0 %v5723
      %v5783 = vpop.f32.mrf.mxu0
      %v5784 = vadd.f32 0.0, %v5783
      %v5785 = vpop.f32.mrf.mxu0
      %v5786 = vpop.f32.mrf.mxu0
      %v5787 = vadd.f32 0.0, %v5786
      %v5788 = vpop.f32.mrf.mxu0
      %5789 = vdwg.mxu0
      %v5791 = vsel %vm3393, %v4850, 0
      %v5794 = vsel %vm3393, %v4851, 0
      %v5797 = vsel %vm3393, %v4852, 0
      %v5800 = vsel %vm3393, %v4853, 0
      %5802 = vmatprep.subr.bf16.mxu0 0
      %5803 = vmatpush1.bf16.msra.mxu0 0
      %5804 = vmatprep.subr.bf16.mxu0 0
      %5805 = vmatpush1.bf16.msra.mxu0 0
      %5806 = vmatprep.subr.bf16.mxu0 0
      %5807 = vmatpush1.bf16.msra.mxu0 0
      %5808 = vmatprep.subr.bf16.mxu0 0
      %5809 = vmatpush1.bf16.msra.mxu0 0
      %5810 = vmatprep.subr.bf16.mxu0 0
      %5811 = vmatpush1.bf16.msra.mxu0 %v1767
      %5812 = vmatprep.subr.bf16.mxu0 0
      %5813 = vmatpush1.bf16.msra.mxu0 %v1765
      %5814 = vmatprep.subr.bf16.mxu0 0
      %5815 = vmatpush1.bf16.msra.mxu0 %v1763
      %5816 = vmatprep.subr.bf16.mxu0 0
      %5817 = vmatpush1.bf16.msra.mxu0 %v1761
      %5818 = vmatprep.subr.bf16.mxu0 0
      %5819 = vmatpush2.bf16.msra.mxu0 0
      %5820 = vmatprep.subr.bf16.mxu0 0
      %5821 = vmatpush2.bf16.msra.mxu0 0
      %5822 = vmatprep.subr.bf16.mxu0 0
      %5823 = vmatpush2.bf16.msra.mxu0 0
      %5824 = vmatprep.subr.bf16.mxu0 0
      %5825 = vmatpush2.bf16.msra.mxu0 0
      %5826 = vmatprep.subr.bf16.mxu0 0
      %5827 = vmatpush2.bf16.msra.mxu0 0
      %5828 = vmatprep.subr.bf16.mxu0 0
      %5829 = vmatpush2.bf16.msra.mxu0 0
      %5830 = vmatprep.subr.bf16.mxu0 0
      %5831 = vmatpush2.bf16.msra.mxu0 0
      %5832 = vmatprep.subr.bf16.mxu0 0
      %5833 = vmatpush2.bf16.msra.mxu0 0
      %5834 = vmatprep.mubr.bf16.mxu0 0
      %5835 = vmatmul.mubr.bf16.gmra.mxu0 %v5791
      %v5836 = vpop.f32.mrf.mxu0
      %v5837 = vadd.f32 0.0, %v5836
      %v5838 = vpop.f32.mrf.mxu0
      %v5839 = vpop.f32.mrf.mxu0
      %v5840 = vadd.f32 0.0, %v5839
      %v5841 = vpop.f32.mrf.mxu0
      %5842 = vmatprep.mubr.bf16.mxu0 0
      %5843 = vmatmul.mubr.bf16.gmra.mxu0 %v5794
      %v5844 = vpop.f32.mrf.mxu0
      %v5845 = vadd.f32 0.0, %v5844
      %v5846 = vpop.f32.mrf.mxu0
      %v5847 = vpop.f32.mrf.mxu0
      %v5848 = vadd.f32 0.0, %v5847
      %v5849 = vpop.f32.mrf.mxu0
      %5850 = vmatprep.mubr.bf16.mxu0 0
      %5851 = vmatmul.mubr.bf16.gmra.mxu0 %v5797
      %v5852 = vpop.f32.mrf.mxu0
      %v5853 = vadd.f32 0.0, %v5852
      %v5854 = vpop.f32.mrf.mxu0
      %v5855 = vpop.f32.mrf.mxu0
      %v5856 = vadd.f32 0.0, %v5855
      %v5857 = vpop.f32.mrf.mxu0
      %5858 = vmatprep.mubr.bf16.mxu0 0
      %5859 = vmatmul.mubr.bf16.gmra.mxu0 %v5800
      %v5860 = vpop.f32.mrf.mxu0
      %v5861 = vadd.f32 0.0, %v5860
      %v5862 = vpop.f32.mrf.mxu0
      %v5863 = vpop.f32.mrf.mxu0
      %v5864 = vadd.f32 0.0, %v5863
      %v5865 = vpop.f32.mrf.mxu0
      %5866 = vdwg.mxu0
      %v5868 = vsel %vm3393, %v4854, 0
      %v5871 = vsel %vm3393, %v4855, 0
      %v5874 = vsel %vm3393, %v4856, 0
      %v5877 = vsel %vm3393, %v4857, 0
      %5879 = vmatprep.subr.bf16.mxu0 0
      %5880 = vmatpush1.bf16.msra.mxu0 0
      %5881 = vmatprep.subr.bf16.mxu0 0
      %5882 = vmatpush1.bf16.msra.mxu0 0
      %5883 = vmatprep.subr.bf16.mxu0 0
      %5884 = vmatpush1.bf16.msra.mxu0 0
      %5885 = vmatprep.subr.bf16.mxu0 0
      %5886 = vmatpush1.bf16.msra.mxu0 0
      %5887 = vmatprep.subr.bf16.mxu0 0
      %5888 = vmatpush1.bf16.msra.mxu0 %v1775
      %5889 = vmatprep.subr.bf16.mxu0 0
      %5890 = vmatpush1.bf16.msra.mxu0 %v1773
      %5891 = vmatprep.subr.bf16.mxu0 0
      %5892 = vmatpush1.bf16.msra.mxu0 %v1771
      %5893 = vmatprep.subr.bf16.mxu0 0
      %5894 = vmatpush1.bf16.msra.mxu0 %v1769
      %5895 = vmatprep.subr.bf16.mxu0 0
      %5896 = vmatpush2.bf16.msra.mxu0 0
      %5897 = vmatprep.subr.bf16.mxu0 0
      %5898 = vmatpush2.bf16.msra.mxu0 0
      %5899 = vmatprep.subr.bf16.mxu0 0
      %5900 = vmatpush2.bf16.msra.mxu0 0
      %5901 = vmatprep.subr.bf16.mxu0 0
      %5902 = vmatpush2.bf16.msra.mxu0 0
      %5903 = vmatprep.subr.bf16.mxu0 0
      %5904 = vmatpush2.bf16.msra.mxu0 0
      %5905 = vmatprep.subr.bf16.mxu0 0
      %5906 = vmatpush2.bf16.msra.mxu0 0
      %5907 = vmatprep.subr.bf16.mxu0 0
      %5908 = vmatpush2.bf16.msra.mxu0 0
      %5909 = vmatprep.subr.bf16.mxu0 0
      %5910 = vmatpush2.bf16.msra.mxu0 0
      %5911 = vmatprep.mubr.bf16.mxu0 0
      %5912 = vmatmul.mubr.bf16.gmra.mxu0 %v5868
      %v5913 = vpop.f32.mrf.mxu0
      %v5914 = vadd.f32 0.0, %v5913
      %v5915 = vpop.f32.mrf.mxu0
      %v5916 = vpop.f32.mrf.mxu0
      %v5917 = vadd.f32 0.0, %v5916
      %v5918 = vpop.f32.mrf.mxu0
      %5919 = vmatprep.mubr.bf16.mxu0 0
      %5920 = vmatmul.mubr.bf16.gmra.mxu0 %v5871
      %v5921 = vpop.f32.mrf.mxu0
      %v5922 = vadd.f32 0.0, %v5921
      %v5923 = vpop.f32.mrf.mxu0
      %v5924 = vpop.f32.mrf.mxu0
      %v5925 = vadd.f32 0.0, %v5924
      %v5926 = vpop.f32.mrf.mxu0
      %5927 = vmatprep.mubr.bf16.mxu0 0
      %5928 = vmatmul.mubr.bf16.gmra.mxu0 %v5874
      %v5929 = vpop.f32.mrf.mxu0
      %v5930 = vadd.f32 0.0, %v5929
      %v5931 = vpop.f32.mrf.mxu0
      %v5932 = vpop.f32.mrf.mxu0
      %v5933 = vadd.f32 0.0, %v5932
      %v5934 = vpop.f32.mrf.mxu0
      %5935 = vmatprep.mubr.bf16.mxu0 0
      %5936 = vmatmul.mubr.bf16.gmra.mxu0 %v5877
      %v5937 = vpop.f32.mrf.mxu0
      %v5938 = vadd.f32 0.0, %v5937
      %v5939 = vpop.f32.mrf.mxu0
      %v5940 = vpop.f32.mrf.mxu0
      %v5941 = vadd.f32 0.0, %v5940
      %v5942 = vpop.f32.mrf.mxu0
      %5943 = vdwg.mxu0
      %v5945 = vsel %vm3393, %v4858, 0
      %v5948 = vsel %vm3393, %v4859, 0
      %v5951 = vsel %vm3393, %v4860, 0
      %v5954 = vsel %vm3393, %v4861, 0
      %5956 = vmatprep.subr.bf16.mxu0 0
      %5957 = vmatpush1.bf16.msra.mxu0 0
      %5958 = vmatprep.subr.bf16.mxu0 0
      %5959 = vmatpush1.bf16.msra.mxu0 0
      %5960 = vmatprep.subr.bf16.mxu0 0
      %5961 = vmatpush1.bf16.msra.mxu0 0
      %5962 = vmatprep.subr.bf16.mxu0 0
      %5963 = vmatpush1.bf16.msra.mxu0 0
      %5964 = vmatprep.subr.bf16.mxu0 0
      %5965 = vmatpush1.bf16.msra.mxu0 %v1783
      %5966 = vmatprep.subr.bf16.mxu0 0
      %5967 = vmatpush1.bf16.msra.mxu0 %v1781
      %5968 = vmatprep.subr.bf16.mxu0 0
      %5969 = vmatpush1.bf16.msra.mxu0 %v1779
      %5970 = vmatprep.subr.bf16.mxu0 0
      %5971 = vmatpush1.bf16.msra.mxu0 %v1777
      %5972 = vmatprep.subr.bf16.mxu0 0
      %5973 = vmatpush2.bf16.msra.mxu0 0
      %5974 = vmatprep.subr.bf16.mxu0 0
      %5975 = vmatpush2.bf16.msra.mxu0 0
      %5976 = vmatprep.subr.bf16.mxu0 0
      %5977 = vmatpush2.bf16.msra.mxu0 0
      %5978 = vmatprep.subr.bf16.mxu0 0
      %5979 = vmatpush2.bf16.msra.mxu0 0
      %5980 = vmatprep.subr.bf16.mxu0 0
      %5981 = vmatpush2.bf16.msra.mxu0 0
      %5982 = vmatprep.subr.bf16.mxu0 0
      %5983 = vmatpush2.bf16.msra.mxu0 0
      %5984 = vmatprep.subr.bf16.mxu0 0
      %5985 = vmatpush2.bf16.msra.mxu0 0
      %5986 = vmatprep.subr.bf16.mxu0 0
      %5987 = vmatpush2.bf16.msra.mxu0 0
      %5988 = vmatprep.mubr.bf16.mxu0 0
      %5989 = vmatmul.mubr.bf16.gmra.mxu0 %v5945
      %v5990 = vpop.f32.mrf.mxu0
      %v5991 = vadd.f32 0.0, %v5990
      %v5992 = vpop.f32.mrf.mxu0
      %v5993 = vpop.f32.mrf.mxu0
      %v5994 = vadd.f32 0.0, %v5993
      %v5995 = vpop.f32.mrf.mxu0
      %5996 = vmatprep.mubr.bf16.mxu0 0
      %5997 = vmatmul.mubr.bf16.gmra.mxu0 %v5948
      %v5998 = vpop.f32.mrf.mxu0
      %v5999 = vadd.f32 0.0, %v5998
      %v6000 = vpop.f32.mrf.mxu0
      %v6001 = vpop.f32.mrf.mxu0
      %v6002 = vadd.f32 0.0, %v6001
      %v6003 = vpop.f32.mrf.mxu0
      %6004 = vmatprep.mubr.bf16.mxu0 0
      %6005 = vmatmul.mubr.bf16.gmra.mxu0 %v5951
      %v6006 = vpop.f32.mrf.mxu0
      %v6007 = vadd.f32 0.0, %v6006
      %v6008 = vpop.f32.mrf.mxu0
      %v6009 = vpop.f32.mrf.mxu0
      %v6010 = vadd.f32 0.0, %v6009
      %v6011 = vpop.f32.mrf.mxu0
      %6012 = vmatprep.mubr.bf16.mxu0 0
      %6013 = vmatmul.mubr.bf16.gmra.mxu0 %v5954
      %v6014 = vpop.f32.mrf.mxu0
      %v6015 = vadd.f32 0.0, %v6014
      %v6016 = vpop.f32.mrf.mxu0
      %v6017 = vpop.f32.mrf.mxu0
      %v6018 = vadd.f32 0.0, %v6017
      %v6019 = vpop.f32.mrf.mxu0
      %6020 = vdwg.mxu0
      %v6022 = vsel %vm3393, %v4862, 0
      %v6025 = vsel %vm3393, %v4863, 0
      %v6028 = vsel %vm3393, %v4864, 0
      %v6031 = vsel %vm3393, %v4865, 0
      %6033 = vmatprep.subr.bf16.mxu0 0
      %6034 = vmatpush1.bf16.msra.mxu0 0
      %6035 = vmatprep.subr.bf16.mxu0 0
      %6036 = vmatpush1.bf16.msra.mxu0 0
      %6037 = vmatprep.subr.bf16.mxu0 0
      %6038 = vmatpush1.bf16.msra.mxu0 0
      %6039 = vmatprep.subr.bf16.mxu0 0
      %6040 = vmatpush1.bf16.msra.mxu0 0
      %6041 = vmatprep.subr.bf16.mxu0 0
      %6042 = vmatpush1.bf16.msra.mxu0 %v1791
      %6043 = vmatprep.subr.bf16.mxu0 0
      %6044 = vmatpush1.bf16.msra.mxu0 %v1789
      %6045 = vmatprep.subr.bf16.mxu0 0
      %6046 = vmatpush1.bf16.msra.mxu0 %v1787
      %6047 = vmatprep.subr.bf16.mxu0 0
      %6048 = vmatpush1.bf16.msra.mxu0 %v1785
      %6049 = vmatprep.subr.bf16.mxu0 0
      %6050 = vmatpush2.bf16.msra.mxu0 0
      %6051 = vmatprep.subr.bf16.mxu0 0
      %6052 = vmatpush2.bf16.msra.mxu0 0
      %6053 = vmatprep.subr.bf16.mxu0 0
      %6054 = vmatpush2.bf16.msra.mxu0 0
      %6055 = vmatprep.subr.bf16.mxu0 0
      %6056 = vmatpush2.bf16.msra.mxu0 0
      %6057 = vmatprep.subr.bf16.mxu0 0
      %6058 = vmatpush2.bf16.msra.mxu0 0
      %6059 = vmatprep.subr.bf16.mxu0 0
      %6060 = vmatpush2.bf16.msra.mxu0 0
      %6061 = vmatprep.subr.bf16.mxu0 0
      %6062 = vmatpush2.bf16.msra.mxu0 0
      %6063 = vmatprep.subr.bf16.mxu0 0
      %6064 = vmatpush2.bf16.msra.mxu0 0
      %6065 = vmatprep.mubr.bf16.mxu0 0
      %6066 = vmatmul.mubr.bf16.gmra.mxu0 %v6022
      %v6067 = vpop.f32.mrf.mxu0
      %v6068 = vadd.f32 0.0, %v6067
      %v6069 = vpop.f32.mrf.mxu0
      %v6070 = vpop.f32.mrf.mxu0
      %v6071 = vadd.f32 0.0, %v6070
      %v6072 = vpop.f32.mrf.mxu0
      %6073 = vmatprep.mubr.bf16.mxu0 0
      %6074 = vmatmul.mubr.bf16.gmra.mxu0 %v6025
      %v6075 = vpop.f32.mrf.mxu0
      %v6076 = vadd.f32 0.0, %v6075
      %v6077 = vpop.f32.mrf.mxu0
      %v6078 = vpop.f32.mrf.mxu0
      %v6079 = vadd.f32 0.0, %v6078
      %v6080 = vpop.f32.mrf.mxu0
      %6081 = vmatprep.mubr.bf16.mxu0 0
      %6082 = vmatmul.mubr.bf16.gmra.mxu0 %v6028
      %v6083 = vpop.f32.mrf.mxu0
      %v6084 = vadd.f32 0.0, %v6083
      %v6085 = vpop.f32.mrf.mxu0
      %v6086 = vpop.f32.mrf.mxu0
      %v6087 = vadd.f32 0.0, %v6086
      %v6088 = vpop.f32.mrf.mxu0
      %6089 = vmatprep.mubr.bf16.mxu0 0
      %6090 = vmatmul.mubr.bf16.gmra.mxu0 %v6031
      %v6091 = vpop.f32.mrf.mxu0
      %v6092 = vadd.f32 0.0, %v6091
      %v6093 = vpop.f32.mrf.mxu0
      %v6094 = vpop.f32.mrf.mxu0
      %v6095 = vadd.f32 0.0, %v6094
      %v6096 = vpop.f32.mrf.mxu0
      %6097 = vdwg.mxu0
      %v6098 = vpack.c.bf16 %v4916, %v4913
      %v6099 = vpack.c.bf16 %v4924, %v4921
      %v6100 = vpack.c.bf16 %v4932, %v4929
      %v6101 = vpack.c.bf16 %v4940, %v4937
      %v6102 = vpack.c.bf16 %v4993, %v4990
      %v6103 = vpack.c.bf16 %v5001, %v4998
      %v6104 = vpack.c.bf16 %v5009, %v5006
      %v6105 = vpack.c.bf16 %v5017, %v5014
      %v6106 = vpack.c.bf16 %v5070, %v5067
      %v6107 = vpack.c.bf16 %v5078, %v5075
      %v6108 = vpack.c.bf16 %v5086, %v5083
      %v6109 = vpack.c.bf16 %v5094, %v5091
      %v6110 = vpack.c.bf16 %v5147, %v5144
      %v6111 = vpack.c.bf16 %v5155, %v5152
      %v6112 = vpack.c.bf16 %v5163, %v5160
      %v6113 = vpack.c.bf16 %v5171, %v5168
      %v6114 = vpack.c.bf16 %v5224, %v5221
      %v6115 = vpack.c.bf16 %v5232, %v5229
      %v6116 = vpack.c.bf16 %v5240, %v5237
      %v6117 = vpack.c.bf16 %v5248, %v5245
      %v6118 = vpack.c.bf16 %v5301, %v5298
      %v6119 = vpack.c.bf16 %v5309, %v5306
      %v6120 = vpack.c.bf16 %v5317, %v5314
      %v6121 = vpack.c.bf16 %v5325, %v5322
      %v6122 = vpack.c.bf16 %v5378, %v5375
      %v6123 = vpack.c.bf16 %v5386, %v5383
      %v6124 = vpack.c.bf16 %v5394, %v5391
      %v6125 = vpack.c.bf16 %v5402, %v5399
      %v6126 = vpack.c.bf16 %v5455, %v5452
      %v6127 = vpack.c.bf16 %v5463, %v5460
      %v6128 = vpack.c.bf16 %v5471, %v5468
      %v6129 = vpack.c.bf16 %v5479, %v5476
      %v6130 = vpack.c.bf16 %v5532, %v5529
      %v6131 = vpack.c.bf16 %v5540, %v5537
      %v6132 = vpack.c.bf16 %v5548, %v5545
      %v6133 = vpack.c.bf16 %v5556, %v5553
      %v6134 = vpack.c.bf16 %v5609, %v5606
      %v6135 = vpack.c.bf16 %v5617, %v5614
      %v6136 = vpack.c.bf16 %v5625, %v5622
      %v6137 = vpack.c.bf16 %v5633, %v5630
      %v6138 = vpack.c.bf16 %v5686, %v5683
      %v6139 = vpack.c.bf16 %v5694, %v5691
      %v6140 = vpack.c.bf16 %v5702, %v5699
      %v6141 = vpack.c.bf16 %v5710, %v5707
      %v6142 = vpack.c.bf16 %v5763, %v5760
      %v6143 = vpack.c.bf16 %v5771, %v5768
      %v6144 = vpack.c.bf16 %v5779, %v5776
      %v6145 = vpack.c.bf16 %v5787, %v5784
      %v6146 = vpack.c.bf16 %v5840, %v5837
      %v6147 = vpack.c.bf16 %v5848, %v5845
      %v6148 = vpack.c.bf16 %v5856, %v5853
      %v6149 = vpack.c.bf16 %v5864, %v5861
      %v6150 = vpack.c.bf16 %v5917, %v5914
      %v6151 = vpack.c.bf16 %v5925, %v5922
      %v6152 = vpack.c.bf16 %v5933, %v5930
      %v6153 = vpack.c.bf16 %v5941, %v5938
      %v6154 = vpack.c.bf16 %v5994, %v5991
      %v6155 = vpack.c.bf16 %v6002, %v5999
      %v6156 = vpack.c.bf16 %v6010, %v6007
      %v6157 = vpack.c.bf16 %v6018, %v6015
      %v6158 = vpack.c.bf16 %v6071, %v6068
      %v6159 = vpack.c.bf16 %v6079, %v6076
      %v6160 = vpack.c.bf16 %v6087, %v6084
      %v6161 = vpack.c.bf16 %v6095, %v6092
      %6178 = vrot.lane.b32.xlu0 %v6114, 32
      %v6179 = vpop.permute.xlu0 %6178
      %6180 = vrot.lane.b32.xlu0 %v6115, 32
      %v6181 = vpop.permute.xlu0 %6180
      %6182 = vrot.lane.b32.xlu0 %v6116, 32
      %v6183 = vpop.permute.xlu0 %6182
      %6184 = vrot.lane.b32.xlu0 %v6117, 32
      %v6185 = vpop.permute.xlu0 %6184
      %6186 = vrot.lane.b32.xlu0 %v6118, 32
      %v6187 = vpop.permute.xlu0 %6186
      %6188 = vrot.lane.b32.xlu0 %v6119, 32
      %v6189 = vpop.permute.xlu0 %6188
      %6190 = vrot.lane.b32.xlu0 %v6120, 32
      %v6191 = vpop.permute.xlu0 %6190
      %6192 = vrot.lane.b32.xlu0 %v6121, 32
      %v6193 = vpop.permute.xlu0 %6192
      %6194 = vrot.lane.b32.xlu0 %v6122, 32
      %v6195 = vpop.permute.xlu0 %6194
      %6196 = vrot.lane.b32.xlu0 %v6123, 32
      %v6197 = vpop.permute.xlu0 %6196
      %6198 = vrot.lane.b32.xlu0 %v6124, 32
      %v6199 = vpop.permute.xlu0 %6198
      %6200 = vrot.lane.b32.xlu0 %v6125, 32
      %v6201 = vpop.permute.xlu0 %6200
      %6202 = vrot.lane.b32.xlu0 %v6126, 32
      %v6203 = vpop.permute.xlu0 %6202
      %6204 = vrot.lane.b32.xlu0 %v6127, 32
      %v6205 = vpop.permute.xlu0 %6204
      %6206 = vrot.lane.b32.xlu0 %v6128, 32
      %v6207 = vpop.permute.xlu0 %6206
      %6208 = vrot.lane.b32.xlu0 %v6129, 32
      %v6209 = vpop.permute.xlu0 %6208
      %6226 = vrot.lane.b32.xlu0 %v6130, 64
      %v6227 = vpop.permute.xlu0 %6226
      %6228 = vrot.lane.b32.xlu0 %v6131, 64
      %v6229 = vpop.permute.xlu0 %6228
      %6230 = vrot.lane.b32.xlu0 %v6132, 64
      %v6231 = vpop.permute.xlu0 %6230
      %6232 = vrot.lane.b32.xlu0 %v6133, 64
      %v6233 = vpop.permute.xlu0 %6232
      %6234 = vrot.lane.b32.xlu0 %v6134, 64
      %v6235 = vpop.permute.xlu0 %6234
      %6236 = vrot.lane.b32.xlu0 %v6135, 64
      %v6237 = vpop.permute.xlu0 %6236
      %6238 = vrot.lane.b32.xlu0 %v6136, 64
      %v6239 = vpop.permute.xlu0 %6238
      %6240 = vrot.lane.b32.xlu0 %v6137, 64
      %v6241 = vpop.permute.xlu0 %6240
      %6242 = vrot.lane.b32.xlu0 %v6138, 64
      %v6243 = vpop.permute.xlu0 %6242
      %6244 = vrot.lane.b32.xlu0 %v6139, 64
      %v6245 = vpop.permute.xlu0 %6244
      %6246 = vrot.lane.b32.xlu0 %v6140, 64
      %v6247 = vpop.permute.xlu0 %6246
      %6248 = vrot.lane.b32.xlu0 %v6141, 64
      %v6249 = vpop.permute.xlu0 %6248
      %6250 = vrot.lane.b32.xlu0 %v6142, 64
      %v6251 = vpop.permute.xlu0 %6250
      %6252 = vrot.lane.b32.xlu0 %v6143, 64
      %v6253 = vpop.permute.xlu0 %6252
      %6254 = vrot.lane.b32.xlu0 %v6144, 64
      %v6255 = vpop.permute.xlu0 %6254
      %6256 = vrot.lane.b32.xlu0 %v6145, 64
      %v6257 = vpop.permute.xlu0 %6256
      %6274 = vrot.lane.b32.xlu0 %v6146, 96
      %v6275 = vpop.permute.xlu0 %6274
      %6276 = vrot.lane.b32.xlu0 %v6147, 96
      %v6277 = vpop.permute.xlu0 %6276
      %6278 = vrot.lane.b32.xlu0 %v6148, 96
      %v6279 = vpop.permute.xlu0 %6278
      %6280 = vrot.lane.b32.xlu0 %v6149, 96
      %v6281 = vpop.permute.xlu0 %6280
      %6282 = vrot.lane.b32.xlu0 %v6150, 96
      %v6283 = vpop.permute.xlu0 %6282
      %6284 = vrot.lane.b32.xlu0 %v6151, 96
      %v6285 = vpop.permute.xlu0 %6284
      %6286 = vrot.lane.b32.xlu0 %v6152, 96
      %v6287 = vpop.permute.xlu0 %6286
      %6288 = vrot.lane.b32.xlu0 %v6153, 96
      %v6289 = vpop.permute.xlu0 %6288
      %6290 = vrot.lane.b32.xlu0 %v6154, 96
      %v6291 = vpop.permute.xlu0 %6290
      %6292 = vrot.lane.b32.xlu0 %v6155, 96
      %v6293 = vpop.permute.xlu0 %6292
      %6294 = vrot.lane.b32.xlu0 %v6156, 96
      %v6295 = vpop.permute.xlu0 %6294
      %6296 = vrot.lane.b32.xlu0 %v6157, 96
      %v6297 = vpop.permute.xlu0 %6296
      %6298 = vrot.lane.b32.xlu0 %v6158, 96
      %v6299 = vpop.permute.xlu0 %6298
      %6300 = vrot.lane.b32.xlu0 %v6159, 96
      %v6301 = vpop.permute.xlu0 %6300
      %6302 = vrot.lane.b32.xlu0 %v6160, 96
      %v6303 = vpop.permute.xlu0 %6302
      %6304 = vrot.lane.b32.xlu0 %v6161, 96
      %v6305 = vpop.permute.xlu0 %6304
      %v6308 = vsel %vm1808, %v6098, %v6179
      %v6311 = vsel %vm1808, %v6099, %v6181
      %v6314 = vsel %vm1808, %v6100, %v6183
      %v6317 = vsel %vm1808, %v6101, %v6185
      %v6320 = vsel %vm1808, %v6102, %v6187
      %v6323 = vsel %vm1808, %v6103, %v6189
      %v6326 = vsel %vm1808, %v6104, %v6191
      %v6329 = vsel %vm1808, %v6105, %v6193
      %v6332 = vsel %vm1808, %v6106, %v6195
      %v6335 = vsel %vm1808, %v6107, %v6197
      %v6338 = vsel %vm1808, %v6108, %v6199
      %v6341 = vsel %vm1808, %v6109, %v6201
      %v6344 = vsel %vm1808, %v6110, %v6203
      %v6347 = vsel %vm1808, %v6111, %v6205
      %v6350 = vsel %vm1808, %v6112, %v6207
      %v6353 = vsel %vm1808, %v6113, %v6209
      %v6355 = vsel %vm3393, %v6308, %v6227
      %v6357 = vsel %vm3393, %v6311, %v6229
      %v6359 = vsel %vm3393, %v6314, %v6231
      %v6361 = vsel %vm3393, %v6317, %v6233
      %v6363 = vsel %vm3393, %v6320, %v6235
      %v6365 = vsel %vm3393, %v6323, %v6237
      %v6367 = vsel %vm3393, %v6326, %v6239
      %v6369 = vsel %vm3393, %v6329, %v6241
      %v6371 = vsel %vm3393, %v6332, %v6243
      %v6373 = vsel %vm3393, %v6335, %v6245
      %v6375 = vsel %vm3393, %v6338, %v6247
      %v6377 = vsel %vm3393, %v6341, %v6249
      %v6379 = vsel %vm3393, %v6344, %v6251
      %v6381 = vsel %vm3393, %v6347, %v6253
      %v6383 = vsel %vm3393, %v6350, %v6255
      %v6385 = vsel %vm3393, %v6353, %v6257
      %vm6386 = vcmask 785408
      %v6388 = vsel %vm6386, %v6355, %v6275
      %v6391 = vsel %vm6386, %v6357, %v6277
      %v6394 = vsel %vm6386, %v6359, %v6279
      %v6397 = vsel %vm6386, %v6361, %v6281
      %v6400 = vsel %vm6386, %v6363, %v6283
      %v6403 = vsel %vm6386, %v6365, %v6285
      %v6406 = vsel %vm6386, %v6367, %v6287
      %v6409 = vsel %vm6386, %v6369, %v6289
      %v6412 = vsel %vm6386, %v6371, %v6291
      %v6415 = vsel %vm6386, %v6373, %v6293
      %v6418 = vsel %vm6386, %v6375, %v6295
      %v6421 = vsel %vm6386, %v6377, %v6297
      %v6424 = vsel %vm6386, %v6379, %v6299
      %v6427 = vsel %vm6386, %v6381, %v6301
      %v6430 = vsel %vm6386, %v6383, %v6303
      %v6433 = vsel %vm6386, %v6385, %v6305
      %v6435 = vld [vmem:[%s5] sm:$0xf]
      %v6436 = vld [vmem:[%s5 + $0x4] sm:$0xf]
      %v6437 = vld [vmem:[%s5 + $0x8] sm:$0xf]
      %v6438 = vld [vmem:[%s5 + $0xc] sm:$0xf]
      %v6439 = vld [vmem:[%s5 + $0x10] sm:$0xf]
      %v6440 = vld [vmem:[%s5 + $0x14] sm:$0xf]
      %v6441 = vld [vmem:[%s5 + $0x18] sm:$0xf]
      %v6442 = vld [vmem:[%s5 + $0x1c] sm:$0xf]
      %v6443 = vld [vmem:[%s5 + $0x20] sm:$0xf]
      %v6444 = vld [vmem:[%s5 + $0x24] sm:$0xf]
      %v6445 = vld [vmem:[%s5 + $0x28] sm:$0xf]
      %v6446 = vld [vmem:[%s5 + $0x2c] sm:$0xf]
      %v6447 = vld [vmem:[%s5 + $0x30] sm:$0xf]
      %v6448 = vld [vmem:[%s5 + $0x34] sm:$0xf]
      %v6449 = vld [vmem:[%s5 + $0x38] sm:$0xf]
      %v6450 = vld [vmem:[%s5 + $0x3c] sm:$0xf]
      %v6451 = vld [vmem:[%s6] sm:$0x1]
      %v6453 = vlaneseq
      %v6454 = vshrl.u32 %v6453, 7
      %v6455 = vsub.s32 0, %v6454
      %v6456 = vrot.slane %v6451, %v6455
      %v6474 = vunpack.c.l.b16 %v6435
      %v6475 = vunpack.c.l.b16 %v6436
      %v6476 = vunpack.c.l.b16 %v6437
      %v6477 = vunpack.c.l.b16 %v6438
      %v6478 = vunpack.c.l.b16 %v6439
      %v6479 = vunpack.c.l.b16 %v6440
      %v6480 = vunpack.c.l.b16 %v6441
      %v6481 = vunpack.c.l.b16 %v6442
      %v6482 = vunpack.c.l.b16 %v6443
      %v6483 = vunpack.c.l.b16 %v6444
      %v6484 = vunpack.c.l.b16 %v6445
      %v6485 = vunpack.c.l.b16 %v6446
      %v6486 = vunpack.c.l.b16 %v6447
      %v6487 = vunpack.c.l.b16 %v6448
      %v6488 = vunpack.c.l.b16 %v6449
      %v6489 = vunpack.c.l.b16 %v6450
      %v6490 = vpack.c.b16 %v6475, %v6474
      %v6491 = vpack.c.b16 %v6477, %v6476
      %v6492 = vpack.c.b16 %v6479, %v6478
      %v6493 = vpack.c.b16 %v6481, %v6480
      %v6494 = vpack.c.b16 %v6483, %v6482
      %v6495 = vpack.c.b16 %v6485, %v6484
      %v6496 = vpack.c.b16 %v6487, %v6486
      %v6497 = vpack.c.b16 %v6489, %v6488
      %6506 = vmatprep.subr.bf16.mxu0 0
      %6507 = vmatpush1.bf16.msra.mxu0 %v6497
      %6508 = vmatprep.subr.bf16.mxu0 0
      %6509 = vmatpush1.bf16.msra.mxu0 %v6496
      %6510 = vmatprep.subr.bf16.mxu0 0
      %6511 = vmatpush1.bf16.msra.mxu0 %v6495
      %6512 = vmatprep.subr.bf16.mxu0 0
      %6513 = vmatpush1.bf16.msra.mxu0 %v6494
      %6514 = vmatprep.subr.bf16.mxu0 0
      %6515 = vmatpush1.bf16.msra.mxu0 %v6493
      %6516 = vmatprep.subr.bf16.mxu0 0
      %6517 = vmatpush1.bf16.msra.mxu0 %v6492
      %6518 = vmatprep.subr.bf16.mxu0 0
      %6519 = vmatpush1.bf16.msra.mxu0 %v6491
      %6520 = vmatprep.subr.bf16.mxu0 0
      %6521 = vmatpush1.bf16.msra.mxu0 %v6490
      %6522 = vmatprep.subr.bf16.mxu0 0
      %6523 = vmatpush2.bf16.msra.mxu0 0
      %6524 = vmatprep.subr.bf16.mxu0 0
      %6525 = vmatpush2.bf16.msra.mxu0 0
      %6526 = vmatprep.subr.bf16.mxu0 0
      %6527 = vmatpush2.bf16.msra.mxu0 0
      %6528 = vmatprep.subr.bf16.mxu0 0
      %6529 = vmatpush2.bf16.msra.mxu0 0
      %6530 = vmatprep.subr.bf16.mxu0 0
      %6531 = vmatpush2.bf16.msra.mxu0 0
      %6532 = vmatprep.subr.bf16.mxu0 0
      %6533 = vmatpush2.bf16.msra.mxu0 0
      %6534 = vmatprep.subr.bf16.mxu0 0
      %6535 = vmatpush2.bf16.msra.mxu0 0
      %6536 = vmatprep.subr.bf16.mxu0 0
      %6537 = vmatpush2.bf16.msra.mxu0 0
      %6538 = vmatprep.mubr.bf16.mxu0 0
      %6539 = vmatmul.mubr.bf16.gmra.mxu0 %v6388
      %v6540 = vpop.f32.mrf.mxu0
      %v6541 = vadd.f32 %v6456, %v6540
      %v6542 = vpop.f32.mrf.mxu0
      %v6543 = vpop.f32.mrf.mxu0
      %v6544 = vadd.f32 %v6456, %v6543
      %v6545 = vpop.f32.mrf.mxu0
      %6546 = vmatprep.mubr.bf16.mxu0 0
      %6547 = vmatmul.mubr.bf16.gmra.mxu0 %v6391
      %v6548 = vpop.f32.mrf.mxu0
      %v6549 = vadd.f32 %v6456, %v6548
      %v6550 = vpop.f32.mrf.mxu0
      %v6551 = vpop.f32.mrf.mxu0
      %v6552 = vadd.f32 %v6456, %v6551
      %v6553 = vpop.f32.mrf.mxu0
      %6554 = vmatprep.mubr.bf16.mxu0 0
      %6555 = vmatmul.mubr.bf16.gmra.mxu0 %v6394
      %v6556 = vpop.f32.mrf.mxu0
      %v6557 = vadd.f32 %v6456, %v6556
      %v6558 = vpop.f32.mrf.mxu0
      %v6559 = vpop.f32.mrf.mxu0
      %v6560 = vadd.f32 %v6456, %v6559
      %v6561 = vpop.f32.mrf.mxu0
      %6562 = vmatprep.mubr.bf16.mxu0 0
      %6563 = vmatmul.mubr.bf16.gmra.mxu0 %v6397
      %v6564 = vpop.f32.mrf.mxu0
      %v6565 = vadd.f32 %v6456, %v6564
      %v6566 = vpop.f32.mrf.mxu0
      %v6567 = vpop.f32.mrf.mxu0
      %v6568 = vadd.f32 %v6456, %v6567
      %v6569 = vpop.f32.mrf.mxu0
      %6570 = vmatprep.mubr.bf16.mxu0 0
      %6571 = vmatmul.mubr.bf16.gmra.mxu0 %v6400
      %v6572 = vpop.f32.mrf.mxu0
      %v6573 = vadd.f32 %v6456, %v6572
      %v6574 = vpop.f32.mrf.mxu0
      %v6575 = vpop.f32.mrf.mxu0
      %v6576 = vadd.f32 %v6456, %v6575
      %v6577 = vpop.f32.mrf.mxu0
      %6578 = vmatprep.mubr.bf16.mxu0 0
      %6579 = vmatmul.mubr.bf16.gmra.mxu0 %v6403
      %v6580 = vpop.f32.mrf.mxu0
      %v6581 = vadd.f32 %v6456, %v6580
      %v6582 = vpop.f32.mrf.mxu0
      %v6583 = vpop.f32.mrf.mxu0
      %v6584 = vadd.f32 %v6456, %v6583
      %v6585 = vpop.f32.mrf.mxu0
      %6586 = vmatprep.mubr.bf16.mxu0 0
      %6587 = vmatmul.mubr.bf16.gmra.mxu0 %v6406
      %v6588 = vpop.f32.mrf.mxu0
      %v6589 = vadd.f32 %v6456, %v6588
      %v6590 = vpop.f32.mrf.mxu0
      %v6591 = vpop.f32.mrf.mxu0
      %v6592 = vadd.f32 %v6456, %v6591
      %v6593 = vpop.f32.mrf.mxu0
      %6594 = vmatprep.mubr.bf16.mxu0 0
      %6595 = vmatmul.mubr.bf16.gmra.mxu0 %v6409
      %v6596 = vpop.f32.mrf.mxu0
      %v6597 = vadd.f32 %v6456, %v6596
      %v6598 = vpop.f32.mrf.mxu0
      %v6599 = vpop.f32.mrf.mxu0
      %v6600 = vadd.f32 %v6456, %v6599
      %v6601 = vpop.f32.mrf.mxu0
      %6602 = vmatprep.mubr.bf16.mxu0 0
      %6603 = vmatmul.mubr.bf16.gmra.mxu0 %v6412
      %v6604 = vpop.f32.mrf.mxu0
      %v6605 = vadd.f32 %v6456, %v6604
      %v6606 = vpop.f32.mrf.mxu0
      %v6607 = vpop.f32.mrf.mxu0
      %v6608 = vadd.f32 %v6456, %v6607
      %v6609 = vpop.f32.mrf.mxu0
      %6610 = vmatprep.mubr.bf16.mxu0 0
      %6611 = vmatmul.mubr.bf16.gmra.mxu0 %v6415
      %v6612 = vpop.f32.mrf.mxu0
      %v6613 = vadd.f32 %v6456, %v6612
      %v6614 = vpop.f32.mrf.mxu0
      %v6615 = vpop.f32.mrf.mxu0
      %v6616 = vadd.f32 %v6456, %v6615
      %v6617 = vpop.f32.mrf.mxu0
      %6618 = vmatprep.mubr.bf16.mxu0 0
      %6619 = vmatmul.mubr.bf16.gmra.mxu0 %v6418
      %v6620 = vpop.f32.mrf.mxu0
      %v6621 = vadd.f32 %v6456, %v6620
      %v6622 = vpop.f32.mrf.mxu0
      %v6623 = vpop.f32.mrf.mxu0
      %v6624 = vadd.f32 %v6456, %v6623
      %v6625 = vpop.f32.mrf.mxu0
      %6626 = vmatprep.mubr.bf16.mxu0 0
      %6627 = vmatmul.mubr.bf16.gmra.mxu0 %v6421
      %v6628 = vpop.f32.mrf.mxu0
      %v6629 = vadd.f32 %v6456, %v6628
      %v6630 = vpop.f32.mrf.mxu0
      %v6631 = vpop.f32.mrf.mxu0
      %v6632 = vadd.f32 %v6456, %v6631
      %v6633 = vpop.f32.mrf.mxu0
      %6634 = vmatprep.mubr.bf16.mxu0 0
      %6635 = vmatmul.mubr.bf16.gmra.mxu0 %v6424
      %v6636 = vpop.f32.mrf.mxu0
      %v6637 = vadd.f32 %v6456, %v6636
      %v6638 = vpop.f32.mrf.mxu0
      %v6639 = vpop.f32.mrf.mxu0
      %v6640 = vadd.f32 %v6456, %v6639
      %v6641 = vpop.f32.mrf.mxu0
      %6642 = vmatprep.mubr.bf16.mxu0 0
      %6643 = vmatmul.mubr.bf16.gmra.mxu0 %v6427
      %v6644 = vpop.f32.mrf.mxu0
      %v6645 = vadd.f32 %v6456, %v6644
      %v6646 = vpop.f32.mrf.mxu0
      %v6647 = vpop.f32.mrf.mxu0
      %v6648 = vadd.f32 %v6456, %v6647
      %v6649 = vpop.f32.mrf.mxu0
      %6650 = vmatprep.mubr.bf16.mxu0 0
      %6651 = vmatmul.mubr.bf16.gmra.mxu0 %v6430
      %v6652 = vpop.f32.mrf.mxu0
      %v6653 = vadd.f32 %v6456, %v6652
      %v6654 = vpop.f32.mrf.mxu0
      %v6655 = vpop.f32.mrf.mxu0
      %v6656 = vadd.f32 %v6456, %v6655
      %v6657 = vpop.f32.mrf.mxu0
      %6658 = vmatprep.mubr.bf16.mxu0 0
      %6659 = vmatmul.mubr.bf16.gmra.mxu0 %v6433
      %v6660 = vpop.f32.mrf.mxu0
      %v6661 = vadd.f32 %v6456, %v6660
      %v6662 = vpop.f32.mrf.mxu0
      %v6663 = vpop.f32.mrf.mxu0
      %v6664 = vadd.f32 %v6456, %v6663
      %v6665 = vpop.f32.mrf.mxu0
      %6666 = vdwg.mxu0
      %v6667 = vadd.f32 %v334, %v6541
      %v6668 = vadd.f32 %v335, %v6573
      %v6669 = vadd.f32 %v336, %v6544
      %v6670 = vadd.f32 %v337, %v6576
      %v6671 = vadd.f32 %v338, %v6549
      %v6672 = vadd.f32 %v339, %v6581
      %v6673 = vadd.f32 %v340, %v6552
      %v6674 = vadd.f32 %v341, %v6584
      %v6675 = vadd.f32 %v342, %v6557
      %v6676 = vadd.f32 %v343, %v6589
      %v6677 = vadd.f32 %v344, %v6560
      %v6678 = vadd.f32 %v345, %v6592
      %v6679 = vadd.f32 %v346, %v6565
      %v6680 = vadd.f32 %v347, %v6597
      %v6681 = vadd.f32 %v348, %v6568
      %v6682 = vadd.f32 %v349, %v6600
      %v6683 = vadd.f32 %v350, %v6605
      %v6684 = vadd.f32 %v351, %v6637
      %v6685 = vadd.f32 %v352, %v6608
      %v6686 = vadd.f32 %v353, %v6640
      %v6687 = vadd.f32 %v354, %v6613
      %v6688 = vadd.f32 %v355, %v6645
      %v6689 = vadd.f32 %v356, %v6616
      %v6690 = vadd.f32 %v357, %v6648
      %v6691 = vadd.f32 %v358, %v6621
      %v6692 = vadd.f32 %v359, %v6653
      %v6693 = vadd.f32 %v360, %v6624
      %v6694 = vadd.f32 %v361, %v6656
      %v6695 = vadd.f32 %v362, %v6629
      %v6696 = vadd.f32 %v363, %v6661
      %v6697 = vadd.f32 %v364, %v6632
      %v6698 = vadd.f32 %v365, %v6664
      %6699 = vst [vmem:[%s332] sm:$0xff] %v6667
      %6700 = vst [vmem:[%s332 + $0x8] sm:$0xff] %v6668
      %6701 = vst [vmem:[%s332 + $0x10] sm:$0xff] %v6669
      %6702 = vst [vmem:[%s332 + $0x18] sm:$0xff] %v6670
      %6703 = vst [vmem:[%s332 + $0x20] sm:$0xff] %v6671
      %6704 = vst [vmem:[%s332 + $0x28] sm:$0xff] %v6672
      %6705 = vst [vmem:[%s332 + $0x30] sm:$0xff] %v6673
      %6706 = vst [vmem:[%s332 + $0x38] sm:$0xff] %v6674
      %6707 = vst [vmem:[%s332 + $0x40] sm:$0xff] %v6675
      %6708 = vst [vmem:[%s332 + $0x48] sm:$0xff] %v6676
      %6709 = vst [vmem:[%s332 + $0x50] sm:$0xff] %v6677
      %6710 = vst [vmem:[%s332 + $0x58] sm:$0xff] %v6678
      %6711 = vst [vmem:[%s332 + $0x60] sm:$0xff] %v6679
      %6712 = vst [vmem:[%s332 + $0x68] sm:$0xff] %v6680
      %6713 = vst [vmem:[%s332 + $0x70] sm:$0xff] %v6681
      %6714 = vst [vmem:[%s332 + $0x78] sm:$0xff] %v6682
      %6715 = vst [vmem:[%s332 + $0x80] sm:$0xff] %v6683
      %6716 = vst [vmem:[%s332 + $0x88] sm:$0xff] %v6684
      %6717 = vst [vmem:[%s332 + $0x90] sm:$0xff] %v6685
      %6718 = vst [vmem:[%s332 + $0x98] sm:$0xff] %v6686
      %6719 = vst [vmem:[%s332 + $0xa0] sm:$0xff] %v6687
      %6720 = vst [vmem:[%s332 + $0xa8] sm:$0xff] %v6688
      %6721 = vst [vmem:[%s332 + $0xb0] sm:$0xff] %v6689
      %6722 = vst [vmem:[%s332 + $0xb8] sm:$0xff] %v6690
      %6723 = vst [vmem:[%s332 + $0xc0] sm:$0xff] %v6691
      %6724 = vst [vmem:[%s332 + $0xc8] sm:$0xff] %v6692
      %6725 = vst [vmem:[%s332 + $0xd0] sm:$0xff] %v6693
      %6726 = vst [vmem:[%s332 + $0xd8] sm:$0xff] %v6694
      %6727 = vst [vmem:[%s332 + $0xe0] sm:$0xff] %v6695
      %6728 = vst [vmem:[%s332 + $0xe8] sm:$0xff] %v6696
      %6729 = vst [vmem:[%s332 + $0xf0] sm:$0xff] %v6697
      %6730 = vst [vmem:[%s332 + $0xf8] sm:$0xff] %v6698
      %p6731 = scmp.lt.s32.totalorder %s20, 1
      %s6732 = scalar_select %p6731, %s20, 1
      %s6733 = smul.addr %s6732, 32
      %s6734 = smul.addr %s6733, 8
      %s6735 = scalar_lea.vmem %s9, %s6734
      // Predicated region
      $region57: #{swin_block_pallas.2} parent=55 // pred_check
        %p6736 = pneg %p232
      $region58: #{swin_block_pallas.2} parent=55 // pred_check_branch
        %6738 = sbr.rel (%p6736) target = $region60
      $region59: #{swin_block_pallas.2} parent=55 // pred_region
        _
      $region60: #{swin_block_pallas.2} parent=55 // pred_fallthru
        _
    $region56: #{swin_block_pallas.2} parent=5 // pred_fallthru
      _
    %p6739 = scmp.le.s32.totalorder 2, %s15
    // Predicated region
    $region61: #{swin_block_pallas.2} parent=5 // pred_check
      %p6740 = pneg %p6739
    $region62: #{swin_block_pallas.2} parent=5 // pred_check_branch
      %6742 = sbr.rel (%p6740) target = $region64
    $region63: #{swin_block_pallas.2} parent=5 // pred_region
      %s6743 = ssub.s32 %s15, 2
      // Predicated region
      $region65: #{swin_block_pallas.2} parent=63 // pred_check
        %p6744 = pneg %p238
      $region66: #{swin_block_pallas.2} parent=63 // pred_check_branch
        %6746 = sbr.rel (%p6744) target = $region68
      $region67: #{swin_block_pallas.2} parent=63 // pred_region
        %p6747 = scmp.lt.s32.totalorder %s21, 1
        %s6748 = scalar_select %p6747, %s21, 1
        %s6749 = smul.addr %s6748, 32
        %s6750 = smul.addr %s6749, 8
        %s6751 = scalar_lea.vmem %s9, %s6750
      $region68: #{swin_block_pallas.2} parent=63 // pred_fallthru
        _
    $region64: #{swin_block_pallas.2} parent=5 // pred_fallthru
      _
  $region6: #{swin_block_pallas.2} parent=0 // loop_footer
    %s19 = sadd.s32 1, %s15
  $region7: #{swin_block_pallas.2} parent=0 // loop_footer_branch
    %14 = sbr.rel target = $region3
  $region8: #{swin_block_pallas.2} parent=0 // loop_exit
    _

</llo_original>
